<compile_context>
chip_gen: v5e
topology: v5e:2x2
jax: 0.10.0
libtpu: 0.0.40
codegen_flags: <defaults>
</compile_context>

<pallas_src>
import jax
import jax.numpy as jnp
from jax import lax
from jax.experimental import pallas as pl
from jax.experimental.pallas import tpu as pltpu

SELU_ALPHA = 1.6732632423543772
SELU_SCALE = 1.0507009873554805
_HI = lax.Precision.HIGHEST


def _selu(x):
    return SELU_SCALE * jnp.where(x > 0, x, SELU_ALPHA * (jnp.exp(x) - 1.0))


def _residual_block_kernel(x_ref,      # (Nb, C0, H, W)      VMEM f32
                           b1_ref,     # (2, C0, W, C1*W)    conv1 (bn2-folded) band weights
                           b2_ref,     # (2, C1*W, C1*W)     conv2 band weights
                           bd_ref,     # (C0, W, C1*W)       conv_downsample band weights
                           s0_ref,     # (Nb*(H+1), Nb*H)    row shift (kh=0, zero top pad)
                           s1_ref,     # (Nb*(H+1), Nb*H)    row shift (kh=1, zero bottom pad)
                           r0_ref,     # (Nb*H, Nb*(H+1))    conv2 row select r
                           r1_ref,     # (Nb*H, Nb*(H+1))    conv2 row select r+1
                           sel_ref,    # (3, C1*W, C1*Wp)    maxpool column selections
                           sh1_ref,    # (1, C1*W)           b1*scale2 + shift2 (per lane)
                           bres_ref,   # (1, C1*W)           b2 + bd (per lane)
                           out_ref):   # (Nb*H, C1*Wp)
    """One grid step = Nb images; every conv and the pool run as MXU matmuls."""
    Nb, C0, H, W = x_ref.shape
    L1 = b1_ref.shape[-1]          # C1*W: output channels stacked on the lane axis
    MH = Nb * H
    f32 = jnp.float32

    x = x_ref[...].astype(f32)                                   # (Nb, C0, H, W)

    # conv1 taps + conv_downsample as channel-contracting banded matmuls.
    # (width zero-padding is encoded in the band structure; no padded input needed)
    t0 = jnp.zeros((MH, L1), f32)       # conv1 tap kh=0 (uses input row r-1)
    t1 = jnp.zeros((MH, L1), f32)       # conv1 tap kh=1 (uses input row r)
    idn = jnp.zeros((MH, L1), f32)      # conv_downsample (1x3)
    for ci in range(C0):
        xc = x[:, ci].reshape(MH, W)                             # (Nb*H, W); H%8==0 -> free
        t0 = t0 + jnp.dot(xc, b1_ref[0, ci], precision=_HI, preferred_element_type=f32)
        t1 = t1 + jnp.dot(xc, b1_ref[1, ci], precision=_HI, preferred_element_type=f32)
        idn = idn + jnp.dot(xc, bd_ref[ci], precision=_HI, preferred_element_type=f32)

    # conv1 height padding (pad_h=1, k_h=2): per-image row shifts via block-diagonal
    # one-hot matmuls (exact for the Nb-packed row layout), then folded bn2 shift + SELU.
    y = (jnp.dot(s0_ref[...], t0, precision=_HI, preferred_element_type=f32) +
         jnp.dot(s1_ref[...], t1, precision=_HI, preferred_element_type=f32) +
         sh1_ref[...])                                           # (Nb*(H+1), C1*W)
    y = _selu(y)

    # conv2: valid in height (row selects), banded in width+channels (one matmul per kh).
    z0 = jnp.dot(r0_ref[...], y, precision=_HI, preferred_element_type=f32)
    z1 = jnp.dot(r1_ref[...], y, precision=_HI, preferred_element_type=f32)
    s = (jnp.dot(z0, b2_ref[0], precision=_HI, preferred_element_type=f32) +
         jnp.dot(z1, b2_ref[1], precision=_HI, preferred_element_type=f32) +
         idn + bres_ref[...])                                    # (Nb*H, C1*W)

    # MaxPool2d((1,3)): three block-diagonal column selections + elementwise max,
    # a single lane-dense (Nb*H, C1*Wp) store for the whole step.
    m = jnp.maximum(
        jnp.maximum(jnp.dot(s, sel_ref[0], precision=_HI, preferred_element_type=f32),
                    jnp.dot(s, sel_ref[1], precision=_HI, preferred_element_type=f32)),
        jnp.dot(s, sel_ref[2], precision=_HI, preferred_element_type=f32))
    out_ref[...] = m


def _pick_batch_block(N, H):
    # Pack several images per grid step (bigger DMA blocks, fewer per-step fixed
    # costs) while (a) keeping the Nb^2-sized block-diagonal shift matrices tiny
    # (VMEM-safe even on v7x's 32 MiB scoped budget) and (b) keeping >= 2-4 grid
    # steps when the batch allows it, so v7x gets DMA/compute overlap on both TCs.
    cap = 16
    if N >= 8:
        cap = min(cap, N // 4)
    elif N >= 4:
        cap = min(cap, N // 2)
    nb = max(d for d in range(1, N + 1) if N % d == 0 and d <= cap)
    if (nb * H) % 8 != 0:
        nb = N        # gridded out-block needs sublane-aligned rows; fall back to 1 step
    return nb


def residual_block_forward(x, params, *, batch_block=None):
    """first=False / downsample=True path of Residual_block, bn2 in eval mode."""
    N, C0, H, W = x.shape
    C1 = params["b1"].shape[0]
    H1, Wp = H + 1, W // 3
    L1, Lp = C1 * W, C1 * Wp
    f32 = jnp.float32

    Nb = _pick_batch_block(N, H) if batch_block is None else batch_block
    G = N // Nb

    # ---- fold bn2/biases; pack conv weights into banded matrices (hoisted constants) ----
    scale2 = params["scale2"].astype(f32)
    w1 = params["w1"].astype(f32) * scale2[:, None, None, None]     # (C1, C0, 2, 3)
    w2 = params["w2"].astype(f32)                                   # (C1, C1, 2, 3)
    wd = params["wd"].astype(f32)[:, :, 0, :]                       # (C1, C0, 3)
    shift1 = params["b1"].astype(f32) * scale2 + params["shift2"].astype(f32)
    bres = (params["b2"] + params["bd"]).astype(f32)

    # width-tap one-hot shift matrices: M[k, a, b] = 1  iff  a == b + k - 1 (pad_w = 1)
    M = jnp.stack([jnp.eye(W, k=1, dtype=f32),
                   jnp.eye(W, dtype=f32),
                   jnp.eye(W, k=-1, dtype=f32)])                    # (3, W, W)
    b1m = jnp.einsum('oihk,kab->hiaob', w1, M).reshape(2, C0, W, L1)
    b2m = jnp.einsum('oihk,kab->hiaob', w2, M).reshape(2, L1, L1)
    bdm = jnp.einsum('oik,kab->iaob', wd, M).reshape(C0, W, L1)

    # per-image row shift/select matrices, block-diagonal over the packed batch
    eye_nb = jnp.eye(Nb, dtype=f32)
    s0 = jnp.kron(eye_nb, jnp.eye(H1, H, k=-1, dtype=f32))          # (Nb*H1, Nb*H)
    s1 = jnp.kron(eye_nb, jnp.eye(H1, H, dtype=f32))
    r0 = jnp.kron(eye_nb, jnp.eye(H, H1, dtype=f32))                # (Nb*H, Nb*H1)
    r1 = jnp.kron(eye_nb, jnp.eye(H, H1, k=1, dtype=f32))

    # MaxPool2d((1,3)) column selections, block-diagonal over output channels
    a = jnp.arange(W)[:, None]
    j = jnp.arange(Wp)[None, :]
    eye_c1 = jnp.eye(C1, dtype=f32)
    sel = jnp.stack([jnp.kron(eye_c1, (a == 3 * j + k).astype(f32)) for k in range(3)])

    sh1 = jnp.repeat(shift1, W)[None, :]                            # (1, L1)
    bres_l = jnp.repeat(bres, W)[None, :]                           # (1, L1)

    def _const_spec(arr):
        nd = arr.ndim
        return pl.BlockSpec(arr.shape, lambda g: (0,) * nd)         # fetched once

    out_flat = pl.pallas_call(
        _residual_block_kernel,
        out_shape=jax.ShapeDtypeStruct((N * H, Lp), f32),
        grid=(G,),
        in_specs=[pl.BlockSpec((Nb, C0, H, W), lambda g: (g, 0, 0, 0)),
                  _const_spec(b1m), _const_spec(b2m), _const_spec(bdm),
                  _const_spec(s0), _const_spec(s1), _const_spec(r0), _const_spec(r1),
                  _const_spec(sel), _const_spec(sh1), _const_spec(bres_l)],
        out_specs=pl.BlockSpec((Nb * H, Lp), lambda g: (g, 0)),
        compiler_params=pltpu.CompilerParams(dimension_semantics=("parallel",)),
    )(x.astype(f32), b1m, b2m, bdm, s0, s1, r0, r1, sel, sh1, bres_l)

    # layout plumbing back to the module's NCHW output
    return out_flat.reshape(N, H, C1, Wp).transpose(0, 2, 1, 3)


def _reference(x, params):
    dn = ('NCHW', 'OIHW', 'NCHW')
    y = lax.conv_general_dilated(x, params["w1"], (1, 1), [(1, 1), (1, 1)],
                                 dimension_numbers=dn, precision=_HI)
    y = y + params["b1"][None, :, None, None]
    y = y * params["scale2"][None, :, None, None] + params["shift2"][None, :, None, None]
    y = _selu(y)
    y = lax.conv_general_dilated(y, params["w2"], (1, 1), [(0, 0), (1, 1)],
                                 dimension_numbers=dn, precision=_HI)
    y = y + params["b2"][None, :, None, None]
    idn = lax.conv_general_dilated(x, params["wd"], (1, 1), [(0, 0), (1, 1)],
                                   dimension_numbers=dn, precision=_HI)
    idn = idn + params["bd"][None, :, None, None]
    s = y + idn
    n, c, h, w = s.shape
    wp = w // 3
    return s[..., :wp * 3].reshape(n, c, h, wp, 3).max(-1)


if __name__ == "__main__":
    N, C0, C1, H, W = 2, 4, 8, 16, 15          # nb_filts = [4, 8] -> downsample=True
    key = jax.random.PRNGKey(0)
    ks = jax.random.split(key, 11)

    params = dict(
        w1=0.1 * jax.random.normal(ks[0], (C1, C0, 2, 3), jnp.float32),
        b1=0.1 * jax.random.normal(ks[1], (C1,), jnp.float32),
        w2=0.1 * jax.random.normal(ks[2], (C1, C1, 2, 3), jnp.float32),
        b2=0.1 * jax.random.normal(ks[3], (C1,), jnp.float32),
        wd=0.1 * jax.random.normal(ks[4], (C1, C0, 1, 3), jnp.float32),
        bd=0.1 * jax.random.normal(ks[5], (C1,), jnp.float32),
    )
    gamma2 = 1.0 + 0.1 * jax.random.normal(ks[6], (C1,), jnp.float32)
    beta2 = 0.1 * jax.random.normal(ks[7], (C1,), jnp.float32)
    mean2 = 0.1 * jax.random.normal(ks[8], (C1,), jnp.float32)
    var2 = 1.0 + jax.random.uniform(ks[9], (C1,), jnp.float32)
    eps = 1e-5
    params["scale2"] = gamma2 * lax.rsqrt(var2 + eps)        # folded bn2 (eval mode)
    params["shift2"] = beta2 - mean2 * params["scale2"]

    x = jax.random.normal(ks[10], (N, C0, H, W), jnp.float32)

    out = jax.block_until_ready(residual_block_forward(x, params))
    print('res:', tuple(out.shape))                          # mirrors the module's print

    ref = _reference(x, params)
    assert out.shape == (N, C1, H, W // 3)
    err = float(jnp.max(jnp.abs(out - ref)))
    if err > 2e-3:
        raise SystemExit("mismatch: max abs err %e" % err)
    print("KERNEL_OK")
</pallas_src>

<mosaic_0001>
module attributes {stable_mosaic.version = 11 : i64} {
  func.func @_residual_block_kernel(%arg0: i32, %arg1: memref<2x4x16x15xf32, #tpu.memory_space<vmem>>, %arg2: memref<2x4x15x120xf32, #tpu.memory_space<vmem>>, %arg3: memref<2x120x120xf32, #tpu.memory_space<vmem>>, %arg4: memref<4x15x120xf32, #tpu.memory_space<vmem>>, %arg5: memref<34x32xf32, #tpu.memory_space<vmem>>, %arg6: memref<34x32xf32, #tpu.memory_space<vmem>>, %arg7: memref<32x34xf32, #tpu.memory_space<vmem>>, %arg8: memref<32x34xf32, #tpu.memory_space<vmem>>, %arg9: memref<3x120x40xf32, #tpu.memory_space<vmem>>, %arg10: memref<1x120xf32, #tpu.memory_space<vmem>>, %arg11: memref<1x120xf32, #tpu.memory_space<vmem>>, %arg12: memref<32x40xf32, #tpu.memory_space<vmem>>) attributes {dimension_semantics = [#tpu.dimension_semantics<parallel>], iteration_bounds = array<i64: 1>, scalar_prefetch = 0 : i64, scratch_operands = 0 : i64, tpu.core_type = #tpu.core_type<tc>, window_params = [{transform_indices = @transform_0, window_bounds = array<i64: 2, 4, 16, 15>}, {pipeline_mode = #tpu.pipeline_mode<synchronous>, transform_indices = @transform_1, window_bounds = array<i64: 2, 4, 15, 120>}, {pipeline_mode = #tpu.pipeline_mode<synchronous>, transform_indices = @transform_2, window_bounds = array<i64: 2, 120, 120>}, {pipeline_mode = #tpu.pipeline_mode<synchronous>, transform_indices = @transform_3, window_bounds = array<i64: 4, 15, 120>}, {pipeline_mode = #tpu.pipeline_mode<synchronous>, transform_indices = @transform_4, window_bounds = array<i64: 34, 32>}, {pipeline_mode = #tpu.pipeline_mode<synchronous>, transform_indices = @transform_5, window_bounds = array<i64: 34, 32>}, {pipeline_mode = #tpu.pipeline_mode<synchronous>, transform_indices = @transform_6, window_bounds = array<i64: 32, 34>}, {pipeline_mode = #tpu.pipeline_mode<synchronous>, transform_indices = @transform_7, window_bounds = array<i64: 32, 34>}, {pipeline_mode = #tpu.pipeline_mode<synchronous>, transform_indices = @transform_8, window_bounds = array<i64: 3, 120, 40>}, {pipeline_mode = #tpu.pipeline_mode<synchronous>, transform_indices = @transform_9, window_bounds = array<i64: 1, 120>}, {pipeline_mode = #tpu.pipeline_mode<synchronous>, transform_indices = @transform_10, window_bounds = array<i64: 1, 120>}, {transform_indices = @transform_11, window_bounds = array<i64: 32, 40>}]} {
    %c0 = arith.constant 0 : index
    %c0_0 = arith.constant 0 : index
    %c0_1 = arith.constant 0 : index
    %c0_2 = arith.constant 0 : index
    %0 = vector.load %arg1[%c0, %c0_0, %c0_1, %c0_2] : memref<2x4x16x15xf32, #tpu.memory_space<vmem>>, vector<2x4x16x15xf32>
    %cst = arith.constant 0.000000e+00 : f32
    %1 = vector.broadcast %cst : f32 to vector<32x120xf32>
    %cst_3 = arith.constant 0.000000e+00 : f32
    %2 = vector.broadcast %cst_3 : f32 to vector<32x120xf32>
    %cst_4 = arith.constant 0.000000e+00 : f32
    %3 = vector.broadcast %cst_4 : f32 to vector<32x120xf32>
    %4 = vector.extract_strided_slice %0 {offsets = [0, 0, 0, 0], sizes = [2, 1, 16, 15], strides = [1, 1, 1, 1]} : vector<2x4x16x15xf32> to vector<2x1x16x15xf32>
    %5 = vector.shape_cast %4 : vector<2x1x16x15xf32> to vector<2x16x15xf32>
    %6 = vector.shape_cast %5 : vector<2x16x15xf32> to vector<32x15xf32>
    %c0_5 = arith.constant 0 : index
    %c0_6 = arith.constant 0 : index
    %c0_7 = arith.constant 0 : index
    %c0_8 = arith.constant 0 : index
    %7 = vector.load %arg2[%c0_5, %c0_6, %c0_7, %c0_8] : memref<2x4x15x120xf32, #tpu.memory_space<vmem>>, vector<1x1x15x120xf32>
    %8 = vector.shape_cast %7 : vector<1x1x15x120xf32> to vector<15x120xf32>
    %cst_9 = arith.constant dense<0.000000e+00> : vector<32x120xf32>
    %9 = tpu.matmul %6, %8, %cst_9 {dimension_numbers = #tpu.dot_dimension_numbers<[1], [0], [0], [1], [0, 0, 1, 1], [], []>, precision = #tpu.contract_precision<fp32>} : vector<32x15xf32>, vector<15x120xf32>, vector<32x120xf32> -> vector<32x120xf32>
    %10 = arith.addf %1, %9 : vector<32x120xf32>
    %c1 = arith.constant 1 : index
    %c0_10 = arith.constant 0 : index
    %c0_11 = arith.constant 0 : index
    %c0_12 = arith.constant 0 : index
    %11 = vector.load %arg2[%c1, %c0_10, %c0_11, %c0_12] : memref<2x4x15x120xf32, #tpu.memory_space<vmem>>, vector<1x1x15x120xf32>
    %12 = vector.shape_cast %11 : vector<1x1x15x120xf32> to vector<15x120xf32>
    %cst_13 = arith.constant dense<0.000000e+00> : vector<32x120xf32>
    %13 = tpu.matmul %6, %12, %cst_13 {dimension_numbers = #tpu.dot_dimension_numbers<[1], [0], [0], [1], [0, 0, 1, 1], [], []>, precision = #tpu.contract_precision<fp32>} : vector<32x15xf32>, vector<15x120xf32>, vector<32x120xf32> -> vector<32x120xf32>
    %14 = arith.addf %2, %13 : vector<32x120xf32>
    %c0_14 = arith.constant 0 : index
    %c0_15 = arith.constant 0 : index
    %c0_16 = arith.constant 0 : index
    %15 = vector.load %arg4[%c0_14, %c0_15, %c0_16] : memref<4x15x120xf32, #tpu.memory_space<vmem>>, vector<1x15x120xf32>
    %16 = vector.shape_cast %15 : vector<1x15x120xf32> to vector<15x120xf32>
    %cst_17 = arith.constant dense<0.000000e+00> : vector<32x120xf32>
    %17 = tpu.matmul %6, %16, %cst_17 {dimension_numbers = #tpu.dot_dimension_numbers<[1], [0], [0], [1], [0, 0, 1, 1], [], []>, precision = #tpu.contract_precision<fp32>} : vector<32x15xf32>, vector<15x120xf32>, vector<32x120xf32> -> vector<32x120xf32>
    %18 = arith.addf %3, %17 : vector<32x120xf32>
    %19 = vector.extract_strided_slice %0 {offsets = [0, 1, 0, 0], sizes = [2, 1, 16, 15], strides = [1, 1, 1, 1]} : vector<2x4x16x15xf32> to vector<2x1x16x15xf32>
    %20 = vector.shape_cast %19 : vector<2x1x16x15xf32> to vector<2x16x15xf32>
    %21 = vector.shape_cast %20 : vector<2x16x15xf32> to vector<32x15xf32>
    %c0_18 = arith.constant 0 : index
    %c1_19 = arith.constant 1 : index
    %c0_20 = arith.constant 0 : index
    %c0_21 = arith.constant 0 : index
    %22 = vector.load %arg2[%c0_18, %c1_19, %c0_20, %c0_21] : memref<2x4x15x120xf32, #tpu.memory_space<vmem>>, vector<1x1x15x120xf32>
    %23 = vector.shape_cast %22 : vector<1x1x15x120xf32> to vector<15x120xf32>
    %cst_22 = arith.constant dense<0.000000e+00> : vector<32x120xf32>
    %24 = tpu.matmul %21, %23, %cst_22 {dimension_numbers = #tpu.dot_dimension_numbers<[1], [0], [0], [1], [0, 0, 1, 1], [], []>, precision = #tpu.contract_precision<fp32>} : vector<32x15xf32>, vector<15x120xf32>, vector<32x120xf32> -> vector<32x120xf32>
    %25 = arith.addf %10, %24 : vector<32x120xf32>
    %c1_23 = arith.constant 1 : index
    %c1_24 = arith.constant 1 : index
    %c0_25 = arith.constant 0 : index
    %c0_26 = arith.constant 0 : index
    %26 = vector.load %arg2[%c1_23, %c1_24, %c0_25, %c0_26] : memref<2x4x15x120xf32, #tpu.memory_space<vmem>>, vector<1x1x15x120xf32>
    %27 = vector.shape_cast %26 : vector<1x1x15x120xf32> to vector<15x120xf32>
    %cst_27 = arith.constant dense<0.000000e+00> : vector<32x120xf32>
    %28 = tpu.matmul %21, %27, %cst_27 {dimension_numbers = #tpu.dot_dimension_numbers<[1], [0], [0], [1], [0, 0, 1, 1], [], []>, precision = #tpu.contract_precision<fp32>} : vector<32x15xf32>, vector<15x120xf32>, vector<32x120xf32> -> vector<32x120xf32>
    %29 = arith.addf %14, %28 : vector<32x120xf32>
    %c1_28 = arith.constant 1 : index
    %c0_29 = arith.constant 0 : index
    %c0_30 = arith.constant 0 : index
    %30 = vector.load %arg4[%c1_28, %c0_29, %c0_30] : memref<4x15x120xf32, #tpu.memory_space<vmem>>, vector<1x15x120xf32>
    %31 = vector.shape_cast %30 : vector<1x15x120xf32> to vector<15x120xf32>
    %cst_31 = arith.constant dense<0.000000e+00> : vector<32x120xf32>
    %32 = tpu.matmul %21, %31, %cst_31 {dimension_numbers = #tpu.dot_dimension_numbers<[1], [0], [0], [1], [0, 0, 1, 1], [], []>, precision = #tpu.contract_precision<fp32>} : vector<32x15xf32>, vector<15x120xf32>, vector<32x120xf32> -> vector<32x120xf32>
    %33 = arith.addf %18, %32 : vector<32x120xf32>
    %34 = vector.extract_strided_slice %0 {offsets = [0, 2, 0, 0], sizes = [2, 1, 16, 15], strides = [1, 1, 1, 1]} : vector<2x4x16x15xf32> to vector<2x1x16x15xf32>
    %35 = vector.shape_cast %34 : vector<2x1x16x15xf32> to vector<2x16x15xf32>
    %36 = vector.shape_cast %35 : vector<2x16x15xf32> to vector<32x15xf32>
    %c0_32 = arith.constant 0 : index
    %c2 = arith.constant 2 : index
    %c0_33 = arith.constant 0 : index
    %c0_34 = arith.constant 0 : index
    %37 = vector.load %arg2[%c0_32, %c2, %c0_33, %c0_34] : memref<2x4x15x120xf32, #tpu.memory_space<vmem>>, vector<1x1x15x120xf32>
    %38 = vector.shape_cast %37 : vector<1x1x15x120xf32> to vector<15x120xf32>
    %cst_35 = arith.constant dense<0.000000e+00> : vector<32x120xf32>
    %39 = tpu.matmul %36, %38, %cst_35 {dimension_numbers = #tpu.dot_dimension_numbers<[1], [0], [0], [1], [0, 0, 1, 1], [], []>, precision = #tpu.contract_precision<fp32>} : vector<32x15xf32>, vector<15x120xf32>, vector<32x120xf32> -> vector<32x120xf32>
    %40 = arith.addf %25, %39 : vector<32x120xf32>
    %c1_36 = arith.constant 1 : index
    %c2_37 = arith.constant 2 : index
    %c0_38 = arith.constant 0 : index
    %c0_39 = arith.constant 0 : index
    %41 = vector.load %arg2[%c1_36, %c2_37, %c0_38, %c0_39] : memref<2x4x15x120xf32, #tpu.memory_space<vmem>>, vector<1x1x15x120xf32>
    %42 = vector.shape_cast %41 : vector<1x1x15x120xf32> to vector<15x120xf32>
    %cst_40 = arith.constant dense<0.000000e+00> : vector<32x120xf32>
    %43 = tpu.matmul %36, %42, %cst_40 {dimension_numbers = #tpu.dot_dimension_numbers<[1], [0], [0], [1], [0, 0, 1, 1], [], []>, precision = #tpu.contract_precision<fp32>} : vector<32x15xf32>, vector<15x120xf32>, vector<32x120xf32> -> vector<32x120xf32>
    %44 = arith.addf %29, %43 : vector<32x120xf32>
    %c2_41 = arith.constant 2 : index
    %c0_42 = arith.constant 0 : index
    %c0_43 = arith.constant 0 : index
    %45 = vector.load %arg4[%c2_41, %c0_42, %c0_43] : memref<4x15x120xf32, #tpu.memory_space<vmem>>, vector<1x15x120xf32>
    %46 = vector.shape_cast %45 : vector<1x15x120xf32> to vector<15x120xf32>
    %cst_44 = arith.constant dense<0.000000e+00> : vector<32x120xf32>
    %47 = tpu.matmul %36, %46, %cst_44 {dimension_numbers = #tpu.dot_dimension_numbers<[1], [0], [0], [1], [0, 0, 1, 1], [], []>, precision = #tpu.contract_precision<fp32>} : vector<32x15xf32>, vector<15x120xf32>, vector<32x120xf32> -> vector<32x120xf32>
    %48 = arith.addf %33, %47 : vector<32x120xf32>
    %49 = vector.extract_strided_slice %0 {offsets = [0, 3, 0, 0], sizes = [2, 1, 16, 15], strides = [1, 1, 1, 1]} : vector<2x4x16x15xf32> to vector<2x1x16x15xf32>
    %50 = vector.shape_cast %49 : vector<2x1x16x15xf32> to vector<2x16x15xf32>
    %51 = vector.shape_cast %50 : vector<2x16x15xf32> to vector<32x15xf32>
    %c0_45 = arith.constant 0 : index
    %c3 = arith.constant 3 : index
    %c0_46 = arith.constant 0 : index
    %c0_47 = arith.constant 0 : index
    %52 = vector.load %arg2[%c0_45, %c3, %c0_46, %c0_47] : memref<2x4x15x120xf32, #tpu.memory_space<vmem>>, vector<1x1x15x120xf32>
    %53 = vector.shape_cast %52 : vector<1x1x15x120xf32> to vector<15x120xf32>
    %cst_48 = arith.constant dense<0.000000e+00> : vector<32x120xf32>
    %54 = tpu.matmul %51, %53, %cst_48 {dimension_numbers = #tpu.dot_dimension_numbers<[1], [0], [0], [1], [0, 0, 1, 1], [], []>, precision = #tpu.contract_precision<fp32>} : vector<32x15xf32>, vector<15x120xf32>, vector<32x120xf32> -> vector<32x120xf32>
    %55 = arith.addf %40, %54 : vector<32x120xf32>
    %c1_49 = arith.constant 1 : index
    %c3_50 = arith.constant 3 : index
    %c0_51 = arith.constant 0 : index
    %c0_52 = arith.constant 0 : index
    %56 = vector.load %arg2[%c1_49, %c3_50, %c0_51, %c0_52] : memref<2x4x15x120xf32, #tpu.memory_space<vmem>>, vector<1x1x15x120xf32>
    %57 = vector.shape_cast %56 : vector<1x1x15x120xf32> to vector<15x120xf32>
    %cst_53 = arith.constant dense<0.000000e+00> : vector<32x120xf32>
    %58 = tpu.matmul %51, %57, %cst_53 {dimension_numbers = #tpu.dot_dimension_numbers<[1], [0], [0], [1], [0, 0, 1, 1], [], []>, precision = #tpu.contract_precision<fp32>} : vector<32x15xf32>, vector<15x120xf32>, vector<32x120xf32> -> vector<32x120xf32>
    %59 = arith.addf %44, %58 : vector<32x120xf32>
    %c3_54 = arith.constant 3 : index
    %c0_55 = arith.constant 0 : index
    %c0_56 = arith.constant 0 : index
    %60 = vector.load %arg4[%c3_54, %c0_55, %c0_56] : memref<4x15x120xf32, #tpu.memory_space<vmem>>, vector<1x15x120xf32>
    %61 = vector.shape_cast %60 : vector<1x15x120xf32> to vector<15x120xf32>
    %cst_57 = arith.constant dense<0.000000e+00> : vector<32x120xf32>
    %62 = tpu.matmul %51, %61, %cst_57 {dimension_numbers = #tpu.dot_dimension_numbers<[1], [0], [0], [1], [0, 0, 1, 1], [], []>, precision = #tpu.contract_precision<fp32>} : vector<32x15xf32>, vector<15x120xf32>, vector<32x120xf32> -> vector<32x120xf32>
    %63 = arith.addf %48, %62 : vector<32x120xf32>
    %c0_58 = arith.constant 0 : index
    %c0_59 = arith.constant 0 : index
    %64 = vector.load %arg5[%c0_58, %c0_59] : memref<34x32xf32, #tpu.memory_space<vmem>>, vector<34x32xf32>
    %cst_60 = arith.constant dense<0.000000e+00> : vector<34x120xf32>
    %65 = tpu.matmul %64, %55, %cst_60 {dimension_numbers = #tpu.dot_dimension_numbers<[1], [0], [0], [1], [0, 0, 1, 1], [], []>, precision = #tpu.contract_precision<fp32>} : vector<34x32xf32>, vector<32x120xf32>, vector<34x120xf32> -> vector<34x120xf32>
    %c0_61 = arith.constant 0 : index
    %c0_62 = arith.constant 0 : index
    %66 = vector.load %arg6[%c0_61, %c0_62] : memref<34x32xf32, #tpu.memory_space<vmem>>, vector<34x32xf32>
    %cst_63 = arith.constant dense<0.000000e+00> : vector<34x120xf32>
    %67 = tpu.matmul %66, %59, %cst_63 {dimension_numbers = #tpu.dot_dimension_numbers<[1], [0], [0], [1], [0, 0, 1, 1], [], []>, precision = #tpu.contract_precision<fp32>} : vector<34x32xf32>, vector<32x120xf32>, vector<34x120xf32> -> vector<34x120xf32>
    %68 = arith.addf %65, %67 : vector<34x120xf32>
    %c0_64 = arith.constant 0 : index
    %c0_65 = arith.constant 0 : index
    %69 = vector.load %arg10[%c0_64, %c0_65] : memref<1x120xf32, #tpu.memory_space<vmem>>, vector<1x120xf32>
    %70 = vector.broadcast %69 : vector<1x120xf32> to vector<34x120xf32>
    %71 = arith.addf %68, %70 : vector<34x120xf32>
    %cst_66 = arith.constant 0.000000e+00 : f32
    %72 = vector.broadcast %cst_66 : f32 to vector<34x120xf32>
    %73 = arith.cmpf ogt, %71, %72 : vector<34x120xf32>
    %74 = math.exp %71 : vector<34x120xf32>
    %cst_67 = arith.constant 1.000000e+00 : f32
    %75 = vector.broadcast %cst_67 : f32 to vector<34x120xf32>
    %76 = arith.subf %74, %75 : vector<34x120xf32>
    %cst_68 = arith.constant 1.67326319 : f32
    %77 = vector.broadcast %cst_68 : f32 to vector<34x120xf32>
    %78 = arith.mulf %77, %76 : vector<34x120xf32>
    %79 = arith.select %73, %71, %78 : vector<34x120xi1>, vector<34x120xf32>
    %cst_69 = arith.constant 1.05070102 : f32
    %80 = vector.broadcast %cst_69 : f32 to vector<34x120xf32>
    %81 = arith.mulf %80, %79 : vector<34x120xf32>
    %c0_70 = arith.constant 0 : index
    %c0_71 = arith.constant 0 : index
    %82 = vector.load %arg7[%c0_70, %c0_71] : memref<32x34xf32, #tpu.memory_space<vmem>>, vector<32x34xf32>
    %cst_72 = arith.constant dense<0.000000e+00> : vector<32x120xf32>
    %83 = tpu.matmul %82, %81, %cst_72 {dimension_numbers = #tpu.dot_dimension_numbers<[1], [0], [0], [1], [0, 0, 1, 1], [], []>, precision = #tpu.contract_precision<fp32>} : vector<32x34xf32>, vector<34x120xf32>, vector<32x120xf32> -> vector<32x120xf32>
    %c0_73 = arith.constant 0 : index
    %c0_74 = arith.constant 0 : index
    %84 = vector.load %arg8[%c0_73, %c0_74] : memref<32x34xf32, #tpu.memory_space<vmem>>, vector<32x34xf32>
    %cst_75 = arith.constant dense<0.000000e+00> : vector<32x120xf32>
    %85 = tpu.matmul %84, %81, %cst_75 {dimension_numbers = #tpu.dot_dimension_numbers<[1], [0], [0], [1], [0, 0, 1, 1], [], []>, precision = #tpu.contract_precision<fp32>} : vector<32x34xf32>, vector<34x120xf32>, vector<32x120xf32> -> vector<32x120xf32>
    %c0_76 = arith.constant 0 : index
    %c0_77 = arith.constant 0 : index
    %c0_78 = arith.constant 0 : index
    %86 = vector.load %arg3[%c0_76, %c0_77, %c0_78] : memref<2x120x120xf32, #tpu.memory_space<vmem>>, vector<1x120x120xf32>
    %87 = vector.shape_cast %86 : vector<1x120x120xf32> to vector<120x120xf32>
    %cst_79 = arith.constant dense<0.000000e+00> : vector<32x120xf32>
    %88 = tpu.matmul %83, %87, %cst_79 {dimension_numbers = #tpu.dot_dimension_numbers<[1], [0], [0], [1], [0, 0, 1, 1], [], []>, precision = #tpu.contract_precision<fp32>} : vector<32x120xf32>, vector<120x120xf32>, vector<32x120xf32> -> vector<32x120xf32>
    %c1_80 = arith.constant 1 : index
    %c0_81 = arith.constant 0 : index
    %c0_82 = arith.constant 0 : index
    %89 = vector.load %arg3[%c1_80, %c0_81, %c0_82] : memref<2x120x120xf32, #tpu.memory_space<vmem>>, vector<1x120x120xf32>
    %90 = vector.shape_cast %89 : vector<1x120x120xf32> to vector<120x120xf32>
    %cst_83 = arith.constant dense<0.000000e+00> : vector<32x120xf32>
    %91 = tpu.matmul %85, %90, %cst_83 {dimension_numbers = #tpu.dot_dimension_numbers<[1], [0], [0], [1], [0, 0, 1, 1], [], []>, precision = #tpu.contract_precision<fp32>} : vector<32x120xf32>, vector<120x120xf32>, vector<32x120xf32> -> vector<32x120xf32>
    %92 = arith.addf %88, %91 : vector<32x120xf32>
    %93 = arith.addf %92, %63 : vector<32x120xf32>
    %c0_84 = arith.constant 0 : index
    %c0_85 = arith.constant 0 : index
    %94 = vector.load %arg11[%c0_84, %c0_85] : memref<1x120xf32, #tpu.memory_space<vmem>>, vector<1x120xf32>
    %95 = vector.broadcast %94 : vector<1x120xf32> to vector<32x120xf32>
    %96 = arith.addf %93, %95 : vector<32x120xf32>
    %c0_86 = arith.constant 0 : index
    %c0_87 = arith.constant 0 : index
    %c0_88 = arith.constant 0 : index
    %97 = vector.load %arg9[%c0_86, %c0_87, %c0_88] : memref<3x120x40xf32, #tpu.memory_space<vmem>>, vector<1x120x40xf32>
    %98 = vector.shape_cast %97 : vector<1x120x40xf32> to vector<120x40xf32>
    %cst_89 = arith.constant dense<0.000000e+00> : vector<32x40xf32>
    %99 = tpu.matmul %96, %98, %cst_89 {dimension_numbers = #tpu.dot_dimension_numbers<[1], [0], [0], [1], [0, 0, 1, 1], [], []>, precision = #tpu.contract_precision<fp32>} : vector<32x120xf32>, vector<120x40xf32>, vector<32x40xf32> -> vector<32x40xf32>
    %c1_90 = arith.constant 1 : index
    %c0_91 = arith.constant 0 : index
    %c0_92 = arith.constant 0 : index
    %100 = vector.load %arg9[%c1_90, %c0_91, %c0_92] : memref<3x120x40xf32, #tpu.memory_space<vmem>>, vector<1x120x40xf32>
    %101 = vector.shape_cast %100 : vector<1x120x40xf32> to vector<120x40xf32>
    %cst_93 = arith.constant dense<0.000000e+00> : vector<32x40xf32>
    %102 = tpu.matmul %96, %101, %cst_93 {dimension_numbers = #tpu.dot_dimension_numbers<[1], [0], [0], [1], [0, 0, 1, 1], [], []>, precision = #tpu.contract_precision<fp32>} : vector<32x120xf32>, vector<120x40xf32>, vector<32x40xf32> -> vector<32x40xf32>
    %103 = arith.maximumf %99, %102 : vector<32x40xf32>
    %c2_94 = arith.constant 2 : index
    %c0_95 = arith.constant 0 : index
    %c0_96 = arith.constant 0 : index
    %104 = vector.load %arg9[%c2_94, %c0_95, %c0_96] : memref<3x120x40xf32, #tpu.memory_space<vmem>>, vector<1x120x40xf32>
    %105 = vector.shape_cast %104 : vector<1x120x40xf32> to vector<120x40xf32>
    %cst_97 = arith.constant dense<0.000000e+00> : vector<32x40xf32>
    %106 = tpu.matmul %96, %105, %cst_97 {dimension_numbers = #tpu.dot_dimension_numbers<[1], [0], [0], [1], [0, 0, 1, 1], [], []>, precision = #tpu.contract_precision<fp32>} : vector<32x120xf32>, vector<120x40xf32>, vector<32x40xf32> -> vector<32x40xf32>
    %107 = arith.maximumf %103, %106 : vector<32x40xf32>
    %c0_98 = arith.constant 0 : index
    %c0_99 = arith.constant 0 : index
    %108 = vector.load %arg12[%c0_98, %c0_99] : memref<32x40xf32, #tpu.memory_space<vmem>>, vector<32x40xf32>
    tpu.vector_store %arg12[%c0_98, %c0_99], %107 {strides = array<i32>} : memref<32x40xf32, #tpu.memory_space<vmem>>, vector<32x40xf32>,
    return
  }
  func.func @transform_0(%arg0: i32) -> (i32, i32, i32, i32) {
    %c0_i32 = arith.constant 0 : i32
    %c0_i32_0 = arith.constant 0 : i32
    %c0_i32_1 = arith.constant 0 : i32
    %c0_i32_2 = arith.constant 0 : i32
    return %arg0, %c0_i32, %c0_i32_0, %c0_i32_1 : i32, i32, i32, i32
  }
  func.func @transform_1(%arg0: i32) -> (i32, i32, i32, i32) {
    %c0_i32 = arith.constant 0 : i32
    %c0_i32_0 = arith.constant 0 : i32
    %c0_i32_1 = arith.constant 0 : i32
    %c0_i32_2 = arith.constant 0 : i32
    %c0_i32_3 = arith.constant 0 : i32
    return %c0_i32, %c0_i32_0, %c0_i32_1, %c0_i32_2 : i32, i32, i32, i32
  }
  func.func @transform_2(%arg0: i32) -> (i32, i32, i32) {
    %c0_i32 = arith.constant 0 : i32
    %c0_i32_0 = arith.constant 0 : i32
    %c0_i32_1 = arith.constant 0 : i32
    %c0_i32_2 = arith.constant 0 : i32
    return %c0_i32, %c0_i32_0, %c0_i32_1 : i32, i32, i32
  }
  func.func @transform_3(%arg0: i32) -> (i32, i32, i32) {
    %c0_i32 = arith.constant 0 : i32
    %c0_i32_0 = arith.constant 0 : i32
    %c0_i32_1 = arith.constant 0 : i32
    %c0_i32_2 = arith.constant 0 : i32
    return %c0_i32, %c0_i32_0, %c0_i32_1 : i32, i32, i32
  }
  func.func @transform_4(%arg0: i32) -> (i32, i32) {
    %c0_i32 = arith.constant 0 : i32
    %c0_i32_0 = arith.constant 0 : i32
    %c0_i32_1 = arith.constant 0 : i32
    return %c0_i32, %c0_i32_0 : i32, i32
  }
  func.func @transform_5(%arg0: i32) -> (i32, i32) {
    %c0_i32 = arith.constant 0 : i32
    %c0_i32_0 = arith.constant 0 : i32
    %c0_i32_1 = arith.constant 0 : i32
    return %c0_i32, %c0_i32_0 : i32, i32
  }
  func.func @transform_6(%arg0: i32) -> (i32, i32) {
    %c0_i32 = arith.constant 0 : i32
    %c0_i32_0 = arith.constant 0 : i32
    %c0_i32_1 = arith.constant 0 : i32
    return %c0_i32, %c0_i32_0 : i32, i32
  }
  func.func @transform_7(%arg0: i32) -> (i32, i32) {
    %c0_i32 = arith.constant 0 : i32
    %c0_i32_0 = arith.constant 0 : i32
    %c0_i32_1 = arith.constant 0 : i32
    return %c0_i32, %c0_i32_0 : i32, i32
  }
  func.func @transform_8(%arg0: i32) -> (i32, i32, i32) {
    %c0_i32 = arith.constant 0 : i32
    %c0_i32_0 = arith.constant 0 : i32
    %c0_i32_1 = arith.constant 0 : i32
    %c0_i32_2 = arith.constant 0 : i32
    return %c0_i32, %c0_i32_0, %c0_i32_1 : i32, i32, i32
  }
  func.func @transform_9(%arg0: i32) -> (i32, i32) {
    %c0_i32 = arith.constant 0 : i32
    %c0_i32_0 = arith.constant 0 : i32
    %c0_i32_1 = arith.constant 0 : i32
    return %c0_i32, %c0_i32_0 : i32, i32
  }
  func.func @transform_10(%arg0: i32) -> (i32, i32) {
    %c0_i32 = arith.constant 0 : i32
    %c0_i32_0 = arith.constant 0 : i32
    %c0_i32_1 = arith.constant 0 : i32
    return %c0_i32, %c0_i32_0 : i32, i32
  }
  func.func @transform_11(%arg0: i32) -> (i32, i32) {
    %c0_i32 = arith.constant 0 : i32
    %c0_i32_0 = arith.constant 0 : i32
    return %arg0, %c0_i32 : i32, i32
  }
}

</mosaic_0001>

<llo_original>
// kernel: tpu_custom_call.1
$region0: #{tpu_custom_call.1}
  #allocation0 [shape = 'u32[]', space=smem, size = 0x4, offset = 0x4, fixed_abs, tag = 'smem constant byte address 0x4 - core index']
  #allocation1 [shape = 'u32[72,128]{1,0:T(1,128)}', space=vmem, size = 0x9000, scoped, tag = 'internal scratch']
  %s0 = inlined_call_operand.vmem [shape: f32[2,4,16,15], index: 0, kind: input, shape index: {}]
  %s1 = inlined_call_operand.vmem [shape: f32[2,4,15,120], index: 1, kind: input, shape index: {}]
  %s2 = inlined_call_operand.vmem [shape: f32[2,120,120], index: 2, kind: input, shape index: {}]
  %s3 = inlined_call_operand.vmem [shape: f32[4,15,120], index: 3, kind: input, shape index: {}]
  %s4 = inlined_call_operand.vmem [shape: f32[34,32], index: 4, kind: input, shape index: {}]
  %s5 = inlined_call_operand.vmem [shape: f32[34,32], index: 5, kind: input, shape index: {}]
  %s6 = inlined_call_operand.vmem [shape: f32[32,34], index: 6, kind: input, shape index: {}]
  %s7 = inlined_call_operand.vmem [shape: f32[32,34], index: 7, kind: input, shape index: {}]
  %s8 = inlined_call_operand.vmem [shape: f32[3,120,40], index: 8, kind: input, shape index: {}]
  %s9 = inlined_call_operand.vmem [shape: f32[1,120], index: 9, kind: input, shape index: {}]
  %s10 = inlined_call_operand.vmem [shape: f32[1,120], index: 10, kind: input, shape index: {}]
  %s11 = inlined_call_operand.hbm [shape: f32[32,40], index: 11, kind: output, shape index: {}]
  %s12 = sld [smem:[#allocation0]]
  $region54: #{tpu_custom_call.1} parent=0
    _
  %s14 = ssub.s32 1, %s12
  %s15 = scalar_select 0, %s14, %s12
  $region1: #{tpu_custom_call.1} parent=0
    #allocation2 [shape = 'u8[16384]{0}', space=vmem, size = 0x4000, scoped, tag = 'output window, operand 0, single buffered']
    #allocation3 [shape = 's32[1]{0}', space=sflag, size = 0x4, scoped, tag = 'scoped memory for tpu_custom_call.1']
    %16 = vsyncpa [#allocation3], 0
    // Predicated region
    $region2: #{tpu_custom_call.1} parent=1 // pred_check
      _
    $region3: #{tpu_custom_call.1} parent=1 // pred_check_branch
      %18 = sbr.rel (0) target = $region5
    $region4: #{tpu_custom_call.1} parent=1 // pred_region
      _
    $region5: #{tpu_custom_call.1} parent=1 // pred_fallthru
      _
    // Predicated region
    $region6: #{tpu_custom_call.1} parent=1 // pred_check
      _
    $region7: #{tpu_custom_call.1} parent=1 // pred_check_branch
      %20 = sbr.rel (0) target = $region9
    $region8: #{tpu_custom_call.1} parent=1 // pred_region
      _
    $region9: #{tpu_custom_call.1} parent=1 // pred_fallthru
      _
    // Predicated region
    $region10: #{tpu_custom_call.1} parent=1 // pred_check
      _
    $region11: #{tpu_custom_call.1} parent=1 // pred_check_branch
      %22 = sbr.rel (0) target = $region13
    $region12: #{tpu_custom_call.1} parent=1 // pred_region
      _
    $region13: #{tpu_custom_call.1} parent=1 // pred_fallthru
      _
    // Predicated region
    $region14: #{tpu_custom_call.1} parent=1 // pred_check
      _
    $region15: #{tpu_custom_call.1} parent=1 // pred_check_branch
      %24 = sbr.rel (0) target = $region17
    $region16: #{tpu_custom_call.1} parent=1 // pred_region
      _
    $region17: #{tpu_custom_call.1} parent=1 // pred_fallthru
      _
    // Predicated region
    $region18: #{tpu_custom_call.1} parent=1 // pred_check
      _
    $region19: #{tpu_custom_call.1} parent=1 // pred_check_branch
      %26 = sbr.rel (0) target = $region21
    $region20: #{tpu_custom_call.1} parent=1 // pred_region
      _
    $region21: #{tpu_custom_call.1} parent=1 // pred_fallthru
      _
    // Predicated region
    $region22: #{tpu_custom_call.1} parent=1 // pred_check
      _
    $region23: #{tpu_custom_call.1} parent=1 // pred_check_branch
      %28 = sbr.rel (0) target = $region25
    $region24: #{tpu_custom_call.1} parent=1 // pred_region
      _
    $region25: #{tpu_custom_call.1} parent=1 // pred_fallthru
      _
    // Predicated region
    $region26: #{tpu_custom_call.1} parent=1 // pred_check
      _
    $region27: #{tpu_custom_call.1} parent=1 // pred_check_branch
      %30 = sbr.rel (0) target = $region29
    $region28: #{tpu_custom_call.1} parent=1 // pred_region
      _
    $region29: #{tpu_custom_call.1} parent=1 // pred_fallthru
      _
    // Predicated region
    $region30: #{tpu_custom_call.1} parent=1 // pred_check
      _
    $region31: #{tpu_custom_call.1} parent=1 // pred_check_branch
      %32 = sbr.rel (0) target = $region33
    $region32: #{tpu_custom_call.1} parent=1 // pred_region
      _
    $region33: #{tpu_custom_call.1} parent=1 // pred_fallthru
      _
    // Predicated region
    $region34: #{tpu_custom_call.1} parent=1 // pred_check
      _
    $region35: #{tpu_custom_call.1} parent=1 // pred_check_branch
      %34 = sbr.rel (0) target = $region37
    $region36: #{tpu_custom_call.1} parent=1 // pred_region
      _
    $region37: #{tpu_custom_call.1} parent=1 // pred_fallthru
      _
    // Predicated region
    $region38: #{tpu_custom_call.1} parent=1 // pred_check
      _
    $region39: #{tpu_custom_call.1} parent=1 // pred_check_branch
      %36 = sbr.rel (0) target = $region41
    $region40: #{tpu_custom_call.1} parent=1 // pred_region
      _
    $region41: #{tpu_custom_call.1} parent=1 // pred_fallthru
      _
    // Predicated region
    $region42: #{tpu_custom_call.1} parent=1 // pred_check
      _
    $region43: #{tpu_custom_call.1} parent=1 // pred_check_branch
      %38 = sbr.rel (0) target = $region45
    $region44: #{tpu_custom_call.1} parent=1 // pred_region
      _
    $region45: #{tpu_custom_call.1} parent=1 // pred_fallthru
      _
    %v39 = vld [vmem:[%s0] sm:$0xff]
    %v40 = vld [vmem:[%s0 + $0x8] sm:$0xff]
    %v41 = vld [vmem:[%s0 + $0x10] sm:$0xff]
    %v42 = vld [vmem:[%s0 + $0x18] sm:$0xff]
    %v43 = vld [vmem:[%s0 + $0x20] sm:$0xff]
    %v44 = vld [vmem:[%s0 + $0x28] sm:$0xff]
    %v45 = vld [vmem:[%s0 + $0x30] sm:$0xff]
    %v46 = vld [vmem:[%s0 + $0x38] sm:$0xff]
    %v47 = vld [vmem:[%s0 + $0x40] sm:$0xff]
    %v48 = vld [vmem:[%s0 + $0x48] sm:$0xff]
    %v49 = vld [vmem:[%s0 + $0x50] sm:$0xff]
    %v50 = vld [vmem:[%s0 + $0x58] sm:$0xff]
    %v51 = vld [vmem:[%s0 + $0x60] sm:$0xff]
    %v52 = vld [vmem:[%s0 + $0x68] sm:$0xff]
    %v53 = vld [vmem:[%s0 + $0x70] sm:$0xff]
    %v54 = vld [vmem:[%s0 + $0x78] sm:$0xff]
    %v55 = vld [vmem:[%s1] sm:$0xff]
    %v56 = vld [vmem:[%s1 + $0x8] sm:$0x7f]
    %s57 = scalar_lea.vmem %s1, 64
    %v58 = vld [vmem:[%s57] sm:$0xff]
    %v59 = vld [vmem:[%s57 + $0x8] sm:$0x7f]
    %v60 = vld [vmem:[%s3] sm:$0xff]
    %v61 = vld [vmem:[%s3 + $0x8] sm:$0x7f]
    %s62 = scalar_lea.vmem %s1, 16
    %v63 = vld [vmem:[%s62] sm:$0xff]
    %v64 = vld [vmem:[%s62 + $0x8] sm:$0x7f]
    %vm65 = vcmask 121856
    %v67 = vsel %vm65, %v41, 0
    %v70 = vsel %vm65, %v42, 0
    %v73 = vsel %vm65, %v49, 0
    %v76 = vsel %vm65, %v50, 0
    %vm78 = vcmask 1046528
    %v80 = vsel %vm78, %v64, 0
    %82 = vmatpush.msra.mxu0 0.0
    %83 = vmatpush.msra.mxu0 0.0
    %84 = vmatpush.msra.mxu0 0.0
    %85 = vmatpush.msra.mxu0 0.0
    %86 = vmatpush.msra.mxu0 0.0
    %87 = vmatpush.msra.mxu0 0.0
    %88 = vmatpush.msra.mxu0 0.0
    %89 = vmatpush.msra.mxu0 0.0
    %90 = vmatpush.msra.mxu0 0.0
    %91 = vmatpush.msra.mxu0 0.0
    %92 = vmatpush.msra.mxu0 0.0
    %93 = vmatpush.msra.mxu0 0.0
    %94 = vmatpush.msra.mxu0 0.0
    %95 = vmatpush.msra.mxu0 0.0
    %v96 = vand.u32 %v80, 4294901760
    %97 = vmatpush.msra.mxu0 %v96
    %v98 = vand.u32 %v63, 4294901760
    %99 = vmatpush.msra.mxu0 %v98
    %v100 = vand.u32 %v67, 4294901760
    %v101 = vsub.f32 %v67, %v100
    %v102 = vand.u32 %v101, 4294901760
    %v103 = vsub.f32 %v101, %v102
    %v104 = vand.u32 %v103, 4294901760
    %105 = vmatmul.f32.gmra.mxu0 %v104
    %v106 = vpop.f32.mrf.mxu0
    %v107 = vadd.f32 0.0, %v106
    %v108 = vand.u32 %v70, 4294901760
    %v109 = vsub.f32 %v70, %v108
    %v110 = vand.u32 %v109, 4294901760
    %v111 = vsub.f32 %v109, %v110
    %v112 = vand.u32 %v111, 4294901760
    %113 = vmatmul.f32.gmra.mxu0 %v112
    %v114 = vpop.f32.mrf.mxu0
    %v115 = vadd.f32 0.0, %v114
    %v116 = vand.u32 %v73, 4294901760
    %v117 = vsub.f32 %v73, %v116
    %v118 = vand.u32 %v117, 4294901760
    %v119 = vsub.f32 %v117, %v118
    %v120 = vand.u32 %v119, 4294901760
    %121 = vmatmul.f32.gmra.mxu0 %v120
    %v122 = vpop.f32.mrf.mxu0
    %v123 = vadd.f32 0.0, %v122
    %v124 = vand.u32 %v76, 4294901760
    %v125 = vsub.f32 %v76, %v124
    %v126 = vand.u32 %v125, 4294901760
    %v127 = vsub.f32 %v125, %v126
    %v128 = vand.u32 %v127, 4294901760
    %129 = vmatmul.f32.gmra.mxu0 %v128
    %v130 = vpop.f32.mrf.mxu0
    %v131 = vadd.f32 0.0, %v130
    %132 = vdwg.mxu0
    %133 = vmatpush.msra.mxu0 0.0
    %134 = vmatpush.msra.mxu0 0.0
    %135 = vmatpush.msra.mxu0 0.0
    %136 = vmatpush.msra.mxu0 0.0
    %137 = vmatpush.msra.mxu0 0.0
    %138 = vmatpush.msra.mxu0 0.0
    %139 = vmatpush.msra.mxu0 0.0
    %140 = vmatpush.msra.mxu0 0.0
    %141 = vmatpush.msra.mxu0 0.0
    %142 = vmatpush.msra.mxu0 0.0
    %143 = vmatpush.msra.mxu0 0.0
    %144 = vmatpush.msra.mxu0 0.0
    %145 = vmatpush.msra.mxu0 0.0
    %146 = vmatpush.msra.mxu0 0.0
    %v147 = vand.u32 %v80, 4294901760
    %v148 = vsub.f32 %v80, %v147
    %v149 = vand.u32 %v148, 4294901760
    %v150 = vsub.f32 %v148, %v149
    %v151 = vand.u32 %v150, 4294901760
    %152 = vmatpush.msra.mxu0 %v151
    %v153 = vand.u32 %v63, 4294901760
    %v154 = vsub.f32 %v63, %v153
    %v155 = vand.u32 %v154, 4294901760
    %v156 = vsub.f32 %v154, %v155
    %v157 = vand.u32 %v156, 4294901760
    %158 = vmatpush.msra.mxu0 %v157
    %v159 = vand.u32 %v67, 4294901760
    %160 = vmatmul.f32.gmra.mxu0 %v159
    %v161 = vpop.f32.mrf.mxu0
    %v162 = vadd.f32 %v107, %v161
    %v163 = vand.u32 %v70, 4294901760
    %164 = vmatmul.f32.gmra.mxu0 %v163
    %v165 = vpop.f32.mrf.mxu0
    %v166 = vadd.f32 %v115, %v165
    %v167 = vand.u32 %v73, 4294901760
    %168 = vmatmul.f32.gmra.mxu0 %v167
    %v169 = vpop.f32.mrf.mxu0
    %v170 = vadd.f32 %v123, %v169
    %v171 = vand.u32 %v76, 4294901760
    %172 = vmatmul.f32.gmra.mxu0 %v171
    %v173 = vpop.f32.mrf.mxu0
    %v174 = vadd.f32 %v131, %v173
    %175 = vdwg.mxu0
    %176 = vmatpush.msra.mxu0 0.0
    %177 = vmatpush.msra.mxu0 0.0
    %178 = vmatpush.msra.mxu0 0.0
    %179 = vmatpush.msra.mxu0 0.0
    %180 = vmatpush.msra.mxu0 0.0
    %181 = vmatpush.msra.mxu0 0.0
    %182 = vmatpush.msra.mxu0 0.0
    %183 = vmatpush.msra.mxu0 0.0
    %184 = vmatpush.msra.mxu0 0.0
    %185 = vmatpush.msra.mxu0 0.0
    %186 = vmatpush.msra.mxu0 0.0
    %187 = vmatpush.msra.mxu0 0.0
    %188 = vmatpush.msra.mxu0 0.0
    %189 = vmatpush.msra.mxu0 0.0
    %v190 = vand.u32 %v80, 4294901760
    %v191 = vsub.f32 %v80, %v190
    %192 = vmatpush.msra.mxu0 %v191
    %v193 = vand.u32 %v63, 4294901760
    %v194 = vsub.f32 %v63, %v193
    %195 = vmatpush.msra.mxu0 %v194
    %v196 = vand.u32 %v67, 4294901760
    %v197 = vsub.f32 %v67, %v196
    %198 = vmatmul.f32.gmra.mxu0 %v197
    %v199 = vpop.f32.mrf.mxu0
    %v200 = vadd.f32 %v162, %v199
    %v201 = vand.u32 %v70, 4294901760
    %v202 = vsub.f32 %v70, %v201
    %203 = vmatmul.f32.gmra.mxu0 %v202
    %v204 = vpop.f32.mrf.mxu0
    %v205 = vadd.f32 %v166, %v204
    %v206 = vand.u32 %v73, 4294901760
    %v207 = vsub.f32 %v73, %v206
    %208 = vmatmul.f32.gmra.mxu0 %v207
    %v209 = vpop.f32.mrf.mxu0
    %v210 = vadd.f32 %v170, %v209
    %v211 = vand.u32 %v76, 4294901760
    %v212 = vsub.f32 %v76, %v211
    %213 = vmatmul.f32.gmra.mxu0 %v212
    %v214 = vpop.f32.mrf.mxu0
    %v215 = vadd.f32 %v174, %v214
    %216 = vdwg.mxu0
    %217 = vmatpush.msra.mxu0 0.0
    %218 = vmatpush.msra.mxu0 0.0
    %219 = vmatpush.msra.mxu0 0.0
    %220 = vmatpush.msra.mxu0 0.0
    %221 = vmatpush.msra.mxu0 0.0
    %222 = vmatpush.msra.mxu0 0.0
    %223 = vmatpush.msra.mxu0 0.0
    %224 = vmatpush.msra.mxu0 0.0
    %225 = vmatpush.msra.mxu0 0.0
    %226 = vmatpush.msra.mxu0 0.0
    %227 = vmatpush.msra.mxu0 0.0
    %228 = vmatpush.msra.mxu0 0.0
    %229 = vmatpush.msra.mxu0 0.0
    %230 = vmatpush.msra.mxu0 0.0
    %v231 = vand.u32 %v80, 4294901760
    %232 = vmatpush.msra.mxu0 %v231
    %v233 = vand.u32 %v63, 4294901760
    %234 = vmatpush.msra.mxu0 %v233
    %v235 = vand.u32 %v67, 4294901760
    %v236 = vsub.f32 %v67, %v235
    %v237 = vand.u32 %v236, 4294901760
    %238 = vmatmul.f32.gmra.mxu0 %v237
    %v239 = vpop.f32.mrf.mxu0
    %v240 = vadd.f32 %v200, %v239
    %v241 = vand.u32 %v70, 4294901760
    %v242 = vsub.f32 %v70, %v241
    %v243 = vand.u32 %v242, 4294901760
    %244 = vmatmul.f32.gmra.mxu0 %v243
    %v245 = vpop.f32.mrf.mxu0
    %v246 = vadd.f32 %v205, %v245
    %v247 = vand.u32 %v73, 4294901760
    %v248 = vsub.f32 %v73, %v247
    %v249 = vand.u32 %v248, 4294901760
    %250 = vmatmul.f32.gmra.mxu0 %v249
    %v251 = vpop.f32.mrf.mxu0
    %v252 = vadd.f32 %v210, %v251
    %v253 = vand.u32 %v76, 4294901760
    %v254 = vsub.f32 %v76, %v253
    %v255 = vand.u32 %v254, 4294901760
    %256 = vmatmul.f32.gmra.mxu0 %v255
    %v257 = vpop.f32.mrf.mxu0
    %v258 = vadd.f32 %v215, %v257
    %259 = vdwg.mxu0
    %260 = vmatpush.msra.mxu0 0.0
    %261 = vmatpush.msra.mxu0 0.0
    %262 = vmatpush.msra.mxu0 0.0
    %263 = vmatpush.msra.mxu0 0.0
    %264 = vmatpush.msra.mxu0 0.0
    %265 = vmatpush.msra.mxu0 0.0
    %266 = vmatpush.msra.mxu0 0.0
    %267 = vmatpush.msra.mxu0 0.0
    %268 = vmatpush.msra.mxu0 0.0
    %269 = vmatpush.msra.mxu0 0.0
    %270 = vmatpush.msra.mxu0 0.0
    %271 = vmatpush.msra.mxu0 0.0
    %272 = vmatpush.msra.mxu0 0.0
    %273 = vmatpush.msra.mxu0 0.0
    %v274 = vand.u32 %v80, 4294901760
    %v275 = vsub.f32 %v80, %v274
    %v276 = vand.u32 %v275, 4294901760
    %277 = vmatpush.msra.mxu0 %v276
    %v278 = vand.u32 %v63, 4294901760
    %v279 = vsub.f32 %v63, %v278
    %v280 = vand.u32 %v279, 4294901760
    %281 = vmatpush.msra.mxu0 %v280
    %v282 = vand.u32 %v67, 4294901760
    %283 = vmatmul.f32.gmra.mxu0 %v282
    %v284 = vpop.f32.mrf.mxu0
    %v285 = vadd.f32 %v240, %v284
    %v286 = vand.u32 %v70, 4294901760
    %287 = vmatmul.f32.gmra.mxu0 %v286
    %v288 = vpop.f32.mrf.mxu0
    %v289 = vadd.f32 %v246, %v288
    %v290 = vand.u32 %v73, 4294901760
    %291 = vmatmul.f32.gmra.mxu0 %v290
    %v292 = vpop.f32.mrf.mxu0
    %v293 = vadd.f32 %v252, %v292
    %v294 = vand.u32 %v76, 4294901760
    %295 = vmatmul.f32.gmra.mxu0 %v294
    %v296 = vpop.f32.mrf.mxu0
    %v297 = vadd.f32 %v258, %v296
    %298 = vdwg.mxu0
    %299 = vmatpush.msra.mxu0 0.0
    %300 = vmatpush.msra.mxu0 0.0
    %301 = vmatpush.msra.mxu0 0.0
    %302 = vmatpush.msra.mxu0 0.0
    %303 = vmatpush.msra.mxu0 0.0
    %304 = vmatpush.msra.mxu0 0.0
    %305 = vmatpush.msra.mxu0 0.0
    %306 = vmatpush.msra.mxu0 0.0
    %307 = vmatpush.msra.mxu0 0.0
    %308 = vmatpush.msra.mxu0 0.0
    %309 = vmatpush.msra.mxu0 0.0
    %310 = vmatpush.msra.mxu0 0.0
    %311 = vmatpush.msra.mxu0 0.0
    %312 = vmatpush.msra.mxu0 0.0
    %v313 = vand.u32 %v80, 4294901760
    %314 = vmatpush.msra.mxu0 %v313
    %v315 = vand.u32 %v63, 4294901760
    %316 = vmatpush.msra.mxu0 %v315
    %v317 = vand.u32 %v67, 4294901760
    %318 = vmatmul.f32.gmra.mxu0 %v317
    %v319 = vpop.f32.mrf.mxu0
    %v320 = vadd.f32 %v285, %v319
    %v321 = vand.u32 %v70, 4294901760
    %322 = vmatmul.f32.gmra.mxu0 %v321
    %v323 = vpop.f32.mrf.mxu0
    %v324 = vadd.f32 %v289, %v323
    %v325 = vand.u32 %v73, 4294901760
    %326 = vmatmul.f32.gmra.mxu0 %v325
    %v327 = vpop.f32.mrf.mxu0
    %v328 = vadd.f32 %v293, %v327
    %v329 = vand.u32 %v76, 4294901760
    %330 = vmatmul.f32.gmra.mxu0 %v329
    %v331 = vpop.f32.mrf.mxu0
    %v332 = vadd.f32 %v297, %v331
    %333 = vdwg.mxu0
    %v335 = vsel %vm65, %v39, 0
    %v338 = vsel %vm65, %v40, 0
    %v341 = vsel %vm65, %v47, 0
    %v344 = vsel %vm65, %v48, 0
    %v347 = vsel %vm78, %v56, 0
    %349 = vmatpush.msra.mxu0 0.0
    %350 = vmatpush.msra.mxu0 0.0
    %351 = vmatpush.msra.mxu0 0.0
    %352 = vmatpush.msra.mxu0 0.0
    %353 = vmatpush.msra.mxu0 0.0
    %354 = vmatpush.msra.mxu0 0.0
    %355 = vmatpush.msra.mxu0 0.0
    %356 = vmatpush.msra.mxu0 0.0
    %357 = vmatpush.msra.mxu0 0.0
    %358 = vmatpush.msra.mxu0 0.0
    %359 = vmatpush.msra.mxu0 0.0
    %360 = vmatpush.msra.mxu0 0.0
    %361 = vmatpush.msra.mxu0 0.0
    %362 = vmatpush.msra.mxu0 0.0
    %v363 = vand.u32 %v347, 4294901760
    %364 = vmatpush.msra.mxu0 %v363
    %v365 = vand.u32 %v55, 4294901760
    %366 = vmatpush.msra.mxu0 %v365
    %v367 = vand.u32 %v335, 4294901760
    %v368 = vsub.f32 %v335, %v367
    %v369 = vand.u32 %v368, 4294901760
    %v370 = vsub.f32 %v368, %v369
    %v371 = vand.u32 %v370, 4294901760
    %372 = vmatmul.f32.gmra.mxu0 %v371
    %v373 = vpop.f32.mrf.mxu0
    %v374 = vadd.f32 %v320, %v373
    %v375 = vand.u32 %v338, 4294901760
    %v376 = vsub.f32 %v338, %v375
    %v377 = vand.u32 %v376, 4294901760
    %v378 = vsub.f32 %v376, %v377
    %v379 = vand.u32 %v378, 4294901760
    %380 = vmatmul.f32.gmra.mxu0 %v379
    %v381 = vpop.f32.mrf.mxu0
    %v382 = vadd.f32 %v324, %v381
    %v383 = vand.u32 %v341, 4294901760
    %v384 = vsub.f32 %v341, %v383
    %v385 = vand.u32 %v384, 4294901760
    %v386 = vsub.f32 %v384, %v385
    %v387 = vand.u32 %v386, 4294901760
    %388 = vmatmul.f32.gmra.mxu0 %v387
    %v389 = vpop.f32.mrf.mxu0
    %v390 = vadd.f32 %v328, %v389
    %v391 = vand.u32 %v344, 4294901760
    %v392 = vsub.f32 %v344, %v391
    %v393 = vand.u32 %v392, 4294901760
    %v394 = vsub.f32 %v392, %v393
    %v395 = vand.u32 %v394, 4294901760
    %396 = vmatmul.f32.gmra.mxu0 %v395
    %v397 = vpop.f32.mrf.mxu0
    %v398 = vadd.f32 %v332, %v397
    %399 = vdwg.mxu0
    %400 = vmatpush.msra.mxu0 0.0
    %401 = vmatpush.msra.mxu0 0.0
    %402 = vmatpush.msra.mxu0 0.0
    %403 = vmatpush.msra.mxu0 0.0
    %404 = vmatpush.msra.mxu0 0.0
    %405 = vmatpush.msra.mxu0 0.0
    %406 = vmatpush.msra.mxu0 0.0
    %407 = vmatpush.msra.mxu0 0.0
    %408 = vmatpush.msra.mxu0 0.0
    %409 = vmatpush.msra.mxu0 0.0
    %410 = vmatpush.msra.mxu0 0.0
    %411 = vmatpush.msra.mxu0 0.0
    %412 = vmatpush.msra.mxu0 0.0
    %413 = vmatpush.msra.mxu0 0.0
    %v414 = vand.u32 %v347, 4294901760
    %v415 = vsub.f32 %v347, %v414
    %v416 = vand.u32 %v415, 4294901760
    %v417 = vsub.f32 %v415, %v416
    %v418 = vand.u32 %v417, 4294901760
    %419 = vmatpush.msra.mxu0 %v418
    %v420 = vand.u32 %v55, 4294901760
    %v421 = vsub.f32 %v55, %v420
    %v422 = vand.u32 %v421, 4294901760
    %v423 = vsub.f32 %v421, %v422
    %v424 = vand.u32 %v423, 4294901760
    %425 = vmatpush.msra.mxu0 %v424
    %v426 = vand.u32 %v335, 4294901760
    %427 = vmatmul.f32.gmra.mxu0 %v426
    %v428 = vpop.f32.mrf.mxu0
    %v429 = vadd.f32 %v374, %v428
    %v430 = vand.u32 %v338, 4294901760
    %431 = vmatmul.f32.gmra.mxu0 %v430
    %v432 = vpop.f32.mrf.mxu0
    %v433 = vadd.f32 %v382, %v432
    %v434 = vand.u32 %v341, 4294901760
    %435 = vmatmul.f32.gmra.mxu0 %v434
    %v436 = vpop.f32.mrf.mxu0
    %v437 = vadd.f32 %v390, %v436
    %v438 = vand.u32 %v344, 4294901760
    %439 = vmatmul.f32.gmra.mxu0 %v438
    %v440 = vpop.f32.mrf.mxu0
    %v441 = vadd.f32 %v398, %v440
    %442 = vdwg.mxu0
    %443 = vmatpush.msra.mxu0 0.0
    %444 = vmatpush.msra.mxu0 0.0
    %445 = vmatpush.msra.mxu0 0.0
    %446 = vmatpush.msra.mxu0 0.0
    %447 = vmatpush.msra.mxu0 0.0
    %448 = vmatpush.msra.mxu0 0.0
    %449 = vmatpush.msra.mxu0 0.0
    %450 = vmatpush.msra.mxu0 0.0
    %451 = vmatpush.msra.mxu0 0.0
    %452 = vmatpush.msra.mxu0 0.0
    %453 = vmatpush.msra.mxu0 0.0
    %454 = vmatpush.msra.mxu0 0.0
    %455 = vmatpush.msra.mxu0 0.0
    %456 = vmatpush.msra.mxu0 0.0
    %v457 = vand.u32 %v347, 4294901760
    %v458 = vsub.f32 %v347, %v457
    %459 = vmatpush.msra.mxu0 %v458
    %v460 = vand.u32 %v55, 4294901760
    %v461 = vsub.f32 %v55, %v460
    %462 = vmatpush.msra.mxu0 %v461
    %v463 = vand.u32 %v335, 4294901760
    %v464 = vsub.f32 %v335, %v463
    %465 = vmatmul.f32.gmra.mxu0 %v464
    %v466 = vpop.f32.mrf.mxu0
    %v467 = vadd.f32 %v429, %v466
    %v468 = vand.u32 %v338, 4294901760
    %v469 = vsub.f32 %v338, %v468
    %470 = vmatmul.f32.gmra.mxu0 %v469
    %v471 = vpop.f32.mrf.mxu0
    %v472 = vadd.f32 %v433, %v471
    %v473 = vand.u32 %v341, 4294901760
    %v474 = vsub.f32 %v341, %v473
    %475 = vmatmul.f32.gmra.mxu0 %v474
    %v476 = vpop.f32.mrf.mxu0
    %v477 = vadd.f32 %v437, %v476
    %v478 = vand.u32 %v344, 4294901760
    %v479 = vsub.f32 %v344, %v478
    %480 = vmatmul.f32.gmra.mxu0 %v479
    %v481 = vpop.f32.mrf.mxu0
    %v482 = vadd.f32 %v441, %v481
    %483 = vdwg.mxu0
    %484 = vmatpush.msra.mxu0 0.0
    %485 = vmatpush.msra.mxu0 0.0
    %486 = vmatpush.msra.mxu0 0.0
    %487 = vmatpush.msra.mxu0 0.0
    %488 = vmatpush.msra.mxu0 0.0
    %489 = vmatpush.msra.mxu0 0.0
    %490 = vmatpush.msra.mxu0 0.0
    %491 = vmatpush.msra.mxu0 0.0
    %492 = vmatpush.msra.mxu0 0.0
    %493 = vmatpush.msra.mxu0 0.0
    %494 = vmatpush.msra.mxu0 0.0
    %495 = vmatpush.msra.mxu0 0.0
    %496 = vmatpush.msra.mxu0 0.0
    %497 = vmatpush.msra.mxu0 0.0
    %v498 = vand.u32 %v347, 4294901760
    %499 = vmatpush.msra.mxu0 %v498
    %v500 = vand.u32 %v55, 4294901760
    %501 = vmatpush.msra.mxu0 %v500
    %v502 = vand.u32 %v335, 4294901760
    %v503 = vsub.f32 %v335, %v502
    %v504 = vand.u32 %v503, 4294901760
    %505 = vmatmul.f32.gmra.mxu0 %v504
    %v506 = vpop.f32.mrf.mxu0
    %v507 = vadd.f32 %v467, %v506
    %v508 = vand.u32 %v338, 4294901760
    %v509 = vsub.f32 %v338, %v508
    %v510 = vand.u32 %v509, 4294901760
    %511 = vmatmul.f32.gmra.mxu0 %v510
    %v512 = vpop.f32.mrf.mxu0
    %v513 = vadd.f32 %v472, %v512
    %v514 = vand.u32 %v341, 4294901760
    %v515 = vsub.f32 %v341, %v514
    %v516 = vand.u32 %v515, 4294901760
    %517 = vmatmul.f32.gmra.mxu0 %v516
    %v518 = vpop.f32.mrf.mxu0
    %v519 = vadd.f32 %v477, %v518
    %v520 = vand.u32 %v344, 4294901760
    %v521 = vsub.f32 %v344, %v520
    %v522 = vand.u32 %v521, 4294901760
    %523 = vmatmul.f32.gmra.mxu0 %v522
    %v524 = vpop.f32.mrf.mxu0
    %v525 = vadd.f32 %v482, %v524
    %526 = vdwg.mxu0
    %527 = vmatpush.msra.mxu0 0.0
    %528 = vmatpush.msra.mxu0 0.0
    %529 = vmatpush.msra.mxu0 0.0
    %530 = vmatpush.msra.mxu0 0.0
    %531 = vmatpush.msra.mxu0 0.0
    %532 = vmatpush.msra.mxu0 0.0
    %533 = vmatpush.msra.mxu0 0.0
    %534 = vmatpush.msra.mxu0 0.0
    %535 = vmatpush.msra.mxu0 0.0
    %536 = vmatpush.msra.mxu0 0.0
    %537 = vmatpush.msra.mxu0 0.0
    %538 = vmatpush.msra.mxu0 0.0
    %539 = vmatpush.msra.mxu0 0.0
    %540 = vmatpush.msra.mxu0 0.0
    %v541 = vand.u32 %v347, 4294901760
    %v542 = vsub.f32 %v347, %v541
    %v543 = vand.u32 %v542, 4294901760
    %544 = vmatpush.msra.mxu0 %v543
    %v545 = vand.u32 %v55, 4294901760
    %v546 = vsub.f32 %v55, %v545
    %v547 = vand.u32 %v546, 4294901760
    %548 = vmatpush.msra.mxu0 %v547
    %v549 = vand.u32 %v335, 4294901760
    %550 = vmatmul.f32.gmra.mxu0 %v549
    %v551 = vpop.f32.mrf.mxu0
    %v552 = vadd.f32 %v507, %v551
    %v553 = vand.u32 %v338, 4294901760
    %554 = vmatmul.f32.gmra.mxu0 %v553
    %v555 = vpop.f32.mrf.mxu0
    %v556 = vadd.f32 %v513, %v555
    %v557 = vand.u32 %v341, 4294901760
    %558 = vmatmul.f32.gmra.mxu0 %v557
    %v559 = vpop.f32.mrf.mxu0
    %v560 = vadd.f32 %v519, %v559
    %v561 = vand.u32 %v344, 4294901760
    %562 = vmatmul.f32.gmra.mxu0 %v561
    %v563 = vpop.f32.mrf.mxu0
    %v564 = vadd.f32 %v525, %v563
    %565 = vdwg.mxu0
    %566 = vmatpush.msra.mxu0 0.0
    %567 = vmatpush.msra.mxu0 0.0
    %568 = vmatpush.msra.mxu0 0.0
    %569 = vmatpush.msra.mxu0 0.0
    %570 = vmatpush.msra.mxu0 0.0
    %571 = vmatpush.msra.mxu0 0.0
    %572 = vmatpush.msra.mxu0 0.0
    %573 = vmatpush.msra.mxu0 0.0
    %574 = vmatpush.msra.mxu0 0.0
    %575 = vmatpush.msra.mxu0 0.0
    %576 = vmatpush.msra.mxu0 0.0
    %577 = vmatpush.msra.mxu0 0.0
    %578 = vmatpush.msra.mxu0 0.0
    %579 = vmatpush.msra.mxu0 0.0
    %v580 = vand.u32 %v347, 4294901760
    %581 = vmatpush.msra.mxu0 %v580
    %v582 = vand.u32 %v55, 4294901760
    %583 = vmatpush.msra.mxu0 %v582
    %v584 = vand.u32 %v335, 4294901760
    %585 = vmatmul.f32.gmra.mxu0 %v584
    %v586 = vpop.f32.mrf.mxu0
    %v587 = vadd.f32 %v552, %v586
    %v588 = vand.u32 %v338, 4294901760
    %589 = vmatmul.f32.gmra.mxu0 %v588
    %v590 = vpop.f32.mrf.mxu0
    %v591 = vadd.f32 %v556, %v590
    %v592 = vand.u32 %v341, 4294901760
    %593 = vmatmul.f32.gmra.mxu0 %v592
    %v594 = vpop.f32.mrf.mxu0
    %v595 = vadd.f32 %v560, %v594
    %v596 = vand.u32 %v344, 4294901760
    %597 = vmatmul.f32.gmra.mxu0 %v596
    %v598 = vpop.f32.mrf.mxu0
    %v599 = vadd.f32 %v564, %v598
    %600 = vdwg.mxu0
    %s601 = scalar_lea.vmem %s1, 80
    %v602 = vld [vmem:[%s601] sm:$0xff]
    %v603 = vld [vmem:[%s601 + $0x8] sm:$0x7f]
    %v605 = vsel %vm78, %v603, 0
    %607 = vmatpush.msra.mxu0 0.0
    %608 = vmatpush.msra.mxu0 0.0
    %609 = vmatpush.msra.mxu0 0.0
    %610 = vmatpush.msra.mxu0 0.0
    %611 = vmatpush.msra.mxu0 0.0
    %612 = vmatpush.msra.mxu0 0.0
    %613 = vmatpush.msra.mxu0 0.0
    %614 = vmatpush.msra.mxu0 0.0
    %615 = vmatpush.msra.mxu0 0.0
    %616 = vmatpush.msra.mxu0 0.0
    %617 = vmatpush.msra.mxu0 0.0
    %618 = vmatpush.msra.mxu0 0.0
    %619 = vmatpush.msra.mxu0 0.0
    %620 = vmatpush.msra.mxu0 0.0
    %v621 = vand.u32 %v605, 4294901760
    %622 = vmatpush.msra.mxu0 %v621
    %v623 = vand.u32 %v602, 4294901760
    %624 = vmatpush.msra.mxu0 %v623
    %v625 = vand.u32 %v67, 4294901760
    %v626 = vsub.f32 %v67, %v625
    %v627 = vand.u32 %v626, 4294901760
    %v628 = vsub.f32 %v626, %v627
    %v629 = vand.u32 %v628, 4294901760
    %630 = vmatmul.f32.gmra.mxu0 %v629
    %v631 = vpop.f32.mrf.mxu0
    %v632 = vadd.f32 0.0, %v631
    %v633 = vand.u32 %v70, 4294901760
    %v634 = vsub.f32 %v70, %v633
    %v635 = vand.u32 %v634, 4294901760
    %v636 = vsub.f32 %v634, %v635
    %v637 = vand.u32 %v636, 4294901760
    %638 = vmatmul.f32.gmra.mxu0 %v637
    %v639 = vpop.f32.mrf.mxu0
    %v640 = vadd.f32 0.0, %v639
    %v641 = vand.u32 %v73, 4294901760
    %v642 = vsub.f32 %v73, %v641
    %v643 = vand.u32 %v642, 4294901760
    %v644 = vsub.f32 %v642, %v643
    %v645 = vand.u32 %v644, 4294901760
    %646 = vmatmul.f32.gmra.mxu0 %v645
    %v647 = vpop.f32.mrf.mxu0
    %v648 = vadd.f32 0.0, %v647
    %v649 = vand.u32 %v76, 4294901760
    %v650 = vsub.f32 %v76, %v649
    %v651 = vand.u32 %v650, 4294901760
    %v652 = vsub.f32 %v650, %v651
    %v653 = vand.u32 %v652, 4294901760
    %654 = vmatmul.f32.gmra.mxu0 %v653
    %v655 = vpop.f32.mrf.mxu0
    %v656 = vadd.f32 0.0, %v655
    %657 = vdwg.mxu0
    %658 = vmatpush.msra.mxu0 0.0
    %659 = vmatpush.msra.mxu0 0.0
    %660 = vmatpush.msra.mxu0 0.0
    %661 = vmatpush.msra.mxu0 0.0
    %662 = vmatpush.msra.mxu0 0.0
    %663 = vmatpush.msra.mxu0 0.0
    %664 = vmatpush.msra.mxu0 0.0
    %665 = vmatpush.msra.mxu0 0.0
    %666 = vmatpush.msra.mxu0 0.0
    %667 = vmatpush.msra.mxu0 0.0
    %668 = vmatpush.msra.mxu0 0.0
    %669 = vmatpush.msra.mxu0 0.0
    %670 = vmatpush.msra.mxu0 0.0
    %671 = vmatpush.msra.mxu0 0.0
    %v672 = vand.u32 %v605, 4294901760
    %v673 = vsub.f32 %v605, %v672
    %v674 = vand.u32 %v673, 4294901760
    %v675 = vsub.f32 %v673, %v674
    %v676 = vand.u32 %v675, 4294901760
    %677 = vmatpush.msra.mxu0 %v676
    %v678 = vand.u32 %v602, 4294901760
    %v679 = vsub.f32 %v602, %v678
    %v680 = vand.u32 %v679, 4294901760
    %v681 = vsub.f32 %v679, %v680
    %v682 = vand.u32 %v681, 4294901760
    %683 = vmatpush.msra.mxu0 %v682
    %v684 = vand.u32 %v67, 4294901760
    %685 = vmatmul.f32.gmra.mxu0 %v684
    %v686 = vpop.f32.mrf.mxu0
    %v687 = vadd.f32 %v632, %v686
    %v688 = vand.u32 %v70, 4294901760
    %689 = vmatmul.f32.gmra.mxu0 %v688
    %v690 = vpop.f32.mrf.mxu0
    %v691 = vadd.f32 %v640, %v690
    %v692 = vand.u32 %v73, 4294901760
    %693 = vmatmul.f32.gmra.mxu0 %v692
    %v694 = vpop.f32.mrf.mxu0
    %v695 = vadd.f32 %v648, %v694
    %v696 = vand.u32 %v76, 4294901760
    %697 = vmatmul.f32.gmra.mxu0 %v696
    %v698 = vpop.f32.mrf.mxu0
    %v699 = vadd.f32 %v656, %v698
    %700 = vdwg.mxu0
    %701 = vmatpush.msra.mxu0 0.0
    %702 = vmatpush.msra.mxu0 0.0
    %703 = vmatpush.msra.mxu0 0.0
    %704 = vmatpush.msra.mxu0 0.0
    %705 = vmatpush.msra.mxu0 0.0
    %706 = vmatpush.msra.mxu0 0.0
    %707 = vmatpush.msra.mxu0 0.0
    %708 = vmatpush.msra.mxu0 0.0
    %709 = vmatpush.msra.mxu0 0.0
    %710 = vmatpush.msra.mxu0 0.0
    %711 = vmatpush.msra.mxu0 0.0
    %712 = vmatpush.msra.mxu0 0.0
    %713 = vmatpush.msra.mxu0 0.0
    %714 = vmatpush.msra.mxu0 0.0
    %v715 = vand.u32 %v605, 4294901760
    %v716 = vsub.f32 %v605, %v715
    %717 = vmatpush.msra.mxu0 %v716
    %v718 = vand.u32 %v602, 4294901760
    %v719 = vsub.f32 %v602, %v718
    %720 = vmatpush.msra.mxu0 %v719
    %v721 = vand.u32 %v67, 4294901760
    %v722 = vsub.f32 %v67, %v721
    %723 = vmatmul.f32.gmra.mxu0 %v722
    %v724 = vpop.f32.mrf.mxu0
    %v725 = vadd.f32 %v687, %v724
    %v726 = vand.u32 %v70, 4294901760
    %v727 = vsub.f32 %v70, %v726
    %728 = vmatmul.f32.gmra.mxu0 %v727
    %v729 = vpop.f32.mrf.mxu0
    %v730 = vadd.f32 %v691, %v729
    %v731 = vand.u32 %v73, 4294901760
    %v732 = vsub.f32 %v73, %v731
    %733 = vmatmul.f32.gmra.mxu0 %v732
    %v734 = vpop.f32.mrf.mxu0
    %v735 = vadd.f32 %v695, %v734
    %v736 = vand.u32 %v76, 4294901760
    %v737 = vsub.f32 %v76, %v736
    %738 = vmatmul.f32.gmra.mxu0 %v737
    %v739 = vpop.f32.mrf.mxu0
    %v740 = vadd.f32 %v699, %v739
    %741 = vdwg.mxu0
    %742 = vmatpush.msra.mxu0 0.0
    %743 = vmatpush.msra.mxu0 0.0
    %744 = vmatpush.msra.mxu0 0.0
    %745 = vmatpush.msra.mxu0 0.0
    %746 = vmatpush.msra.mxu0 0.0
    %747 = vmatpush.msra.mxu0 0.0
    %748 = vmatpush.msra.mxu0 0.0
    %749 = vmatpush.msra.mxu0 0.0
    %750 = vmatpush.msra.mxu0 0.0
    %751 = vmatpush.msra.mxu0 0.0
    %752 = vmatpush.msra.mxu0 0.0
    %753 = vmatpush.msra.mxu0 0.0
    %754 = vmatpush.msra.mxu0 0.0
    %755 = vmatpush.msra.mxu0 0.0
    %v756 = vand.u32 %v605, 4294901760
    %757 = vmatpush.msra.mxu0 %v756
    %v758 = vand.u32 %v602, 4294901760
    %759 = vmatpush.msra.mxu0 %v758
    %v760 = vand.u32 %v67, 4294901760
    %v761 = vsub.f32 %v67, %v760
    %v762 = vand.u32 %v761, 4294901760
    %763 = vmatmul.f32.gmra.mxu0 %v762
    %v764 = vpop.f32.mrf.mxu0
    %v765 = vadd.f32 %v725, %v764
    %v766 = vand.u32 %v70, 4294901760
    %v767 = vsub.f32 %v70, %v766
    %v768 = vand.u32 %v767, 4294901760
    %769 = vmatmul.f32.gmra.mxu0 %v768
    %v770 = vpop.f32.mrf.mxu0
    %v771 = vadd.f32 %v730, %v770
    %v772 = vand.u32 %v73, 4294901760
    %v773 = vsub.f32 %v73, %v772
    %v774 = vand.u32 %v773, 4294901760
    %775 = vmatmul.f32.gmra.mxu0 %v774
    %v776 = vpop.f32.mrf.mxu0
    %v777 = vadd.f32 %v735, %v776
    %v778 = vand.u32 %v76, 4294901760
    %v779 = vsub.f32 %v76, %v778
    %v780 = vand.u32 %v779, 4294901760
    %781 = vmatmul.f32.gmra.mxu0 %v780
    %v782 = vpop.f32.mrf.mxu0
    %v783 = vadd.f32 %v740, %v782
    %784 = vdwg.mxu0
    %785 = vmatpush.msra.mxu0 0.0
    %786 = vmatpush.msra.mxu0 0.0
    %787 = vmatpush.msra.mxu0 0.0
    %788 = vmatpush.msra.mxu0 0.0
    %789 = vmatpush.msra.mxu0 0.0
    %790 = vmatpush.msra.mxu0 0.0
    %791 = vmatpush.msra.mxu0 0.0
    %792 = vmatpush.msra.mxu0 0.0
    %793 = vmatpush.msra.mxu0 0.0
    %794 = vmatpush.msra.mxu0 0.0
    %795 = vmatpush.msra.mxu0 0.0
    %796 = vmatpush.msra.mxu0 0.0
    %797 = vmatpush.msra.mxu0 0.0
    %798 = vmatpush.msra.mxu0 0.0
    %v799 = vand.u32 %v605, 4294901760
    %v800 = vsub.f32 %v605, %v799
    %v801 = vand.u32 %v800, 4294901760
    %802 = vmatpush.msra.mxu0 %v801
    %v803 = vand.u32 %v602, 4294901760
    %v804 = vsub.f32 %v602, %v803
    %v805 = vand.u32 %v804, 4294901760
    %806 = vmatpush.msra.mxu0 %v805
    %v807 = vand.u32 %v67, 4294901760
    %808 = vmatmul.f32.gmra.mxu0 %v807
    %v809 = vpop.f32.mrf.mxu0
    %v810 = vadd.f32 %v765, %v809
    %v811 = vand.u32 %v70, 4294901760
    %812 = vmatmul.f32.gmra.mxu0 %v811
    %v813 = vpop.f32.mrf.mxu0
    %v814 = vadd.f32 %v771, %v813
    %v815 = vand.u32 %v73, 4294901760
    %816 = vmatmul.f32.gmra.mxu0 %v815
    %v817 = vpop.f32.mrf.mxu0
    %v818 = vadd.f32 %v777, %v817
    %v819 = vand.u32 %v76, 4294901760
    %820 = vmatmul.f32.gmra.mxu0 %v819
    %v821 = vpop.f32.mrf.mxu0
    %v822 = vadd.f32 %v783, %v821
    %823 = vdwg.mxu0
    %824 = vmatpush.msra.mxu0 0.0
    %825 = vmatpush.msra.mxu0 0.0
    %826 = vmatpush.msra.mxu0 0.0
    %827 = vmatpush.msra.mxu0 0.0
    %828 = vmatpush.msra.mxu0 0.0
    %829 = vmatpush.msra.mxu0 0.0
    %830 = vmatpush.msra.mxu0 0.0
    %831 = vmatpush.msra.mxu0 0.0
    %832 = vmatpush.msra.mxu0 0.0
    %833 = vmatpush.msra.mxu0 0.0
    %834 = vmatpush.msra.mxu0 0.0
    %835 = vmatpush.msra.mxu0 0.0
    %836 = vmatpush.msra.mxu0 0.0
    %837 = vmatpush.msra.mxu0 0.0
    %v838 = vand.u32 %v605, 4294901760
    %839 = vmatpush.msra.mxu0 %v838
    %v840 = vand.u32 %v602, 4294901760
    %841 = vmatpush.msra.mxu0 %v840
    %v842 = vand.u32 %v67, 4294901760
    %843 = vmatmul.f32.gmra.mxu0 %v842
    %v844 = vpop.f32.mrf.mxu0
    %v845 = vadd.f32 %v810, %v844
    %v846 = vand.u32 %v70, 4294901760
    %847 = vmatmul.f32.gmra.mxu0 %v846
    %v848 = vpop.f32.mrf.mxu0
    %v849 = vadd.f32 %v814, %v848
    %v850 = vand.u32 %v73, 4294901760
    %851 = vmatmul.f32.gmra.mxu0 %v850
    %v852 = vpop.f32.mrf.mxu0
    %v853 = vadd.f32 %v818, %v852
    %v854 = vand.u32 %v76, 4294901760
    %855 = vmatmul.f32.gmra.mxu0 %v854
    %v856 = vpop.f32.mrf.mxu0
    %v857 = vadd.f32 %v822, %v856
    %858 = vdwg.mxu0
    %v860 = vsel %vm78, %v59, 0
    %862 = vmatpush.msra.mxu0 0.0
    %863 = vmatpush.msra.mxu0 0.0
    %864 = vmatpush.msra.mxu0 0.0
    %865 = vmatpush.msra.mxu0 0.0
    %866 = vmatpush.msra.mxu0 0.0
    %867 = vmatpush.msra.mxu0 0.0
    %868 = vmatpush.msra.mxu0 0.0
    %869 = vmatpush.msra.mxu0 0.0
    %870 = vmatpush.msra.mxu0 0.0
    %871 = vmatpush.msra.mxu0 0.0
    %872 = vmatpush.msra.mxu0 0.0
    %873 = vmatpush.msra.mxu0 0.0
    %874 = vmatpush.msra.mxu0 0.0
    %875 = vmatpush.msra.mxu0 0.0
    %v876 = vand.u32 %v860, 4294901760
    %877 = vmatpush.msra.mxu0 %v876
    %v878 = vand.u32 %v58, 4294901760
    %879 = vmatpush.msra.mxu0 %v878
    %v880 = vand.u32 %v335, 4294901760
    %v881 = vsub.f32 %v335, %v880
    %v882 = vand.u32 %v881, 4294901760
    %v883 = vsub.f32 %v881, %v882
    %v884 = vand.u32 %v883, 4294901760
    %885 = vmatmul.f32.gmra.mxu0 %v884
    %v886 = vpop.f32.mrf.mxu0
    %v887 = vadd.f32 %v845, %v886
    %v888 = vand.u32 %v338, 4294901760
    %v889 = vsub.f32 %v338, %v888
    %v890 = vand.u32 %v889, 4294901760
    %v891 = vsub.f32 %v889, %v890
    %v892 = vand.u32 %v891, 4294901760
    %893 = vmatmul.f32.gmra.mxu0 %v892
    %v894 = vpop.f32.mrf.mxu0
    %v895 = vadd.f32 %v849, %v894
    %v896 = vand.u32 %v341, 4294901760
    %v897 = vsub.f32 %v341, %v896
    %v898 = vand.u32 %v897, 4294901760
    %v899 = vsub.f32 %v897, %v898
    %v900 = vand.u32 %v899, 4294901760
    %901 = vmatmul.f32.gmra.mxu0 %v900
    %v902 = vpop.f32.mrf.mxu0
    %v903 = vadd.f32 %v853, %v902
    %v904 = vand.u32 %v344, 4294901760
    %v905 = vsub.f32 %v344, %v904
    %v906 = vand.u32 %v905, 4294901760
    %v907 = vsub.f32 %v905, %v906
    %v908 = vand.u32 %v907, 4294901760
    %909 = vmatmul.f32.gmra.mxu0 %v908
    %v910 = vpop.f32.mrf.mxu0
    %v911 = vadd.f32 %v857, %v910
    %912 = vdwg.mxu0
    %913 = vmatpush.msra.mxu0 0.0
    %914 = vmatpush.msra.mxu0 0.0
    %915 = vmatpush.msra.mxu0 0.0
    %916 = vmatpush.msra.mxu0 0.0
    %917 = vmatpush.msra.mxu0 0.0
    %918 = vmatpush.msra.mxu0 0.0
    %919 = vmatpush.msra.mxu0 0.0
    %920 = vmatpush.msra.mxu0 0.0
    %921 = vmatpush.msra.mxu0 0.0
    %922 = vmatpush.msra.mxu0 0.0
    %923 = vmatpush.msra.mxu0 0.0
    %924 = vmatpush.msra.mxu0 0.0
    %925 = vmatpush.msra.mxu0 0.0
    %926 = vmatpush.msra.mxu0 0.0
    %v927 = vand.u32 %v860, 4294901760
    %v928 = vsub.f32 %v860, %v927
    %v929 = vand.u32 %v928, 4294901760
    %v930 = vsub.f32 %v928, %v929
    %v931 = vand.u32 %v930, 4294901760
    %932 = vmatpush.msra.mxu0 %v931
    %v933 = vand.u32 %v58, 4294901760
    %v934 = vsub.f32 %v58, %v933
    %v935 = vand.u32 %v934, 4294901760
    %v936 = vsub.f32 %v934, %v935
    %v937 = vand.u32 %v936, 4294901760
    %938 = vmatpush.msra.mxu0 %v937
    %v939 = vand.u32 %v335, 4294901760
    %940 = vmatmul.f32.gmra.mxu0 %v939
    %v941 = vpop.f32.mrf.mxu0
    %v942 = vadd.f32 %v887, %v941
    %v943 = vand.u32 %v338, 4294901760
    %944 = vmatmul.f32.gmra.mxu0 %v943
    %v945 = vpop.f32.mrf.mxu0
    %v946 = vadd.f32 %v895, %v945
    %v947 = vand.u32 %v341, 4294901760
    %948 = vmatmul.f32.gmra.mxu0 %v947
    %v949 = vpop.f32.mrf.mxu0
    %v950 = vadd.f32 %v903, %v949
    %v951 = vand.u32 %v344, 4294901760
    %952 = vmatmul.f32.gmra.mxu0 %v951
    %v953 = vpop.f32.mrf.mxu0
    %v954 = vadd.f32 %v911, %v953
    %955 = vdwg.mxu0
    %956 = vmatpush.msra.mxu0 0.0
    %957 = vmatpush.msra.mxu0 0.0
    %958 = vmatpush.msra.mxu0 0.0
    %959 = vmatpush.msra.mxu0 0.0
    %960 = vmatpush.msra.mxu0 0.0
    %961 = vmatpush.msra.mxu0 0.0
    %962 = vmatpush.msra.mxu0 0.0
    %963 = vmatpush.msra.mxu0 0.0
    %964 = vmatpush.msra.mxu0 0.0
    %965 = vmatpush.msra.mxu0 0.0
    %966 = vmatpush.msra.mxu0 0.0
    %967 = vmatpush.msra.mxu0 0.0
    %968 = vmatpush.msra.mxu0 0.0
    %969 = vmatpush.msra.mxu0 0.0
    %v970 = vand.u32 %v860, 4294901760
    %v971 = vsub.f32 %v860, %v970
    %972 = vmatpush.msra.mxu0 %v971
    %v973 = vand.u32 %v58, 4294901760
    %v974 = vsub.f32 %v58, %v973
    %975 = vmatpush.msra.mxu0 %v974
    %v976 = vand.u32 %v335, 4294901760
    %v977 = vsub.f32 %v335, %v976
    %978 = vmatmul.f32.gmra.mxu0 %v977
    %v979 = vpop.f32.mrf.mxu0
    %v980 = vadd.f32 %v942, %v979
    %v981 = vand.u32 %v338, 4294901760
    %v982 = vsub.f32 %v338, %v981
    %983 = vmatmul.f32.gmra.mxu0 %v982
    %v984 = vpop.f32.mrf.mxu0
    %v985 = vadd.f32 %v946, %v984
    %v986 = vand.u32 %v341, 4294901760
    %v987 = vsub.f32 %v341, %v986
    %988 = vmatmul.f32.gmra.mxu0 %v987
    %v989 = vpop.f32.mrf.mxu0
    %v990 = vadd.f32 %v950, %v989
    %v991 = vand.u32 %v344, 4294901760
    %v992 = vsub.f32 %v344, %v991
    %993 = vmatmul.f32.gmra.mxu0 %v992
    %v994 = vpop.f32.mrf.mxu0
    %v995 = vadd.f32 %v954, %v994
    %996 = vdwg.mxu0
    %997 = vmatpush.msra.mxu0 0.0
    %998 = vmatpush.msra.mxu0 0.0
    %999 = vmatpush.msra.mxu0 0.0
    %1000 = vmatpush.msra.mxu0 0.0
    %1001 = vmatpush.msra.mxu0 0.0
    %1002 = vmatpush.msra.mxu0 0.0
    %1003 = vmatpush.msra.mxu0 0.0
    %1004 = vmatpush.msra.mxu0 0.0
    %1005 = vmatpush.msra.mxu0 0.0
    %1006 = vmatpush.msra.mxu0 0.0
    %1007 = vmatpush.msra.mxu0 0.0
    %1008 = vmatpush.msra.mxu0 0.0
    %1009 = vmatpush.msra.mxu0 0.0
    %1010 = vmatpush.msra.mxu0 0.0
    %v1011 = vand.u32 %v860, 4294901760
    %1012 = vmatpush.msra.mxu0 %v1011
    %v1013 = vand.u32 %v58, 4294901760
    %1014 = vmatpush.msra.mxu0 %v1013
    %v1015 = vand.u32 %v335, 4294901760
    %v1016 = vsub.f32 %v335, %v1015
    %v1017 = vand.u32 %v1016, 4294901760
    %1018 = vmatmul.f32.gmra.mxu0 %v1017
    %v1019 = vpop.f32.mrf.mxu0
    %v1020 = vadd.f32 %v980, %v1019
    %v1021 = vand.u32 %v338, 4294901760
    %v1022 = vsub.f32 %v338, %v1021
    %v1023 = vand.u32 %v1022, 4294901760
    %1024 = vmatmul.f32.gmra.mxu0 %v1023
    %v1025 = vpop.f32.mrf.mxu0
    %v1026 = vadd.f32 %v985, %v1025
    %v1027 = vand.u32 %v341, 4294901760
    %v1028 = vsub.f32 %v341, %v1027
    %v1029 = vand.u32 %v1028, 4294901760
    %1030 = vmatmul.f32.gmra.mxu0 %v1029
    %v1031 = vpop.f32.mrf.mxu0
    %v1032 = vadd.f32 %v990, %v1031
    %v1033 = vand.u32 %v344, 4294901760
    %v1034 = vsub.f32 %v344, %v1033
    %v1035 = vand.u32 %v1034, 4294901760
    %1036 = vmatmul.f32.gmra.mxu0 %v1035
    %v1037 = vpop.f32.mrf.mxu0
    %v1038 = vadd.f32 %v995, %v1037
    %1039 = vdwg.mxu0
    %1040 = vmatpush.msra.mxu0 0.0
    %1041 = vmatpush.msra.mxu0 0.0
    %1042 = vmatpush.msra.mxu0 0.0
    %1043 = vmatpush.msra.mxu0 0.0
    %1044 = vmatpush.msra.mxu0 0.0
    %1045 = vmatpush.msra.mxu0 0.0
    %1046 = vmatpush.msra.mxu0 0.0
    %1047 = vmatpush.msra.mxu0 0.0
    %1048 = vmatpush.msra.mxu0 0.0
    %1049 = vmatpush.msra.mxu0 0.0
    %1050 = vmatpush.msra.mxu0 0.0
    %1051 = vmatpush.msra.mxu0 0.0
    %1052 = vmatpush.msra.mxu0 0.0
    %1053 = vmatpush.msra.mxu0 0.0
    %v1054 = vand.u32 %v860, 4294901760
    %v1055 = vsub.f32 %v860, %v1054
    %v1056 = vand.u32 %v1055, 4294901760
    %1057 = vmatpush.msra.mxu0 %v1056
    %v1058 = vand.u32 %v58, 4294901760
    %v1059 = vsub.f32 %v58, %v1058
    %v1060 = vand.u32 %v1059, 4294901760
    %1061 = vmatpush.msra.mxu0 %v1060
    %v1062 = vand.u32 %v335, 4294901760
    %1063 = vmatmul.f32.gmra.mxu0 %v1062
    %v1064 = vpop.f32.mrf.mxu0
    %v1065 = vadd.f32 %v1020, %v1064
    %v1066 = vand.u32 %v338, 4294901760
    %1067 = vmatmul.f32.gmra.mxu0 %v1066
    %v1068 = vpop.f32.mrf.mxu0
    %v1069 = vadd.f32 %v1026, %v1068
    %v1070 = vand.u32 %v341, 4294901760
    %1071 = vmatmul.f32.gmra.mxu0 %v1070
    %v1072 = vpop.f32.mrf.mxu0
    %v1073 = vadd.f32 %v1032, %v1072
    %v1074 = vand.u32 %v344, 4294901760
    %1075 = vmatmul.f32.gmra.mxu0 %v1074
    %v1076 = vpop.f32.mrf.mxu0
    %v1077 = vadd.f32 %v1038, %v1076
    %1078 = vdwg.mxu0
    %1079 = vmatpush.msra.mxu0 0.0
    %1080 = vmatpush.msra.mxu0 0.0
    %1081 = vmatpush.msra.mxu0 0.0
    %1082 = vmatpush.msra.mxu0 0.0
    %1083 = vmatpush.msra.mxu0 0.0
    %1084 = vmatpush.msra.mxu0 0.0
    %1085 = vmatpush.msra.mxu0 0.0
    %1086 = vmatpush.msra.mxu0 0.0
    %1087 = vmatpush.msra.mxu0 0.0
    %1088 = vmatpush.msra.mxu0 0.0
    %1089 = vmatpush.msra.mxu0 0.0
    %1090 = vmatpush.msra.mxu0 0.0
    %1091 = vmatpush.msra.mxu0 0.0
    %1092 = vmatpush.msra.mxu0 0.0
    %v1093 = vand.u32 %v860, 4294901760
    %1094 = vmatpush.msra.mxu0 %v1093
    %v1095 = vand.u32 %v58, 4294901760
    %1096 = vmatpush.msra.mxu0 %v1095
    %v1097 = vand.u32 %v335, 4294901760
    %1098 = vmatmul.f32.gmra.mxu0 %v1097
    %v1099 = vpop.f32.mrf.mxu0
    %v1100 = vadd.f32 %v1065, %v1099
    %v1101 = vand.u32 %v338, 4294901760
    %1102 = vmatmul.f32.gmra.mxu0 %v1101
    %v1103 = vpop.f32.mrf.mxu0
    %v1104 = vadd.f32 %v1069, %v1103
    %v1105 = vand.u32 %v341, 4294901760
    %1106 = vmatmul.f32.gmra.mxu0 %v1105
    %v1107 = vpop.f32.mrf.mxu0
    %v1108 = vadd.f32 %v1073, %v1107
    %v1109 = vand.u32 %v344, 4294901760
    %1110 = vmatmul.f32.gmra.mxu0 %v1109
    %v1111 = vpop.f32.mrf.mxu0
    %v1112 = vadd.f32 %v1077, %v1111
    %1113 = vdwg.mxu0
    %s1114 = scalar_lea.vmem %s3, 16
    %v1115 = vld [vmem:[%s1114] sm:$0xff]
    %v1116 = vld [vmem:[%s1114 + $0x8] sm:$0x7f]
    %v1118 = vsel %vm78, %v1116, 0
    %1120 = vmatpush.msra.mxu0 0.0
    %1121 = vmatpush.msra.mxu0 0.0
    %1122 = vmatpush.msra.mxu0 0.0
    %1123 = vmatpush.msra.mxu0 0.0
    %1124 = vmatpush.msra.mxu0 0.0
    %1125 = vmatpush.msra.mxu0 0.0
    %1126 = vmatpush.msra.mxu0 0.0
    %1127 = vmatpush.msra.mxu0 0.0
    %1128 = vmatpush.msra.mxu0 0.0
    %1129 = vmatpush.msra.mxu0 0.0
    %1130 = vmatpush.msra.mxu0 0.0
    %1131 = vmatpush.msra.mxu0 0.0
    %1132 = vmatpush.msra.mxu0 0.0
    %1133 = vmatpush.msra.mxu0 0.0
    %v1134 = vand.u32 %v1118, 4294901760
    %1135 = vmatpush.msra.mxu0 %v1134
    %v1136 = vand.u32 %v1115, 4294901760
    %1137 = vmatpush.msra.mxu0 %v1136
    %v1138 = vand.u32 %v67, 4294901760
    %v1139 = vsub.f32 %v67, %v1138
    %v1140 = vand.u32 %v1139, 4294901760
    %v1141 = vsub.f32 %v1139, %v1140
    %v1142 = vand.u32 %v1141, 4294901760
    %1143 = vmatmul.f32.gmra.mxu0 %v1142
    %v1144 = vpop.f32.mrf.mxu0
    %v1145 = vadd.f32 0.0, %v1144
    %v1146 = vand.u32 %v70, 4294901760
    %v1147 = vsub.f32 %v70, %v1146
    %v1148 = vand.u32 %v1147, 4294901760
    %v1149 = vsub.f32 %v1147, %v1148
    %v1150 = vand.u32 %v1149, 4294901760
    %1151 = vmatmul.f32.gmra.mxu0 %v1150
    %v1152 = vpop.f32.mrf.mxu0
    %v1153 = vadd.f32 0.0, %v1152
    %v1154 = vand.u32 %v73, 4294901760
    %v1155 = vsub.f32 %v73, %v1154
    %v1156 = vand.u32 %v1155, 4294901760
    %v1157 = vsub.f32 %v1155, %v1156
    %v1158 = vand.u32 %v1157, 4294901760
    %1159 = vmatmul.f32.gmra.mxu0 %v1158
    %v1160 = vpop.f32.mrf.mxu0
    %v1161 = vadd.f32 0.0, %v1160
    %v1162 = vand.u32 %v76, 4294901760
    %v1163 = vsub.f32 %v76, %v1162
    %v1164 = vand.u32 %v1163, 4294901760
    %v1165 = vsub.f32 %v1163, %v1164
    %v1166 = vand.u32 %v1165, 4294901760
    %1167 = vmatmul.f32.gmra.mxu0 %v1166
    %v1168 = vpop.f32.mrf.mxu0
    %v1169 = vadd.f32 0.0, %v1168
    %1170 = vdwg.mxu0
    %1171 = vmatpush.msra.mxu0 0.0
    %1172 = vmatpush.msra.mxu0 0.0
    %1173 = vmatpush.msra.mxu0 0.0
    %1174 = vmatpush.msra.mxu0 0.0
    %1175 = vmatpush.msra.mxu0 0.0
    %1176 = vmatpush.msra.mxu0 0.0
    %1177 = vmatpush.msra.mxu0 0.0
    %1178 = vmatpush.msra.mxu0 0.0
    %1179 = vmatpush.msra.mxu0 0.0
    %1180 = vmatpush.msra.mxu0 0.0
    %1181 = vmatpush.msra.mxu0 0.0
    %1182 = vmatpush.msra.mxu0 0.0
    %1183 = vmatpush.msra.mxu0 0.0
    %1184 = vmatpush.msra.mxu0 0.0
    %v1185 = vand.u32 %v1118, 4294901760
    %v1186 = vsub.f32 %v1118, %v1185
    %v1187 = vand.u32 %v1186, 4294901760
    %v1188 = vsub.f32 %v1186, %v1187
    %v1189 = vand.u32 %v1188, 4294901760
    %1190 = vmatpush.msra.mxu0 %v1189
    %v1191 = vand.u32 %v1115, 4294901760
    %v1192 = vsub.f32 %v1115, %v1191
    %v1193 = vand.u32 %v1192, 4294901760
    %v1194 = vsub.f32 %v1192, %v1193
    %v1195 = vand.u32 %v1194, 4294901760
    %1196 = vmatpush.msra.mxu0 %v1195
    %v1197 = vand.u32 %v67, 4294901760
    %1198 = vmatmul.f32.gmra.mxu0 %v1197
    %v1199 = vpop.f32.mrf.mxu0
    %v1200 = vadd.f32 %v1145, %v1199
    %v1201 = vand.u32 %v70, 4294901760
    %1202 = vmatmul.f32.gmra.mxu0 %v1201
    %v1203 = vpop.f32.mrf.mxu0
    %v1204 = vadd.f32 %v1153, %v1203
    %v1205 = vand.u32 %v73, 4294901760
    %1206 = vmatmul.f32.gmra.mxu0 %v1205
    %v1207 = vpop.f32.mrf.mxu0
    %v1208 = vadd.f32 %v1161, %v1207
    %v1209 = vand.u32 %v76, 4294901760
    %1210 = vmatmul.f32.gmra.mxu0 %v1209
    %v1211 = vpop.f32.mrf.mxu0
    %v1212 = vadd.f32 %v1169, %v1211
    %1213 = vdwg.mxu0
    %1214 = vmatpush.msra.mxu0 0.0
    %1215 = vmatpush.msra.mxu0 0.0
    %1216 = vmatpush.msra.mxu0 0.0
    %1217 = vmatpush.msra.mxu0 0.0
    %1218 = vmatpush.msra.mxu0 0.0
    %1219 = vmatpush.msra.mxu0 0.0
    %1220 = vmatpush.msra.mxu0 0.0
    %1221 = vmatpush.msra.mxu0 0.0
    %1222 = vmatpush.msra.mxu0 0.0
    %1223 = vmatpush.msra.mxu0 0.0
    %1224 = vmatpush.msra.mxu0 0.0
    %1225 = vmatpush.msra.mxu0 0.0
    %1226 = vmatpush.msra.mxu0 0.0
    %1227 = vmatpush.msra.mxu0 0.0
    %v1228 = vand.u32 %v1118, 4294901760
    %v1229 = vsub.f32 %v1118, %v1228
    %1230 = vmatpush.msra.mxu0 %v1229
    %v1231 = vand.u32 %v1115, 4294901760
    %v1232 = vsub.f32 %v1115, %v1231
    %1233 = vmatpush.msra.mxu0 %v1232
    %v1234 = vand.u32 %v67, 4294901760
    %v1235 = vsub.f32 %v67, %v1234
    %1236 = vmatmul.f32.gmra.mxu0 %v1235
    %v1237 = vpop.f32.mrf.mxu0
    %v1238 = vadd.f32 %v1200, %v1237
    %v1239 = vand.u32 %v70, 4294901760
    %v1240 = vsub.f32 %v70, %v1239
    %1241 = vmatmul.f32.gmra.mxu0 %v1240
    %v1242 = vpop.f32.mrf.mxu0
    %v1243 = vadd.f32 %v1204, %v1242
    %v1244 = vand.u32 %v73, 4294901760
    %v1245 = vsub.f32 %v73, %v1244
    %1246 = vmatmul.f32.gmra.mxu0 %v1245
    %v1247 = vpop.f32.mrf.mxu0
    %v1248 = vadd.f32 %v1208, %v1247
    %v1249 = vand.u32 %v76, 4294901760
    %v1250 = vsub.f32 %v76, %v1249
    %1251 = vmatmul.f32.gmra.mxu0 %v1250
    %v1252 = vpop.f32.mrf.mxu0
    %v1253 = vadd.f32 %v1212, %v1252
    %1254 = vdwg.mxu0
    %1255 = vmatpush.msra.mxu0 0.0
    %1256 = vmatpush.msra.mxu0 0.0
    %1257 = vmatpush.msra.mxu0 0.0
    %1258 = vmatpush.msra.mxu0 0.0
    %1259 = vmatpush.msra.mxu0 0.0
    %1260 = vmatpush.msra.mxu0 0.0
    %1261 = vmatpush.msra.mxu0 0.0
    %1262 = vmatpush.msra.mxu0 0.0
    %1263 = vmatpush.msra.mxu0 0.0
    %1264 = vmatpush.msra.mxu0 0.0
    %1265 = vmatpush.msra.mxu0 0.0
    %1266 = vmatpush.msra.mxu0 0.0
    %1267 = vmatpush.msra.mxu0 0.0
    %1268 = vmatpush.msra.mxu0 0.0
    %v1269 = vand.u32 %v1118, 4294901760
    %1270 = vmatpush.msra.mxu0 %v1269
    %v1271 = vand.u32 %v1115, 4294901760
    %1272 = vmatpush.msra.mxu0 %v1271
    %v1273 = vand.u32 %v67, 4294901760
    %v1274 = vsub.f32 %v67, %v1273
    %v1275 = vand.u32 %v1274, 4294901760
    %1276 = vmatmul.f32.gmra.mxu0 %v1275
    %v1277 = vpop.f32.mrf.mxu0
    %v1278 = vadd.f32 %v1238, %v1277
    %v1279 = vand.u32 %v70, 4294901760
    %v1280 = vsub.f32 %v70, %v1279
    %v1281 = vand.u32 %v1280, 4294901760
    %1282 = vmatmul.f32.gmra.mxu0 %v1281
    %v1283 = vpop.f32.mrf.mxu0
    %v1284 = vadd.f32 %v1243, %v1283
    %v1285 = vand.u32 %v73, 4294901760
    %v1286 = vsub.f32 %v73, %v1285
    %v1287 = vand.u32 %v1286, 4294901760
    %1288 = vmatmul.f32.gmra.mxu0 %v1287
    %v1289 = vpop.f32.mrf.mxu0
    %v1290 = vadd.f32 %v1248, %v1289
    %v1291 = vand.u32 %v76, 4294901760
    %v1292 = vsub.f32 %v76, %v1291
    %v1293 = vand.u32 %v1292, 4294901760
    %1294 = vmatmul.f32.gmra.mxu0 %v1293
    %v1295 = vpop.f32.mrf.mxu0
    %v1296 = vadd.f32 %v1253, %v1295
    %1297 = vdwg.mxu0
    %1298 = vmatpush.msra.mxu0 0.0
    %1299 = vmatpush.msra.mxu0 0.0
    %1300 = vmatpush.msra.mxu0 0.0
    %1301 = vmatpush.msra.mxu0 0.0
    %1302 = vmatpush.msra.mxu0 0.0
    %1303 = vmatpush.msra.mxu0 0.0
    %1304 = vmatpush.msra.mxu0 0.0
    %1305 = vmatpush.msra.mxu0 0.0
    %1306 = vmatpush.msra.mxu0 0.0
    %1307 = vmatpush.msra.mxu0 0.0
    %1308 = vmatpush.msra.mxu0 0.0
    %1309 = vmatpush.msra.mxu0 0.0
    %1310 = vmatpush.msra.mxu0 0.0
    %1311 = vmatpush.msra.mxu0 0.0
    %v1312 = vand.u32 %v1118, 4294901760
    %v1313 = vsub.f32 %v1118, %v1312
    %v1314 = vand.u32 %v1313, 4294901760
    %1315 = vmatpush.msra.mxu0 %v1314
    %v1316 = vand.u32 %v1115, 4294901760
    %v1317 = vsub.f32 %v1115, %v1316
    %v1318 = vand.u32 %v1317, 4294901760
    %1319 = vmatpush.msra.mxu0 %v1318
    %v1320 = vand.u32 %v67, 4294901760
    %1321 = vmatmul.f32.gmra.mxu0 %v1320
    %v1322 = vpop.f32.mrf.mxu0
    %v1323 = vadd.f32 %v1278, %v1322
    %v1324 = vand.u32 %v70, 4294901760
    %1325 = vmatmul.f32.gmra.mxu0 %v1324
    %v1326 = vpop.f32.mrf.mxu0
    %v1327 = vadd.f32 %v1284, %v1326
    %v1328 = vand.u32 %v73, 4294901760
    %1329 = vmatmul.f32.gmra.mxu0 %v1328
    %v1330 = vpop.f32.mrf.mxu0
    %v1331 = vadd.f32 %v1290, %v1330
    %v1332 = vand.u32 %v76, 4294901760
    %1333 = vmatmul.f32.gmra.mxu0 %v1332
    %v1334 = vpop.f32.mrf.mxu0
    %v1335 = vadd.f32 %v1296, %v1334
    %1336 = vdwg.mxu0
    %1337 = vmatpush.msra.mxu0 0.0
    %1338 = vmatpush.msra.mxu0 0.0
    %1339 = vmatpush.msra.mxu0 0.0
    %1340 = vmatpush.msra.mxu0 0.0
    %1341 = vmatpush.msra.mxu0 0.0
    %1342 = vmatpush.msra.mxu0 0.0
    %1343 = vmatpush.msra.mxu0 0.0
    %1344 = vmatpush.msra.mxu0 0.0
    %1345 = vmatpush.msra.mxu0 0.0
    %1346 = vmatpush.msra.mxu0 0.0
    %1347 = vmatpush.msra.mxu0 0.0
    %1348 = vmatpush.msra.mxu0 0.0
    %1349 = vmatpush.msra.mxu0 0.0
    %1350 = vmatpush.msra.mxu0 0.0
    %v1351 = vand.u32 %v1118, 4294901760
    %1352 = vmatpush.msra.mxu0 %v1351
    %v1353 = vand.u32 %v1115, 4294901760
    %1354 = vmatpush.msra.mxu0 %v1353
    %v1355 = vand.u32 %v67, 4294901760
    %1356 = vmatmul.f32.gmra.mxu0 %v1355
    %v1357 = vpop.f32.mrf.mxu0
    %v1358 = vadd.f32 %v1323, %v1357
    %v1359 = vand.u32 %v70, 4294901760
    %1360 = vmatmul.f32.gmra.mxu0 %v1359
    %v1361 = vpop.f32.mrf.mxu0
    %v1362 = vadd.f32 %v1327, %v1361
    %v1363 = vand.u32 %v73, 4294901760
    %1364 = vmatmul.f32.gmra.mxu0 %v1363
    %v1365 = vpop.f32.mrf.mxu0
    %v1366 = vadd.f32 %v1331, %v1365
    %v1367 = vand.u32 %v76, 4294901760
    %1368 = vmatmul.f32.gmra.mxu0 %v1367
    %v1369 = vpop.f32.mrf.mxu0
    %v1370 = vadd.f32 %v1335, %v1369
    %1371 = vdwg.mxu0
    %v1373 = vsel %vm78, %v61, 0
    %1375 = vmatpush.msra.mxu0 0.0
    %1376 = vmatpush.msra.mxu0 0.0
    %1377 = vmatpush.msra.mxu0 0.0
    %1378 = vmatpush.msra.mxu0 0.0
    %1379 = vmatpush.msra.mxu0 0.0
    %1380 = vmatpush.msra.mxu0 0.0
    %1381 = vmatpush.msra.mxu0 0.0
    %1382 = vmatpush.msra.mxu0 0.0
    %1383 = vmatpush.msra.mxu0 0.0
    %1384 = vmatpush.msra.mxu0 0.0
    %1385 = vmatpush.msra.mxu0 0.0
    %1386 = vmatpush.msra.mxu0 0.0
    %1387 = vmatpush.msra.mxu0 0.0
    %1388 = vmatpush.msra.mxu0 0.0
    %v1389 = vand.u32 %v1373, 4294901760
    %1390 = vmatpush.msra.mxu0 %v1389
    %v1391 = vand.u32 %v60, 4294901760
    %1392 = vmatpush.msra.mxu0 %v1391
    %v1393 = vand.u32 %v335, 4294901760
    %v1394 = vsub.f32 %v335, %v1393
    %v1395 = vand.u32 %v1394, 4294901760
    %v1396 = vsub.f32 %v1394, %v1395
    %v1397 = vand.u32 %v1396, 4294901760
    %1398 = vmatmul.f32.gmra.mxu0 %v1397
    %v1399 = vpop.f32.mrf.mxu0
    %v1400 = vadd.f32 %v1358, %v1399
    %v1401 = vand.u32 %v338, 4294901760
    %v1402 = vsub.f32 %v338, %v1401
    %v1403 = vand.u32 %v1402, 4294901760
    %v1404 = vsub.f32 %v1402, %v1403
    %v1405 = vand.u32 %v1404, 4294901760
    %1406 = vmatmul.f32.gmra.mxu0 %v1405
    %v1407 = vpop.f32.mrf.mxu0
    %v1408 = vadd.f32 %v1362, %v1407
    %v1409 = vand.u32 %v341, 4294901760
    %v1410 = vsub.f32 %v341, %v1409
    %v1411 = vand.u32 %v1410, 4294901760
    %v1412 = vsub.f32 %v1410, %v1411
    %v1413 = vand.u32 %v1412, 4294901760
    %1414 = vmatmul.f32.gmra.mxu0 %v1413
    %v1415 = vpop.f32.mrf.mxu0
    %v1416 = vadd.f32 %v1366, %v1415
    %v1417 = vand.u32 %v344, 4294901760
    %v1418 = vsub.f32 %v344, %v1417
    %v1419 = vand.u32 %v1418, 4294901760
    %v1420 = vsub.f32 %v1418, %v1419
    %v1421 = vand.u32 %v1420, 4294901760
    %1422 = vmatmul.f32.gmra.mxu0 %v1421
    %v1423 = vpop.f32.mrf.mxu0
    %v1424 = vadd.f32 %v1370, %v1423
    %1425 = vdwg.mxu0
    %1426 = vmatpush.msra.mxu0 0.0
    %1427 = vmatpush.msra.mxu0 0.0
    %1428 = vmatpush.msra.mxu0 0.0
    %1429 = vmatpush.msra.mxu0 0.0
    %1430 = vmatpush.msra.mxu0 0.0
    %1431 = vmatpush.msra.mxu0 0.0
    %1432 = vmatpush.msra.mxu0 0.0
    %1433 = vmatpush.msra.mxu0 0.0
    %1434 = vmatpush.msra.mxu0 0.0
    %1435 = vmatpush.msra.mxu0 0.0
    %1436 = vmatpush.msra.mxu0 0.0
    %1437 = vmatpush.msra.mxu0 0.0
    %1438 = vmatpush.msra.mxu0 0.0
    %1439 = vmatpush.msra.mxu0 0.0
    %v1440 = vand.u32 %v1373, 4294901760
    %v1441 = vsub.f32 %v1373, %v1440
    %v1442 = vand.u32 %v1441, 4294901760
    %v1443 = vsub.f32 %v1441, %v1442
    %v1444 = vand.u32 %v1443, 4294901760
    %1445 = vmatpush.msra.mxu0 %v1444
    %v1446 = vand.u32 %v60, 4294901760
    %v1447 = vsub.f32 %v60, %v1446
    %v1448 = vand.u32 %v1447, 4294901760
    %v1449 = vsub.f32 %v1447, %v1448
    %v1450 = vand.u32 %v1449, 4294901760
    %1451 = vmatpush.msra.mxu0 %v1450
    %v1452 = vand.u32 %v335, 4294901760
    %1453 = vmatmul.f32.gmra.mxu0 %v1452
    %v1454 = vpop.f32.mrf.mxu0
    %v1455 = vadd.f32 %v1400, %v1454
    %v1456 = vand.u32 %v338, 4294901760
    %1457 = vmatmul.f32.gmra.mxu0 %v1456
    %v1458 = vpop.f32.mrf.mxu0
    %v1459 = vadd.f32 %v1408, %v1458
    %v1460 = vand.u32 %v341, 4294901760
    %1461 = vmatmul.f32.gmra.mxu0 %v1460
    %v1462 = vpop.f32.mrf.mxu0
    %v1463 = vadd.f32 %v1416, %v1462
    %v1464 = vand.u32 %v344, 4294901760
    %1465 = vmatmul.f32.gmra.mxu0 %v1464
    %v1466 = vpop.f32.mrf.mxu0
    %v1467 = vadd.f32 %v1424, %v1466
    %1468 = vdwg.mxu0
    %1469 = vmatpush.msra.mxu0 0.0
    %1470 = vmatpush.msra.mxu0 0.0
    %1471 = vmatpush.msra.mxu0 0.0
    %1472 = vmatpush.msra.mxu0 0.0
    %1473 = vmatpush.msra.mxu0 0.0
    %1474 = vmatpush.msra.mxu0 0.0
    %1475 = vmatpush.msra.mxu0 0.0
    %1476 = vmatpush.msra.mxu0 0.0
    %1477 = vmatpush.msra.mxu0 0.0
    %1478 = vmatpush.msra.mxu0 0.0
    %1479 = vmatpush.msra.mxu0 0.0
    %1480 = vmatpush.msra.mxu0 0.0
    %1481 = vmatpush.msra.mxu0 0.0
    %1482 = vmatpush.msra.mxu0 0.0
    %v1483 = vand.u32 %v1373, 4294901760
    %v1484 = vsub.f32 %v1373, %v1483
    %1485 = vmatpush.msra.mxu0 %v1484
    %v1486 = vand.u32 %v60, 4294901760
    %v1487 = vsub.f32 %v60, %v1486
    %1488 = vmatpush.msra.mxu0 %v1487
    %v1489 = vand.u32 %v335, 4294901760
    %v1490 = vsub.f32 %v335, %v1489
    %1491 = vmatmul.f32.gmra.mxu0 %v1490
    %v1492 = vpop.f32.mrf.mxu0
    %v1493 = vadd.f32 %v1455, %v1492
    %v1494 = vand.u32 %v338, 4294901760
    %v1495 = vsub.f32 %v338, %v1494
    %1496 = vmatmul.f32.gmra.mxu0 %v1495
    %v1497 = vpop.f32.mrf.mxu0
    %v1498 = vadd.f32 %v1459, %v1497
    %v1499 = vand.u32 %v341, 4294901760
    %v1500 = vsub.f32 %v341, %v1499
    %1501 = vmatmul.f32.gmra.mxu0 %v1500
    %v1502 = vpop.f32.mrf.mxu0
    %v1503 = vadd.f32 %v1463, %v1502
    %v1504 = vand.u32 %v344, 4294901760
    %v1505 = vsub.f32 %v344, %v1504
    %1506 = vmatmul.f32.gmra.mxu0 %v1505
    %v1507 = vpop.f32.mrf.mxu0
    %v1508 = vadd.f32 %v1467, %v1507
    %1509 = vdwg.mxu0
    %1510 = vmatpush.msra.mxu0 0.0
    %1511 = vmatpush.msra.mxu0 0.0
    %1512 = vmatpush.msra.mxu0 0.0
    %1513 = vmatpush.msra.mxu0 0.0
    %1514 = vmatpush.msra.mxu0 0.0
    %1515 = vmatpush.msra.mxu0 0.0
    %1516 = vmatpush.msra.mxu0 0.0
    %1517 = vmatpush.msra.mxu0 0.0
    %1518 = vmatpush.msra.mxu0 0.0
    %1519 = vmatpush.msra.mxu0 0.0
    %1520 = vmatpush.msra.mxu0 0.0
    %1521 = vmatpush.msra.mxu0 0.0
    %1522 = vmatpush.msra.mxu0 0.0
    %1523 = vmatpush.msra.mxu0 0.0
    %v1524 = vand.u32 %v1373, 4294901760
    %1525 = vmatpush.msra.mxu0 %v1524
    %v1526 = vand.u32 %v60, 4294901760
    %1527 = vmatpush.msra.mxu0 %v1526
    %v1528 = vand.u32 %v335, 4294901760
    %v1529 = vsub.f32 %v335, %v1528
    %v1530 = vand.u32 %v1529, 4294901760
    %1531 = vmatmul.f32.gmra.mxu0 %v1530
    %v1532 = vpop.f32.mrf.mxu0
    %v1533 = vadd.f32 %v1493, %v1532
    %v1534 = vand.u32 %v338, 4294901760
    %v1535 = vsub.f32 %v338, %v1534
    %v1536 = vand.u32 %v1535, 4294901760
    %1537 = vmatmul.f32.gmra.mxu0 %v1536
    %v1538 = vpop.f32.mrf.mxu0
    %v1539 = vadd.f32 %v1498, %v1538
    %v1540 = vand.u32 %v341, 4294901760
    %v1541 = vsub.f32 %v341, %v1540
    %v1542 = vand.u32 %v1541, 4294901760
    %1543 = vmatmul.f32.gmra.mxu0 %v1542
    %v1544 = vpop.f32.mrf.mxu0
    %v1545 = vadd.f32 %v1503, %v1544
    %v1546 = vand.u32 %v344, 4294901760
    %v1547 = vsub.f32 %v344, %v1546
    %v1548 = vand.u32 %v1547, 4294901760
    %1549 = vmatmul.f32.gmra.mxu0 %v1548
    %v1550 = vpop.f32.mrf.mxu0
    %v1551 = vadd.f32 %v1508, %v1550
    %1552 = vdwg.mxu0
    %1553 = vmatpush.msra.mxu0 0.0
    %1554 = vmatpush.msra.mxu0 0.0
    %1555 = vmatpush.msra.mxu0 0.0
    %1556 = vmatpush.msra.mxu0 0.0
    %1557 = vmatpush.msra.mxu0 0.0
    %1558 = vmatpush.msra.mxu0 0.0
    %1559 = vmatpush.msra.mxu0 0.0
    %1560 = vmatpush.msra.mxu0 0.0
    %1561 = vmatpush.msra.mxu0 0.0
    %1562 = vmatpush.msra.mxu0 0.0
    %1563 = vmatpush.msra.mxu0 0.0
    %1564 = vmatpush.msra.mxu0 0.0
    %1565 = vmatpush.msra.mxu0 0.0
    %1566 = vmatpush.msra.mxu0 0.0
    %v1567 = vand.u32 %v1373, 4294901760
    %v1568 = vsub.f32 %v1373, %v1567
    %v1569 = vand.u32 %v1568, 4294901760
    %1570 = vmatpush.msra.mxu0 %v1569
    %v1571 = vand.u32 %v60, 4294901760
    %v1572 = vsub.f32 %v60, %v1571
    %v1573 = vand.u32 %v1572, 4294901760
    %1574 = vmatpush.msra.mxu0 %v1573
    %v1575 = vand.u32 %v335, 4294901760
    %1576 = vmatmul.f32.gmra.mxu0 %v1575
    %v1577 = vpop.f32.mrf.mxu0
    %v1578 = vadd.f32 %v1533, %v1577
    %v1579 = vand.u32 %v338, 4294901760
    %1580 = vmatmul.f32.gmra.mxu0 %v1579
    %v1581 = vpop.f32.mrf.mxu0
    %v1582 = vadd.f32 %v1539, %v1581
    %v1583 = vand.u32 %v341, 4294901760
    %1584 = vmatmul.f32.gmra.mxu0 %v1583
    %v1585 = vpop.f32.mrf.mxu0
    %v1586 = vadd.f32 %v1545, %v1585
    %v1587 = vand.u32 %v344, 4294901760
    %1588 = vmatmul.f32.gmra.mxu0 %v1587
    %v1589 = vpop.f32.mrf.mxu0
    %v1590 = vadd.f32 %v1551, %v1589
    %1591 = vdwg.mxu0
    %1592 = vmatpush.msra.mxu0 0.0
    %1593 = vmatpush.msra.mxu0 0.0
    %1594 = vmatpush.msra.mxu0 0.0
    %1595 = vmatpush.msra.mxu0 0.0
    %1596 = vmatpush.msra.mxu0 0.0
    %1597 = vmatpush.msra.mxu0 0.0
    %1598 = vmatpush.msra.mxu0 0.0
    %1599 = vmatpush.msra.mxu0 0.0
    %1600 = vmatpush.msra.mxu0 0.0
    %1601 = vmatpush.msra.mxu0 0.0
    %1602 = vmatpush.msra.mxu0 0.0
    %1603 = vmatpush.msra.mxu0 0.0
    %1604 = vmatpush.msra.mxu0 0.0
    %1605 = vmatpush.msra.mxu0 0.0
    %v1606 = vand.u32 %v1373, 4294901760
    %1607 = vmatpush.msra.mxu0 %v1606
    %v1608 = vand.u32 %v60, 4294901760
    %1609 = vmatpush.msra.mxu0 %v1608
    %v1610 = vand.u32 %v335, 4294901760
    %1611 = vmatmul.f32.gmra.mxu0 %v1610
    %v1612 = vpop.f32.mrf.mxu0
    %v1613 = vadd.f32 %v1578, %v1612
    %v1614 = vand.u32 %v338, 4294901760
    %1615 = vmatmul.f32.gmra.mxu0 %v1614
    %v1616 = vpop.f32.mrf.mxu0
    %v1617 = vadd.f32 %v1582, %v1616
    %v1618 = vand.u32 %v341, 4294901760
    %1619 = vmatmul.f32.gmra.mxu0 %v1618
    %v1620 = vpop.f32.mrf.mxu0
    %v1621 = vadd.f32 %v1586, %v1620
    %v1622 = vand.u32 %v344, 4294901760
    %1623 = vmatmul.f32.gmra.mxu0 %v1622
    %v1624 = vpop.f32.mrf.mxu0
    %v1625 = vadd.f32 %v1590, %v1624
    %1626 = vdwg.mxu0
    %s1627 = scalar_lea.vmem %s1, 32
    %v1628 = vld [vmem:[%s1627] sm:$0xff]
    %v1629 = vld [vmem:[%s1627 + $0x8] sm:$0x7f]
    %v1631 = vsel %vm65, %v43, 0
    %v1634 = vsel %vm65, %v44, 0
    %v1637 = vsel %vm65, %v51, 0
    %v1640 = vsel %vm65, %v52, 0
    %v1643 = vsel %vm78, %v1629, 0
    %1645 = vmatpush.msra.mxu0 0.0
    %1646 = vmatpush.msra.mxu0 0.0
    %1647 = vmatpush.msra.mxu0 0.0
    %1648 = vmatpush.msra.mxu0 0.0
    %1649 = vmatpush.msra.mxu0 0.0
    %1650 = vmatpush.msra.mxu0 0.0
    %1651 = vmatpush.msra.mxu0 0.0
    %1652 = vmatpush.msra.mxu0 0.0
    %1653 = vmatpush.msra.mxu0 0.0
    %1654 = vmatpush.msra.mxu0 0.0
    %1655 = vmatpush.msra.mxu0 0.0
    %1656 = vmatpush.msra.mxu0 0.0
    %1657 = vmatpush.msra.mxu0 0.0
    %1658 = vmatpush.msra.mxu0 0.0
    %v1659 = vand.u32 %v1643, 4294901760
    %1660 = vmatpush.msra.mxu0 %v1659
    %v1661 = vand.u32 %v1628, 4294901760
    %1662 = vmatpush.msra.mxu0 %v1661
    %v1663 = vand.u32 %v1631, 4294901760
    %v1664 = vsub.f32 %v1631, %v1663
    %v1665 = vand.u32 %v1664, 4294901760
    %v1666 = vsub.f32 %v1664, %v1665
    %v1667 = vand.u32 %v1666, 4294901760
    %1668 = vmatmul.f32.gmra.mxu0 %v1667
    %v1669 = vpop.f32.mrf.mxu0
    %v1670 = vadd.f32 0.0, %v1669
    %v1671 = vand.u32 %v1634, 4294901760
    %v1672 = vsub.f32 %v1634, %v1671
    %v1673 = vand.u32 %v1672, 4294901760
    %v1674 = vsub.f32 %v1672, %v1673
    %v1675 = vand.u32 %v1674, 4294901760
    %1676 = vmatmul.f32.gmra.mxu0 %v1675
    %v1677 = vpop.f32.mrf.mxu0
    %v1678 = vadd.f32 0.0, %v1677
    %v1679 = vand.u32 %v1637, 4294901760
    %v1680 = vsub.f32 %v1637, %v1679
    %v1681 = vand.u32 %v1680, 4294901760
    %v1682 = vsub.f32 %v1680, %v1681
    %v1683 = vand.u32 %v1682, 4294901760
    %1684 = vmatmul.f32.gmra.mxu0 %v1683
    %v1685 = vpop.f32.mrf.mxu0
    %v1686 = vadd.f32 0.0, %v1685
    %v1687 = vand.u32 %v1640, 4294901760
    %v1688 = vsub.f32 %v1640, %v1687
    %v1689 = vand.u32 %v1688, 4294901760
    %v1690 = vsub.f32 %v1688, %v1689
    %v1691 = vand.u32 %v1690, 4294901760
    %1692 = vmatmul.f32.gmra.mxu0 %v1691
    %v1693 = vpop.f32.mrf.mxu0
    %v1694 = vadd.f32 0.0, %v1693
    %1695 = vdwg.mxu0
    %1696 = vmatpush.msra.mxu0 0.0
    %1697 = vmatpush.msra.mxu0 0.0
    %1698 = vmatpush.msra.mxu0 0.0
    %1699 = vmatpush.msra.mxu0 0.0
    %1700 = vmatpush.msra.mxu0 0.0
    %1701 = vmatpush.msra.mxu0 0.0
    %1702 = vmatpush.msra.mxu0 0.0
    %1703 = vmatpush.msra.mxu0 0.0
    %1704 = vmatpush.msra.mxu0 0.0
    %1705 = vmatpush.msra.mxu0 0.0
    %1706 = vmatpush.msra.mxu0 0.0
    %1707 = vmatpush.msra.mxu0 0.0
    %1708 = vmatpush.msra.mxu0 0.0
    %1709 = vmatpush.msra.mxu0 0.0
    %v1710 = vand.u32 %v1643, 4294901760
    %v1711 = vsub.f32 %v1643, %v1710
    %v1712 = vand.u32 %v1711, 4294901760
    %v1713 = vsub.f32 %v1711, %v1712
    %v1714 = vand.u32 %v1713, 4294901760
    %1715 = vmatpush.msra.mxu0 %v1714
    %v1716 = vand.u32 %v1628, 4294901760
    %v1717 = vsub.f32 %v1628, %v1716
    %v1718 = vand.u32 %v1717, 4294901760
    %v1719 = vsub.f32 %v1717, %v1718
    %v1720 = vand.u32 %v1719, 4294901760
    %1721 = vmatpush.msra.mxu0 %v1720
    %v1722 = vand.u32 %v1631, 4294901760
    %1723 = vmatmul.f32.gmra.mxu0 %v1722
    %v1724 = vpop.f32.mrf.mxu0
    %v1725 = vadd.f32 %v1670, %v1724
    %v1726 = vand.u32 %v1634, 4294901760
    %1727 = vmatmul.f32.gmra.mxu0 %v1726
    %v1728 = vpop.f32.mrf.mxu0
    %v1729 = vadd.f32 %v1678, %v1728
    %v1730 = vand.u32 %v1637, 4294901760
    %1731 = vmatmul.f32.gmra.mxu0 %v1730
    %v1732 = vpop.f32.mrf.mxu0
    %v1733 = vadd.f32 %v1686, %v1732
    %v1734 = vand.u32 %v1640, 4294901760
    %1735 = vmatmul.f32.gmra.mxu0 %v1734
    %v1736 = vpop.f32.mrf.mxu0
    %v1737 = vadd.f32 %v1694, %v1736
    %1738 = vdwg.mxu0
    %1739 = vmatpush.msra.mxu0 0.0
    %1740 = vmatpush.msra.mxu0 0.0
    %1741 = vmatpush.msra.mxu0 0.0
    %1742 = vmatpush.msra.mxu0 0.0
    %1743 = vmatpush.msra.mxu0 0.0
    %1744 = vmatpush.msra.mxu0 0.0
    %1745 = vmatpush.msra.mxu0 0.0
    %1746 = vmatpush.msra.mxu0 0.0
    %1747 = vmatpush.msra.mxu0 0.0
    %1748 = vmatpush.msra.mxu0 0.0
    %1749 = vmatpush.msra.mxu0 0.0
    %1750 = vmatpush.msra.mxu0 0.0
    %1751 = vmatpush.msra.mxu0 0.0
    %1752 = vmatpush.msra.mxu0 0.0
    %v1753 = vand.u32 %v1643, 4294901760
    %v1754 = vsub.f32 %v1643, %v1753
    %1755 = vmatpush.msra.mxu0 %v1754
    %v1756 = vand.u32 %v1628, 4294901760
    %v1757 = vsub.f32 %v1628, %v1756
    %1758 = vmatpush.msra.mxu0 %v1757
    %v1759 = vand.u32 %v1631, 4294901760
    %v1760 = vsub.f32 %v1631, %v1759
    %1761 = vmatmul.f32.gmra.mxu0 %v1760
    %v1762 = vpop.f32.mrf.mxu0
    %v1763 = vadd.f32 %v1725, %v1762
    %v1764 = vand.u32 %v1634, 4294901760
    %v1765 = vsub.f32 %v1634, %v1764
    %1766 = vmatmul.f32.gmra.mxu0 %v1765
    %v1767 = vpop.f32.mrf.mxu0
    %v1768 = vadd.f32 %v1729, %v1767
    %v1769 = vand.u32 %v1637, 4294901760
    %v1770 = vsub.f32 %v1637, %v1769
    %1771 = vmatmul.f32.gmra.mxu0 %v1770
    %v1772 = vpop.f32.mrf.mxu0
    %v1773 = vadd.f32 %v1733, %v1772
    %v1774 = vand.u32 %v1640, 4294901760
    %v1775 = vsub.f32 %v1640, %v1774
    %1776 = vmatmul.f32.gmra.mxu0 %v1775
    %v1777 = vpop.f32.mrf.mxu0
    %v1778 = vadd.f32 %v1737, %v1777
    %1779 = vdwg.mxu0
    %1780 = vmatpush.msra.mxu0 0.0
    %1781 = vmatpush.msra.mxu0 0.0
    %1782 = vmatpush.msra.mxu0 0.0
    %1783 = vmatpush.msra.mxu0 0.0
    %1784 = vmatpush.msra.mxu0 0.0
    %1785 = vmatpush.msra.mxu0 0.0
    %1786 = vmatpush.msra.mxu0 0.0
    %1787 = vmatpush.msra.mxu0 0.0
    %1788 = vmatpush.msra.mxu0 0.0
    %1789 = vmatpush.msra.mxu0 0.0
    %1790 = vmatpush.msra.mxu0 0.0
    %1791 = vmatpush.msra.mxu0 0.0
    %1792 = vmatpush.msra.mxu0 0.0
    %1793 = vmatpush.msra.mxu0 0.0
    %v1794 = vand.u32 %v1643, 4294901760
    %1795 = vmatpush.msra.mxu0 %v1794
    %v1796 = vand.u32 %v1628, 4294901760
    %1797 = vmatpush.msra.mxu0 %v1796
    %v1798 = vand.u32 %v1631, 4294901760
    %v1799 = vsub.f32 %v1631, %v1798
    %v1800 = vand.u32 %v1799, 4294901760
    %1801 = vmatmul.f32.gmra.mxu0 %v1800
    %v1802 = vpop.f32.mrf.mxu0
    %v1803 = vadd.f32 %v1763, %v1802
    %v1804 = vand.u32 %v1634, 4294901760
    %v1805 = vsub.f32 %v1634, %v1804
    %v1806 = vand.u32 %v1805, 4294901760
    %1807 = vmatmul.f32.gmra.mxu0 %v1806
    %v1808 = vpop.f32.mrf.mxu0
    %v1809 = vadd.f32 %v1768, %v1808
    %v1810 = vand.u32 %v1637, 4294901760
    %v1811 = vsub.f32 %v1637, %v1810
    %v1812 = vand.u32 %v1811, 4294901760
    %1813 = vmatmul.f32.gmra.mxu0 %v1812
    %v1814 = vpop.f32.mrf.mxu0
    %v1815 = vadd.f32 %v1773, %v1814
    %v1816 = vand.u32 %v1640, 4294901760
    %v1817 = vsub.f32 %v1640, %v1816
    %v1818 = vand.u32 %v1817, 4294901760
    %1819 = vmatmul.f32.gmra.mxu0 %v1818
    %v1820 = vpop.f32.mrf.mxu0
    %v1821 = vadd.f32 %v1778, %v1820
    %1822 = vdwg.mxu0
    %1823 = vmatpush.msra.mxu0 0.0
    %1824 = vmatpush.msra.mxu0 0.0
    %1825 = vmatpush.msra.mxu0 0.0
    %1826 = vmatpush.msra.mxu0 0.0
    %1827 = vmatpush.msra.mxu0 0.0
    %1828 = vmatpush.msra.mxu0 0.0
    %1829 = vmatpush.msra.mxu0 0.0
    %1830 = vmatpush.msra.mxu0 0.0
    %1831 = vmatpush.msra.mxu0 0.0
    %1832 = vmatpush.msra.mxu0 0.0
    %1833 = vmatpush.msra.mxu0 0.0
    %1834 = vmatpush.msra.mxu0 0.0
    %1835 = vmatpush.msra.mxu0 0.0
    %1836 = vmatpush.msra.mxu0 0.0
    %v1837 = vand.u32 %v1643, 4294901760
    %v1838 = vsub.f32 %v1643, %v1837
    %v1839 = vand.u32 %v1838, 4294901760
    %1840 = vmatpush.msra.mxu0 %v1839
    %v1841 = vand.u32 %v1628, 4294901760
    %v1842 = vsub.f32 %v1628, %v1841
    %v1843 = vand.u32 %v1842, 4294901760
    %1844 = vmatpush.msra.mxu0 %v1843
    %v1845 = vand.u32 %v1631, 4294901760
    %1846 = vmatmul.f32.gmra.mxu0 %v1845
    %v1847 = vpop.f32.mrf.mxu0
    %v1848 = vadd.f32 %v1803, %v1847
    %v1849 = vand.u32 %v1634, 4294901760
    %1850 = vmatmul.f32.gmra.mxu0 %v1849
    %v1851 = vpop.f32.mrf.mxu0
    %v1852 = vadd.f32 %v1809, %v1851
    %v1853 = vand.u32 %v1637, 4294901760
    %1854 = vmatmul.f32.gmra.mxu0 %v1853
    %v1855 = vpop.f32.mrf.mxu0
    %v1856 = vadd.f32 %v1815, %v1855
    %v1857 = vand.u32 %v1640, 4294901760
    %1858 = vmatmul.f32.gmra.mxu0 %v1857
    %v1859 = vpop.f32.mrf.mxu0
    %v1860 = vadd.f32 %v1821, %v1859
    %1861 = vdwg.mxu0
    %1862 = vmatpush.msra.mxu0 0.0
    %1863 = vmatpush.msra.mxu0 0.0
    %1864 = vmatpush.msra.mxu0 0.0
    %1865 = vmatpush.msra.mxu0 0.0
    %1866 = vmatpush.msra.mxu0 0.0
    %1867 = vmatpush.msra.mxu0 0.0
    %1868 = vmatpush.msra.mxu0 0.0
    %1869 = vmatpush.msra.mxu0 0.0
    %1870 = vmatpush.msra.mxu0 0.0
    %1871 = vmatpush.msra.mxu0 0.0
    %1872 = vmatpush.msra.mxu0 0.0
    %1873 = vmatpush.msra.mxu0 0.0
    %1874 = vmatpush.msra.mxu0 0.0
    %1875 = vmatpush.msra.mxu0 0.0
    %v1876 = vand.u32 %v1643, 4294901760
    %1877 = vmatpush.msra.mxu0 %v1876
    %v1878 = vand.u32 %v1628, 4294901760
    %1879 = vmatpush.msra.mxu0 %v1878
    %v1880 = vand.u32 %v1631, 4294901760
    %1881 = vmatmul.f32.gmra.mxu0 %v1880
    %v1882 = vpop.f32.mrf.mxu0
    %v1883 = vadd.f32 %v1848, %v1882
    %v1884 = vand.u32 %v1634, 4294901760
    %1885 = vmatmul.f32.gmra.mxu0 %v1884
    %v1886 = vpop.f32.mrf.mxu0
    %v1887 = vadd.f32 %v1852, %v1886
    %v1888 = vand.u32 %v1637, 4294901760
    %1889 = vmatmul.f32.gmra.mxu0 %v1888
    %v1890 = vpop.f32.mrf.mxu0
    %v1891 = vadd.f32 %v1856, %v1890
    %v1892 = vand.u32 %v1640, 4294901760
    %1893 = vmatmul.f32.gmra.mxu0 %v1892
    %v1894 = vpop.f32.mrf.mxu0
    %v1895 = vadd.f32 %v1860, %v1894
    %1896 = vdwg.mxu0
    %v1897 = vadd.f32 %v587, %v1883
    %v1898 = vadd.f32 %v591, %v1887
    %v1899 = vadd.f32 %v595, %v1891
    %v1900 = vadd.f32 %v599, %v1895
    %s1901 = scalar_lea.vmem %s1, 96
    %v1902 = vld [vmem:[%s1901] sm:$0xff]
    %v1903 = vld [vmem:[%s1901 + $0x8] sm:$0x7f]
    %v1905 = vsel %vm78, %v1903, 0
    %1907 = vmatpush.msra.mxu0 0.0
    %1908 = vmatpush.msra.mxu0 0.0
    %1909 = vmatpush.msra.mxu0 0.0
    %1910 = vmatpush.msra.mxu0 0.0
    %1911 = vmatpush.msra.mxu0 0.0
    %1912 = vmatpush.msra.mxu0 0.0
    %1913 = vmatpush.msra.mxu0 0.0
    %1914 = vmatpush.msra.mxu0 0.0
    %1915 = vmatpush.msra.mxu0 0.0
    %1916 = vmatpush.msra.mxu0 0.0
    %1917 = vmatpush.msra.mxu0 0.0
    %1918 = vmatpush.msra.mxu0 0.0
    %1919 = vmatpush.msra.mxu0 0.0
    %1920 = vmatpush.msra.mxu0 0.0
    %v1921 = vand.u32 %v1905, 4294901760
    %1922 = vmatpush.msra.mxu0 %v1921
    %v1923 = vand.u32 %v1902, 4294901760
    %1924 = vmatpush.msra.mxu0 %v1923
    %v1925 = vand.u32 %v1631, 4294901760
    %v1926 = vsub.f32 %v1631, %v1925
    %v1927 = vand.u32 %v1926, 4294901760
    %v1928 = vsub.f32 %v1926, %v1927
    %v1929 = vand.u32 %v1928, 4294901760
    %1930 = vmatmul.f32.gmra.mxu0 %v1929
    %v1931 = vpop.f32.mrf.mxu0
    %v1932 = vadd.f32 0.0, %v1931
    %v1933 = vand.u32 %v1634, 4294901760
    %v1934 = vsub.f32 %v1634, %v1933
    %v1935 = vand.u32 %v1934, 4294901760
    %v1936 = vsub.f32 %v1934, %v1935
    %v1937 = vand.u32 %v1936, 4294901760
    %1938 = vmatmul.f32.gmra.mxu0 %v1937
    %v1939 = vpop.f32.mrf.mxu0
    %v1940 = vadd.f32 0.0, %v1939
    %v1941 = vand.u32 %v1637, 4294901760
    %v1942 = vsub.f32 %v1637, %v1941
    %v1943 = vand.u32 %v1942, 4294901760
    %v1944 = vsub.f32 %v1942, %v1943
    %v1945 = vand.u32 %v1944, 4294901760
    %1946 = vmatmul.f32.gmra.mxu0 %v1945
    %v1947 = vpop.f32.mrf.mxu0
    %v1948 = vadd.f32 0.0, %v1947
    %v1949 = vand.u32 %v1640, 4294901760
    %v1950 = vsub.f32 %v1640, %v1949
    %v1951 = vand.u32 %v1950, 4294901760
    %v1952 = vsub.f32 %v1950, %v1951
    %v1953 = vand.u32 %v1952, 4294901760
    %1954 = vmatmul.f32.gmra.mxu0 %v1953
    %v1955 = vpop.f32.mrf.mxu0
    %v1956 = vadd.f32 0.0, %v1955
    %1957 = vdwg.mxu0
    %1958 = vmatpush.msra.mxu0 0.0
    %1959 = vmatpush.msra.mxu0 0.0
    %1960 = vmatpush.msra.mxu0 0.0
    %1961 = vmatpush.msra.mxu0 0.0
    %1962 = vmatpush.msra.mxu0 0.0
    %1963 = vmatpush.msra.mxu0 0.0
    %1964 = vmatpush.msra.mxu0 0.0
    %1965 = vmatpush.msra.mxu0 0.0
    %1966 = vmatpush.msra.mxu0 0.0
    %1967 = vmatpush.msra.mxu0 0.0
    %1968 = vmatpush.msra.mxu0 0.0
    %1969 = vmatpush.msra.mxu0 0.0
    %1970 = vmatpush.msra.mxu0 0.0
    %1971 = vmatpush.msra.mxu0 0.0
    %v1972 = vand.u32 %v1905, 4294901760
    %v1973 = vsub.f32 %v1905, %v1972
    %v1974 = vand.u32 %v1973, 4294901760
    %v1975 = vsub.f32 %v1973, %v1974
    %v1976 = vand.u32 %v1975, 4294901760
    %1977 = vmatpush.msra.mxu0 %v1976
    %v1978 = vand.u32 %v1902, 4294901760
    %v1979 = vsub.f32 %v1902, %v1978
    %v1980 = vand.u32 %v1979, 4294901760
    %v1981 = vsub.f32 %v1979, %v1980
    %v1982 = vand.u32 %v1981, 4294901760
    %1983 = vmatpush.msra.mxu0 %v1982
    %v1984 = vand.u32 %v1631, 4294901760
    %1985 = vmatmul.f32.gmra.mxu0 %v1984
    %v1986 = vpop.f32.mrf.mxu0
    %v1987 = vadd.f32 %v1932, %v1986
    %v1988 = vand.u32 %v1634, 4294901760
    %1989 = vmatmul.f32.gmra.mxu0 %v1988
    %v1990 = vpop.f32.mrf.mxu0
    %v1991 = vadd.f32 %v1940, %v1990
    %v1992 = vand.u32 %v1637, 4294901760
    %1993 = vmatmul.f32.gmra.mxu0 %v1992
    %v1994 = vpop.f32.mrf.mxu0
    %v1995 = vadd.f32 %v1948, %v1994
    %v1996 = vand.u32 %v1640, 4294901760
    %1997 = vmatmul.f32.gmra.mxu0 %v1996
    %v1998 = vpop.f32.mrf.mxu0
    %v1999 = vadd.f32 %v1956, %v1998
    %2000 = vdwg.mxu0
    %2001 = vmatpush.msra.mxu0 0.0
    %2002 = vmatpush.msra.mxu0 0.0
    %2003 = vmatpush.msra.mxu0 0.0
    %2004 = vmatpush.msra.mxu0 0.0
    %2005 = vmatpush.msra.mxu0 0.0
    %2006 = vmatpush.msra.mxu0 0.0
    %2007 = vmatpush.msra.mxu0 0.0
    %2008 = vmatpush.msra.mxu0 0.0
    %2009 = vmatpush.msra.mxu0 0.0
    %2010 = vmatpush.msra.mxu0 0.0
    %2011 = vmatpush.msra.mxu0 0.0
    %2012 = vmatpush.msra.mxu0 0.0
    %2013 = vmatpush.msra.mxu0 0.0
    %2014 = vmatpush.msra.mxu0 0.0
    %v2015 = vand.u32 %v1905, 4294901760
    %v2016 = vsub.f32 %v1905, %v2015
    %2017 = vmatpush.msra.mxu0 %v2016
    %v2018 = vand.u32 %v1902, 4294901760
    %v2019 = vsub.f32 %v1902, %v2018
    %2020 = vmatpush.msra.mxu0 %v2019
    %v2021 = vand.u32 %v1631, 4294901760
    %v2022 = vsub.f32 %v1631, %v2021
    %2023 = vmatmul.f32.gmra.mxu0 %v2022
    %v2024 = vpop.f32.mrf.mxu0
    %v2025 = vadd.f32 %v1987, %v2024
    %v2026 = vand.u32 %v1634, 4294901760
    %v2027 = vsub.f32 %v1634, %v2026
    %2028 = vmatmul.f32.gmra.mxu0 %v2027
    %v2029 = vpop.f32.mrf.mxu0
    %v2030 = vadd.f32 %v1991, %v2029
    %v2031 = vand.u32 %v1637, 4294901760
    %v2032 = vsub.f32 %v1637, %v2031
    %2033 = vmatmul.f32.gmra.mxu0 %v2032
    %v2034 = vpop.f32.mrf.mxu0
    %v2035 = vadd.f32 %v1995, %v2034
    %v2036 = vand.u32 %v1640, 4294901760
    %v2037 = vsub.f32 %v1640, %v2036
    %2038 = vmatmul.f32.gmra.mxu0 %v2037
    %v2039 = vpop.f32.mrf.mxu0
    %v2040 = vadd.f32 %v1999, %v2039
    %2041 = vdwg.mxu0
    %2042 = vmatpush.msra.mxu0 0.0
    %2043 = vmatpush.msra.mxu0 0.0
    %2044 = vmatpush.msra.mxu0 0.0
    %2045 = vmatpush.msra.mxu0 0.0
    %2046 = vmatpush.msra.mxu0 0.0
    %2047 = vmatpush.msra.mxu0 0.0
    %2048 = vmatpush.msra.mxu0 0.0
    %2049 = vmatpush.msra.mxu0 0.0
    %2050 = vmatpush.msra.mxu0 0.0
    %2051 = vmatpush.msra.mxu0 0.0
    %2052 = vmatpush.msra.mxu0 0.0
    %2053 = vmatpush.msra.mxu0 0.0
    %2054 = vmatpush.msra.mxu0 0.0
    %2055 = vmatpush.msra.mxu0 0.0
    %v2056 = vand.u32 %v1905, 4294901760
    %2057 = vmatpush.msra.mxu0 %v2056
    %v2058 = vand.u32 %v1902, 4294901760
    %2059 = vmatpush.msra.mxu0 %v2058
    %v2060 = vand.u32 %v1631, 4294901760
    %v2061 = vsub.f32 %v1631, %v2060
    %v2062 = vand.u32 %v2061, 4294901760
    %2063 = vmatmul.f32.gmra.mxu0 %v2062
    %v2064 = vpop.f32.mrf.mxu0
    %v2065 = vadd.f32 %v2025, %v2064
    %v2066 = vand.u32 %v1634, 4294901760
    %v2067 = vsub.f32 %v1634, %v2066
    %v2068 = vand.u32 %v2067, 4294901760
    %2069 = vmatmul.f32.gmra.mxu0 %v2068
    %v2070 = vpop.f32.mrf.mxu0
    %v2071 = vadd.f32 %v2030, %v2070
    %v2072 = vand.u32 %v1637, 4294901760
    %v2073 = vsub.f32 %v1637, %v2072
    %v2074 = vand.u32 %v2073, 4294901760
    %2075 = vmatmul.f32.gmra.mxu0 %v2074
    %v2076 = vpop.f32.mrf.mxu0
    %v2077 = vadd.f32 %v2035, %v2076
    %v2078 = vand.u32 %v1640, 4294901760
    %v2079 = vsub.f32 %v1640, %v2078
    %v2080 = vand.u32 %v2079, 4294901760
    %2081 = vmatmul.f32.gmra.mxu0 %v2080
    %v2082 = vpop.f32.mrf.mxu0
    %v2083 = vadd.f32 %v2040, %v2082
    %2084 = vdwg.mxu0
    %2085 = vmatpush.msra.mxu0 0.0
    %2086 = vmatpush.msra.mxu0 0.0
    %2087 = vmatpush.msra.mxu0 0.0
    %2088 = vmatpush.msra.mxu0 0.0
    %2089 = vmatpush.msra.mxu0 0.0
    %2090 = vmatpush.msra.mxu0 0.0
    %2091 = vmatpush.msra.mxu0 0.0
    %2092 = vmatpush.msra.mxu0 0.0
    %2093 = vmatpush.msra.mxu0 0.0
    %2094 = vmatpush.msra.mxu0 0.0
    %2095 = vmatpush.msra.mxu0 0.0
    %2096 = vmatpush.msra.mxu0 0.0
    %2097 = vmatpush.msra.mxu0 0.0
    %2098 = vmatpush.msra.mxu0 0.0
    %v2099 = vand.u32 %v1905, 4294901760
    %v2100 = vsub.f32 %v1905, %v2099
    %v2101 = vand.u32 %v2100, 4294901760
    %2102 = vmatpush.msra.mxu0 %v2101
    %v2103 = vand.u32 %v1902, 4294901760
    %v2104 = vsub.f32 %v1902, %v2103
    %v2105 = vand.u32 %v2104, 4294901760
    %2106 = vmatpush.msra.mxu0 %v2105
    %v2107 = vand.u32 %v1631, 4294901760
    %2108 = vmatmul.f32.gmra.mxu0 %v2107
    %v2109 = vpop.f32.mrf.mxu0
    %v2110 = vadd.f32 %v2065, %v2109
    %v2111 = vand.u32 %v1634, 4294901760
    %2112 = vmatmul.f32.gmra.mxu0 %v2111
    %v2113 = vpop.f32.mrf.mxu0
    %v2114 = vadd.f32 %v2071, %v2113
    %v2115 = vand.u32 %v1637, 4294901760
    %2116 = vmatmul.f32.gmra.mxu0 %v2115
    %v2117 = vpop.f32.mrf.mxu0
    %v2118 = vadd.f32 %v2077, %v2117
    %v2119 = vand.u32 %v1640, 4294901760
    %2120 = vmatmul.f32.gmra.mxu0 %v2119
    %v2121 = vpop.f32.mrf.mxu0
    %v2122 = vadd.f32 %v2083, %v2121
    %2123 = vdwg.mxu0
    %2124 = vmatpush.msra.mxu0 0.0
    %2125 = vmatpush.msra.mxu0 0.0
    %2126 = vmatpush.msra.mxu0 0.0
    %2127 = vmatpush.msra.mxu0 0.0
    %2128 = vmatpush.msra.mxu0 0.0
    %2129 = vmatpush.msra.mxu0 0.0
    %2130 = vmatpush.msra.mxu0 0.0
    %2131 = vmatpush.msra.mxu0 0.0
    %2132 = vmatpush.msra.mxu0 0.0
    %2133 = vmatpush.msra.mxu0 0.0
    %2134 = vmatpush.msra.mxu0 0.0
    %2135 = vmatpush.msra.mxu0 0.0
    %2136 = vmatpush.msra.mxu0 0.0
    %2137 = vmatpush.msra.mxu0 0.0
    %v2138 = vand.u32 %v1905, 4294901760
    %2139 = vmatpush.msra.mxu0 %v2138
    %v2140 = vand.u32 %v1902, 4294901760
    %2141 = vmatpush.msra.mxu0 %v2140
    %v2142 = vand.u32 %v1631, 4294901760
    %2143 = vmatmul.f32.gmra.mxu0 %v2142
    %v2144 = vpop.f32.mrf.mxu0
    %v2145 = vadd.f32 %v2110, %v2144
    %v2146 = vand.u32 %v1634, 4294901760
    %2147 = vmatmul.f32.gmra.mxu0 %v2146
    %v2148 = vpop.f32.mrf.mxu0
    %v2149 = vadd.f32 %v2114, %v2148
    %v2150 = vand.u32 %v1637, 4294901760
    %2151 = vmatmul.f32.gmra.mxu0 %v2150
    %v2152 = vpop.f32.mrf.mxu0
    %v2153 = vadd.f32 %v2118, %v2152
    %v2154 = vand.u32 %v1640, 4294901760
    %2155 = vmatmul.f32.gmra.mxu0 %v2154
    %v2156 = vpop.f32.mrf.mxu0
    %v2157 = vadd.f32 %v2122, %v2156
    %2158 = vdwg.mxu0
    %v2159 = vadd.f32 %v1100, %v2145
    %v2160 = vadd.f32 %v1104, %v2149
    %v2161 = vadd.f32 %v1108, %v2153
    %v2162 = vadd.f32 %v1112, %v2157
    %s2163 = scalar_lea.vmem %s3, 32
    %v2164 = vld [vmem:[%s2163] sm:$0xff]
    %v2165 = vld [vmem:[%s2163 + $0x8] sm:$0x7f]
    %v2167 = vsel %vm78, %v2165, 0
    %2169 = vmatpush.msra.mxu0 0.0
    %2170 = vmatpush.msra.mxu0 0.0
    %2171 = vmatpush.msra.mxu0 0.0
    %2172 = vmatpush.msra.mxu0 0.0
    %2173 = vmatpush.msra.mxu0 0.0
    %2174 = vmatpush.msra.mxu0 0.0
    %2175 = vmatpush.msra.mxu0 0.0
    %2176 = vmatpush.msra.mxu0 0.0
    %2177 = vmatpush.msra.mxu0 0.0
    %2178 = vmatpush.msra.mxu0 0.0
    %2179 = vmatpush.msra.mxu0 0.0
    %2180 = vmatpush.msra.mxu0 0.0
    %2181 = vmatpush.msra.mxu0 0.0
    %2182 = vmatpush.msra.mxu0 0.0
    %v2183 = vand.u32 %v2167, 4294901760
    %2184 = vmatpush.msra.mxu0 %v2183
    %v2185 = vand.u32 %v2164, 4294901760
    %2186 = vmatpush.msra.mxu0 %v2185
    %v2187 = vand.u32 %v1631, 4294901760
    %v2188 = vsub.f32 %v1631, %v2187
    %v2189 = vand.u32 %v2188, 4294901760
    %v2190 = vsub.f32 %v2188, %v2189
    %v2191 = vand.u32 %v2190, 4294901760
    %2192 = vmatmul.f32.gmra.mxu0 %v2191
    %v2193 = vpop.f32.mrf.mxu0
    %v2194 = vadd.f32 0.0, %v2193
    %v2195 = vand.u32 %v1634, 4294901760
    %v2196 = vsub.f32 %v1634, %v2195
    %v2197 = vand.u32 %v2196, 4294901760
    %v2198 = vsub.f32 %v2196, %v2197
    %v2199 = vand.u32 %v2198, 4294901760
    %2200 = vmatmul.f32.gmra.mxu0 %v2199
    %v2201 = vpop.f32.mrf.mxu0
    %v2202 = vadd.f32 0.0, %v2201
    %v2203 = vand.u32 %v1637, 4294901760
    %v2204 = vsub.f32 %v1637, %v2203
    %v2205 = vand.u32 %v2204, 4294901760
    %v2206 = vsub.f32 %v2204, %v2205
    %v2207 = vand.u32 %v2206, 4294901760
    %2208 = vmatmul.f32.gmra.mxu0 %v2207
    %v2209 = vpop.f32.mrf.mxu0
    %v2210 = vadd.f32 0.0, %v2209
    %v2211 = vand.u32 %v1640, 4294901760
    %v2212 = vsub.f32 %v1640, %v2211
    %v2213 = vand.u32 %v2212, 4294901760
    %v2214 = vsub.f32 %v2212, %v2213
    %v2215 = vand.u32 %v2214, 4294901760
    %2216 = vmatmul.f32.gmra.mxu0 %v2215
    %v2217 = vpop.f32.mrf.mxu0
    %v2218 = vadd.f32 0.0, %v2217
    %2219 = vdwg.mxu0
    %2220 = vmatpush.msra.mxu0 0.0
    %2221 = vmatpush.msra.mxu0 0.0
    %2222 = vmatpush.msra.mxu0 0.0
    %2223 = vmatpush.msra.mxu0 0.0
    %2224 = vmatpush.msra.mxu0 0.0
    %2225 = vmatpush.msra.mxu0 0.0
    %2226 = vmatpush.msra.mxu0 0.0
    %2227 = vmatpush.msra.mxu0 0.0
    %2228 = vmatpush.msra.mxu0 0.0
    %2229 = vmatpush.msra.mxu0 0.0
    %2230 = vmatpush.msra.mxu0 0.0
    %2231 = vmatpush.msra.mxu0 0.0
    %2232 = vmatpush.msra.mxu0 0.0
    %2233 = vmatpush.msra.mxu0 0.0
    %v2234 = vand.u32 %v2167, 4294901760
    %v2235 = vsub.f32 %v2167, %v2234
    %v2236 = vand.u32 %v2235, 4294901760
    %v2237 = vsub.f32 %v2235, %v2236
    %v2238 = vand.u32 %v2237, 4294901760
    %2239 = vmatpush.msra.mxu0 %v2238
    %v2240 = vand.u32 %v2164, 4294901760
    %v2241 = vsub.f32 %v2164, %v2240
    %v2242 = vand.u32 %v2241, 4294901760
    %v2243 = vsub.f32 %v2241, %v2242
    %v2244 = vand.u32 %v2243, 4294901760
    %2245 = vmatpush.msra.mxu0 %v2244
    %v2246 = vand.u32 %v1631, 4294901760
    %2247 = vmatmul.f32.gmra.mxu0 %v2246
    %v2248 = vpop.f32.mrf.mxu0
    %v2249 = vadd.f32 %v2194, %v2248
    %v2250 = vand.u32 %v1634, 4294901760
    %2251 = vmatmul.f32.gmra.mxu0 %v2250
    %v2252 = vpop.f32.mrf.mxu0
    %v2253 = vadd.f32 %v2202, %v2252
    %v2254 = vand.u32 %v1637, 4294901760
    %2255 = vmatmul.f32.gmra.mxu0 %v2254
    %v2256 = vpop.f32.mrf.mxu0
    %v2257 = vadd.f32 %v2210, %v2256
    %v2258 = vand.u32 %v1640, 4294901760
    %2259 = vmatmul.f32.gmra.mxu0 %v2258
    %v2260 = vpop.f32.mrf.mxu0
    %v2261 = vadd.f32 %v2218, %v2260
    %2262 = vdwg.mxu0
    %2263 = vmatpush.msra.mxu0 0.0
    %2264 = vmatpush.msra.mxu0 0.0
    %2265 = vmatpush.msra.mxu0 0.0
    %2266 = vmatpush.msra.mxu0 0.0
    %2267 = vmatpush.msra.mxu0 0.0
    %2268 = vmatpush.msra.mxu0 0.0
    %2269 = vmatpush.msra.mxu0 0.0
    %2270 = vmatpush.msra.mxu0 0.0
    %2271 = vmatpush.msra.mxu0 0.0
    %2272 = vmatpush.msra.mxu0 0.0
    %2273 = vmatpush.msra.mxu0 0.0
    %2274 = vmatpush.msra.mxu0 0.0
    %2275 = vmatpush.msra.mxu0 0.0
    %2276 = vmatpush.msra.mxu0 0.0
    %v2277 = vand.u32 %v2167, 4294901760
    %v2278 = vsub.f32 %v2167, %v2277
    %2279 = vmatpush.msra.mxu0 %v2278
    %v2280 = vand.u32 %v2164, 4294901760
    %v2281 = vsub.f32 %v2164, %v2280
    %2282 = vmatpush.msra.mxu0 %v2281
    %v2283 = vand.u32 %v1631, 4294901760
    %v2284 = vsub.f32 %v1631, %v2283
    %2285 = vmatmul.f32.gmra.mxu0 %v2284
    %v2286 = vpop.f32.mrf.mxu0
    %v2287 = vadd.f32 %v2249, %v2286
    %v2288 = vand.u32 %v1634, 4294901760
    %v2289 = vsub.f32 %v1634, %v2288
    %2290 = vmatmul.f32.gmra.mxu0 %v2289
    %v2291 = vpop.f32.mrf.mxu0
    %v2292 = vadd.f32 %v2253, %v2291
    %v2293 = vand.u32 %v1637, 4294901760
    %v2294 = vsub.f32 %v1637, %v2293
    %2295 = vmatmul.f32.gmra.mxu0 %v2294
    %v2296 = vpop.f32.mrf.mxu0
    %v2297 = vadd.f32 %v2257, %v2296
    %v2298 = vand.u32 %v1640, 4294901760
    %v2299 = vsub.f32 %v1640, %v2298
    %2300 = vmatmul.f32.gmra.mxu0 %v2299
    %v2301 = vpop.f32.mrf.mxu0
    %v2302 = vadd.f32 %v2261, %v2301
    %2303 = vdwg.mxu0
    %2304 = vmatpush.msra.mxu0 0.0
    %2305 = vmatpush.msra.mxu0 0.0
    %2306 = vmatpush.msra.mxu0 0.0
    %2307 = vmatpush.msra.mxu0 0.0
    %2308 = vmatpush.msra.mxu0 0.0
    %2309 = vmatpush.msra.mxu0 0.0
    %2310 = vmatpush.msra.mxu0 0.0
    %2311 = vmatpush.msra.mxu0 0.0
    %2312 = vmatpush.msra.mxu0 0.0
    %2313 = vmatpush.msra.mxu0 0.0
    %2314 = vmatpush.msra.mxu0 0.0
    %2315 = vmatpush.msra.mxu0 0.0
    %2316 = vmatpush.msra.mxu0 0.0
    %2317 = vmatpush.msra.mxu0 0.0
    %v2318 = vand.u32 %v2167, 4294901760
    %2319 = vmatpush.msra.mxu0 %v2318
    %v2320 = vand.u32 %v2164, 4294901760
    %2321 = vmatpush.msra.mxu0 %v2320
    %v2322 = vand.u32 %v1631, 4294901760
    %v2323 = vsub.f32 %v1631, %v2322
    %v2324 = vand.u32 %v2323, 4294901760
    %2325 = vmatmul.f32.gmra.mxu0 %v2324
    %v2326 = vpop.f32.mrf.mxu0
    %v2327 = vadd.f32 %v2287, %v2326
    %v2328 = vand.u32 %v1634, 4294901760
    %v2329 = vsub.f32 %v1634, %v2328
    %v2330 = vand.u32 %v2329, 4294901760
    %2331 = vmatmul.f32.gmra.mxu0 %v2330
    %v2332 = vpop.f32.mrf.mxu0
    %v2333 = vadd.f32 %v2292, %v2332
    %v2334 = vand.u32 %v1637, 4294901760
    %v2335 = vsub.f32 %v1637, %v2334
    %v2336 = vand.u32 %v2335, 4294901760
    %2337 = vmatmul.f32.gmra.mxu0 %v2336
    %v2338 = vpop.f32.mrf.mxu0
    %v2339 = vadd.f32 %v2297, %v2338
    %v2340 = vand.u32 %v1640, 4294901760
    %v2341 = vsub.f32 %v1640, %v2340
    %v2342 = vand.u32 %v2341, 4294901760
    %2343 = vmatmul.f32.gmra.mxu0 %v2342
    %v2344 = vpop.f32.mrf.mxu0
    %v2345 = vadd.f32 %v2302, %v2344
    %2346 = vdwg.mxu0
    %2347 = vmatpush.msra.mxu0 0.0
    %2348 = vmatpush.msra.mxu0 0.0
    %2349 = vmatpush.msra.mxu0 0.0
    %2350 = vmatpush.msra.mxu0 0.0
    %2351 = vmatpush.msra.mxu0 0.0
    %2352 = vmatpush.msra.mxu0 0.0
    %2353 = vmatpush.msra.mxu0 0.0
    %2354 = vmatpush.msra.mxu0 0.0
    %2355 = vmatpush.msra.mxu0 0.0
    %2356 = vmatpush.msra.mxu0 0.0
    %2357 = vmatpush.msra.mxu0 0.0
    %2358 = vmatpush.msra.mxu0 0.0
    %2359 = vmatpush.msra.mxu0 0.0
    %2360 = vmatpush.msra.mxu0 0.0
    %v2361 = vand.u32 %v2167, 4294901760
    %v2362 = vsub.f32 %v2167, %v2361
    %v2363 = vand.u32 %v2362, 4294901760
    %2364 = vmatpush.msra.mxu0 %v2363
    %v2365 = vand.u32 %v2164, 4294901760
    %v2366 = vsub.f32 %v2164, %v2365
    %v2367 = vand.u32 %v2366, 4294901760
    %2368 = vmatpush.msra.mxu0 %v2367
    %v2369 = vand.u32 %v1631, 4294901760
    %2370 = vmatmul.f32.gmra.mxu0 %v2369
    %v2371 = vpop.f32.mrf.mxu0
    %v2372 = vadd.f32 %v2327, %v2371
    %v2373 = vand.u32 %v1634, 4294901760
    %2374 = vmatmul.f32.gmra.mxu0 %v2373
    %v2375 = vpop.f32.mrf.mxu0
    %v2376 = vadd.f32 %v2333, %v2375
    %v2377 = vand.u32 %v1637, 4294901760
    %2378 = vmatmul.f32.gmra.mxu0 %v2377
    %v2379 = vpop.f32.mrf.mxu0
    %v2380 = vadd.f32 %v2339, %v2379
    %v2381 = vand.u32 %v1640, 4294901760
    %2382 = vmatmul.f32.gmra.mxu0 %v2381
    %v2383 = vpop.f32.mrf.mxu0
    %v2384 = vadd.f32 %v2345, %v2383
    %2385 = vdwg.mxu0
    %2386 = vmatpush.msra.mxu0 0.0
    %2387 = vmatpush.msra.mxu0 0.0
    %2388 = vmatpush.msra.mxu0 0.0
    %2389 = vmatpush.msra.mxu0 0.0
    %2390 = vmatpush.msra.mxu0 0.0
    %2391 = vmatpush.msra.mxu0 0.0
    %2392 = vmatpush.msra.mxu0 0.0
    %2393 = vmatpush.msra.mxu0 0.0
    %2394 = vmatpush.msra.mxu0 0.0
    %2395 = vmatpush.msra.mxu0 0.0
    %2396 = vmatpush.msra.mxu0 0.0
    %2397 = vmatpush.msra.mxu0 0.0
    %2398 = vmatpush.msra.mxu0 0.0
    %2399 = vmatpush.msra.mxu0 0.0
    %v2400 = vand.u32 %v2167, 4294901760
    %2401 = vmatpush.msra.mxu0 %v2400
    %v2402 = vand.u32 %v2164, 4294901760
    %2403 = vmatpush.msra.mxu0 %v2402
    %v2404 = vand.u32 %v1631, 4294901760
    %2405 = vmatmul.f32.gmra.mxu0 %v2404
    %v2406 = vpop.f32.mrf.mxu0
    %v2407 = vadd.f32 %v2372, %v2406
    %v2408 = vand.u32 %v1634, 4294901760
    %2409 = vmatmul.f32.gmra.mxu0 %v2408
    %v2410 = vpop.f32.mrf.mxu0
    %v2411 = vadd.f32 %v2376, %v2410
    %v2412 = vand.u32 %v1637, 4294901760
    %2413 = vmatmul.f32.gmra.mxu0 %v2412
    %v2414 = vpop.f32.mrf.mxu0
    %v2415 = vadd.f32 %v2380, %v2414
    %v2416 = vand.u32 %v1640, 4294901760
    %2417 = vmatmul.f32.gmra.mxu0 %v2416
    %v2418 = vpop.f32.mrf.mxu0
    %v2419 = vadd.f32 %v2384, %v2418
    %2420 = vdwg.mxu0
    %v2421 = vadd.f32 %v1613, %v2407
    %v2422 = vadd.f32 %v1617, %v2411
    %v2423 = vadd.f32 %v1621, %v2415
    %v2424 = vadd.f32 %v1625, %v2419
    %s2425 = scalar_lea.vmem %s1, 48
    %v2426 = vld [vmem:[%s2425] sm:$0xff]
    %v2427 = vld [vmem:[%s2425 + $0x8] sm:$0x7f]
    %v2429 = vsel %vm65, %v45, 0
    %v2432 = vsel %vm65, %v46, 0
    %v2435 = vsel %vm65, %v53, 0
    %v2438 = vsel %vm65, %v54, 0
    %v2441 = vsel %vm78, %v2427, 0
    %2443 = vmatpush.msra.mxu0 0.0
    %2444 = vmatpush.msra.mxu0 0.0
    %2445 = vmatpush.msra.mxu0 0.0
    %2446 = vmatpush.msra.mxu0 0.0
    %2447 = vmatpush.msra.mxu0 0.0
    %2448 = vmatpush.msra.mxu0 0.0
    %2449 = vmatpush.msra.mxu0 0.0
    %2450 = vmatpush.msra.mxu0 0.0
    %2451 = vmatpush.msra.mxu0 0.0
    %2452 = vmatpush.msra.mxu0 0.0
    %2453 = vmatpush.msra.mxu0 0.0
    %2454 = vmatpush.msra.mxu0 0.0
    %2455 = vmatpush.msra.mxu0 0.0
    %2456 = vmatpush.msra.mxu0 0.0
    %v2457 = vand.u32 %v2441, 4294901760
    %2458 = vmatpush.msra.mxu0 %v2457
    %v2459 = vand.u32 %v2426, 4294901760
    %2460 = vmatpush.msra.mxu0 %v2459
    %v2461 = vand.u32 %v2429, 4294901760
    %v2462 = vsub.f32 %v2429, %v2461
    %v2463 = vand.u32 %v2462, 4294901760
    %v2464 = vsub.f32 %v2462, %v2463
    %v2465 = vand.u32 %v2464, 4294901760
    %2466 = vmatmul.f32.gmra.mxu0 %v2465
    %v2467 = vpop.f32.mrf.mxu0
    %v2468 = vadd.f32 0.0, %v2467
    %v2469 = vand.u32 %v2432, 4294901760
    %v2470 = vsub.f32 %v2432, %v2469
    %v2471 = vand.u32 %v2470, 4294901760
    %v2472 = vsub.f32 %v2470, %v2471
    %v2473 = vand.u32 %v2472, 4294901760
    %2474 = vmatmul.f32.gmra.mxu0 %v2473
    %v2475 = vpop.f32.mrf.mxu0
    %v2476 = vadd.f32 0.0, %v2475
    %v2477 = vand.u32 %v2435, 4294901760
    %v2478 = vsub.f32 %v2435, %v2477
    %v2479 = vand.u32 %v2478, 4294901760
    %v2480 = vsub.f32 %v2478, %v2479
    %v2481 = vand.u32 %v2480, 4294901760
    %2482 = vmatmul.f32.gmra.mxu0 %v2481
    %v2483 = vpop.f32.mrf.mxu0
    %v2484 = vadd.f32 0.0, %v2483
    %v2485 = vand.u32 %v2438, 4294901760
    %v2486 = vsub.f32 %v2438, %v2485
    %v2487 = vand.u32 %v2486, 4294901760
    %v2488 = vsub.f32 %v2486, %v2487
    %v2489 = vand.u32 %v2488, 4294901760
    %2490 = vmatmul.f32.gmra.mxu0 %v2489
    %v2491 = vpop.f32.mrf.mxu0
    %v2492 = vadd.f32 0.0, %v2491
    %2493 = vdwg.mxu0
    %2494 = vmatpush.msra.mxu0 0.0
    %2495 = vmatpush.msra.mxu0 0.0
    %2496 = vmatpush.msra.mxu0 0.0
    %2497 = vmatpush.msra.mxu0 0.0
    %2498 = vmatpush.msra.mxu0 0.0
    %2499 = vmatpush.msra.mxu0 0.0
    %2500 = vmatpush.msra.mxu0 0.0
    %2501 = vmatpush.msra.mxu0 0.0
    %2502 = vmatpush.msra.mxu0 0.0
    %2503 = vmatpush.msra.mxu0 0.0
    %2504 = vmatpush.msra.mxu0 0.0
    %2505 = vmatpush.msra.mxu0 0.0
    %2506 = vmatpush.msra.mxu0 0.0
    %2507 = vmatpush.msra.mxu0 0.0
    %v2508 = vand.u32 %v2441, 4294901760
    %v2509 = vsub.f32 %v2441, %v2508
    %v2510 = vand.u32 %v2509, 4294901760
    %v2511 = vsub.f32 %v2509, %v2510
    %v2512 = vand.u32 %v2511, 4294901760
    %2513 = vmatpush.msra.mxu0 %v2512
    %v2514 = vand.u32 %v2426, 4294901760
    %v2515 = vsub.f32 %v2426, %v2514
    %v2516 = vand.u32 %v2515, 4294901760
    %v2517 = vsub.f32 %v2515, %v2516
    %v2518 = vand.u32 %v2517, 4294901760
    %2519 = vmatpush.msra.mxu0 %v2518
    %v2520 = vand.u32 %v2429, 4294901760
    %2521 = vmatmul.f32.gmra.mxu0 %v2520
    %v2522 = vpop.f32.mrf.mxu0
    %v2523 = vadd.f32 %v2468, %v2522
    %v2524 = vand.u32 %v2432, 4294901760
    %2525 = vmatmul.f32.gmra.mxu0 %v2524
    %v2526 = vpop.f32.mrf.mxu0
    %v2527 = vadd.f32 %v2476, %v2526
    %v2528 = vand.u32 %v2435, 4294901760
    %2529 = vmatmul.f32.gmra.mxu0 %v2528
    %v2530 = vpop.f32.mrf.mxu0
    %v2531 = vadd.f32 %v2484, %v2530
    %v2532 = vand.u32 %v2438, 4294901760
    %2533 = vmatmul.f32.gmra.mxu0 %v2532
    %v2534 = vpop.f32.mrf.mxu0
    %v2535 = vadd.f32 %v2492, %v2534
    %2536 = vdwg.mxu0
    %2537 = vmatpush.msra.mxu0 0.0
    %2538 = vmatpush.msra.mxu0 0.0
    %2539 = vmatpush.msra.mxu0 0.0
    %2540 = vmatpush.msra.mxu0 0.0
    %2541 = vmatpush.msra.mxu0 0.0
    %2542 = vmatpush.msra.mxu0 0.0
    %2543 = vmatpush.msra.mxu0 0.0
    %2544 = vmatpush.msra.mxu0 0.0
    %2545 = vmatpush.msra.mxu0 0.0
    %2546 = vmatpush.msra.mxu0 0.0
    %2547 = vmatpush.msra.mxu0 0.0
    %2548 = vmatpush.msra.mxu0 0.0
    %2549 = vmatpush.msra.mxu0 0.0
    %2550 = vmatpush.msra.mxu0 0.0
    %v2551 = vand.u32 %v2441, 4294901760
    %v2552 = vsub.f32 %v2441, %v2551
    %2553 = vmatpush.msra.mxu0 %v2552
    %v2554 = vand.u32 %v2426, 4294901760
    %v2555 = vsub.f32 %v2426, %v2554
    %2556 = vmatpush.msra.mxu0 %v2555
    %v2557 = vand.u32 %v2429, 4294901760
    %v2558 = vsub.f32 %v2429, %v2557
    %2559 = vmatmul.f32.gmra.mxu0 %v2558
    %v2560 = vpop.f32.mrf.mxu0
    %v2561 = vadd.f32 %v2523, %v2560
    %v2562 = vand.u32 %v2432, 4294901760
    %v2563 = vsub.f32 %v2432, %v2562
    %2564 = vmatmul.f32.gmra.mxu0 %v2563
    %v2565 = vpop.f32.mrf.mxu0
    %v2566 = vadd.f32 %v2527, %v2565
    %v2567 = vand.u32 %v2435, 4294901760
    %v2568 = vsub.f32 %v2435, %v2567
    %2569 = vmatmul.f32.gmra.mxu0 %v2568
    %v2570 = vpop.f32.mrf.mxu0
    %v2571 = vadd.f32 %v2531, %v2570
    %v2572 = vand.u32 %v2438, 4294901760
    %v2573 = vsub.f32 %v2438, %v2572
    %2574 = vmatmul.f32.gmra.mxu0 %v2573
    %v2575 = vpop.f32.mrf.mxu0
    %v2576 = vadd.f32 %v2535, %v2575
    %2577 = vdwg.mxu0
    %2578 = vmatpush.msra.mxu0 0.0
    %2579 = vmatpush.msra.mxu0 0.0
    %2580 = vmatpush.msra.mxu0 0.0
    %2581 = vmatpush.msra.mxu0 0.0
    %2582 = vmatpush.msra.mxu0 0.0
    %2583 = vmatpush.msra.mxu0 0.0
    %2584 = vmatpush.msra.mxu0 0.0
    %2585 = vmatpush.msra.mxu0 0.0
    %2586 = vmatpush.msra.mxu0 0.0
    %2587 = vmatpush.msra.mxu0 0.0
    %2588 = vmatpush.msra.mxu0 0.0
    %2589 = vmatpush.msra.mxu0 0.0
    %2590 = vmatpush.msra.mxu0 0.0
    %2591 = vmatpush.msra.mxu0 0.0
    %v2592 = vand.u32 %v2441, 4294901760
    %2593 = vmatpush.msra.mxu0 %v2592
    %v2594 = vand.u32 %v2426, 4294901760
    %2595 = vmatpush.msra.mxu0 %v2594
    %v2596 = vand.u32 %v2429, 4294901760
    %v2597 = vsub.f32 %v2429, %v2596
    %v2598 = vand.u32 %v2597, 4294901760
    %2599 = vmatmul.f32.gmra.mxu0 %v2598
    %v2600 = vpop.f32.mrf.mxu0
    %v2601 = vadd.f32 %v2561, %v2600
    %v2602 = vand.u32 %v2432, 4294901760
    %v2603 = vsub.f32 %v2432, %v2602
    %v2604 = vand.u32 %v2603, 4294901760
    %2605 = vmatmul.f32.gmra.mxu0 %v2604
    %v2606 = vpop.f32.mrf.mxu0
    %v2607 = vadd.f32 %v2566, %v2606
    %v2608 = vand.u32 %v2435, 4294901760
    %v2609 = vsub.f32 %v2435, %v2608
    %v2610 = vand.u32 %v2609, 4294901760
    %2611 = vmatmul.f32.gmra.mxu0 %v2610
    %v2612 = vpop.f32.mrf.mxu0
    %v2613 = vadd.f32 %v2571, %v2612
    %v2614 = vand.u32 %v2438, 4294901760
    %v2615 = vsub.f32 %v2438, %v2614
    %v2616 = vand.u32 %v2615, 4294901760
    %2617 = vmatmul.f32.gmra.mxu0 %v2616
    %v2618 = vpop.f32.mrf.mxu0
    %v2619 = vadd.f32 %v2576, %v2618
    %2620 = vdwg.mxu0
    %2621 = vmatpush.msra.mxu0 0.0
    %2622 = vmatpush.msra.mxu0 0.0
    %2623 = vmatpush.msra.mxu0 0.0
    %2624 = vmatpush.msra.mxu0 0.0
    %2625 = vmatpush.msra.mxu0 0.0
    %2626 = vmatpush.msra.mxu0 0.0
    %2627 = vmatpush.msra.mxu0 0.0
    %2628 = vmatpush.msra.mxu0 0.0
    %2629 = vmatpush.msra.mxu0 0.0
    %2630 = vmatpush.msra.mxu0 0.0
    %2631 = vmatpush.msra.mxu0 0.0
    %2632 = vmatpush.msra.mxu0 0.0
    %2633 = vmatpush.msra.mxu0 0.0
    %2634 = vmatpush.msra.mxu0 0.0
    %v2635 = vand.u32 %v2441, 4294901760
    %v2636 = vsub.f32 %v2441, %v2635
    %v2637 = vand.u32 %v2636, 4294901760
    %2638 = vmatpush.msra.mxu0 %v2637
    %v2639 = vand.u32 %v2426, 4294901760
    %v2640 = vsub.f32 %v2426, %v2639
    %v2641 = vand.u32 %v2640, 4294901760
    %2642 = vmatpush.msra.mxu0 %v2641
    %v2643 = vand.u32 %v2429, 4294901760
    %2644 = vmatmul.f32.gmra.mxu0 %v2643
    %v2645 = vpop.f32.mrf.mxu0
    %v2646 = vadd.f32 %v2601, %v2645
    %v2647 = vand.u32 %v2432, 4294901760
    %2648 = vmatmul.f32.gmra.mxu0 %v2647
    %v2649 = vpop.f32.mrf.mxu0
    %v2650 = vadd.f32 %v2607, %v2649
    %v2651 = vand.u32 %v2435, 4294901760
    %2652 = vmatmul.f32.gmra.mxu0 %v2651
    %v2653 = vpop.f32.mrf.mxu0
    %v2654 = vadd.f32 %v2613, %v2653
    %v2655 = vand.u32 %v2438, 4294901760
    %2656 = vmatmul.f32.gmra.mxu0 %v2655
    %v2657 = vpop.f32.mrf.mxu0
    %v2658 = vadd.f32 %v2619, %v2657
    %2659 = vdwg.mxu0
    %2660 = vmatpush.msra.mxu0 0.0
    %2661 = vmatpush.msra.mxu0 0.0
    %2662 = vmatpush.msra.mxu0 0.0
    %2663 = vmatpush.msra.mxu0 0.0
    %2664 = vmatpush.msra.mxu0 0.0
    %2665 = vmatpush.msra.mxu0 0.0
    %2666 = vmatpush.msra.mxu0 0.0
    %2667 = vmatpush.msra.mxu0 0.0
    %2668 = vmatpush.msra.mxu0 0.0
    %2669 = vmatpush.msra.mxu0 0.0
    %2670 = vmatpush.msra.mxu0 0.0
    %2671 = vmatpush.msra.mxu0 0.0
    %2672 = vmatpush.msra.mxu0 0.0
    %2673 = vmatpush.msra.mxu0 0.0
    %v2674 = vand.u32 %v2441, 4294901760
    %2675 = vmatpush.msra.mxu0 %v2674
    %v2676 = vand.u32 %v2426, 4294901760
    %2677 = vmatpush.msra.mxu0 %v2676
    %v2678 = vand.u32 %v2429, 4294901760
    %2679 = vmatmul.f32.gmra.mxu0 %v2678
    %v2680 = vpop.f32.mrf.mxu0
    %v2681 = vadd.f32 %v2646, %v2680
    %v2682 = vand.u32 %v2432, 4294901760
    %2683 = vmatmul.f32.gmra.mxu0 %v2682
    %v2684 = vpop.f32.mrf.mxu0
    %v2685 = vadd.f32 %v2650, %v2684
    %v2686 = vand.u32 %v2435, 4294901760
    %2687 = vmatmul.f32.gmra.mxu0 %v2686
    %v2688 = vpop.f32.mrf.mxu0
    %v2689 = vadd.f32 %v2654, %v2688
    %v2690 = vand.u32 %v2438, 4294901760
    %2691 = vmatmul.f32.gmra.mxu0 %v2690
    %v2692 = vpop.f32.mrf.mxu0
    %v2693 = vadd.f32 %v2658, %v2692
    %2694 = vdwg.mxu0
    %v2695 = vadd.f32 %v1897, %v2681
    %v2696 = vadd.f32 %v1898, %v2685
    %v2697 = vadd.f32 %v1899, %v2689
    %v2698 = vadd.f32 %v1900, %v2693
    %s2699 = scalar_lea.vmem %s1, 112
    %v2700 = vld [vmem:[%s2699] sm:$0xff]
    %v2701 = vld [vmem:[%s2699 + $0x8] sm:$0x7f]
    %v2703 = vsel %vm78, %v2701, 0
    %2705 = vmatpush.msra.mxu0 0.0
    %2706 = vmatpush.msra.mxu0 0.0
    %2707 = vmatpush.msra.mxu0 0.0
    %2708 = vmatpush.msra.mxu0 0.0
    %2709 = vmatpush.msra.mxu0 0.0
    %2710 = vmatpush.msra.mxu0 0.0
    %2711 = vmatpush.msra.mxu0 0.0
    %2712 = vmatpush.msra.mxu0 0.0
    %2713 = vmatpush.msra.mxu0 0.0
    %2714 = vmatpush.msra.mxu0 0.0
    %2715 = vmatpush.msra.mxu0 0.0
    %2716 = vmatpush.msra.mxu0 0.0
    %2717 = vmatpush.msra.mxu0 0.0
    %2718 = vmatpush.msra.mxu0 0.0
    %v2719 = vand.u32 %v2703, 4294901760
    %2720 = vmatpush.msra.mxu0 %v2719
    %v2721 = vand.u32 %v2700, 4294901760
    %2722 = vmatpush.msra.mxu0 %v2721
    %v2723 = vand.u32 %v2429, 4294901760
    %v2724 = vsub.f32 %v2429, %v2723
    %v2725 = vand.u32 %v2724, 4294901760
    %v2726 = vsub.f32 %v2724, %v2725
    %v2727 = vand.u32 %v2726, 4294901760
    %2728 = vmatmul.f32.gmra.mxu0 %v2727
    %v2729 = vpop.f32.mrf.mxu0
    %v2730 = vadd.f32 0.0, %v2729
    %v2731 = vand.u32 %v2432, 4294901760
    %v2732 = vsub.f32 %v2432, %v2731
    %v2733 = vand.u32 %v2732, 4294901760
    %v2734 = vsub.f32 %v2732, %v2733
    %v2735 = vand.u32 %v2734, 4294901760
    %2736 = vmatmul.f32.gmra.mxu0 %v2735
    %v2737 = vpop.f32.mrf.mxu0
    %v2738 = vadd.f32 0.0, %v2737
    %v2739 = vand.u32 %v2435, 4294901760
    %v2740 = vsub.f32 %v2435, %v2739
    %v2741 = vand.u32 %v2740, 4294901760
    %v2742 = vsub.f32 %v2740, %v2741
    %v2743 = vand.u32 %v2742, 4294901760
    %2744 = vmatmul.f32.gmra.mxu0 %v2743
    %v2745 = vpop.f32.mrf.mxu0
    %v2746 = vadd.f32 0.0, %v2745
    %v2747 = vand.u32 %v2438, 4294901760
    %v2748 = vsub.f32 %v2438, %v2747
    %v2749 = vand.u32 %v2748, 4294901760
    %v2750 = vsub.f32 %v2748, %v2749
    %v2751 = vand.u32 %v2750, 4294901760
    %2752 = vmatmul.f32.gmra.mxu0 %v2751
    %v2753 = vpop.f32.mrf.mxu0
    %v2754 = vadd.f32 0.0, %v2753
    %2755 = vdwg.mxu0
    %2756 = vmatpush.msra.mxu0 0.0
    %2757 = vmatpush.msra.mxu0 0.0
    %2758 = vmatpush.msra.mxu0 0.0
    %2759 = vmatpush.msra.mxu0 0.0
    %2760 = vmatpush.msra.mxu0 0.0
    %2761 = vmatpush.msra.mxu0 0.0
    %2762 = vmatpush.msra.mxu0 0.0
    %2763 = vmatpush.msra.mxu0 0.0
    %2764 = vmatpush.msra.mxu0 0.0
    %2765 = vmatpush.msra.mxu0 0.0
    %2766 = vmatpush.msra.mxu0 0.0
    %2767 = vmatpush.msra.mxu0 0.0
    %2768 = vmatpush.msra.mxu0 0.0
    %2769 = vmatpush.msra.mxu0 0.0
    %v2770 = vand.u32 %v2703, 4294901760
    %v2771 = vsub.f32 %v2703, %v2770
    %v2772 = vand.u32 %v2771, 4294901760
    %v2773 = vsub.f32 %v2771, %v2772
    %v2774 = vand.u32 %v2773, 4294901760
    %2775 = vmatpush.msra.mxu0 %v2774
    %v2776 = vand.u32 %v2700, 4294901760
    %v2777 = vsub.f32 %v2700, %v2776
    %v2778 = vand.u32 %v2777, 4294901760
    %v2779 = vsub.f32 %v2777, %v2778
    %v2780 = vand.u32 %v2779, 4294901760
    %2781 = vmatpush.msra.mxu0 %v2780
    %v2782 = vand.u32 %v2429, 4294901760
    %2783 = vmatmul.f32.gmra.mxu0 %v2782
    %v2784 = vpop.f32.mrf.mxu0
    %v2785 = vadd.f32 %v2730, %v2784
    %v2786 = vand.u32 %v2432, 4294901760
    %2787 = vmatmul.f32.gmra.mxu0 %v2786
    %v2788 = vpop.f32.mrf.mxu0
    %v2789 = vadd.f32 %v2738, %v2788
    %v2790 = vand.u32 %v2435, 4294901760
    %2791 = vmatmul.f32.gmra.mxu0 %v2790
    %v2792 = vpop.f32.mrf.mxu0
    %v2793 = vadd.f32 %v2746, %v2792
    %v2794 = vand.u32 %v2438, 4294901760
    %2795 = vmatmul.f32.gmra.mxu0 %v2794
    %v2796 = vpop.f32.mrf.mxu0
    %v2797 = vadd.f32 %v2754, %v2796
    %2798 = vdwg.mxu0
    %2799 = vmatpush.msra.mxu0 0.0
    %2800 = vmatpush.msra.mxu0 0.0
    %2801 = vmatpush.msra.mxu0 0.0
    %2802 = vmatpush.msra.mxu0 0.0
    %2803 = vmatpush.msra.mxu0 0.0
    %2804 = vmatpush.msra.mxu0 0.0
    %2805 = vmatpush.msra.mxu0 0.0
    %2806 = vmatpush.msra.mxu0 0.0
    %2807 = vmatpush.msra.mxu0 0.0
    %2808 = vmatpush.msra.mxu0 0.0
    %2809 = vmatpush.msra.mxu0 0.0
    %2810 = vmatpush.msra.mxu0 0.0
    %2811 = vmatpush.msra.mxu0 0.0
    %2812 = vmatpush.msra.mxu0 0.0
    %v2813 = vand.u32 %v2703, 4294901760
    %v2814 = vsub.f32 %v2703, %v2813
    %2815 = vmatpush.msra.mxu0 %v2814
    %v2816 = vand.u32 %v2700, 4294901760
    %v2817 = vsub.f32 %v2700, %v2816
    %2818 = vmatpush.msra.mxu0 %v2817
    %v2819 = vand.u32 %v2429, 4294901760
    %v2820 = vsub.f32 %v2429, %v2819
    %2821 = vmatmul.f32.gmra.mxu0 %v2820
    %v2822 = vpop.f32.mrf.mxu0
    %v2823 = vadd.f32 %v2785, %v2822
    %v2824 = vand.u32 %v2432, 4294901760
    %v2825 = vsub.f32 %v2432, %v2824
    %2826 = vmatmul.f32.gmra.mxu0 %v2825
    %v2827 = vpop.f32.mrf.mxu0
    %v2828 = vadd.f32 %v2789, %v2827
    %v2829 = vand.u32 %v2435, 4294901760
    %v2830 = vsub.f32 %v2435, %v2829
    %2831 = vmatmul.f32.gmra.mxu0 %v2830
    %v2832 = vpop.f32.mrf.mxu0
    %v2833 = vadd.f32 %v2793, %v2832
    %v2834 = vand.u32 %v2438, 4294901760
    %v2835 = vsub.f32 %v2438, %v2834
    %2836 = vmatmul.f32.gmra.mxu0 %v2835
    %v2837 = vpop.f32.mrf.mxu0
    %v2838 = vadd.f32 %v2797, %v2837
    %2839 = vdwg.mxu0
    %2840 = vmatpush.msra.mxu0 0.0
    %2841 = vmatpush.msra.mxu0 0.0
    %2842 = vmatpush.msra.mxu0 0.0
    %2843 = vmatpush.msra.mxu0 0.0
    %2844 = vmatpush.msra.mxu0 0.0
    %2845 = vmatpush.msra.mxu0 0.0
    %2846 = vmatpush.msra.mxu0 0.0
    %2847 = vmatpush.msra.mxu0 0.0
    %2848 = vmatpush.msra.mxu0 0.0
    %2849 = vmatpush.msra.mxu0 0.0
    %2850 = vmatpush.msra.mxu0 0.0
    %2851 = vmatpush.msra.mxu0 0.0
    %2852 = vmatpush.msra.mxu0 0.0
    %2853 = vmatpush.msra.mxu0 0.0
    %v2854 = vand.u32 %v2703, 4294901760
    %2855 = vmatpush.msra.mxu0 %v2854
    %v2856 = vand.u32 %v2700, 4294901760
    %2857 = vmatpush.msra.mxu0 %v2856
    %v2858 = vand.u32 %v2429, 4294901760
    %v2859 = vsub.f32 %v2429, %v2858
    %v2860 = vand.u32 %v2859, 4294901760
    %2861 = vmatmul.f32.gmra.mxu0 %v2860
    %v2862 = vpop.f32.mrf.mxu0
    %v2863 = vadd.f32 %v2823, %v2862
    %v2864 = vand.u32 %v2432, 4294901760
    %v2865 = vsub.f32 %v2432, %v2864
    %v2866 = vand.u32 %v2865, 4294901760
    %2867 = vmatmul.f32.gmra.mxu0 %v2866
    %v2868 = vpop.f32.mrf.mxu0
    %v2869 = vadd.f32 %v2828, %v2868
    %v2870 = vand.u32 %v2435, 4294901760
    %v2871 = vsub.f32 %v2435, %v2870
    %v2872 = vand.u32 %v2871, 4294901760
    %2873 = vmatmul.f32.gmra.mxu0 %v2872
    %v2874 = vpop.f32.mrf.mxu0
    %v2875 = vadd.f32 %v2833, %v2874
    %v2876 = vand.u32 %v2438, 4294901760
    %v2877 = vsub.f32 %v2438, %v2876
    %v2878 = vand.u32 %v2877, 4294901760
    %2879 = vmatmul.f32.gmra.mxu0 %v2878
    %v2880 = vpop.f32.mrf.mxu0
    %v2881 = vadd.f32 %v2838, %v2880
    %2882 = vdwg.mxu0
    %2883 = vmatpush.msra.mxu0 0.0
    %2884 = vmatpush.msra.mxu0 0.0
    %2885 = vmatpush.msra.mxu0 0.0
    %2886 = vmatpush.msra.mxu0 0.0
    %2887 = vmatpush.msra.mxu0 0.0
    %2888 = vmatpush.msra.mxu0 0.0
    %2889 = vmatpush.msra.mxu0 0.0
    %2890 = vmatpush.msra.mxu0 0.0
    %2891 = vmatpush.msra.mxu0 0.0
    %2892 = vmatpush.msra.mxu0 0.0
    %2893 = vmatpush.msra.mxu0 0.0
    %2894 = vmatpush.msra.mxu0 0.0
    %2895 = vmatpush.msra.mxu0 0.0
    %2896 = vmatpush.msra.mxu0 0.0
    %v2897 = vand.u32 %v2703, 4294901760
    %v2898 = vsub.f32 %v2703, %v2897
    %v2899 = vand.u32 %v2898, 4294901760
    %2900 = vmatpush.msra.mxu0 %v2899
    %v2901 = vand.u32 %v2700, 4294901760
    %v2902 = vsub.f32 %v2700, %v2901
    %v2903 = vand.u32 %v2902, 4294901760
    %2904 = vmatpush.msra.mxu0 %v2903
    %v2905 = vand.u32 %v2429, 4294901760
    %2906 = vmatmul.f32.gmra.mxu0 %v2905
    %v2907 = vpop.f32.mrf.mxu0
    %v2908 = vadd.f32 %v2863, %v2907
    %v2909 = vand.u32 %v2432, 4294901760
    %2910 = vmatmul.f32.gmra.mxu0 %v2909
    %v2911 = vpop.f32.mrf.mxu0
    %v2912 = vadd.f32 %v2869, %v2911
    %v2913 = vand.u32 %v2435, 4294901760
    %2914 = vmatmul.f32.gmra.mxu0 %v2913
    %v2915 = vpop.f32.mrf.mxu0
    %v2916 = vadd.f32 %v2875, %v2915
    %v2917 = vand.u32 %v2438, 4294901760
    %2918 = vmatmul.f32.gmra.mxu0 %v2917
    %v2919 = vpop.f32.mrf.mxu0
    %v2920 = vadd.f32 %v2881, %v2919
    %2921 = vdwg.mxu0
    %2922 = vmatpush.msra.mxu0 0.0
    %2923 = vmatpush.msra.mxu0 0.0
    %2924 = vmatpush.msra.mxu0 0.0
    %2925 = vmatpush.msra.mxu0 0.0
    %2926 = vmatpush.msra.mxu0 0.0
    %2927 = vmatpush.msra.mxu0 0.0
    %2928 = vmatpush.msra.mxu0 0.0
    %2929 = vmatpush.msra.mxu0 0.0
    %2930 = vmatpush.msra.mxu0 0.0
    %2931 = vmatpush.msra.mxu0 0.0
    %2932 = vmatpush.msra.mxu0 0.0
    %2933 = vmatpush.msra.mxu0 0.0
    %2934 = vmatpush.msra.mxu0 0.0
    %2935 = vmatpush.msra.mxu0 0.0
    %v2936 = vand.u32 %v2703, 4294901760
    %2937 = vmatpush.msra.mxu0 %v2936
    %v2938 = vand.u32 %v2700, 4294901760
    %2939 = vmatpush.msra.mxu0 %v2938
    %v2940 = vand.u32 %v2429, 4294901760
    %2941 = vmatmul.f32.gmra.mxu0 %v2940
    %v2942 = vpop.f32.mrf.mxu0
    %v2943 = vadd.f32 %v2908, %v2942
    %v2944 = vand.u32 %v2432, 4294901760
    %2945 = vmatmul.f32.gmra.mxu0 %v2944
    %v2946 = vpop.f32.mrf.mxu0
    %v2947 = vadd.f32 %v2912, %v2946
    %v2948 = vand.u32 %v2435, 4294901760
    %2949 = vmatmul.f32.gmra.mxu0 %v2948
    %v2950 = vpop.f32.mrf.mxu0
    %v2951 = vadd.f32 %v2916, %v2950
    %v2952 = vand.u32 %v2438, 4294901760
    %2953 = vmatmul.f32.gmra.mxu0 %v2952
    %v2954 = vpop.f32.mrf.mxu0
    %v2955 = vadd.f32 %v2920, %v2954
    %2956 = vdwg.mxu0
    %v2957 = vadd.f32 %v2159, %v2943
    %v2958 = vadd.f32 %v2160, %v2947
    %v2959 = vadd.f32 %v2161, %v2951
    %v2960 = vadd.f32 %v2162, %v2955
    %s2961 = scalar_lea.vmem %s3, 48
    %v2962 = vld [vmem:[%s2961] sm:$0xff]
    %v2963 = vld [vmem:[%s2961 + $0x8] sm:$0x7f]
    %v2965 = vsel %vm78, %v2963, 0
    %2967 = vmatpush.msra.mxu0 0.0
    %2968 = vmatpush.msra.mxu0 0.0
    %2969 = vmatpush.msra.mxu0 0.0
    %2970 = vmatpush.msra.mxu0 0.0
    %2971 = vmatpush.msra.mxu0 0.0
    %2972 = vmatpush.msra.mxu0 0.0
    %2973 = vmatpush.msra.mxu0 0.0
    %2974 = vmatpush.msra.mxu0 0.0
    %2975 = vmatpush.msra.mxu0 0.0
    %2976 = vmatpush.msra.mxu0 0.0
    %2977 = vmatpush.msra.mxu0 0.0
    %2978 = vmatpush.msra.mxu0 0.0
    %2979 = vmatpush.msra.mxu0 0.0
    %2980 = vmatpush.msra.mxu0 0.0
    %v2981 = vand.u32 %v2965, 4294901760
    %2982 = vmatpush.msra.mxu0 %v2981
    %v2983 = vand.u32 %v2962, 4294901760
    %2984 = vmatpush.msra.mxu0 %v2983
    %v2985 = vand.u32 %v2429, 4294901760
    %v2986 = vsub.f32 %v2429, %v2985
    %v2987 = vand.u32 %v2986, 4294901760
    %v2988 = vsub.f32 %v2986, %v2987
    %v2989 = vand.u32 %v2988, 4294901760
    %2990 = vmatmul.f32.gmra.mxu0 %v2989
    %v2991 = vpop.f32.mrf.mxu0
    %v2992 = vadd.f32 0.0, %v2991
    %v2993 = vand.u32 %v2432, 4294901760
    %v2994 = vsub.f32 %v2432, %v2993
    %v2995 = vand.u32 %v2994, 4294901760
    %v2996 = vsub.f32 %v2994, %v2995
    %v2997 = vand.u32 %v2996, 4294901760
    %2998 = vmatmul.f32.gmra.mxu0 %v2997
    %v2999 = vpop.f32.mrf.mxu0
    %v3000 = vadd.f32 0.0, %v2999
    %v3001 = vand.u32 %v2435, 4294901760
    %v3002 = vsub.f32 %v2435, %v3001
    %v3003 = vand.u32 %v3002, 4294901760
    %v3004 = vsub.f32 %v3002, %v3003
    %v3005 = vand.u32 %v3004, 4294901760
    %3006 = vmatmul.f32.gmra.mxu0 %v3005
    %v3007 = vpop.f32.mrf.mxu0
    %v3008 = vadd.f32 0.0, %v3007
    %v3009 = vand.u32 %v2438, 4294901760
    %v3010 = vsub.f32 %v2438, %v3009
    %v3011 = vand.u32 %v3010, 4294901760
    %v3012 = vsub.f32 %v3010, %v3011
    %v3013 = vand.u32 %v3012, 4294901760
    %3014 = vmatmul.f32.gmra.mxu0 %v3013
    %v3015 = vpop.f32.mrf.mxu0
    %v3016 = vadd.f32 0.0, %v3015
    %3017 = vdwg.mxu0
    %3018 = vmatpush.msra.mxu0 0.0
    %3019 = vmatpush.msra.mxu0 0.0
    %3020 = vmatpush.msra.mxu0 0.0
    %3021 = vmatpush.msra.mxu0 0.0
    %3022 = vmatpush.msra.mxu0 0.0
    %3023 = vmatpush.msra.mxu0 0.0
    %3024 = vmatpush.msra.mxu0 0.0
    %3025 = vmatpush.msra.mxu0 0.0
    %3026 = vmatpush.msra.mxu0 0.0
    %3027 = vmatpush.msra.mxu0 0.0
    %3028 = vmatpush.msra.mxu0 0.0
    %3029 = vmatpush.msra.mxu0 0.0
    %3030 = vmatpush.msra.mxu0 0.0
    %3031 = vmatpush.msra.mxu0 0.0
    %v3032 = vand.u32 %v2965, 4294901760
    %v3033 = vsub.f32 %v2965, %v3032
    %v3034 = vand.u32 %v3033, 4294901760
    %v3035 = vsub.f32 %v3033, %v3034
    %v3036 = vand.u32 %v3035, 4294901760
    %3037 = vmatpush.msra.mxu0 %v3036
    %v3038 = vand.u32 %v2962, 4294901760
    %v3039 = vsub.f32 %v2962, %v3038
    %v3040 = vand.u32 %v3039, 4294901760
    %v3041 = vsub.f32 %v3039, %v3040
    %v3042 = vand.u32 %v3041, 4294901760
    %3043 = vmatpush.msra.mxu0 %v3042
    %v3044 = vand.u32 %v2429, 4294901760
    %3045 = vmatmul.f32.gmra.mxu0 %v3044
    %v3046 = vpop.f32.mrf.mxu0
    %v3047 = vadd.f32 %v2992, %v3046
    %v3048 = vand.u32 %v2432, 4294901760
    %3049 = vmatmul.f32.gmra.mxu0 %v3048
    %v3050 = vpop.f32.mrf.mxu0
    %v3051 = vadd.f32 %v3000, %v3050
    %v3052 = vand.u32 %v2435, 4294901760
    %3053 = vmatmul.f32.gmra.mxu0 %v3052
    %v3054 = vpop.f32.mrf.mxu0
    %v3055 = vadd.f32 %v3008, %v3054
    %v3056 = vand.u32 %v2438, 4294901760
    %3057 = vmatmul.f32.gmra.mxu0 %v3056
    %v3058 = vpop.f32.mrf.mxu0
    %v3059 = vadd.f32 %v3016, %v3058
    %3060 = vdwg.mxu0
    %3061 = vmatpush.msra.mxu0 0.0
    %3062 = vmatpush.msra.mxu0 0.0
    %3063 = vmatpush.msra.mxu0 0.0
    %3064 = vmatpush.msra.mxu0 0.0
    %3065 = vmatpush.msra.mxu0 0.0
    %3066 = vmatpush.msra.mxu0 0.0
    %3067 = vmatpush.msra.mxu0 0.0
    %3068 = vmatpush.msra.mxu0 0.0
    %3069 = vmatpush.msra.mxu0 0.0
    %3070 = vmatpush.msra.mxu0 0.0
    %3071 = vmatpush.msra.mxu0 0.0
    %3072 = vmatpush.msra.mxu0 0.0
    %3073 = vmatpush.msra.mxu0 0.0
    %3074 = vmatpush.msra.mxu0 0.0
    %v3075 = vand.u32 %v2965, 4294901760
    %v3076 = vsub.f32 %v2965, %v3075
    %3077 = vmatpush.msra.mxu0 %v3076
    %v3078 = vand.u32 %v2962, 4294901760
    %v3079 = vsub.f32 %v2962, %v3078
    %3080 = vmatpush.msra.mxu0 %v3079
    %v3081 = vand.u32 %v2429, 4294901760
    %v3082 = vsub.f32 %v2429, %v3081
    %3083 = vmatmul.f32.gmra.mxu0 %v3082
    %v3084 = vpop.f32.mrf.mxu0
    %v3085 = vadd.f32 %v3047, %v3084
    %v3086 = vand.u32 %v2432, 4294901760
    %v3087 = vsub.f32 %v2432, %v3086
    %3088 = vmatmul.f32.gmra.mxu0 %v3087
    %v3089 = vpop.f32.mrf.mxu0
    %v3090 = vadd.f32 %v3051, %v3089
    %v3091 = vand.u32 %v2435, 4294901760
    %v3092 = vsub.f32 %v2435, %v3091
    %3093 = vmatmul.f32.gmra.mxu0 %v3092
    %v3094 = vpop.f32.mrf.mxu0
    %v3095 = vadd.f32 %v3055, %v3094
    %v3096 = vand.u32 %v2438, 4294901760
    %v3097 = vsub.f32 %v2438, %v3096
    %3098 = vmatmul.f32.gmra.mxu0 %v3097
    %v3099 = vpop.f32.mrf.mxu0
    %v3100 = vadd.f32 %v3059, %v3099
    %3101 = vdwg.mxu0
    %3102 = vmatpush.msra.mxu0 0.0
    %3103 = vmatpush.msra.mxu0 0.0
    %3104 = vmatpush.msra.mxu0 0.0
    %3105 = vmatpush.msra.mxu0 0.0
    %3106 = vmatpush.msra.mxu0 0.0
    %3107 = vmatpush.msra.mxu0 0.0
    %3108 = vmatpush.msra.mxu0 0.0
    %3109 = vmatpush.msra.mxu0 0.0
    %3110 = vmatpush.msra.mxu0 0.0
    %3111 = vmatpush.msra.mxu0 0.0
    %3112 = vmatpush.msra.mxu0 0.0
    %3113 = vmatpush.msra.mxu0 0.0
    %3114 = vmatpush.msra.mxu0 0.0
    %3115 = vmatpush.msra.mxu0 0.0
    %v3116 = vand.u32 %v2965, 4294901760
    %3117 = vmatpush.msra.mxu0 %v3116
    %v3118 = vand.u32 %v2962, 4294901760
    %3119 = vmatpush.msra.mxu0 %v3118
    %v3120 = vand.u32 %v2429, 4294901760
    %v3121 = vsub.f32 %v2429, %v3120
    %v3122 = vand.u32 %v3121, 4294901760
    %3123 = vmatmul.f32.gmra.mxu0 %v3122
    %v3124 = vpop.f32.mrf.mxu0
    %v3125 = vadd.f32 %v3085, %v3124
    %v3126 = vand.u32 %v2432, 4294901760
    %v3127 = vsub.f32 %v2432, %v3126
    %v3128 = vand.u32 %v3127, 4294901760
    %3129 = vmatmul.f32.gmra.mxu0 %v3128
    %v3130 = vpop.f32.mrf.mxu0
    %v3131 = vadd.f32 %v3090, %v3130
    %v3132 = vand.u32 %v2435, 4294901760
    %v3133 = vsub.f32 %v2435, %v3132
    %v3134 = vand.u32 %v3133, 4294901760
    %3135 = vmatmul.f32.gmra.mxu0 %v3134
    %v3136 = vpop.f32.mrf.mxu0
    %v3137 = vadd.f32 %v3095, %v3136
    %v3138 = vand.u32 %v2438, 4294901760
    %v3139 = vsub.f32 %v2438, %v3138
    %v3140 = vand.u32 %v3139, 4294901760
    %3141 = vmatmul.f32.gmra.mxu0 %v3140
    %v3142 = vpop.f32.mrf.mxu0
    %v3143 = vadd.f32 %v3100, %v3142
    %3144 = vdwg.mxu0
    %3145 = vmatpush.msra.mxu0 0.0
    %3146 = vmatpush.msra.mxu0 0.0
    %3147 = vmatpush.msra.mxu0 0.0
    %3148 = vmatpush.msra.mxu0 0.0
    %3149 = vmatpush.msra.mxu0 0.0
    %3150 = vmatpush.msra.mxu0 0.0
    %3151 = vmatpush.msra.mxu0 0.0
    %3152 = vmatpush.msra.mxu0 0.0
    %3153 = vmatpush.msra.mxu0 0.0
    %3154 = vmatpush.msra.mxu0 0.0
    %3155 = vmatpush.msra.mxu0 0.0
    %3156 = vmatpush.msra.mxu0 0.0
    %3157 = vmatpush.msra.mxu0 0.0
    %3158 = vmatpush.msra.mxu0 0.0
    %v3159 = vand.u32 %v2965, 4294901760
    %v3160 = vsub.f32 %v2965, %v3159
    %v3161 = vand.u32 %v3160, 4294901760
    %3162 = vmatpush.msra.mxu0 %v3161
    %v3163 = vand.u32 %v2962, 4294901760
    %v3164 = vsub.f32 %v2962, %v3163
    %v3165 = vand.u32 %v3164, 4294901760
    %3166 = vmatpush.msra.mxu0 %v3165
    %v3167 = vand.u32 %v2429, 4294901760
    %3168 = vmatmul.f32.gmra.mxu0 %v3167
    %v3169 = vpop.f32.mrf.mxu0
    %v3170 = vadd.f32 %v3125, %v3169
    %v3171 = vand.u32 %v2432, 4294901760
    %3172 = vmatmul.f32.gmra.mxu0 %v3171
    %v3173 = vpop.f32.mrf.mxu0
    %v3174 = vadd.f32 %v3131, %v3173
    %v3175 = vand.u32 %v2435, 4294901760
    %3176 = vmatmul.f32.gmra.mxu0 %v3175
    %v3177 = vpop.f32.mrf.mxu0
    %v3178 = vadd.f32 %v3137, %v3177
    %v3179 = vand.u32 %v2438, 4294901760
    %3180 = vmatmul.f32.gmra.mxu0 %v3179
    %v3181 = vpop.f32.mrf.mxu0
    %v3182 = vadd.f32 %v3143, %v3181
    %3183 = vdwg.mxu0
    %3184 = vmatpush.msra.mxu0 0.0
    %3185 = vmatpush.msra.mxu0 0.0
    %3186 = vmatpush.msra.mxu0 0.0
    %3187 = vmatpush.msra.mxu0 0.0
    %3188 = vmatpush.msra.mxu0 0.0
    %3189 = vmatpush.msra.mxu0 0.0
    %3190 = vmatpush.msra.mxu0 0.0
    %3191 = vmatpush.msra.mxu0 0.0
    %3192 = vmatpush.msra.mxu0 0.0
    %3193 = vmatpush.msra.mxu0 0.0
    %3194 = vmatpush.msra.mxu0 0.0
    %3195 = vmatpush.msra.mxu0 0.0
    %3196 = vmatpush.msra.mxu0 0.0
    %3197 = vmatpush.msra.mxu0 0.0
    %v3198 = vand.u32 %v2965, 4294901760
    %3199 = vmatpush.msra.mxu0 %v3198
    %v3200 = vand.u32 %v2962, 4294901760
    %3201 = vmatpush.msra.mxu0 %v3200
    %v3202 = vand.u32 %v2429, 4294901760
    %3203 = vmatmul.f32.gmra.mxu0 %v3202
    %v3204 = vpop.f32.mrf.mxu0
    %v3205 = vadd.f32 %v3170, %v3204
    %v3206 = vand.u32 %v2432, 4294901760
    %3207 = vmatmul.f32.gmra.mxu0 %v3206
    %v3208 = vpop.f32.mrf.mxu0
    %v3209 = vadd.f32 %v3174, %v3208
    %v3210 = vand.u32 %v2435, 4294901760
    %3211 = vmatmul.f32.gmra.mxu0 %v3210
    %v3212 = vpop.f32.mrf.mxu0
    %v3213 = vadd.f32 %v3178, %v3212
    %v3214 = vand.u32 %v2438, 4294901760
    %3215 = vmatmul.f32.gmra.mxu0 %v3214
    %v3216 = vpop.f32.mrf.mxu0
    %v3217 = vadd.f32 %v3182, %v3216
    %3218 = vdwg.mxu0
    %v3219 = vadd.f32 %v2421, %v3205
    %v3220 = vadd.f32 %v2422, %v3209
    %v3221 = vadd.f32 %v2423, %v3213
    %v3222 = vadd.f32 %v2424, %v3217
    %v3223 = vld [vmem:[%s4] sm:$0xff]
    %v3224 = vld [vmem:[%s4 + $0x8] sm:$0xff]
    %v3225 = vld [vmem:[%s4 + $0x10] sm:$0xff]
    %v3226 = vld [vmem:[%s4 + $0x18] sm:$0xff]
    %v3227 = vld [vmem:[%s4 + $0x20] sm:$0x3]
    %v3228 = vld [vmem:[%s5] sm:$0xff]
    %v3229 = vld [vmem:[%s5 + $0x8] sm:$0xff]
    %v3230 = vld [vmem:[%s5 + $0x10] sm:$0xff]
    %v3231 = vld [vmem:[%s5 + $0x18] sm:$0xff]
    %v3232 = vld [vmem:[%s5 + $0x20] sm:$0x3]
    %vm3233 = vcmask 261120
    %v3235 = vsel %vm3233, %v3228, 0
    %v3238 = vsel %vm3233, %v3229, 0
    %v3241 = vsel %vm3233, %v3230, 0
    %v3244 = vsel %vm3233, %v3231, 0
    %v3247 = vsel %vm3233, %v3232, 0
    %3249 = vmatpush.msra.mxu0 0.0
    %3250 = vmatpush.msra.mxu0 0.0
    %3251 = vmatpush.msra.mxu0 0.0
    %3252 = vmatpush.msra.mxu0 0.0
    %3253 = vmatpush.msra.mxu0 0.0
    %3254 = vmatpush.msra.mxu0 0.0
    %3255 = vmatpush.msra.mxu0 0.0
    %3256 = vmatpush.msra.mxu0 0.0
    %3257 = vmatpush.msra.mxu0 0.0
    %3258 = vmatpush.msra.mxu0 0.0
    %3259 = vmatpush.msra.mxu0 0.0
    %3260 = vmatpush.msra.mxu0 0.0
    %v3261 = vand.u32 %v2960, 4294901760
    %3262 = vmatpush.msra.mxu0 %v3261
    %v3263 = vand.u32 %v2959, 4294901760
    %3264 = vmatpush.msra.mxu0 %v3263
    %v3265 = vand.u32 %v2958, 4294901760
    %3266 = vmatpush.msra.mxu0 %v3265
    %v3267 = vand.u32 %v2957, 4294901760
    %3268 = vmatpush.msra.mxu0 %v3267
    %v3269 = vand.u32 %v3235, 4294901760
    %v3270 = vsub.f32 %v3235, %v3269
    %v3271 = vand.u32 %v3270, 4294901760
    %v3272 = vsub.f32 %v3270, %v3271
    %v3273 = vand.u32 %v3272, 4294901760
    %3274 = vmatmul.f32.gmra.mxu0 %v3273
    %v3275 = vpop.f32.mrf.mxu0
    %v3276 = vadd.f32 0.0, %v3275
    %v3277 = vand.u32 %v3238, 4294901760
    %v3278 = vsub.f32 %v3238, %v3277
    %v3279 = vand.u32 %v3278, 4294901760
    %v3280 = vsub.f32 %v3278, %v3279
    %v3281 = vand.u32 %v3280, 4294901760
    %3282 = vmatmul.f32.gmra.mxu0 %v3281
    %v3283 = vpop.f32.mrf.mxu0
    %v3284 = vadd.f32 0.0, %v3283
    %v3285 = vand.u32 %v3241, 4294901760
    %v3286 = vsub.f32 %v3241, %v3285
    %v3287 = vand.u32 %v3286, 4294901760
    %v3288 = vsub.f32 %v3286, %v3287
    %v3289 = vand.u32 %v3288, 4294901760
    %3290 = vmatmul.f32.gmra.mxu0 %v3289
    %v3291 = vpop.f32.mrf.mxu0
    %v3292 = vadd.f32 0.0, %v3291
    %v3293 = vand.u32 %v3244, 4294901760
    %v3294 = vsub.f32 %v3244, %v3293
    %v3295 = vand.u32 %v3294, 4294901760
    %v3296 = vsub.f32 %v3294, %v3295
    %v3297 = vand.u32 %v3296, 4294901760
    %3298 = vmatmul.f32.gmra.mxu0 %v3297
    %v3299 = vpop.f32.mrf.mxu0
    %v3300 = vadd.f32 0.0, %v3299
    %v3301 = vand.u32 %v3247, 4294901760
    %v3302 = vsub.f32 %v3247, %v3301
    %v3303 = vand.u32 %v3302, 4294901760
    %v3304 = vsub.f32 %v3302, %v3303
    %v3305 = vand.u32 %v3304, 4294901760
    %3306 = vmatmul.f32.gmra.mxu0 %v3305
    %v3307 = vpop.f32.mrf.mxu0
    %v3308 = vadd.f32 0.0, %v3307
    %3309 = vdwg.mxu0
    %3310 = vmatpush.msra.mxu0 0.0
    %3311 = vmatpush.msra.mxu0 0.0
    %3312 = vmatpush.msra.mxu0 0.0
    %3313 = vmatpush.msra.mxu0 0.0
    %3314 = vmatpush.msra.mxu0 0.0
    %3315 = vmatpush.msra.mxu0 0.0
    %3316 = vmatpush.msra.mxu0 0.0
    %3317 = vmatpush.msra.mxu0 0.0
    %3318 = vmatpush.msra.mxu0 0.0
    %3319 = vmatpush.msra.mxu0 0.0
    %3320 = vmatpush.msra.mxu0 0.0
    %3321 = vmatpush.msra.mxu0 0.0
    %v3322 = vand.u32 %v2960, 4294901760
    %v3323 = vsub.f32 %v2960, %v3322
    %v3324 = vand.u32 %v3323, 4294901760
    %v3325 = vsub.f32 %v3323, %v3324
    %v3326 = vand.u32 %v3325, 4294901760
    %3327 = vmatpush.msra.mxu0 %v3326
    %v3328 = vand.u32 %v2959, 4294901760
    %v3329 = vsub.f32 %v2959, %v3328
    %v3330 = vand.u32 %v3329, 4294901760
    %v3331 = vsub.f32 %v3329, %v3330
    %v3332 = vand.u32 %v3331, 4294901760
    %3333 = vmatpush.msra.mxu0 %v3332
    %v3334 = vand.u32 %v2958, 4294901760
    %v3335 = vsub.f32 %v2958, %v3334
    %v3336 = vand.u32 %v3335, 4294901760
    %v3337 = vsub.f32 %v3335, %v3336
    %v3338 = vand.u32 %v3337, 4294901760
    %3339 = vmatpush.msra.mxu0 %v3338
    %v3340 = vand.u32 %v2957, 4294901760
    %v3341 = vsub.f32 %v2957, %v3340
    %v3342 = vand.u32 %v3341, 4294901760
    %v3343 = vsub.f32 %v3341, %v3342
    %v3344 = vand.u32 %v3343, 4294901760
    %3345 = vmatpush.msra.mxu0 %v3344
    %v3346 = vand.u32 %v3235, 4294901760
    %3347 = vmatmul.f32.gmra.mxu0 %v3346
    %v3348 = vpop.f32.mrf.mxu0
    %v3349 = vadd.f32 %v3276, %v3348
    %v3350 = vand.u32 %v3238, 4294901760
    %3351 = vmatmul.f32.gmra.mxu0 %v3350
    %v3352 = vpop.f32.mrf.mxu0
    %v3353 = vadd.f32 %v3284, %v3352
    %v3354 = vand.u32 %v3241, 4294901760
    %3355 = vmatmul.f32.gmra.mxu0 %v3354
    %v3356 = vpop.f32.mrf.mxu0
    %v3357 = vadd.f32 %v3292, %v3356
    %v3358 = vand.u32 %v3244, 4294901760
    %3359 = vmatmul.f32.gmra.mxu0 %v3358
    %v3360 = vpop.f32.mrf.mxu0
    %v3361 = vadd.f32 %v3300, %v3360
    %v3362 = vand.u32 %v3247, 4294901760
    %3363 = vmatmul.f32.gmra.mxu0 %v3362
    %v3364 = vpop.f32.mrf.mxu0
    %v3365 = vadd.f32 %v3308, %v3364
    %3366 = vdwg.mxu0
    %3367 = vmatpush.msra.mxu0 0.0
    %3368 = vmatpush.msra.mxu0 0.0
    %3369 = vmatpush.msra.mxu0 0.0
    %3370 = vmatpush.msra.mxu0 0.0
    %3371 = vmatpush.msra.mxu0 0.0
    %3372 = vmatpush.msra.mxu0 0.0
    %3373 = vmatpush.msra.mxu0 0.0
    %3374 = vmatpush.msra.mxu0 0.0
    %3375 = vmatpush.msra.mxu0 0.0
    %3376 = vmatpush.msra.mxu0 0.0
    %3377 = vmatpush.msra.mxu0 0.0
    %3378 = vmatpush.msra.mxu0 0.0
    %v3379 = vand.u32 %v2960, 4294901760
    %v3380 = vsub.f32 %v2960, %v3379
    %3381 = vmatpush.msra.mxu0 %v3380
    %v3382 = vand.u32 %v2959, 4294901760
    %v3383 = vsub.f32 %v2959, %v3382
    %3384 = vmatpush.msra.mxu0 %v3383
    %v3385 = vand.u32 %v2958, 4294901760
    %v3386 = vsub.f32 %v2958, %v3385
    %3387 = vmatpush.msra.mxu0 %v3386
    %v3388 = vand.u32 %v2957, 4294901760
    %v3389 = vsub.f32 %v2957, %v3388
    %3390 = vmatpush.msra.mxu0 %v3389
    %v3391 = vand.u32 %v3235, 4294901760
    %v3392 = vsub.f32 %v3235, %v3391
    %3393 = vmatmul.f32.gmra.mxu0 %v3392
    %v3394 = vpop.f32.mrf.mxu0
    %v3395 = vadd.f32 %v3349, %v3394
    %v3396 = vand.u32 %v3238, 4294901760
    %v3397 = vsub.f32 %v3238, %v3396
    %3398 = vmatmul.f32.gmra.mxu0 %v3397
    %v3399 = vpop.f32.mrf.mxu0
    %v3400 = vadd.f32 %v3353, %v3399
    %v3401 = vand.u32 %v3241, 4294901760
    %v3402 = vsub.f32 %v3241, %v3401
    %3403 = vmatmul.f32.gmra.mxu0 %v3402
    %v3404 = vpop.f32.mrf.mxu0
    %v3405 = vadd.f32 %v3357, %v3404
    %v3406 = vand.u32 %v3244, 4294901760
    %v3407 = vsub.f32 %v3244, %v3406
    %3408 = vmatmul.f32.gmra.mxu0 %v3407
    %v3409 = vpop.f32.mrf.mxu0
    %v3410 = vadd.f32 %v3361, %v3409
    %v3411 = vand.u32 %v3247, 4294901760
    %v3412 = vsub.f32 %v3247, %v3411
    %3413 = vmatmul.f32.gmra.mxu0 %v3412
    %v3414 = vpop.f32.mrf.mxu0
    %v3415 = vadd.f32 %v3365, %v3414
    %3416 = vdwg.mxu0
    %3417 = vmatpush.msra.mxu0 0.0
    %3418 = vmatpush.msra.mxu0 0.0
    %3419 = vmatpush.msra.mxu0 0.0
    %3420 = vmatpush.msra.mxu0 0.0
    %3421 = vmatpush.msra.mxu0 0.0
    %3422 = vmatpush.msra.mxu0 0.0
    %3423 = vmatpush.msra.mxu0 0.0
    %3424 = vmatpush.msra.mxu0 0.0
    %3425 = vmatpush.msra.mxu0 0.0
    %3426 = vmatpush.msra.mxu0 0.0
    %3427 = vmatpush.msra.mxu0 0.0
    %3428 = vmatpush.msra.mxu0 0.0
    %v3429 = vand.u32 %v2960, 4294901760
    %3430 = vmatpush.msra.mxu0 %v3429
    %v3431 = vand.u32 %v2959, 4294901760
    %3432 = vmatpush.msra.mxu0 %v3431
    %v3433 = vand.u32 %v2958, 4294901760
    %3434 = vmatpush.msra.mxu0 %v3433
    %v3435 = vand.u32 %v2957, 4294901760
    %3436 = vmatpush.msra.mxu0 %v3435
    %v3437 = vand.u32 %v3235, 4294901760
    %v3438 = vsub.f32 %v3235, %v3437
    %v3439 = vand.u32 %v3438, 4294901760
    %3440 = vmatmul.f32.gmra.mxu0 %v3439
    %v3441 = vpop.f32.mrf.mxu0
    %v3442 = vadd.f32 %v3395, %v3441
    %v3443 = vand.u32 %v3238, 4294901760
    %v3444 = vsub.f32 %v3238, %v3443
    %v3445 = vand.u32 %v3444, 4294901760
    %3446 = vmatmul.f32.gmra.mxu0 %v3445
    %v3447 = vpop.f32.mrf.mxu0
    %v3448 = vadd.f32 %v3400, %v3447
    %v3449 = vand.u32 %v3241, 4294901760
    %v3450 = vsub.f32 %v3241, %v3449
    %v3451 = vand.u32 %v3450, 4294901760
    %3452 = vmatmul.f32.gmra.mxu0 %v3451
    %v3453 = vpop.f32.mrf.mxu0
    %v3454 = vadd.f32 %v3405, %v3453
    %v3455 = vand.u32 %v3244, 4294901760
    %v3456 = vsub.f32 %v3244, %v3455
    %v3457 = vand.u32 %v3456, 4294901760
    %3458 = vmatmul.f32.gmra.mxu0 %v3457
    %v3459 = vpop.f32.mrf.mxu0
    %v3460 = vadd.f32 %v3410, %v3459
    %v3461 = vand.u32 %v3247, 4294901760
    %v3462 = vsub.f32 %v3247, %v3461
    %v3463 = vand.u32 %v3462, 4294901760
    %3464 = vmatmul.f32.gmra.mxu0 %v3463
    %v3465 = vpop.f32.mrf.mxu0
    %v3466 = vadd.f32 %v3415, %v3465
    %3467 = vdwg.mxu0
    %3468 = vmatpush.msra.mxu0 0.0
    %3469 = vmatpush.msra.mxu0 0.0
    %3470 = vmatpush.msra.mxu0 0.0
    %3471 = vmatpush.msra.mxu0 0.0
    %3472 = vmatpush.msra.mxu0 0.0
    %3473 = vmatpush.msra.mxu0 0.0
    %3474 = vmatpush.msra.mxu0 0.0
    %3475 = vmatpush.msra.mxu0 0.0
    %3476 = vmatpush.msra.mxu0 0.0
    %3477 = vmatpush.msra.mxu0 0.0
    %3478 = vmatpush.msra.mxu0 0.0
    %3479 = vmatpush.msra.mxu0 0.0
    %v3480 = vand.u32 %v2960, 4294901760
    %v3481 = vsub.f32 %v2960, %v3480
    %v3482 = vand.u32 %v3481, 4294901760
    %3483 = vmatpush.msra.mxu0 %v3482
    %v3484 = vand.u32 %v2959, 4294901760
    %v3485 = vsub.f32 %v2959, %v3484
    %v3486 = vand.u32 %v3485, 4294901760
    %3487 = vmatpush.msra.mxu0 %v3486
    %v3488 = vand.u32 %v2958, 4294901760
    %v3489 = vsub.f32 %v2958, %v3488
    %v3490 = vand.u32 %v3489, 4294901760
    %3491 = vmatpush.msra.mxu0 %v3490
    %v3492 = vand.u32 %v2957, 4294901760
    %v3493 = vsub.f32 %v2957, %v3492
    %v3494 = vand.u32 %v3493, 4294901760
    %3495 = vmatpush.msra.mxu0 %v3494
    %v3496 = vand.u32 %v3235, 4294901760
    %3497 = vmatmul.f32.gmra.mxu0 %v3496
    %v3498 = vpop.f32.mrf.mxu0
    %v3499 = vadd.f32 %v3442, %v3498
    %v3500 = vand.u32 %v3238, 4294901760
    %3501 = vmatmul.f32.gmra.mxu0 %v3500
    %v3502 = vpop.f32.mrf.mxu0
    %v3503 = vadd.f32 %v3448, %v3502
    %v3504 = vand.u32 %v3241, 4294901760
    %3505 = vmatmul.f32.gmra.mxu0 %v3504
    %v3506 = vpop.f32.mrf.mxu0
    %v3507 = vadd.f32 %v3454, %v3506
    %v3508 = vand.u32 %v3244, 4294901760
    %3509 = vmatmul.f32.gmra.mxu0 %v3508
    %v3510 = vpop.f32.mrf.mxu0
    %v3511 = vadd.f32 %v3460, %v3510
    %v3512 = vand.u32 %v3247, 4294901760
    %3513 = vmatmul.f32.gmra.mxu0 %v3512
    %v3514 = vpop.f32.mrf.mxu0
    %v3515 = vadd.f32 %v3466, %v3514
    %3516 = vdwg.mxu0
    %3517 = vmatpush.msra.mxu0 0.0
    %3518 = vmatpush.msra.mxu0 0.0
    %3519 = vmatpush.msra.mxu0 0.0
    %3520 = vmatpush.msra.mxu0 0.0
    %3521 = vmatpush.msra.mxu0 0.0
    %3522 = vmatpush.msra.mxu0 0.0
    %3523 = vmatpush.msra.mxu0 0.0
    %3524 = vmatpush.msra.mxu0 0.0
    %3525 = vmatpush.msra.mxu0 0.0
    %3526 = vmatpush.msra.mxu0 0.0
    %3527 = vmatpush.msra.mxu0 0.0
    %3528 = vmatpush.msra.mxu0 0.0
    %v3529 = vand.u32 %v2960, 4294901760
    %3530 = vmatpush.msra.mxu0 %v3529
    %v3531 = vand.u32 %v2959, 4294901760
    %3532 = vmatpush.msra.mxu0 %v3531
    %v3533 = vand.u32 %v2958, 4294901760
    %3534 = vmatpush.msra.mxu0 %v3533
    %v3535 = vand.u32 %v2957, 4294901760
    %3536 = vmatpush.msra.mxu0 %v3535
    %v3537 = vand.u32 %v3235, 4294901760
    %3538 = vmatmul.f32.gmra.mxu0 %v3537
    %v3539 = vpop.f32.mrf.mxu0
    %v3540 = vadd.f32 %v3499, %v3539
    %v3541 = vand.u32 %v3238, 4294901760
    %3542 = vmatmul.f32.gmra.mxu0 %v3541
    %v3543 = vpop.f32.mrf.mxu0
    %v3544 = vadd.f32 %v3503, %v3543
    %v3545 = vand.u32 %v3241, 4294901760
    %3546 = vmatmul.f32.gmra.mxu0 %v3545
    %v3547 = vpop.f32.mrf.mxu0
    %v3548 = vadd.f32 %v3507, %v3547
    %v3549 = vand.u32 %v3244, 4294901760
    %3550 = vmatmul.f32.gmra.mxu0 %v3549
    %v3551 = vpop.f32.mrf.mxu0
    %v3552 = vadd.f32 %v3511, %v3551
    %v3553 = vand.u32 %v3247, 4294901760
    %3554 = vmatmul.f32.gmra.mxu0 %v3553
    %v3555 = vpop.f32.mrf.mxu0
    %v3556 = vadd.f32 %v3515, %v3555
    %3557 = vdwg.mxu0
    %v3559 = vsel %vm3233, %v3223, 0
    %v3562 = vsel %vm3233, %v3224, 0
    %v3565 = vsel %vm3233, %v3225, 0
    %v3568 = vsel %vm3233, %v3226, 0
    %v3571 = vsel %vm3233, %v3227, 0
    %3573 = vmatpush.msra.mxu0 0.0
    %3574 = vmatpush.msra.mxu0 0.0
    %3575 = vmatpush.msra.mxu0 0.0
    %3576 = vmatpush.msra.mxu0 0.0
    %3577 = vmatpush.msra.mxu0 0.0
    %3578 = vmatpush.msra.mxu0 0.0
    %3579 = vmatpush.msra.mxu0 0.0
    %3580 = vmatpush.msra.mxu0 0.0
    %3581 = vmatpush.msra.mxu0 0.0
    %3582 = vmatpush.msra.mxu0 0.0
    %3583 = vmatpush.msra.mxu0 0.0
    %3584 = vmatpush.msra.mxu0 0.0
    %v3585 = vand.u32 %v2698, 4294901760
    %3586 = vmatpush.msra.mxu0 %v3585
    %v3587 = vand.u32 %v2697, 4294901760
    %3588 = vmatpush.msra.mxu0 %v3587
    %v3589 = vand.u32 %v2696, 4294901760
    %3590 = vmatpush.msra.mxu0 %v3589
    %v3591 = vand.u32 %v2695, 4294901760
    %3592 = vmatpush.msra.mxu0 %v3591
    %v3593 = vand.u32 %v3559, 4294901760
    %v3594 = vsub.f32 %v3559, %v3593
    %v3595 = vand.u32 %v3594, 4294901760
    %v3596 = vsub.f32 %v3594, %v3595
    %v3597 = vand.u32 %v3596, 4294901760
    %3598 = vmatmul.f32.gmra.mxu0 %v3597
    %v3599 = vpop.f32.mrf.mxu0
    %v3600 = vadd.f32 %v3540, %v3599
    %v3601 = vand.u32 %v3562, 4294901760
    %v3602 = vsub.f32 %v3562, %v3601
    %v3603 = vand.u32 %v3602, 4294901760
    %v3604 = vsub.f32 %v3602, %v3603
    %v3605 = vand.u32 %v3604, 4294901760
    %3606 = vmatmul.f32.gmra.mxu0 %v3605
    %v3607 = vpop.f32.mrf.mxu0
    %v3608 = vadd.f32 %v3544, %v3607
    %v3609 = vand.u32 %v3565, 4294901760
    %v3610 = vsub.f32 %v3565, %v3609
    %v3611 = vand.u32 %v3610, 4294901760
    %v3612 = vsub.f32 %v3610, %v3611
    %v3613 = vand.u32 %v3612, 4294901760
    %3614 = vmatmul.f32.gmra.mxu0 %v3613
    %v3615 = vpop.f32.mrf.mxu0
    %v3616 = vadd.f32 %v3548, %v3615
    %v3617 = vand.u32 %v3568, 4294901760
    %v3618 = vsub.f32 %v3568, %v3617
    %v3619 = vand.u32 %v3618, 4294901760
    %v3620 = vsub.f32 %v3618, %v3619
    %v3621 = vand.u32 %v3620, 4294901760
    %3622 = vmatmul.f32.gmra.mxu0 %v3621
    %v3623 = vpop.f32.mrf.mxu0
    %v3624 = vadd.f32 %v3552, %v3623
    %v3625 = vand.u32 %v3571, 4294901760
    %v3626 = vsub.f32 %v3571, %v3625
    %v3627 = vand.u32 %v3626, 4294901760
    %v3628 = vsub.f32 %v3626, %v3627
    %v3629 = vand.u32 %v3628, 4294901760
    %3630 = vmatmul.f32.gmra.mxu0 %v3629
    %v3631 = vpop.f32.mrf.mxu0
    %v3632 = vadd.f32 %v3556, %v3631
    %3633 = vdwg.mxu0
    %3634 = vmatpush.msra.mxu0 0.0
    %3635 = vmatpush.msra.mxu0 0.0
    %3636 = vmatpush.msra.mxu0 0.0
    %3637 = vmatpush.msra.mxu0 0.0
    %3638 = vmatpush.msra.mxu0 0.0
    %3639 = vmatpush.msra.mxu0 0.0
    %3640 = vmatpush.msra.mxu0 0.0
    %3641 = vmatpush.msra.mxu0 0.0
    %3642 = vmatpush.msra.mxu0 0.0
    %3643 = vmatpush.msra.mxu0 0.0
    %3644 = vmatpush.msra.mxu0 0.0
    %3645 = vmatpush.msra.mxu0 0.0
    %v3646 = vand.u32 %v2698, 4294901760
    %v3647 = vsub.f32 %v2698, %v3646
    %v3648 = vand.u32 %v3647, 4294901760
    %v3649 = vsub.f32 %v3647, %v3648
    %v3650 = vand.u32 %v3649, 4294901760
    %3651 = vmatpush.msra.mxu0 %v3650
    %v3652 = vand.u32 %v2697, 4294901760
    %v3653 = vsub.f32 %v2697, %v3652
    %v3654 = vand.u32 %v3653, 4294901760
    %v3655 = vsub.f32 %v3653, %v3654
    %v3656 = vand.u32 %v3655, 4294901760
    %3657 = vmatpush.msra.mxu0 %v3656
    %v3658 = vand.u32 %v2696, 4294901760
    %v3659 = vsub.f32 %v2696, %v3658
    %v3660 = vand.u32 %v3659, 4294901760
    %v3661 = vsub.f32 %v3659, %v3660
    %v3662 = vand.u32 %v3661, 4294901760
    %3663 = vmatpush.msra.mxu0 %v3662
    %v3664 = vand.u32 %v2695, 4294901760
    %v3665 = vsub.f32 %v2695, %v3664
    %v3666 = vand.u32 %v3665, 4294901760
    %v3667 = vsub.f32 %v3665, %v3666
    %v3668 = vand.u32 %v3667, 4294901760
    %3669 = vmatpush.msra.mxu0 %v3668
    %v3670 = vand.u32 %v3559, 4294901760
    %3671 = vmatmul.f32.gmra.mxu0 %v3670
    %v3672 = vpop.f32.mrf.mxu0
    %v3673 = vadd.f32 %v3600, %v3672
    %v3674 = vand.u32 %v3562, 4294901760
    %3675 = vmatmul.f32.gmra.mxu0 %v3674
    %v3676 = vpop.f32.mrf.mxu0
    %v3677 = vadd.f32 %v3608, %v3676
    %v3678 = vand.u32 %v3565, 4294901760
    %3679 = vmatmul.f32.gmra.mxu0 %v3678
    %v3680 = vpop.f32.mrf.mxu0
    %v3681 = vadd.f32 %v3616, %v3680
    %v3682 = vand.u32 %v3568, 4294901760
    %3683 = vmatmul.f32.gmra.mxu0 %v3682
    %v3684 = vpop.f32.mrf.mxu0
    %v3685 = vadd.f32 %v3624, %v3684
    %v3686 = vand.u32 %v3571, 4294901760
    %3687 = vmatmul.f32.gmra.mxu0 %v3686
    %v3688 = vpop.f32.mrf.mxu0
    %v3689 = vadd.f32 %v3632, %v3688
    %3690 = vdwg.mxu0
    %3691 = vmatpush.msra.mxu0 0.0
    %3692 = vmatpush.msra.mxu0 0.0
    %3693 = vmatpush.msra.mxu0 0.0
    %3694 = vmatpush.msra.mxu0 0.0
    %3695 = vmatpush.msra.mxu0 0.0
    %3696 = vmatpush.msra.mxu0 0.0
    %3697 = vmatpush.msra.mxu0 0.0
    %3698 = vmatpush.msra.mxu0 0.0
    %3699 = vmatpush.msra.mxu0 0.0
    %3700 = vmatpush.msra.mxu0 0.0
    %3701 = vmatpush.msra.mxu0 0.0
    %3702 = vmatpush.msra.mxu0 0.0
    %v3703 = vand.u32 %v2698, 4294901760
    %v3704 = vsub.f32 %v2698, %v3703
    %3705 = vmatpush.msra.mxu0 %v3704
    %v3706 = vand.u32 %v2697, 4294901760
    %v3707 = vsub.f32 %v2697, %v3706
    %3708 = vmatpush.msra.mxu0 %v3707
    %v3709 = vand.u32 %v2696, 4294901760
    %v3710 = vsub.f32 %v2696, %v3709
    %3711 = vmatpush.msra.mxu0 %v3710
    %v3712 = vand.u32 %v2695, 4294901760
    %v3713 = vsub.f32 %v2695, %v3712
    %3714 = vmatpush.msra.mxu0 %v3713
    %v3715 = vand.u32 %v3559, 4294901760
    %v3716 = vsub.f32 %v3559, %v3715
    %3717 = vmatmul.f32.gmra.mxu0 %v3716
    %v3718 = vpop.f32.mrf.mxu0
    %v3719 = vadd.f32 %v3673, %v3718
    %v3720 = vand.u32 %v3562, 4294901760
    %v3721 = vsub.f32 %v3562, %v3720
    %3722 = vmatmul.f32.gmra.mxu0 %v3721
    %v3723 = vpop.f32.mrf.mxu0
    %v3724 = vadd.f32 %v3677, %v3723
    %v3725 = vand.u32 %v3565, 4294901760
    %v3726 = vsub.f32 %v3565, %v3725
    %3727 = vmatmul.f32.gmra.mxu0 %v3726
    %v3728 = vpop.f32.mrf.mxu0
    %v3729 = vadd.f32 %v3681, %v3728
    %v3730 = vand.u32 %v3568, 4294901760
    %v3731 = vsub.f32 %v3568, %v3730
    %3732 = vmatmul.f32.gmra.mxu0 %v3731
    %v3733 = vpop.f32.mrf.mxu0
    %v3734 = vadd.f32 %v3685, %v3733
    %v3735 = vand.u32 %v3571, 4294901760
    %v3736 = vsub.f32 %v3571, %v3735
    %3737 = vmatmul.f32.gmra.mxu0 %v3736
    %v3738 = vpop.f32.mrf.mxu0
    %v3739 = vadd.f32 %v3689, %v3738
    %3740 = vdwg.mxu0
    %3741 = vmatpush.msra.mxu0 0.0
    %3742 = vmatpush.msra.mxu0 0.0
    %3743 = vmatpush.msra.mxu0 0.0
    %3744 = vmatpush.msra.mxu0 0.0
    %3745 = vmatpush.msra.mxu0 0.0
    %3746 = vmatpush.msra.mxu0 0.0
    %3747 = vmatpush.msra.mxu0 0.0
    %3748 = vmatpush.msra.mxu0 0.0
    %3749 = vmatpush.msra.mxu0 0.0
    %3750 = vmatpush.msra.mxu0 0.0
    %3751 = vmatpush.msra.mxu0 0.0
    %3752 = vmatpush.msra.mxu0 0.0
    %v3753 = vand.u32 %v2698, 4294901760
    %3754 = vmatpush.msra.mxu0 %v3753
    %v3755 = vand.u32 %v2697, 4294901760
    %3756 = vmatpush.msra.mxu0 %v3755
    %v3757 = vand.u32 %v2696, 4294901760
    %3758 = vmatpush.msra.mxu0 %v3757
    %v3759 = vand.u32 %v2695, 4294901760
    %3760 = vmatpush.msra.mxu0 %v3759
    %v3761 = vand.u32 %v3559, 4294901760
    %v3762 = vsub.f32 %v3559, %v3761
    %v3763 = vand.u32 %v3762, 4294901760
    %3764 = vmatmul.f32.gmra.mxu0 %v3763
    %v3765 = vpop.f32.mrf.mxu0
    %v3766 = vadd.f32 %v3719, %v3765
    %v3767 = vand.u32 %v3562, 4294901760
    %v3768 = vsub.f32 %v3562, %v3767
    %v3769 = vand.u32 %v3768, 4294901760
    %3770 = vmatmul.f32.gmra.mxu0 %v3769
    %v3771 = vpop.f32.mrf.mxu0
    %v3772 = vadd.f32 %v3724, %v3771
    %v3773 = vand.u32 %v3565, 4294901760
    %v3774 = vsub.f32 %v3565, %v3773
    %v3775 = vand.u32 %v3774, 4294901760
    %3776 = vmatmul.f32.gmra.mxu0 %v3775
    %v3777 = vpop.f32.mrf.mxu0
    %v3778 = vadd.f32 %v3729, %v3777
    %v3779 = vand.u32 %v3568, 4294901760
    %v3780 = vsub.f32 %v3568, %v3779
    %v3781 = vand.u32 %v3780, 4294901760
    %3782 = vmatmul.f32.gmra.mxu0 %v3781
    %v3783 = vpop.f32.mrf.mxu0
    %v3784 = vadd.f32 %v3734, %v3783
    %v3785 = vand.u32 %v3571, 4294901760
    %v3786 = vsub.f32 %v3571, %v3785
    %v3787 = vand.u32 %v3786, 4294901760
    %3788 = vmatmul.f32.gmra.mxu0 %v3787
    %v3789 = vpop.f32.mrf.mxu0
    %v3790 = vadd.f32 %v3739, %v3789
    %3791 = vdwg.mxu0
    %3792 = vmatpush.msra.mxu0 0.0
    %3793 = vmatpush.msra.mxu0 0.0
    %3794 = vmatpush.msra.mxu0 0.0
    %3795 = vmatpush.msra.mxu0 0.0
    %3796 = vmatpush.msra.mxu0 0.0
    %3797 = vmatpush.msra.mxu0 0.0
    %3798 = vmatpush.msra.mxu0 0.0
    %3799 = vmatpush.msra.mxu0 0.0
    %3800 = vmatpush.msra.mxu0 0.0
    %3801 = vmatpush.msra.mxu0 0.0
    %3802 = vmatpush.msra.mxu0 0.0
    %3803 = vmatpush.msra.mxu0 0.0
    %v3804 = vand.u32 %v2698, 4294901760
    %v3805 = vsub.f32 %v2698, %v3804
    %v3806 = vand.u32 %v3805, 4294901760
    %3807 = vmatpush.msra.mxu0 %v3806
    %v3808 = vand.u32 %v2697, 4294901760
    %v3809 = vsub.f32 %v2697, %v3808
    %v3810 = vand.u32 %v3809, 4294901760
    %3811 = vmatpush.msra.mxu0 %v3810
    %v3812 = vand.u32 %v2696, 4294901760
    %v3813 = vsub.f32 %v2696, %v3812
    %v3814 = vand.u32 %v3813, 4294901760
    %3815 = vmatpush.msra.mxu0 %v3814
    %v3816 = vand.u32 %v2695, 4294901760
    %v3817 = vsub.f32 %v2695, %v3816
    %v3818 = vand.u32 %v3817, 4294901760
    %3819 = vmatpush.msra.mxu0 %v3818
    %v3820 = vand.u32 %v3559, 4294901760
    %3821 = vmatmul.f32.gmra.mxu0 %v3820
    %v3822 = vpop.f32.mrf.mxu0
    %v3823 = vadd.f32 %v3766, %v3822
    %v3824 = vand.u32 %v3562, 4294901760
    %3825 = vmatmul.f32.gmra.mxu0 %v3824
    %v3826 = vpop.f32.mrf.mxu0
    %v3827 = vadd.f32 %v3772, %v3826
    %v3828 = vand.u32 %v3565, 4294901760
    %3829 = vmatmul.f32.gmra.mxu0 %v3828
    %v3830 = vpop.f32.mrf.mxu0
    %v3831 = vadd.f32 %v3778, %v3830
    %v3832 = vand.u32 %v3568, 4294901760
    %3833 = vmatmul.f32.gmra.mxu0 %v3832
    %v3834 = vpop.f32.mrf.mxu0
    %v3835 = vadd.f32 %v3784, %v3834
    %v3836 = vand.u32 %v3571, 4294901760
    %3837 = vmatmul.f32.gmra.mxu0 %v3836
    %v3838 = vpop.f32.mrf.mxu0
    %v3839 = vadd.f32 %v3790, %v3838
    %3840 = vdwg.mxu0
    %3841 = vmatpush.msra.mxu0 0.0
    %3842 = vmatpush.msra.mxu0 0.0
    %3843 = vmatpush.msra.mxu0 0.0
    %3844 = vmatpush.msra.mxu0 0.0
    %3845 = vmatpush.msra.mxu0 0.0
    %3846 = vmatpush.msra.mxu0 0.0
    %3847 = vmatpush.msra.mxu0 0.0
    %3848 = vmatpush.msra.mxu0 0.0
    %3849 = vmatpush.msra.mxu0 0.0
    %3850 = vmatpush.msra.mxu0 0.0
    %3851 = vmatpush.msra.mxu0 0.0
    %3852 = vmatpush.msra.mxu0 0.0
    %v3853 = vand.u32 %v2698, 4294901760
    %3854 = vmatpush.msra.mxu0 %v3853
    %v3855 = vand.u32 %v2697, 4294901760
    %3856 = vmatpush.msra.mxu0 %v3855
    %v3857 = vand.u32 %v2696, 4294901760
    %3858 = vmatpush.msra.mxu0 %v3857
    %v3859 = vand.u32 %v2695, 4294901760
    %3860 = vmatpush.msra.mxu0 %v3859
    %v3861 = vand.u32 %v3559, 4294901760
    %3862 = vmatmul.f32.gmra.mxu0 %v3861
    %v3863 = vpop.f32.mrf.mxu0
    %v3864 = vadd.f32 %v3823, %v3863
    %v3865 = vand.u32 %v3562, 4294901760
    %3866 = vmatmul.f32.gmra.mxu0 %v3865
    %v3867 = vpop.f32.mrf.mxu0
    %v3868 = vadd.f32 %v3827, %v3867
    %v3869 = vand.u32 %v3565, 4294901760
    %3870 = vmatmul.f32.gmra.mxu0 %v3869
    %v3871 = vpop.f32.mrf.mxu0
    %v3872 = vadd.f32 %v3831, %v3871
    %v3873 = vand.u32 %v3568, 4294901760
    %3874 = vmatmul.f32.gmra.mxu0 %v3873
    %v3875 = vpop.f32.mrf.mxu0
    %v3876 = vadd.f32 %v3835, %v3875
    %v3877 = vand.u32 %v3571, 4294901760
    %3878 = vmatmul.f32.gmra.mxu0 %v3877
    %v3879 = vpop.f32.mrf.mxu0
    %v3880 = vadd.f32 %v3839, %v3879
    %3881 = vdwg.mxu0
    %v3882 = vld [vmem:[%s9] sm:$0x1]
    %v3884 = vperm.slane %v3882, 0
    %v3886 = vadd.f32 %v3864, %v3884
    %v3887 = vadd.f32 %v3868, %v3884
    %v3888 = vadd.f32 %v3872, %v3884
    %v3889 = vadd.f32 %v3876, %v3884
    %v3890 = vadd.f32 %v3880, %v3884
    %vm3891 = vcmp.gt.f32.partialorder %v3886, 0.0
    %vm3892 = vcmp.gt.f32.partialorder %v3887, 0.0
    %vm3893 = vcmp.gt.f32.partialorder %v3888, 0.0
    %vm3894 = vcmp.gt.f32.partialorder %v3889, 0.0
    %vm3895 = vcmp.gt.f32.partialorder %v3890, 0.0
    %v3896 = vmul.f32 %v3886, 1.442695
    %v3897 = vpow.pop %v3896
    %v3898 = vmul.f32 %v3887, 1.442695
    %v3899 = vpow.pop %v3898
    %v3900 = vmul.f32 %v3888, 1.442695
    %v3901 = vpow.pop %v3900
    %v3902 = vmul.f32 %v3889, 1.442695
    %v3903 = vpow.pop %v3902
    %v3904 = vmul.f32 %v3890, 1.442695
    %v3905 = vpow.pop %v3904
    %v3906 = vsub.f32 %v3897, 1.0
    %v3907 = vsub.f32 %v3899, 1.0
    %v3908 = vsub.f32 %v3901, 1.0
    %v3909 = vsub.f32 %v3903, 1.0
    %v3910 = vsub.f32 %v3905, 1.0
    %v3911 = vmul.f32 %v3906, 1.6732632
    %v3912 = vmul.f32 %v3907, 1.6732632
    %v3913 = vmul.f32 %v3908, 1.6732632
    %v3914 = vmul.f32 %v3909, 1.6732632
    %v3915 = vmul.f32 %v3910, 1.6732632
    %v3916 = vsel %vm3891, %v3886, %v3911
    %v3917 = vsel %vm3892, %v3887, %v3912
    %v3918 = vsel %vm3893, %v3888, %v3913
    %v3919 = vsel %vm3894, %v3889, %v3914
    %v3920 = vsel %vm3895, %v3890, %v3915
    %v3921 = vmul.f32 %v3916, 1.050701
    %v3922 = vmul.f32 %v3917, 1.050701
    %v3923 = vmul.f32 %v3918, 1.050701
    %v3924 = vmul.f32 %v3919, 1.050701
    %v3925 = vmul.f32 %v3920, 1.050701
    %v3926 = vld [vmem:[%s6] sm:$0xff]
    %v3927 = vld [vmem:[%s6 + $0x8] sm:$0xff]
    %v3928 = vld [vmem:[%s6 + $0x10] sm:$0xff]
    %v3929 = vld [vmem:[%s6 + $0x18] sm:$0xff]
    %vm3930 = vcmask 277504
    %v3932 = vsel %vm3930, %v3926, 0
    %v3935 = vsel %vm3930, %v3927, 0
    %v3938 = vsel %vm3930, %v3928, 0
    %v3941 = vsel %vm3930, %v3929, 0
    %vm3943 = vcmask 1041408
    %v3945 = vsel %vm3943, %v3925, 0
    %3947 = vmatpush.msra.mxu0 0.0
    %3948 = vmatpush.msra.mxu0 0.0
    %3949 = vmatpush.msra.mxu0 0.0
    %3950 = vmatpush.msra.mxu0 0.0
    %3951 = vmatpush.msra.mxu0 0.0
    %3952 = vmatpush.msra.mxu0 0.0
    %3953 = vmatpush.msra.mxu0 0.0
    %3954 = vmatpush.msra.mxu0 0.0
    %3955 = vmatpush.msra.mxu0 0.0
    %3956 = vmatpush.msra.mxu0 0.0
    %3957 = vmatpush.msra.mxu0 0.0
    %v3958 = vand.u32 %v3945, 4294901760
    %3959 = vmatpush.msra.mxu0 %v3958
    %v3960 = vand.u32 %v3924, 4294901760
    %3961 = vmatpush.msra.mxu0 %v3960
    %v3962 = vand.u32 %v3923, 4294901760
    %3963 = vmatpush.msra.mxu0 %v3962
    %v3964 = vand.u32 %v3922, 4294901760
    %3965 = vmatpush.msra.mxu0 %v3964
    %v3966 = vand.u32 %v3921, 4294901760
    %3967 = vmatpush.msra.mxu0 %v3966
    %v3968 = vand.u32 %v3932, 4294901760
    %v3969 = vsub.f32 %v3932, %v3968
    %v3970 = vand.u32 %v3969, 4294901760
    %v3971 = vsub.f32 %v3969, %v3970
    %v3972 = vand.u32 %v3971, 4294901760
    %3973 = vmatmul.f32.gmra.mxu0 %v3972
    %v3974 = vpop.f32.mrf.mxu0
    %v3975 = vadd.f32 0.0, %v3974
    %v3976 = vand.u32 %v3935, 4294901760
    %v3977 = vsub.f32 %v3935, %v3976
    %v3978 = vand.u32 %v3977, 4294901760
    %v3979 = vsub.f32 %v3977, %v3978
    %v3980 = vand.u32 %v3979, 4294901760
    %3981 = vmatmul.f32.gmra.mxu0 %v3980
    %v3982 = vpop.f32.mrf.mxu0
    %v3983 = vadd.f32 0.0, %v3982
    %v3984 = vand.u32 %v3938, 4294901760
    %v3985 = vsub.f32 %v3938, %v3984
    %v3986 = vand.u32 %v3985, 4294901760
    %v3987 = vsub.f32 %v3985, %v3986
    %v3988 = vand.u32 %v3987, 4294901760
    %3989 = vmatmul.f32.gmra.mxu0 %v3988
    %v3990 = vpop.f32.mrf.mxu0
    %v3991 = vadd.f32 0.0, %v3990
    %v3992 = vand.u32 %v3941, 4294901760
    %v3993 = vsub.f32 %v3941, %v3992
    %v3994 = vand.u32 %v3993, 4294901760
    %v3995 = vsub.f32 %v3993, %v3994
    %v3996 = vand.u32 %v3995, 4294901760
    %3997 = vmatmul.f32.gmra.mxu0 %v3996
    %v3998 = vpop.f32.mrf.mxu0
    %v3999 = vadd.f32 0.0, %v3998
    %4000 = vdwg.mxu0
    %4001 = vmatpush.msra.mxu0 0.0
    %4002 = vmatpush.msra.mxu0 0.0
    %4003 = vmatpush.msra.mxu0 0.0
    %4004 = vmatpush.msra.mxu0 0.0
    %4005 = vmatpush.msra.mxu0 0.0
    %4006 = vmatpush.msra.mxu0 0.0
    %4007 = vmatpush.msra.mxu0 0.0
    %4008 = vmatpush.msra.mxu0 0.0
    %4009 = vmatpush.msra.mxu0 0.0
    %4010 = vmatpush.msra.mxu0 0.0
    %4011 = vmatpush.msra.mxu0 0.0
    %v4012 = vand.u32 %v3945, 4294901760
    %v4013 = vsub.f32 %v3945, %v4012
    %v4014 = vand.u32 %v4013, 4294901760
    %v4015 = vsub.f32 %v4013, %v4014
    %v4016 = vand.u32 %v4015, 4294901760
    %4017 = vmatpush.msra.mxu0 %v4016
    %v4018 = vand.u32 %v3924, 4294901760
    %v4019 = vsub.f32 %v3924, %v4018
    %v4020 = vand.u32 %v4019, 4294901760
    %v4021 = vsub.f32 %v4019, %v4020
    %v4022 = vand.u32 %v4021, 4294901760
    %4023 = vmatpush.msra.mxu0 %v4022
    %v4024 = vand.u32 %v3923, 4294901760
    %v4025 = vsub.f32 %v3923, %v4024
    %v4026 = vand.u32 %v4025, 4294901760
    %v4027 = vsub.f32 %v4025, %v4026
    %v4028 = vand.u32 %v4027, 4294901760
    %4029 = vmatpush.msra.mxu0 %v4028
    %v4030 = vand.u32 %v3922, 4294901760
    %v4031 = vsub.f32 %v3922, %v4030
    %v4032 = vand.u32 %v4031, 4294901760
    %v4033 = vsub.f32 %v4031, %v4032
    %v4034 = vand.u32 %v4033, 4294901760
    %4035 = vmatpush.msra.mxu0 %v4034
    %v4036 = vand.u32 %v3921, 4294901760
    %v4037 = vsub.f32 %v3921, %v4036
    %v4038 = vand.u32 %v4037, 4294901760
    %v4039 = vsub.f32 %v4037, %v4038
    %v4040 = vand.u32 %v4039, 4294901760
    %4041 = vmatpush.msra.mxu0 %v4040
    %v4042 = vand.u32 %v3932, 4294901760
    %4043 = vmatmul.f32.gmra.mxu0 %v4042
    %v4044 = vpop.f32.mrf.mxu0
    %v4045 = vadd.f32 %v3975, %v4044
    %v4046 = vand.u32 %v3935, 4294901760
    %4047 = vmatmul.f32.gmra.mxu0 %v4046
    %v4048 = vpop.f32.mrf.mxu0
    %v4049 = vadd.f32 %v3983, %v4048
    %v4050 = vand.u32 %v3938, 4294901760
    %4051 = vmatmul.f32.gmra.mxu0 %v4050
    %v4052 = vpop.f32.mrf.mxu0
    %v4053 = vadd.f32 %v3991, %v4052
    %v4054 = vand.u32 %v3941, 4294901760
    %4055 = vmatmul.f32.gmra.mxu0 %v4054
    %v4056 = vpop.f32.mrf.mxu0
    %v4057 = vadd.f32 %v3999, %v4056
    %4058 = vdwg.mxu0
    %4059 = vmatpush.msra.mxu0 0.0
    %4060 = vmatpush.msra.mxu0 0.0
    %4061 = vmatpush.msra.mxu0 0.0
    %4062 = vmatpush.msra.mxu0 0.0
    %4063 = vmatpush.msra.mxu0 0.0
    %4064 = vmatpush.msra.mxu0 0.0
    %4065 = vmatpush.msra.mxu0 0.0
    %4066 = vmatpush.msra.mxu0 0.0
    %4067 = vmatpush.msra.mxu0 0.0
    %4068 = vmatpush.msra.mxu0 0.0
    %4069 = vmatpush.msra.mxu0 0.0
    %v4070 = vand.u32 %v3945, 4294901760
    %v4071 = vsub.f32 %v3945, %v4070
    %4072 = vmatpush.msra.mxu0 %v4071
    %v4073 = vand.u32 %v3924, 4294901760
    %v4074 = vsub.f32 %v3924, %v4073
    %4075 = vmatpush.msra.mxu0 %v4074
    %v4076 = vand.u32 %v3923, 4294901760
    %v4077 = vsub.f32 %v3923, %v4076
    %4078 = vmatpush.msra.mxu0 %v4077
    %v4079 = vand.u32 %v3922, 4294901760
    %v4080 = vsub.f32 %v3922, %v4079
    %4081 = vmatpush.msra.mxu0 %v4080
    %v4082 = vand.u32 %v3921, 4294901760
    %v4083 = vsub.f32 %v3921, %v4082
    %4084 = vmatpush.msra.mxu0 %v4083
    %v4085 = vand.u32 %v3932, 4294901760
    %v4086 = vsub.f32 %v3932, %v4085
    %4087 = vmatmul.f32.gmra.mxu0 %v4086
    %v4088 = vpop.f32.mrf.mxu0
    %v4089 = vadd.f32 %v4045, %v4088
    %v4090 = vand.u32 %v3935, 4294901760
    %v4091 = vsub.f32 %v3935, %v4090
    %4092 = vmatmul.f32.gmra.mxu0 %v4091
    %v4093 = vpop.f32.mrf.mxu0
    %v4094 = vadd.f32 %v4049, %v4093
    %v4095 = vand.u32 %v3938, 4294901760
    %v4096 = vsub.f32 %v3938, %v4095
    %4097 = vmatmul.f32.gmra.mxu0 %v4096
    %v4098 = vpop.f32.mrf.mxu0
    %v4099 = vadd.f32 %v4053, %v4098
    %v4100 = vand.u32 %v3941, 4294901760
    %v4101 = vsub.f32 %v3941, %v4100
    %4102 = vmatmul.f32.gmra.mxu0 %v4101
    %v4103 = vpop.f32.mrf.mxu0
    %v4104 = vadd.f32 %v4057, %v4103
    %4105 = vdwg.mxu0
    %4106 = vmatpush.msra.mxu0 0.0
    %4107 = vmatpush.msra.mxu0 0.0
    %4108 = vmatpush.msra.mxu0 0.0
    %4109 = vmatpush.msra.mxu0 0.0
    %4110 = vmatpush.msra.mxu0 0.0
    %4111 = vmatpush.msra.mxu0 0.0
    %4112 = vmatpush.msra.mxu0 0.0
    %4113 = vmatpush.msra.mxu0 0.0
    %4114 = vmatpush.msra.mxu0 0.0
    %4115 = vmatpush.msra.mxu0 0.0
    %4116 = vmatpush.msra.mxu0 0.0
    %v4117 = vand.u32 %v3945, 4294901760
    %4118 = vmatpush.msra.mxu0 %v4117
    %v4119 = vand.u32 %v3924, 4294901760
    %4120 = vmatpush.msra.mxu0 %v4119
    %v4121 = vand.u32 %v3923, 4294901760
    %4122 = vmatpush.msra.mxu0 %v4121
    %v4123 = vand.u32 %v3922, 4294901760
    %4124 = vmatpush.msra.mxu0 %v4123
    %v4125 = vand.u32 %v3921, 4294901760
    %4126 = vmatpush.msra.mxu0 %v4125
    %v4127 = vand.u32 %v3932, 4294901760
    %v4128 = vsub.f32 %v3932, %v4127
    %v4129 = vand.u32 %v4128, 4294901760
    %4130 = vmatmul.f32.gmra.mxu0 %v4129
    %v4131 = vpop.f32.mrf.mxu0
    %v4132 = vadd.f32 %v4089, %v4131
    %v4133 = vand.u32 %v3935, 4294901760
    %v4134 = vsub.f32 %v3935, %v4133
    %v4135 = vand.u32 %v4134, 4294901760
    %4136 = vmatmul.f32.gmra.mxu0 %v4135
    %v4137 = vpop.f32.mrf.mxu0
    %v4138 = vadd.f32 %v4094, %v4137
    %v4139 = vand.u32 %v3938, 4294901760
    %v4140 = vsub.f32 %v3938, %v4139
    %v4141 = vand.u32 %v4140, 4294901760
    %4142 = vmatmul.f32.gmra.mxu0 %v4141
    %v4143 = vpop.f32.mrf.mxu0
    %v4144 = vadd.f32 %v4099, %v4143
    %v4145 = vand.u32 %v3941, 4294901760
    %v4146 = vsub.f32 %v3941, %v4145
    %v4147 = vand.u32 %v4146, 4294901760
    %4148 = vmatmul.f32.gmra.mxu0 %v4147
    %v4149 = vpop.f32.mrf.mxu0
    %v4150 = vadd.f32 %v4104, %v4149
    %4151 = vdwg.mxu0
    %4152 = vmatpush.msra.mxu0 0.0
    %4153 = vmatpush.msra.mxu0 0.0
    %4154 = vmatpush.msra.mxu0 0.0
    %4155 = vmatpush.msra.mxu0 0.0
    %4156 = vmatpush.msra.mxu0 0.0
    %4157 = vmatpush.msra.mxu0 0.0
    %4158 = vmatpush.msra.mxu0 0.0
    %4159 = vmatpush.msra.mxu0 0.0
    %4160 = vmatpush.msra.mxu0 0.0
    %4161 = vmatpush.msra.mxu0 0.0
    %4162 = vmatpush.msra.mxu0 0.0
    %v4163 = vand.u32 %v3945, 4294901760
    %v4164 = vsub.f32 %v3945, %v4163
    %v4165 = vand.u32 %v4164, 4294901760
    %4166 = vmatpush.msra.mxu0 %v4165
    %v4167 = vand.u32 %v3924, 4294901760
    %v4168 = vsub.f32 %v3924, %v4167
    %v4169 = vand.u32 %v4168, 4294901760
    %4170 = vmatpush.msra.mxu0 %v4169
    %v4171 = vand.u32 %v3923, 4294901760
    %v4172 = vsub.f32 %v3923, %v4171
    %v4173 = vand.u32 %v4172, 4294901760
    %4174 = vmatpush.msra.mxu0 %v4173
    %v4175 = vand.u32 %v3922, 4294901760
    %v4176 = vsub.f32 %v3922, %v4175
    %v4177 = vand.u32 %v4176, 4294901760
    %4178 = vmatpush.msra.mxu0 %v4177
    %v4179 = vand.u32 %v3921, 4294901760
    %v4180 = vsub.f32 %v3921, %v4179
    %v4181 = vand.u32 %v4180, 4294901760
    %4182 = vmatpush.msra.mxu0 %v4181
    %v4183 = vand.u32 %v3932, 4294901760
    %4184 = vmatmul.f32.gmra.mxu0 %v4183
    %v4185 = vpop.f32.mrf.mxu0
    %v4186 = vadd.f32 %v4132, %v4185
    %v4187 = vand.u32 %v3935, 4294901760
    %4188 = vmatmul.f32.gmra.mxu0 %v4187
    %v4189 = vpop.f32.mrf.mxu0
    %v4190 = vadd.f32 %v4138, %v4189
    %v4191 = vand.u32 %v3938, 4294901760
    %4192 = vmatmul.f32.gmra.mxu0 %v4191
    %v4193 = vpop.f32.mrf.mxu0
    %v4194 = vadd.f32 %v4144, %v4193
    %v4195 = vand.u32 %v3941, 4294901760
    %4196 = vmatmul.f32.gmra.mxu0 %v4195
    %v4197 = vpop.f32.mrf.mxu0
    %v4198 = vadd.f32 %v4150, %v4197
    %4199 = vdwg.mxu0
    %4200 = vmatpush.msra.mxu0 0.0
    %4201 = vmatpush.msra.mxu0 0.0
    %4202 = vmatpush.msra.mxu0 0.0
    %4203 = vmatpush.msra.mxu0 0.0
    %4204 = vmatpush.msra.mxu0 0.0
    %4205 = vmatpush.msra.mxu0 0.0
    %4206 = vmatpush.msra.mxu0 0.0
    %4207 = vmatpush.msra.mxu0 0.0
    %4208 = vmatpush.msra.mxu0 0.0
    %4209 = vmatpush.msra.mxu0 0.0
    %4210 = vmatpush.msra.mxu0 0.0
    %v4211 = vand.u32 %v3945, 4294901760
    %4212 = vmatpush.msra.mxu0 %v4211
    %v4213 = vand.u32 %v3924, 4294901760
    %4214 = vmatpush.msra.mxu0 %v4213
    %v4215 = vand.u32 %v3923, 4294901760
    %4216 = vmatpush.msra.mxu0 %v4215
    %v4217 = vand.u32 %v3922, 4294901760
    %4218 = vmatpush.msra.mxu0 %v4217
    %v4219 = vand.u32 %v3921, 4294901760
    %4220 = vmatpush.msra.mxu0 %v4219
    %v4221 = vand.u32 %v3932, 4294901760
    %4222 = vmatmul.f32.gmra.mxu0 %v4221
    %v4223 = vpop.f32.mrf.mxu0
    %v4224 = vadd.f32 %v4186, %v4223
    %v4225 = vand.u32 %v3935, 4294901760
    %4226 = vmatmul.f32.gmra.mxu0 %v4225
    %v4227 = vpop.f32.mrf.mxu0
    %v4228 = vadd.f32 %v4190, %v4227
    %v4229 = vand.u32 %v3938, 4294901760
    %4230 = vmatmul.f32.gmra.mxu0 %v4229
    %v4231 = vpop.f32.mrf.mxu0
    %v4232 = vadd.f32 %v4194, %v4231
    %v4233 = vand.u32 %v3941, 4294901760
    %4234 = vmatmul.f32.gmra.mxu0 %v4233
    %v4235 = vpop.f32.mrf.mxu0
    %v4236 = vadd.f32 %v4198, %v4235
    %4237 = vdwg.mxu0
    %v4238 = vld [vmem:[%s7] sm:$0xff]
    %v4239 = vld [vmem:[%s7 + $0x8] sm:$0xff]
    %v4240 = vld [vmem:[%s7 + $0x10] sm:$0xff]
    %v4241 = vld [vmem:[%s7 + $0x18] sm:$0xff]
    %v4243 = vsel %vm3930, %v4238, 0
    %v4246 = vsel %vm3930, %v4239, 0
    %v4249 = vsel %vm3930, %v4240, 0
    %v4252 = vsel %vm3930, %v4241, 0
    %4254 = vmatpush.msra.mxu0 0.0
    %4255 = vmatpush.msra.mxu0 0.0
    %4256 = vmatpush.msra.mxu0 0.0
    %4257 = vmatpush.msra.mxu0 0.0
    %4258 = vmatpush.msra.mxu0 0.0
    %4259 = vmatpush.msra.mxu0 0.0
    %4260 = vmatpush.msra.mxu0 0.0
    %4261 = vmatpush.msra.mxu0 0.0
    %4262 = vmatpush.msra.mxu0 0.0
    %4263 = vmatpush.msra.mxu0 0.0
    %4264 = vmatpush.msra.mxu0 0.0
    %v4265 = vand.u32 %v3945, 4294901760
    %4266 = vmatpush.msra.mxu0 %v4265
    %v4267 = vand.u32 %v3924, 4294901760
    %4268 = vmatpush.msra.mxu0 %v4267
    %v4269 = vand.u32 %v3923, 4294901760
    %4270 = vmatpush.msra.mxu0 %v4269
    %v4271 = vand.u32 %v3922, 4294901760
    %4272 = vmatpush.msra.mxu0 %v4271
    %v4273 = vand.u32 %v3921, 4294901760
    %4274 = vmatpush.msra.mxu0 %v4273
    %v4275 = vand.u32 %v4243, 4294901760
    %v4276 = vsub.f32 %v4243, %v4275
    %v4277 = vand.u32 %v4276, 4294901760
    %v4278 = vsub.f32 %v4276, %v4277
    %v4279 = vand.u32 %v4278, 4294901760
    %4280 = vmatmul.f32.gmra.mxu0 %v4279
    %v4281 = vpop.f32.mrf.mxu0
    %v4282 = vadd.f32 0.0, %v4281
    %v4283 = vand.u32 %v4246, 4294901760
    %v4284 = vsub.f32 %v4246, %v4283
    %v4285 = vand.u32 %v4284, 4294901760
    %v4286 = vsub.f32 %v4284, %v4285
    %v4287 = vand.u32 %v4286, 4294901760
    %4288 = vmatmul.f32.gmra.mxu0 %v4287
    %v4289 = vpop.f32.mrf.mxu0
    %v4290 = vadd.f32 0.0, %v4289
    %v4291 = vand.u32 %v4249, 4294901760
    %v4292 = vsub.f32 %v4249, %v4291
    %v4293 = vand.u32 %v4292, 4294901760
    %v4294 = vsub.f32 %v4292, %v4293
    %v4295 = vand.u32 %v4294, 4294901760
    %4296 = vmatmul.f32.gmra.mxu0 %v4295
    %v4297 = vpop.f32.mrf.mxu0
    %v4298 = vadd.f32 0.0, %v4297
    %v4299 = vand.u32 %v4252, 4294901760
    %v4300 = vsub.f32 %v4252, %v4299
    %v4301 = vand.u32 %v4300, 4294901760
    %v4302 = vsub.f32 %v4300, %v4301
    %v4303 = vand.u32 %v4302, 4294901760
    %4304 = vmatmul.f32.gmra.mxu0 %v4303
    %v4305 = vpop.f32.mrf.mxu0
    %v4306 = vadd.f32 0.0, %v4305
    %4307 = vdwg.mxu0
    %4308 = vmatpush.msra.mxu0 0.0
    %4309 = vmatpush.msra.mxu0 0.0
    %4310 = vmatpush.msra.mxu0 0.0
    %4311 = vmatpush.msra.mxu0 0.0
    %4312 = vmatpush.msra.mxu0 0.0
    %4313 = vmatpush.msra.mxu0 0.0
    %4314 = vmatpush.msra.mxu0 0.0
    %4315 = vmatpush.msra.mxu0 0.0
    %4316 = vmatpush.msra.mxu0 0.0
    %4317 = vmatpush.msra.mxu0 0.0
    %4318 = vmatpush.msra.mxu0 0.0
    %v4319 = vand.u32 %v3945, 4294901760
    %v4320 = vsub.f32 %v3945, %v4319
    %v4321 = vand.u32 %v4320, 4294901760
    %v4322 = vsub.f32 %v4320, %v4321
    %v4323 = vand.u32 %v4322, 4294901760
    %4324 = vmatpush.msra.mxu0 %v4323
    %v4325 = vand.u32 %v3924, 4294901760
    %v4326 = vsub.f32 %v3924, %v4325
    %v4327 = vand.u32 %v4326, 4294901760
    %v4328 = vsub.f32 %v4326, %v4327
    %v4329 = vand.u32 %v4328, 4294901760
    %4330 = vmatpush.msra.mxu0 %v4329
    %v4331 = vand.u32 %v3923, 4294901760
    %v4332 = vsub.f32 %v3923, %v4331
    %v4333 = vand.u32 %v4332, 4294901760
    %v4334 = vsub.f32 %v4332, %v4333
    %v4335 = vand.u32 %v4334, 4294901760
    %4336 = vmatpush.msra.mxu0 %v4335
    %v4337 = vand.u32 %v3922, 4294901760
    %v4338 = vsub.f32 %v3922, %v4337
    %v4339 = vand.u32 %v4338, 4294901760
    %v4340 = vsub.f32 %v4338, %v4339
    %v4341 = vand.u32 %v4340, 4294901760
    %4342 = vmatpush.msra.mxu0 %v4341
    %v4343 = vand.u32 %v3921, 4294901760
    %v4344 = vsub.f32 %v3921, %v4343
    %v4345 = vand.u32 %v4344, 4294901760
    %v4346 = vsub.f32 %v4344, %v4345
    %v4347 = vand.u32 %v4346, 4294901760
    %4348 = vmatpush.msra.mxu0 %v4347
    %v4349 = vand.u32 %v4243, 4294901760
    %4350 = vmatmul.f32.gmra.mxu0 %v4349
    %v4351 = vpop.f32.mrf.mxu0
    %v4352 = vadd.f32 %v4282, %v4351
    %v4353 = vand.u32 %v4246, 4294901760
    %4354 = vmatmul.f32.gmra.mxu0 %v4353
    %v4355 = vpop.f32.mrf.mxu0
    %v4356 = vadd.f32 %v4290, %v4355
    %v4357 = vand.u32 %v4249, 4294901760
    %4358 = vmatmul.f32.gmra.mxu0 %v4357
    %v4359 = vpop.f32.mrf.mxu0
    %v4360 = vadd.f32 %v4298, %v4359
    %v4361 = vand.u32 %v4252, 4294901760
    %4362 = vmatmul.f32.gmra.mxu0 %v4361
    %v4363 = vpop.f32.mrf.mxu0
    %v4364 = vadd.f32 %v4306, %v4363
    %4365 = vdwg.mxu0
    %4366 = vmatpush.msra.mxu0 0.0
    %4367 = vmatpush.msra.mxu0 0.0
    %4368 = vmatpush.msra.mxu0 0.0
    %4369 = vmatpush.msra.mxu0 0.0
    %4370 = vmatpush.msra.mxu0 0.0
    %4371 = vmatpush.msra.mxu0 0.0
    %4372 = vmatpush.msra.mxu0 0.0
    %4373 = vmatpush.msra.mxu0 0.0
    %4374 = vmatpush.msra.mxu0 0.0
    %4375 = vmatpush.msra.mxu0 0.0
    %4376 = vmatpush.msra.mxu0 0.0
    %v4377 = vand.u32 %v3945, 4294901760
    %v4378 = vsub.f32 %v3945, %v4377
    %4379 = vmatpush.msra.mxu0 %v4378
    %v4380 = vand.u32 %v3924, 4294901760
    %v4381 = vsub.f32 %v3924, %v4380
    %4382 = vmatpush.msra.mxu0 %v4381
    %v4383 = vand.u32 %v3923, 4294901760
    %v4384 = vsub.f32 %v3923, %v4383
    %4385 = vmatpush.msra.mxu0 %v4384
    %v4386 = vand.u32 %v3922, 4294901760
    %v4387 = vsub.f32 %v3922, %v4386
    %4388 = vmatpush.msra.mxu0 %v4387
    %v4389 = vand.u32 %v3921, 4294901760
    %v4390 = vsub.f32 %v3921, %v4389
    %4391 = vmatpush.msra.mxu0 %v4390
    %v4392 = vand.u32 %v4243, 4294901760
    %v4393 = vsub.f32 %v4243, %v4392
    %4394 = vmatmul.f32.gmra.mxu0 %v4393
    %v4395 = vpop.f32.mrf.mxu0
    %v4396 = vadd.f32 %v4352, %v4395
    %v4397 = vand.u32 %v4246, 4294901760
    %v4398 = vsub.f32 %v4246, %v4397
    %4399 = vmatmul.f32.gmra.mxu0 %v4398
    %v4400 = vpop.f32.mrf.mxu0
    %v4401 = vadd.f32 %v4356, %v4400
    %v4402 = vand.u32 %v4249, 4294901760
    %v4403 = vsub.f32 %v4249, %v4402
    %4404 = vmatmul.f32.gmra.mxu0 %v4403
    %v4405 = vpop.f32.mrf.mxu0
    %v4406 = vadd.f32 %v4360, %v4405
    %v4407 = vand.u32 %v4252, 4294901760
    %v4408 = vsub.f32 %v4252, %v4407
    %4409 = vmatmul.f32.gmra.mxu0 %v4408
    %v4410 = vpop.f32.mrf.mxu0
    %v4411 = vadd.f32 %v4364, %v4410
    %4412 = vdwg.mxu0
    %4413 = vmatpush.msra.mxu0 0.0
    %4414 = vmatpush.msra.mxu0 0.0
    %4415 = vmatpush.msra.mxu0 0.0
    %4416 = vmatpush.msra.mxu0 0.0
    %4417 = vmatpush.msra.mxu0 0.0
    %4418 = vmatpush.msra.mxu0 0.0
    %4419 = vmatpush.msra.mxu0 0.0
    %4420 = vmatpush.msra.mxu0 0.0
    %4421 = vmatpush.msra.mxu0 0.0
    %4422 = vmatpush.msra.mxu0 0.0
    %4423 = vmatpush.msra.mxu0 0.0
    %v4424 = vand.u32 %v3945, 4294901760
    %4425 = vmatpush.msra.mxu0 %v4424
    %v4426 = vand.u32 %v3924, 4294901760
    %4427 = vmatpush.msra.mxu0 %v4426
    %v4428 = vand.u32 %v3923, 4294901760
    %4429 = vmatpush.msra.mxu0 %v4428
    %v4430 = vand.u32 %v3922, 4294901760
    %4431 = vmatpush.msra.mxu0 %v4430
    %v4432 = vand.u32 %v3921, 4294901760
    %4433 = vmatpush.msra.mxu0 %v4432
    %v4434 = vand.u32 %v4243, 4294901760
    %v4435 = vsub.f32 %v4243, %v4434
    %v4436 = vand.u32 %v4435, 4294901760
    %4437 = vmatmul.f32.gmra.mxu0 %v4436
    %v4438 = vpop.f32.mrf.mxu0
    %v4439 = vadd.f32 %v4396, %v4438
    %v4440 = vand.u32 %v4246, 4294901760
    %v4441 = vsub.f32 %v4246, %v4440
    %v4442 = vand.u32 %v4441, 4294901760
    %4443 = vmatmul.f32.gmra.mxu0 %v4442
    %v4444 = vpop.f32.mrf.mxu0
    %v4445 = vadd.f32 %v4401, %v4444
    %v4446 = vand.u32 %v4249, 4294901760
    %v4447 = vsub.f32 %v4249, %v4446
    %v4448 = vand.u32 %v4447, 4294901760
    %4449 = vmatmul.f32.gmra.mxu0 %v4448
    %v4450 = vpop.f32.mrf.mxu0
    %v4451 = vadd.f32 %v4406, %v4450
    %v4452 = vand.u32 %v4252, 4294901760
    %v4453 = vsub.f32 %v4252, %v4452
    %v4454 = vand.u32 %v4453, 4294901760
    %4455 = vmatmul.f32.gmra.mxu0 %v4454
    %v4456 = vpop.f32.mrf.mxu0
    %v4457 = vadd.f32 %v4411, %v4456
    %4458 = vdwg.mxu0
    %4459 = vmatpush.msra.mxu0 0.0
    %4460 = vmatpush.msra.mxu0 0.0
    %4461 = vmatpush.msra.mxu0 0.0
    %4462 = vmatpush.msra.mxu0 0.0
    %4463 = vmatpush.msra.mxu0 0.0
    %4464 = vmatpush.msra.mxu0 0.0
    %4465 = vmatpush.msra.mxu0 0.0
    %4466 = vmatpush.msra.mxu0 0.0
    %4467 = vmatpush.msra.mxu0 0.0
    %4468 = vmatpush.msra.mxu0 0.0
    %4469 = vmatpush.msra.mxu0 0.0
    %v4470 = vand.u32 %v3945, 4294901760
    %v4471 = vsub.f32 %v3945, %v4470
    %v4472 = vand.u32 %v4471, 4294901760
    %4473 = vmatpush.msra.mxu0 %v4472
    %v4474 = vand.u32 %v3924, 4294901760
    %v4475 = vsub.f32 %v3924, %v4474
    %v4476 = vand.u32 %v4475, 4294901760
    %4477 = vmatpush.msra.mxu0 %v4476
    %v4478 = vand.u32 %v3923, 4294901760
    %v4479 = vsub.f32 %v3923, %v4478
    %v4480 = vand.u32 %v4479, 4294901760
    %4481 = vmatpush.msra.mxu0 %v4480
    %v4482 = vand.u32 %v3922, 4294901760
    %v4483 = vsub.f32 %v3922, %v4482
    %v4484 = vand.u32 %v4483, 4294901760
    %4485 = vmatpush.msra.mxu0 %v4484
    %v4486 = vand.u32 %v3921, 4294901760
    %v4487 = vsub.f32 %v3921, %v4486
    %v4488 = vand.u32 %v4487, 4294901760
    %4489 = vmatpush.msra.mxu0 %v4488
    %v4490 = vand.u32 %v4243, 4294901760
    %4491 = vmatmul.f32.gmra.mxu0 %v4490
    %v4492 = vpop.f32.mrf.mxu0
    %v4493 = vadd.f32 %v4439, %v4492
    %v4494 = vand.u32 %v4246, 4294901760
    %4495 = vmatmul.f32.gmra.mxu0 %v4494
    %v4496 = vpop.f32.mrf.mxu0
    %v4497 = vadd.f32 %v4445, %v4496
    %v4498 = vand.u32 %v4249, 4294901760
    %4499 = vmatmul.f32.gmra.mxu0 %v4498
    %v4500 = vpop.f32.mrf.mxu0
    %v4501 = vadd.f32 %v4451, %v4500
    %v4502 = vand.u32 %v4252, 4294901760
    %4503 = vmatmul.f32.gmra.mxu0 %v4502
    %v4504 = vpop.f32.mrf.mxu0
    %v4505 = vadd.f32 %v4457, %v4504
    %4506 = vdwg.mxu0
    %4507 = vmatpush.msra.mxu0 0.0
    %4508 = vmatpush.msra.mxu0 0.0
    %4509 = vmatpush.msra.mxu0 0.0
    %4510 = vmatpush.msra.mxu0 0.0
    %4511 = vmatpush.msra.mxu0 0.0
    %4512 = vmatpush.msra.mxu0 0.0
    %4513 = vmatpush.msra.mxu0 0.0
    %4514 = vmatpush.msra.mxu0 0.0
    %4515 = vmatpush.msra.mxu0 0.0
    %4516 = vmatpush.msra.mxu0 0.0
    %4517 = vmatpush.msra.mxu0 0.0
    %v4518 = vand.u32 %v3945, 4294901760
    %4519 = vmatpush.msra.mxu0 %v4518
    %v4520 = vand.u32 %v3924, 4294901760
    %4521 = vmatpush.msra.mxu0 %v4520
    %v4522 = vand.u32 %v3923, 4294901760
    %4523 = vmatpush.msra.mxu0 %v4522
    %v4524 = vand.u32 %v3922, 4294901760
    %4525 = vmatpush.msra.mxu0 %v4524
    %v4526 = vand.u32 %v3921, 4294901760
    %4527 = vmatpush.msra.mxu0 %v4526
    %v4528 = vand.u32 %v4243, 4294901760
    %4529 = vmatmul.f32.gmra.mxu0 %v4528
    %v4530 = vpop.f32.mrf.mxu0
    %v4531 = vadd.f32 %v4493, %v4530
    %v4532 = vand.u32 %v4246, 4294901760
    %4533 = vmatmul.f32.gmra.mxu0 %v4532
    %v4534 = vpop.f32.mrf.mxu0
    %v4535 = vadd.f32 %v4497, %v4534
    %v4536 = vand.u32 %v4249, 4294901760
    %4537 = vmatmul.f32.gmra.mxu0 %v4536
    %v4538 = vpop.f32.mrf.mxu0
    %v4539 = vadd.f32 %v4501, %v4538
    %v4540 = vand.u32 %v4252, 4294901760
    %4541 = vmatmul.f32.gmra.mxu0 %v4540
    %v4542 = vpop.f32.mrf.mxu0
    %v4543 = vadd.f32 %v4505, %v4542
    %4544 = vdwg.mxu0
    %v4545 = vld [vmem:[%s2] sm:$0xff]
    %v4546 = vld [vmem:[%s2 + $0x8] sm:$0xff]
    %v4547 = vld [vmem:[%s2 + $0x10] sm:$0xff]
    %v4548 = vld [vmem:[%s2 + $0x18] sm:$0xff]
    %v4549 = vld [vmem:[%s2 + $0x20] sm:$0xff]
    %v4550 = vld [vmem:[%s2 + $0x28] sm:$0xff]
    %v4551 = vld [vmem:[%s2 + $0x30] sm:$0xff]
    %v4552 = vld [vmem:[%s2 + $0x38] sm:$0xff]
    %v4553 = vld [vmem:[%s2 + $0x40] sm:$0xff]
    %v4554 = vld [vmem:[%s2 + $0x48] sm:$0xff]
    %v4555 = vld [vmem:[%s2 + $0x50] sm:$0xff]
    %v4556 = vld [vmem:[%s2 + $0x58] sm:$0xff]
    %v4557 = vld [vmem:[%s2 + $0x60] sm:$0xff]
    %v4558 = vld [vmem:[%s2 + $0x68] sm:$0xff]
    %v4559 = vld [vmem:[%s2 + $0x70] sm:$0xff]
    %s4560 = scalar_lea.vmem %s2, 120
    %v4561 = vld [vmem:[%s4560] sm:$0xff]
    %v4562 = vld [vmem:[%s4560 + $0x8] sm:$0xff]
    %v4563 = vld [vmem:[%s4560 + $0x10] sm:$0xff]
    %v4564 = vld [vmem:[%s4560 + $0x18] sm:$0xff]
    %v4565 = vld [vmem:[%s4560 + $0x20] sm:$0xff]
    %v4566 = vld [vmem:[%s4560 + $0x28] sm:$0xff]
    %v4567 = vld [vmem:[%s4560 + $0x30] sm:$0xff]
    %v4568 = vld [vmem:[%s4560 + $0x38] sm:$0xff]
    %v4569 = vld [vmem:[%s4560 + $0x40] sm:$0xff]
    %v4570 = vld [vmem:[%s4560 + $0x48] sm:$0xff]
    %v4571 = vld [vmem:[%s4560 + $0x50] sm:$0xff]
    %v4572 = vld [vmem:[%s4560 + $0x58] sm:$0xff]
    %v4573 = vld [vmem:[%s4560 + $0x60] sm:$0xff]
    %v4574 = vld [vmem:[%s4560 + $0x68] sm:$0xff]
    %v4575 = vld [vmem:[%s4560 + $0x70] sm:$0xff]
    %vm4576 = vcmask 982016
    %v4578 = vsel %vm4576, %v4531, 0
    %v4581 = vsel %vm4576, %v4535, 0
    %v4584 = vsel %vm4576, %v4539, 0
    %v4587 = vsel %vm4576, %v4543, 0
    %4589 = vmatpush.msra.mxu0 0.0
    %v4590 = vand.u32 %v4575, 4294901760
    %4591 = vmatpush.msra.mxu0 %v4590
    %v4592 = vand.u32 %v4574, 4294901760
    %4593 = vmatpush.msra.mxu0 %v4592
    %v4594 = vand.u32 %v4573, 4294901760
    %4595 = vmatpush.msra.mxu0 %v4594
    %v4596 = vand.u32 %v4572, 4294901760
    %4597 = vmatpush.msra.mxu0 %v4596
    %v4598 = vand.u32 %v4571, 4294901760
    %4599 = vmatpush.msra.mxu0 %v4598
    %v4600 = vand.u32 %v4570, 4294901760
    %4601 = vmatpush.msra.mxu0 %v4600
    %v4602 = vand.u32 %v4569, 4294901760
    %4603 = vmatpush.msra.mxu0 %v4602
    %v4604 = vand.u32 %v4568, 4294901760
    %4605 = vmatpush.msra.mxu0 %v4604
    %v4606 = vand.u32 %v4567, 4294901760
    %4607 = vmatpush.msra.mxu0 %v4606
    %v4608 = vand.u32 %v4566, 4294901760
    %4609 = vmatpush.msra.mxu0 %v4608
    %v4610 = vand.u32 %v4565, 4294901760
    %4611 = vmatpush.msra.mxu0 %v4610
    %v4612 = vand.u32 %v4564, 4294901760
    %4613 = vmatpush.msra.mxu0 %v4612
    %v4614 = vand.u32 %v4563, 4294901760
    %4615 = vmatpush.msra.mxu0 %v4614
    %v4616 = vand.u32 %v4562, 4294901760
    %4617 = vmatpush.msra.mxu0 %v4616
    %v4618 = vand.u32 %v4561, 4294901760
    %4619 = vmatpush.msra.mxu0 %v4618
    %v4620 = vand.u32 %v4578, 4294901760
    %v4621 = vsub.f32 %v4578, %v4620
    %v4622 = vand.u32 %v4621, 4294901760
    %v4623 = vsub.f32 %v4621, %v4622
    %v4624 = vand.u32 %v4623, 4294901760
    %4625 = vmatmul.f32.gmra.mxu0 %v4624
    %v4626 = vpop.f32.mrf.mxu0
    %v4627 = vadd.f32 0.0, %v4626
    %v4628 = vand.u32 %v4581, 4294901760
    %v4629 = vsub.f32 %v4581, %v4628
    %v4630 = vand.u32 %v4629, 4294901760
    %v4631 = vsub.f32 %v4629, %v4630
    %v4632 = vand.u32 %v4631, 4294901760
    %4633 = vmatmul.f32.gmra.mxu0 %v4632
    %v4634 = vpop.f32.mrf.mxu0
    %v4635 = vadd.f32 0.0, %v4634
    %v4636 = vand.u32 %v4584, 4294901760
    %v4637 = vsub.f32 %v4584, %v4636
    %v4638 = vand.u32 %v4637, 4294901760
    %v4639 = vsub.f32 %v4637, %v4638
    %v4640 = vand.u32 %v4639, 4294901760
    %4641 = vmatmul.f32.gmra.mxu0 %v4640
    %v4642 = vpop.f32.mrf.mxu0
    %v4643 = vadd.f32 0.0, %v4642
    %v4644 = vand.u32 %v4587, 4294901760
    %v4645 = vsub.f32 %v4587, %v4644
    %v4646 = vand.u32 %v4645, 4294901760
    %v4647 = vsub.f32 %v4645, %v4646
    %v4648 = vand.u32 %v4647, 4294901760
    %4649 = vmatmul.f32.gmra.mxu0 %v4648
    %v4650 = vpop.f32.mrf.mxu0
    %v4651 = vadd.f32 0.0, %v4650
    %4652 = vdwg.mxu0
    %4653 = vmatpush.msra.mxu0 0.0
    %v4654 = vand.u32 %v4575, 4294901760
    %v4655 = vsub.f32 %v4575, %v4654
    %v4656 = vand.u32 %v4655, 4294901760
    %v4657 = vsub.f32 %v4655, %v4656
    %v4658 = vand.u32 %v4657, 4294901760
    %4659 = vmatpush.msra.mxu0 %v4658
    %v4660 = vand.u32 %v4574, 4294901760
    %v4661 = vsub.f32 %v4574, %v4660
    %v4662 = vand.u32 %v4661, 4294901760
    %v4663 = vsub.f32 %v4661, %v4662
    %v4664 = vand.u32 %v4663, 4294901760
    %4665 = vmatpush.msra.mxu0 %v4664
    %v4666 = vand.u32 %v4573, 4294901760
    %v4667 = vsub.f32 %v4573, %v4666
    %v4668 = vand.u32 %v4667, 4294901760
    %v4669 = vsub.f32 %v4667, %v4668
    %v4670 = vand.u32 %v4669, 4294901760
    %4671 = vmatpush.msra.mxu0 %v4670
    %v4672 = vand.u32 %v4572, 4294901760
    %v4673 = vsub.f32 %v4572, %v4672
    %v4674 = vand.u32 %v4673, 4294901760
    %v4675 = vsub.f32 %v4673, %v4674
    %v4676 = vand.u32 %v4675, 4294901760
    %4677 = vmatpush.msra.mxu0 %v4676
    %v4678 = vand.u32 %v4571, 4294901760
    %v4679 = vsub.f32 %v4571, %v4678
    %v4680 = vand.u32 %v4679, 4294901760
    %v4681 = vsub.f32 %v4679, %v4680
    %v4682 = vand.u32 %v4681, 4294901760
    %4683 = vmatpush.msra.mxu0 %v4682
    %v4684 = vand.u32 %v4570, 4294901760
    %v4685 = vsub.f32 %v4570, %v4684
    %v4686 = vand.u32 %v4685, 4294901760
    %v4687 = vsub.f32 %v4685, %v4686
    %v4688 = vand.u32 %v4687, 4294901760
    %4689 = vmatpush.msra.mxu0 %v4688
    %v4690 = vand.u32 %v4569, 4294901760
    %v4691 = vsub.f32 %v4569, %v4690
    %v4692 = vand.u32 %v4691, 4294901760
    %v4693 = vsub.f32 %v4691, %v4692
    %v4694 = vand.u32 %v4693, 4294901760
    %4695 = vmatpush.msra.mxu0 %v4694
    %v4696 = vand.u32 %v4568, 4294901760
    %v4697 = vsub.f32 %v4568, %v4696
    %v4698 = vand.u32 %v4697, 4294901760
    %v4699 = vsub.f32 %v4697, %v4698
    %v4700 = vand.u32 %v4699, 4294901760
    %4701 = vmatpush.msra.mxu0 %v4700
    %v4702 = vand.u32 %v4567, 4294901760
    %v4703 = vsub.f32 %v4567, %v4702
    %v4704 = vand.u32 %v4703, 4294901760
    %v4705 = vsub.f32 %v4703, %v4704
    %v4706 = vand.u32 %v4705, 4294901760
    %4707 = vmatpush.msra.mxu0 %v4706
    %v4708 = vand.u32 %v4566, 4294901760
    %v4709 = vsub.f32 %v4566, %v4708
    %v4710 = vand.u32 %v4709, 4294901760
    %v4711 = vsub.f32 %v4709, %v4710
    %v4712 = vand.u32 %v4711, 4294901760
    %4713 = vmatpush.msra.mxu0 %v4712
    %v4714 = vand.u32 %v4565, 4294901760
    %v4715 = vsub.f32 %v4565, %v4714
    %v4716 = vand.u32 %v4715, 4294901760
    %v4717 = vsub.f32 %v4715, %v4716
    %v4718 = vand.u32 %v4717, 4294901760
    %4719 = vmatpush.msra.mxu0 %v4718
    %v4720 = vand.u32 %v4564, 4294901760
    %v4721 = vsub.f32 %v4564, %v4720
    %v4722 = vand.u32 %v4721, 4294901760
    %v4723 = vsub.f32 %v4721, %v4722
    %v4724 = vand.u32 %v4723, 4294901760
    %4725 = vmatpush.msra.mxu0 %v4724
    %v4726 = vand.u32 %v4563, 4294901760
    %v4727 = vsub.f32 %v4563, %v4726
    %v4728 = vand.u32 %v4727, 4294901760
    %v4729 = vsub.f32 %v4727, %v4728
    %v4730 = vand.u32 %v4729, 4294901760
    %4731 = vmatpush.msra.mxu0 %v4730
    %v4732 = vand.u32 %v4562, 4294901760
    %v4733 = vsub.f32 %v4562, %v4732
    %v4734 = vand.u32 %v4733, 4294901760
    %v4735 = vsub.f32 %v4733, %v4734
    %v4736 = vand.u32 %v4735, 4294901760
    %4737 = vmatpush.msra.mxu0 %v4736
    %v4738 = vand.u32 %v4561, 4294901760
    %v4739 = vsub.f32 %v4561, %v4738
    %v4740 = vand.u32 %v4739, 4294901760
    %v4741 = vsub.f32 %v4739, %v4740
    %v4742 = vand.u32 %v4741, 4294901760
    %4743 = vmatpush.msra.mxu0 %v4742
    %v4744 = vand.u32 %v4578, 4294901760
    %4745 = vmatmul.f32.gmra.mxu0 %v4744
    %v4746 = vpop.f32.mrf.mxu0
    %v4747 = vadd.f32 %v4627, %v4746
    %v4748 = vand.u32 %v4581, 4294901760
    %4749 = vmatmul.f32.gmra.mxu0 %v4748
    %v4750 = vpop.f32.mrf.mxu0
    %v4751 = vadd.f32 %v4635, %v4750
    %v4752 = vand.u32 %v4584, 4294901760
    %4753 = vmatmul.f32.gmra.mxu0 %v4752
    %v4754 = vpop.f32.mrf.mxu0
    %v4755 = vadd.f32 %v4643, %v4754
    %v4756 = vand.u32 %v4587, 4294901760
    %4757 = vmatmul.f32.gmra.mxu0 %v4756
    %v4758 = vpop.f32.mrf.mxu0
    %v4759 = vadd.f32 %v4651, %v4758
    %4760 = vdwg.mxu0
    %4761 = vmatpush.msra.mxu0 0.0
    %v4762 = vand.u32 %v4575, 4294901760
    %v4763 = vsub.f32 %v4575, %v4762
    %4764 = vmatpush.msra.mxu0 %v4763
    %v4765 = vand.u32 %v4574, 4294901760
    %v4766 = vsub.f32 %v4574, %v4765
    %4767 = vmatpush.msra.mxu0 %v4766
    %v4768 = vand.u32 %v4573, 4294901760
    %v4769 = vsub.f32 %v4573, %v4768
    %4770 = vmatpush.msra.mxu0 %v4769
    %v4771 = vand.u32 %v4572, 4294901760
    %v4772 = vsub.f32 %v4572, %v4771
    %4773 = vmatpush.msra.mxu0 %v4772
    %v4774 = vand.u32 %v4571, 4294901760
    %v4775 = vsub.f32 %v4571, %v4774
    %4776 = vmatpush.msra.mxu0 %v4775
    %v4777 = vand.u32 %v4570, 4294901760
    %v4778 = vsub.f32 %v4570, %v4777
    %4779 = vmatpush.msra.mxu0 %v4778
    %v4780 = vand.u32 %v4569, 4294901760
    %v4781 = vsub.f32 %v4569, %v4780
    %4782 = vmatpush.msra.mxu0 %v4781
    %v4783 = vand.u32 %v4568, 4294901760
    %v4784 = vsub.f32 %v4568, %v4783
    %4785 = vmatpush.msra.mxu0 %v4784
    %v4786 = vand.u32 %v4567, 4294901760
    %v4787 = vsub.f32 %v4567, %v4786
    %4788 = vmatpush.msra.mxu0 %v4787
    %v4789 = vand.u32 %v4566, 4294901760
    %v4790 = vsub.f32 %v4566, %v4789
    %4791 = vmatpush.msra.mxu0 %v4790
    %v4792 = vand.u32 %v4565, 4294901760
    %v4793 = vsub.f32 %v4565, %v4792
    %4794 = vmatpush.msra.mxu0 %v4793
    %v4795 = vand.u32 %v4564, 4294901760
    %v4796 = vsub.f32 %v4564, %v4795
    %4797 = vmatpush.msra.mxu0 %v4796
    %v4798 = vand.u32 %v4563, 4294901760
    %v4799 = vsub.f32 %v4563, %v4798
    %4800 = vmatpush.msra.mxu0 %v4799
    %v4801 = vand.u32 %v4562, 4294901760
    %v4802 = vsub.f32 %v4562, %v4801
    %4803 = vmatpush.msra.mxu0 %v4802
    %v4804 = vand.u32 %v4561, 4294901760
    %v4805 = vsub.f32 %v4561, %v4804
    %4806 = vmatpush.msra.mxu0 %v4805
    %v4807 = vand.u32 %v4578, 4294901760
    %v4808 = vsub.f32 %v4578, %v4807
    %4809 = vmatmul.f32.gmra.mxu0 %v4808
    %v4810 = vpop.f32.mrf.mxu0
    %v4811 = vadd.f32 %v4747, %v4810
    %v4812 = vand.u32 %v4581, 4294901760
    %v4813 = vsub.f32 %v4581, %v4812
    %4814 = vmatmul.f32.gmra.mxu0 %v4813
    %v4815 = vpop.f32.mrf.mxu0
    %v4816 = vadd.f32 %v4751, %v4815
    %v4817 = vand.u32 %v4584, 4294901760
    %v4818 = vsub.f32 %v4584, %v4817
    %4819 = vmatmul.f32.gmra.mxu0 %v4818
    %v4820 = vpop.f32.mrf.mxu0
    %v4821 = vadd.f32 %v4755, %v4820
    %v4822 = vand.u32 %v4587, 4294901760
    %v4823 = vsub.f32 %v4587, %v4822
    %4824 = vmatmul.f32.gmra.mxu0 %v4823
    %v4825 = vpop.f32.mrf.mxu0
    %v4826 = vadd.f32 %v4759, %v4825
    %4827 = vdwg.mxu0
    %4828 = vmatpush.msra.mxu0 0.0
    %v4829 = vand.u32 %v4575, 4294901760
    %4830 = vmatpush.msra.mxu0 %v4829
    %v4831 = vand.u32 %v4574, 4294901760
    %4832 = vmatpush.msra.mxu0 %v4831
    %v4833 = vand.u32 %v4573, 4294901760
    %4834 = vmatpush.msra.mxu0 %v4833
    %v4835 = vand.u32 %v4572, 4294901760
    %4836 = vmatpush.msra.mxu0 %v4835
    %v4837 = vand.u32 %v4571, 4294901760
    %4838 = vmatpush.msra.mxu0 %v4837
    %v4839 = vand.u32 %v4570, 4294901760
    %4840 = vmatpush.msra.mxu0 %v4839
    %v4841 = vand.u32 %v4569, 4294901760
    %4842 = vmatpush.msra.mxu0 %v4841
    %v4843 = vand.u32 %v4568, 4294901760
    %4844 = vmatpush.msra.mxu0 %v4843
    %v4845 = vand.u32 %v4567, 4294901760
    %4846 = vmatpush.msra.mxu0 %v4845
    %v4847 = vand.u32 %v4566, 4294901760
    %4848 = vmatpush.msra.mxu0 %v4847
    %v4849 = vand.u32 %v4565, 4294901760
    %4850 = vmatpush.msra.mxu0 %v4849
    %v4851 = vand.u32 %v4564, 4294901760
    %4852 = vmatpush.msra.mxu0 %v4851
    %v4853 = vand.u32 %v4563, 4294901760
    %4854 = vmatpush.msra.mxu0 %v4853
    %v4855 = vand.u32 %v4562, 4294901760
    %4856 = vmatpush.msra.mxu0 %v4855
    %v4857 = vand.u32 %v4561, 4294901760
    %4858 = vmatpush.msra.mxu0 %v4857
    %v4859 = vand.u32 %v4578, 4294901760
    %v4860 = vsub.f32 %v4578, %v4859
    %v4861 = vand.u32 %v4860, 4294901760
    %4862 = vmatmul.f32.gmra.mxu0 %v4861
    %v4863 = vpop.f32.mrf.mxu0
    %v4864 = vadd.f32 %v4811, %v4863
    %v4865 = vand.u32 %v4581, 4294901760
    %v4866 = vsub.f32 %v4581, %v4865
    %v4867 = vand.u32 %v4866, 4294901760
    %4868 = vmatmul.f32.gmra.mxu0 %v4867
    %v4869 = vpop.f32.mrf.mxu0
    %v4870 = vadd.f32 %v4816, %v4869
    %v4871 = vand.u32 %v4584, 4294901760
    %v4872 = vsub.f32 %v4584, %v4871
    %v4873 = vand.u32 %v4872, 4294901760
    %4874 = vmatmul.f32.gmra.mxu0 %v4873
    %v4875 = vpop.f32.mrf.mxu0
    %v4876 = vadd.f32 %v4821, %v4875
    %v4877 = vand.u32 %v4587, 4294901760
    %v4878 = vsub.f32 %v4587, %v4877
    %v4879 = vand.u32 %v4878, 4294901760
    %4880 = vmatmul.f32.gmra.mxu0 %v4879
    %v4881 = vpop.f32.mrf.mxu0
    %v4882 = vadd.f32 %v4826, %v4881
    %4883 = vdwg.mxu0
    %4884 = vmatpush.msra.mxu0 0.0
    %v4885 = vand.u32 %v4575, 4294901760
    %v4886 = vsub.f32 %v4575, %v4885
    %v4887 = vand.u32 %v4886, 4294901760
    %4888 = vmatpush.msra.mxu0 %v4887
    %v4889 = vand.u32 %v4574, 4294901760
    %v4890 = vsub.f32 %v4574, %v4889
    %v4891 = vand.u32 %v4890, 4294901760
    %4892 = vmatpush.msra.mxu0 %v4891
    %v4893 = vand.u32 %v4573, 4294901760
    %v4894 = vsub.f32 %v4573, %v4893
    %v4895 = vand.u32 %v4894, 4294901760
    %4896 = vmatpush.msra.mxu0 %v4895
    %v4897 = vand.u32 %v4572, 4294901760
    %v4898 = vsub.f32 %v4572, %v4897
    %v4899 = vand.u32 %v4898, 4294901760
    %4900 = vmatpush.msra.mxu0 %v4899
    %v4901 = vand.u32 %v4571, 4294901760
    %v4902 = vsub.f32 %v4571, %v4901
    %v4903 = vand.u32 %v4902, 4294901760
    %4904 = vmatpush.msra.mxu0 %v4903
    %v4905 = vand.u32 %v4570, 4294901760
    %v4906 = vsub.f32 %v4570, %v4905
    %v4907 = vand.u32 %v4906, 4294901760
    %4908 = vmatpush.msra.mxu0 %v4907
    %v4909 = vand.u32 %v4569, 4294901760
    %v4910 = vsub.f32 %v4569, %v4909
    %v4911 = vand.u32 %v4910, 4294901760
    %4912 = vmatpush.msra.mxu0 %v4911
    %v4913 = vand.u32 %v4568, 4294901760
    %v4914 = vsub.f32 %v4568, %v4913
    %v4915 = vand.u32 %v4914, 4294901760
    %4916 = vmatpush.msra.mxu0 %v4915
    %v4917 = vand.u32 %v4567, 4294901760
    %v4918 = vsub.f32 %v4567, %v4917
    %v4919 = vand.u32 %v4918, 4294901760
    %4920 = vmatpush.msra.mxu0 %v4919
    %v4921 = vand.u32 %v4566, 4294901760
    %v4922 = vsub.f32 %v4566, %v4921
    %v4923 = vand.u32 %v4922, 4294901760
    %4924 = vmatpush.msra.mxu0 %v4923
    %v4925 = vand.u32 %v4565, 4294901760
    %v4926 = vsub.f32 %v4565, %v4925
    %v4927 = vand.u32 %v4926, 4294901760
    %4928 = vmatpush.msra.mxu0 %v4927
    %v4929 = vand.u32 %v4564, 4294901760
    %v4930 = vsub.f32 %v4564, %v4929
    %v4931 = vand.u32 %v4930, 4294901760
    %4932 = vmatpush.msra.mxu0 %v4931
    %v4933 = vand.u32 %v4563, 4294901760
    %v4934 = vsub.f32 %v4563, %v4933
    %v4935 = vand.u32 %v4934, 4294901760
    %4936 = vmatpush.msra.mxu0 %v4935
    %v4937 = vand.u32 %v4562, 4294901760
    %v4938 = vsub.f32 %v4562, %v4937
    %v4939 = vand.u32 %v4938, 4294901760
    %4940 = vmatpush.msra.mxu0 %v4939
    %v4941 = vand.u32 %v4561, 4294901760
    %v4942 = vsub.f32 %v4561, %v4941
    %v4943 = vand.u32 %v4942, 4294901760
    %4944 = vmatpush.msra.mxu0 %v4943
    %v4945 = vand.u32 %v4578, 4294901760
    %4946 = vmatmul.f32.gmra.mxu0 %v4945
    %v4947 = vpop.f32.mrf.mxu0
    %v4948 = vadd.f32 %v4864, %v4947
    %v4949 = vand.u32 %v4581, 4294901760
    %4950 = vmatmul.f32.gmra.mxu0 %v4949
    %v4951 = vpop.f32.mrf.mxu0
    %v4952 = vadd.f32 %v4870, %v4951
    %v4953 = vand.u32 %v4584, 4294901760
    %4954 = vmatmul.f32.gmra.mxu0 %v4953
    %v4955 = vpop.f32.mrf.mxu0
    %v4956 = vadd.f32 %v4876, %v4955
    %v4957 = vand.u32 %v4587, 4294901760
    %4958 = vmatmul.f32.gmra.mxu0 %v4957
    %v4959 = vpop.f32.mrf.mxu0
    %v4960 = vadd.f32 %v4882, %v4959
    %4961 = vdwg.mxu0
    %4962 = vmatpush.msra.mxu0 0.0
    %v4963 = vand.u32 %v4575, 4294901760
    %4964 = vmatpush.msra.mxu0 %v4963
    %v4965 = vand.u32 %v4574, 4294901760
    %4966 = vmatpush.msra.mxu0 %v4965
    %v4967 = vand.u32 %v4573, 4294901760
    %4968 = vmatpush.msra.mxu0 %v4967
    %v4969 = vand.u32 %v4572, 4294901760
    %4970 = vmatpush.msra.mxu0 %v4969
    %v4971 = vand.u32 %v4571, 4294901760
    %4972 = vmatpush.msra.mxu0 %v4971
    %v4973 = vand.u32 %v4570, 4294901760
    %4974 = vmatpush.msra.mxu0 %v4973
    %v4975 = vand.u32 %v4569, 4294901760
    %4976 = vmatpush.msra.mxu0 %v4975
    %v4977 = vand.u32 %v4568, 4294901760
    %4978 = vmatpush.msra.mxu0 %v4977
    %v4979 = vand.u32 %v4567, 4294901760
    %4980 = vmatpush.msra.mxu0 %v4979
    %v4981 = vand.u32 %v4566, 4294901760
    %4982 = vmatpush.msra.mxu0 %v4981
    %v4983 = vand.u32 %v4565, 4294901760
    %4984 = vmatpush.msra.mxu0 %v4983
    %v4985 = vand.u32 %v4564, 4294901760
    %4986 = vmatpush.msra.mxu0 %v4985
    %v4987 = vand.u32 %v4563, 4294901760
    %4988 = vmatpush.msra.mxu0 %v4987
    %v4989 = vand.u32 %v4562, 4294901760
    %4990 = vmatpush.msra.mxu0 %v4989
    %v4991 = vand.u32 %v4561, 4294901760
    %4992 = vmatpush.msra.mxu0 %v4991
    %v4993 = vand.u32 %v4578, 4294901760
    %4994 = vmatmul.f32.gmra.mxu0 %v4993
    %v4995 = vpop.f32.mrf.mxu0
    %v4996 = vadd.f32 %v4948, %v4995
    %v4997 = vand.u32 %v4581, 4294901760
    %4998 = vmatmul.f32.gmra.mxu0 %v4997
    %v4999 = vpop.f32.mrf.mxu0
    %v5000 = vadd.f32 %v4952, %v4999
    %v5001 = vand.u32 %v4584, 4294901760
    %5002 = vmatmul.f32.gmra.mxu0 %v5001
    %v5003 = vpop.f32.mrf.mxu0
    %v5004 = vadd.f32 %v4956, %v5003
    %v5005 = vand.u32 %v4587, 4294901760
    %5006 = vmatmul.f32.gmra.mxu0 %v5005
    %v5007 = vpop.f32.mrf.mxu0
    %v5008 = vadd.f32 %v4960, %v5007
    %5009 = vdwg.mxu0
    %v5011 = vsel %vm4576, %v4224, 0
    %v5014 = vsel %vm4576, %v4228, 0
    %v5017 = vsel %vm4576, %v4232, 0
    %v5020 = vsel %vm4576, %v4236, 0
    %5022 = vmatpush.msra.mxu0 0.0
    %v5023 = vand.u32 %v4559, 4294901760
    %5024 = vmatpush.msra.mxu0 %v5023
    %v5025 = vand.u32 %v4558, 4294901760
    %5026 = vmatpush.msra.mxu0 %v5025
    %v5027 = vand.u32 %v4557, 4294901760
    %5028 = vmatpush.msra.mxu0 %v5027
    %v5029 = vand.u32 %v4556, 4294901760
    %5030 = vmatpush.msra.mxu0 %v5029
    %v5031 = vand.u32 %v4555, 4294901760
    %5032 = vmatpush.msra.mxu0 %v5031
    %v5033 = vand.u32 %v4554, 4294901760
    %5034 = vmatpush.msra.mxu0 %v5033
    %v5035 = vand.u32 %v4553, 4294901760
    %5036 = vmatpush.msra.mxu0 %v5035
    %v5037 = vand.u32 %v4552, 4294901760
    %5038 = vmatpush.msra.mxu0 %v5037
    %v5039 = vand.u32 %v4551, 4294901760
    %5040 = vmatpush.msra.mxu0 %v5039
    %v5041 = vand.u32 %v4550, 4294901760
    %5042 = vmatpush.msra.mxu0 %v5041
    %v5043 = vand.u32 %v4549, 4294901760
    %5044 = vmatpush.msra.mxu0 %v5043
    %v5045 = vand.u32 %v4548, 4294901760
    %5046 = vmatpush.msra.mxu0 %v5045
    %v5047 = vand.u32 %v4547, 4294901760
    %5048 = vmatpush.msra.mxu0 %v5047
    %v5049 = vand.u32 %v4546, 4294901760
    %5050 = vmatpush.msra.mxu0 %v5049
    %v5051 = vand.u32 %v4545, 4294901760
    %5052 = vmatpush.msra.mxu0 %v5051
    %v5053 = vand.u32 %v5011, 4294901760
    %v5054 = vsub.f32 %v5011, %v5053
    %v5055 = vand.u32 %v5054, 4294901760
    %v5056 = vsub.f32 %v5054, %v5055
    %v5057 = vand.u32 %v5056, 4294901760
    %5058 = vmatmul.f32.gmra.mxu0 %v5057
    %v5059 = vpop.f32.mrf.mxu0
    %v5060 = vadd.f32 %v4996, %v5059
    %v5061 = vand.u32 %v5014, 4294901760
    %v5062 = vsub.f32 %v5014, %v5061
    %v5063 = vand.u32 %v5062, 4294901760
    %v5064 = vsub.f32 %v5062, %v5063
    %v5065 = vand.u32 %v5064, 4294901760
    %5066 = vmatmul.f32.gmra.mxu0 %v5065
    %v5067 = vpop.f32.mrf.mxu0
    %v5068 = vadd.f32 %v5000, %v5067
    %v5069 = vand.u32 %v5017, 4294901760
    %v5070 = vsub.f32 %v5017, %v5069
    %v5071 = vand.u32 %v5070, 4294901760
    %v5072 = vsub.f32 %v5070, %v5071
    %v5073 = vand.u32 %v5072, 4294901760
    %5074 = vmatmul.f32.gmra.mxu0 %v5073
    %v5075 = vpop.f32.mrf.mxu0
    %v5076 = vadd.f32 %v5004, %v5075
    %v5077 = vand.u32 %v5020, 4294901760
    %v5078 = vsub.f32 %v5020, %v5077
    %v5079 = vand.u32 %v5078, 4294901760
    %v5080 = vsub.f32 %v5078, %v5079
    %v5081 = vand.u32 %v5080, 4294901760
    %5082 = vmatmul.f32.gmra.mxu0 %v5081
    %v5083 = vpop.f32.mrf.mxu0
    %v5084 = vadd.f32 %v5008, %v5083
    %5085 = vdwg.mxu0
    %5086 = vmatpush.msra.mxu0 0.0
    %v5087 = vand.u32 %v4559, 4294901760
    %v5088 = vsub.f32 %v4559, %v5087
    %v5089 = vand.u32 %v5088, 4294901760
    %v5090 = vsub.f32 %v5088, %v5089
    %v5091 = vand.u32 %v5090, 4294901760
    %5092 = vmatpush.msra.mxu0 %v5091
    %v5093 = vand.u32 %v4558, 4294901760
    %v5094 = vsub.f32 %v4558, %v5093
    %v5095 = vand.u32 %v5094, 4294901760
    %v5096 = vsub.f32 %v5094, %v5095
    %v5097 = vand.u32 %v5096, 4294901760
    %5098 = vmatpush.msra.mxu0 %v5097
    %v5099 = vand.u32 %v4557, 4294901760
    %v5100 = vsub.f32 %v4557, %v5099
    %v5101 = vand.u32 %v5100, 4294901760
    %v5102 = vsub.f32 %v5100, %v5101
    %v5103 = vand.u32 %v5102, 4294901760
    %5104 = vmatpush.msra.mxu0 %v5103
    %v5105 = vand.u32 %v4556, 4294901760
    %v5106 = vsub.f32 %v4556, %v5105
    %v5107 = vand.u32 %v5106, 4294901760
    %v5108 = vsub.f32 %v5106, %v5107
    %v5109 = vand.u32 %v5108, 4294901760
    %5110 = vmatpush.msra.mxu0 %v5109
    %v5111 = vand.u32 %v4555, 4294901760
    %v5112 = vsub.f32 %v4555, %v5111
    %v5113 = vand.u32 %v5112, 4294901760
    %v5114 = vsub.f32 %v5112, %v5113
    %v5115 = vand.u32 %v5114, 4294901760
    %5116 = vmatpush.msra.mxu0 %v5115
    %v5117 = vand.u32 %v4554, 4294901760
    %v5118 = vsub.f32 %v4554, %v5117
    %v5119 = vand.u32 %v5118, 4294901760
    %v5120 = vsub.f32 %v5118, %v5119
    %v5121 = vand.u32 %v5120, 4294901760
    %5122 = vmatpush.msra.mxu0 %v5121
    %v5123 = vand.u32 %v4553, 4294901760
    %v5124 = vsub.f32 %v4553, %v5123
    %v5125 = vand.u32 %v5124, 4294901760
    %v5126 = vsub.f32 %v5124, %v5125
    %v5127 = vand.u32 %v5126, 4294901760
    %5128 = vmatpush.msra.mxu0 %v5127
    %v5129 = vand.u32 %v4552, 4294901760
    %v5130 = vsub.f32 %v4552, %v5129
    %v5131 = vand.u32 %v5130, 4294901760
    %v5132 = vsub.f32 %v5130, %v5131
    %v5133 = vand.u32 %v5132, 4294901760
    %5134 = vmatpush.msra.mxu0 %v5133
    %v5135 = vand.u32 %v4551, 4294901760
    %v5136 = vsub.f32 %v4551, %v5135
    %v5137 = vand.u32 %v5136, 4294901760
    %v5138 = vsub.f32 %v5136, %v5137
    %v5139 = vand.u32 %v5138, 4294901760
    %5140 = vmatpush.msra.mxu0 %v5139
    %v5141 = vand.u32 %v4550, 4294901760
    %v5142 = vsub.f32 %v4550, %v5141
    %v5143 = vand.u32 %v5142, 4294901760
    %v5144 = vsub.f32 %v5142, %v5143
    %v5145 = vand.u32 %v5144, 4294901760
    %5146 = vmatpush.msra.mxu0 %v5145
    %v5147 = vand.u32 %v4549, 4294901760
    %v5148 = vsub.f32 %v4549, %v5147
    %v5149 = vand.u32 %v5148, 4294901760
    %v5150 = vsub.f32 %v5148, %v5149
    %v5151 = vand.u32 %v5150, 4294901760
    %5152 = vmatpush.msra.mxu0 %v5151
    %v5153 = vand.u32 %v4548, 4294901760
    %v5154 = vsub.f32 %v4548, %v5153
    %v5155 = vand.u32 %v5154, 4294901760
    %v5156 = vsub.f32 %v5154, %v5155
    %v5157 = vand.u32 %v5156, 4294901760
    %5158 = vmatpush.msra.mxu0 %v5157
    %v5159 = vand.u32 %v4547, 4294901760
    %v5160 = vsub.f32 %v4547, %v5159
    %v5161 = vand.u32 %v5160, 4294901760
    %v5162 = vsub.f32 %v5160, %v5161
    %v5163 = vand.u32 %v5162, 4294901760
    %5164 = vmatpush.msra.mxu0 %v5163
    %v5165 = vand.u32 %v4546, 4294901760
    %v5166 = vsub.f32 %v4546, %v5165
    %v5167 = vand.u32 %v5166, 4294901760
    %v5168 = vsub.f32 %v5166, %v5167
    %v5169 = vand.u32 %v5168, 4294901760
    %5170 = vmatpush.msra.mxu0 %v5169
    %v5171 = vand.u32 %v4545, 4294901760
    %v5172 = vsub.f32 %v4545, %v5171
    %v5173 = vand.u32 %v5172, 4294901760
    %v5174 = vsub.f32 %v5172, %v5173
    %v5175 = vand.u32 %v5174, 4294901760
    %5176 = vmatpush.msra.mxu0 %v5175
    %v5177 = vand.u32 %v5011, 4294901760
    %5178 = vmatmul.f32.gmra.mxu0 %v5177
    %v5179 = vpop.f32.mrf.mxu0
    %v5180 = vadd.f32 %v5060, %v5179
    %v5181 = vand.u32 %v5014, 4294901760
    %5182 = vmatmul.f32.gmra.mxu0 %v5181
    %v5183 = vpop.f32.mrf.mxu0
    %v5184 = vadd.f32 %v5068, %v5183
    %v5185 = vand.u32 %v5017, 4294901760
    %5186 = vmatmul.f32.gmra.mxu0 %v5185
    %v5187 = vpop.f32.mrf.mxu0
    %v5188 = vadd.f32 %v5076, %v5187
    %v5189 = vand.u32 %v5020, 4294901760
    %5190 = vmatmul.f32.gmra.mxu0 %v5189
    %v5191 = vpop.f32.mrf.mxu0
    %v5192 = vadd.f32 %v5084, %v5191
    %5193 = vdwg.mxu0
    %5194 = vmatpush.msra.mxu0 0.0
    %v5195 = vand.u32 %v4559, 4294901760
    %v5196 = vsub.f32 %v4559, %v5195
    %5197 = vmatpush.msra.mxu0 %v5196
    %v5198 = vand.u32 %v4558, 4294901760
    %v5199 = vsub.f32 %v4558, %v5198
    %5200 = vmatpush.msra.mxu0 %v5199
    %v5201 = vand.u32 %v4557, 4294901760
    %v5202 = vsub.f32 %v4557, %v5201
    %5203 = vmatpush.msra.mxu0 %v5202
    %v5204 = vand.u32 %v4556, 4294901760
    %v5205 = vsub.f32 %v4556, %v5204
    %5206 = vmatpush.msra.mxu0 %v5205
    %v5207 = vand.u32 %v4555, 4294901760
    %v5208 = vsub.f32 %v4555, %v5207
    %5209 = vmatpush.msra.mxu0 %v5208
    %v5210 = vand.u32 %v4554, 4294901760
    %v5211 = vsub.f32 %v4554, %v5210
    %5212 = vmatpush.msra.mxu0 %v5211
    %v5213 = vand.u32 %v4553, 4294901760
    %v5214 = vsub.f32 %v4553, %v5213
    %5215 = vmatpush.msra.mxu0 %v5214
    %v5216 = vand.u32 %v4552, 4294901760
    %v5217 = vsub.f32 %v4552, %v5216
    %5218 = vmatpush.msra.mxu0 %v5217
    %v5219 = vand.u32 %v4551, 4294901760
    %v5220 = vsub.f32 %v4551, %v5219
    %5221 = vmatpush.msra.mxu0 %v5220
    %v5222 = vand.u32 %v4550, 4294901760
    %v5223 = vsub.f32 %v4550, %v5222
    %5224 = vmatpush.msra.mxu0 %v5223
    %v5225 = vand.u32 %v4549, 4294901760
    %v5226 = vsub.f32 %v4549, %v5225
    %5227 = vmatpush.msra.mxu0 %v5226
    %v5228 = vand.u32 %v4548, 4294901760
    %v5229 = vsub.f32 %v4548, %v5228
    %5230 = vmatpush.msra.mxu0 %v5229
    %v5231 = vand.u32 %v4547, 4294901760
    %v5232 = vsub.f32 %v4547, %v5231
    %5233 = vmatpush.msra.mxu0 %v5232
    %v5234 = vand.u32 %v4546, 4294901760
    %v5235 = vsub.f32 %v4546, %v5234
    %5236 = vmatpush.msra.mxu0 %v5235
    %v5237 = vand.u32 %v4545, 4294901760
    %v5238 = vsub.f32 %v4545, %v5237
    %5239 = vmatpush.msra.mxu0 %v5238
    %v5240 = vand.u32 %v5011, 4294901760
    %v5241 = vsub.f32 %v5011, %v5240
    %5242 = vmatmul.f32.gmra.mxu0 %v5241
    %v5243 = vpop.f32.mrf.mxu0
    %v5244 = vadd.f32 %v5180, %v5243
    %v5245 = vand.u32 %v5014, 4294901760
    %v5246 = vsub.f32 %v5014, %v5245
    %5247 = vmatmul.f32.gmra.mxu0 %v5246
    %v5248 = vpop.f32.mrf.mxu0
    %v5249 = vadd.f32 %v5184, %v5248
    %v5250 = vand.u32 %v5017, 4294901760
    %v5251 = vsub.f32 %v5017, %v5250
    %5252 = vmatmul.f32.gmra.mxu0 %v5251
    %v5253 = vpop.f32.mrf.mxu0
    %v5254 = vadd.f32 %v5188, %v5253
    %v5255 = vand.u32 %v5020, 4294901760
    %v5256 = vsub.f32 %v5020, %v5255
    %5257 = vmatmul.f32.gmra.mxu0 %v5256
    %v5258 = vpop.f32.mrf.mxu0
    %v5259 = vadd.f32 %v5192, %v5258
    %5260 = vdwg.mxu0
    %5261 = vmatpush.msra.mxu0 0.0
    %v5262 = vand.u32 %v4559, 4294901760
    %5263 = vmatpush.msra.mxu0 %v5262
    %v5264 = vand.u32 %v4558, 4294901760
    %5265 = vmatpush.msra.mxu0 %v5264
    %v5266 = vand.u32 %v4557, 4294901760
    %5267 = vmatpush.msra.mxu0 %v5266
    %v5268 = vand.u32 %v4556, 4294901760
    %5269 = vmatpush.msra.mxu0 %v5268
    %v5270 = vand.u32 %v4555, 4294901760
    %5271 = vmatpush.msra.mxu0 %v5270
    %v5272 = vand.u32 %v4554, 4294901760
    %5273 = vmatpush.msra.mxu0 %v5272
    %v5274 = vand.u32 %v4553, 4294901760
    %5275 = vmatpush.msra.mxu0 %v5274
    %v5276 = vand.u32 %v4552, 4294901760
    %5277 = vmatpush.msra.mxu0 %v5276
    %v5278 = vand.u32 %v4551, 4294901760
    %5279 = vmatpush.msra.mxu0 %v5278
    %v5280 = vand.u32 %v4550, 4294901760
    %5281 = vmatpush.msra.mxu0 %v5280
    %v5282 = vand.u32 %v4549, 4294901760
    %5283 = vmatpush.msra.mxu0 %v5282
    %v5284 = vand.u32 %v4548, 4294901760
    %5285 = vmatpush.msra.mxu0 %v5284
    %v5286 = vand.u32 %v4547, 4294901760
    %5287 = vmatpush.msra.mxu0 %v5286
    %v5288 = vand.u32 %v4546, 4294901760
    %5289 = vmatpush.msra.mxu0 %v5288
    %v5290 = vand.u32 %v4545, 4294901760
    %5291 = vmatpush.msra.mxu0 %v5290
    %v5292 = vand.u32 %v5011, 4294901760
    %v5293 = vsub.f32 %v5011, %v5292
    %v5294 = vand.u32 %v5293, 4294901760
    %5295 = vmatmul.f32.gmra.mxu0 %v5294
    %v5296 = vpop.f32.mrf.mxu0
    %v5297 = vadd.f32 %v5244, %v5296
    %v5298 = vand.u32 %v5014, 4294901760
    %v5299 = vsub.f32 %v5014, %v5298
    %v5300 = vand.u32 %v5299, 4294901760
    %5301 = vmatmul.f32.gmra.mxu0 %v5300
    %v5302 = vpop.f32.mrf.mxu0
    %v5303 = vadd.f32 %v5249, %v5302
    %v5304 = vand.u32 %v5017, 4294901760
    %v5305 = vsub.f32 %v5017, %v5304
    %v5306 = vand.u32 %v5305, 4294901760
    %5307 = vmatmul.f32.gmra.mxu0 %v5306
    %v5308 = vpop.f32.mrf.mxu0
    %v5309 = vadd.f32 %v5254, %v5308
    %v5310 = vand.u32 %v5020, 4294901760
    %v5311 = vsub.f32 %v5020, %v5310
    %v5312 = vand.u32 %v5311, 4294901760
    %5313 = vmatmul.f32.gmra.mxu0 %v5312
    %v5314 = vpop.f32.mrf.mxu0
    %v5315 = vadd.f32 %v5259, %v5314
    %5316 = vdwg.mxu0
    %5317 = vmatpush.msra.mxu0 0.0
    %v5318 = vand.u32 %v4559, 4294901760
    %v5319 = vsub.f32 %v4559, %v5318
    %v5320 = vand.u32 %v5319, 4294901760
    %5321 = vmatpush.msra.mxu0 %v5320
    %v5322 = vand.u32 %v4558, 4294901760
    %v5323 = vsub.f32 %v4558, %v5322
    %v5324 = vand.u32 %v5323, 4294901760
    %5325 = vmatpush.msra.mxu0 %v5324
    %v5326 = vand.u32 %v4557, 4294901760
    %v5327 = vsub.f32 %v4557, %v5326
    %v5328 = vand.u32 %v5327, 4294901760
    %5329 = vmatpush.msra.mxu0 %v5328
    %v5330 = vand.u32 %v4556, 4294901760
    %v5331 = vsub.f32 %v4556, %v5330
    %v5332 = vand.u32 %v5331, 4294901760
    %5333 = vmatpush.msra.mxu0 %v5332
    %v5334 = vand.u32 %v4555, 4294901760
    %v5335 = vsub.f32 %v4555, %v5334
    %v5336 = vand.u32 %v5335, 4294901760
    %5337 = vmatpush.msra.mxu0 %v5336
    %v5338 = vand.u32 %v4554, 4294901760
    %v5339 = vsub.f32 %v4554, %v5338
    %v5340 = vand.u32 %v5339, 4294901760
    %5341 = vmatpush.msra.mxu0 %v5340
    %v5342 = vand.u32 %v4553, 4294901760
    %v5343 = vsub.f32 %v4553, %v5342
    %v5344 = vand.u32 %v5343, 4294901760
    %5345 = vmatpush.msra.mxu0 %v5344
    %v5346 = vand.u32 %v4552, 4294901760
    %v5347 = vsub.f32 %v4552, %v5346
    %v5348 = vand.u32 %v5347, 4294901760
    %5349 = vmatpush.msra.mxu0 %v5348
    %v5350 = vand.u32 %v4551, 4294901760
    %v5351 = vsub.f32 %v4551, %v5350
    %v5352 = vand.u32 %v5351, 4294901760
    %5353 = vmatpush.msra.mxu0 %v5352
    %v5354 = vand.u32 %v4550, 4294901760
    %v5355 = vsub.f32 %v4550, %v5354
    %v5356 = vand.u32 %v5355, 4294901760
    %5357 = vmatpush.msra.mxu0 %v5356
    %v5358 = vand.u32 %v4549, 4294901760
    %v5359 = vsub.f32 %v4549, %v5358
    %v5360 = vand.u32 %v5359, 4294901760
    %5361 = vmatpush.msra.mxu0 %v5360
    %v5362 = vand.u32 %v4548, 4294901760
    %v5363 = vsub.f32 %v4548, %v5362
    %v5364 = vand.u32 %v5363, 4294901760
    %5365 = vmatpush.msra.mxu0 %v5364
    %v5366 = vand.u32 %v4547, 4294901760
    %v5367 = vsub.f32 %v4547, %v5366
    %v5368 = vand.u32 %v5367, 4294901760
    %5369 = vmatpush.msra.mxu0 %v5368
    %v5370 = vand.u32 %v4546, 4294901760
    %v5371 = vsub.f32 %v4546, %v5370
    %v5372 = vand.u32 %v5371, 4294901760
    %5373 = vmatpush.msra.mxu0 %v5372
    %v5374 = vand.u32 %v4545, 4294901760
    %v5375 = vsub.f32 %v4545, %v5374
    %v5376 = vand.u32 %v5375, 4294901760
    %5377 = vmatpush.msra.mxu0 %v5376
    %v5378 = vand.u32 %v5011, 4294901760
    %5379 = vmatmul.f32.gmra.mxu0 %v5378
    %v5380 = vpop.f32.mrf.mxu0
    %v5381 = vadd.f32 %v5297, %v5380
    %v5382 = vand.u32 %v5014, 4294901760
    %5383 = vmatmul.f32.gmra.mxu0 %v5382
    %v5384 = vpop.f32.mrf.mxu0
    %v5385 = vadd.f32 %v5303, %v5384
    %v5386 = vand.u32 %v5017, 4294901760
    %5387 = vmatmul.f32.gmra.mxu0 %v5386
    %v5388 = vpop.f32.mrf.mxu0
    %v5389 = vadd.f32 %v5309, %v5388
    %v5390 = vand.u32 %v5020, 4294901760
    %5391 = vmatmul.f32.gmra.mxu0 %v5390
    %v5392 = vpop.f32.mrf.mxu0
    %v5393 = vadd.f32 %v5315, %v5392
    %5394 = vdwg.mxu0
    %5395 = vmatpush.msra.mxu0 0.0
    %v5396 = vand.u32 %v4559, 4294901760
    %5397 = vmatpush.msra.mxu0 %v5396
    %v5398 = vand.u32 %v4558, 4294901760
    %5399 = vmatpush.msra.mxu0 %v5398
    %v5400 = vand.u32 %v4557, 4294901760
    %5401 = vmatpush.msra.mxu0 %v5400
    %v5402 = vand.u32 %v4556, 4294901760
    %5403 = vmatpush.msra.mxu0 %v5402
    %v5404 = vand.u32 %v4555, 4294901760
    %5405 = vmatpush.msra.mxu0 %v5404
    %v5406 = vand.u32 %v4554, 4294901760
    %5407 = vmatpush.msra.mxu0 %v5406
    %v5408 = vand.u32 %v4553, 4294901760
    %5409 = vmatpush.msra.mxu0 %v5408
    %v5410 = vand.u32 %v4552, 4294901760
    %5411 = vmatpush.msra.mxu0 %v5410
    %v5412 = vand.u32 %v4551, 4294901760
    %5413 = vmatpush.msra.mxu0 %v5412
    %v5414 = vand.u32 %v4550, 4294901760
    %5415 = vmatpush.msra.mxu0 %v5414
    %v5416 = vand.u32 %v4549, 4294901760
    %5417 = vmatpush.msra.mxu0 %v5416
    %v5418 = vand.u32 %v4548, 4294901760
    %5419 = vmatpush.msra.mxu0 %v5418
    %v5420 = vand.u32 %v4547, 4294901760
    %5421 = vmatpush.msra.mxu0 %v5420
    %v5422 = vand.u32 %v4546, 4294901760
    %5423 = vmatpush.msra.mxu0 %v5422
    %v5424 = vand.u32 %v4545, 4294901760
    %5425 = vmatpush.msra.mxu0 %v5424
    %v5426 = vand.u32 %v5011, 4294901760
    %5427 = vmatmul.f32.gmra.mxu0 %v5426
    %v5428 = vpop.f32.mrf.mxu0
    %v5429 = vadd.f32 %v5381, %v5428
    %v5430 = vand.u32 %v5014, 4294901760
    %5431 = vmatmul.f32.gmra.mxu0 %v5430
    %v5432 = vpop.f32.mrf.mxu0
    %v5433 = vadd.f32 %v5385, %v5432
    %v5434 = vand.u32 %v5017, 4294901760
    %5435 = vmatmul.f32.gmra.mxu0 %v5434
    %v5436 = vpop.f32.mrf.mxu0
    %v5437 = vadd.f32 %v5389, %v5436
    %v5438 = vand.u32 %v5020, 4294901760
    %5439 = vmatmul.f32.gmra.mxu0 %v5438
    %v5440 = vpop.f32.mrf.mxu0
    %v5441 = vadd.f32 %v5393, %v5440
    %5442 = vdwg.mxu0
    %v5443 = vadd.f32 %v5429, %v3219
    %v5444 = vadd.f32 %v5433, %v3220
    %v5445 = vadd.f32 %v5437, %v3221
    %v5446 = vadd.f32 %v5441, %v3222
    %v5447 = vld [vmem:[%s10] sm:$0x1]
    %v5449 = vperm.slane %v5447, 0
    %v5451 = vadd.f32 %v5443, %v5449
    %v5452 = vadd.f32 %v5444, %v5449
    %v5453 = vadd.f32 %v5445, %v5449
    %v5454 = vadd.f32 %v5446, %v5449
    %v5455 = vld [vmem:[%s8] sm:$0xff]
    %v5456 = vld [vmem:[%s8 + $0x8] sm:$0xff]
    %v5457 = vld [vmem:[%s8 + $0x10] sm:$0xff]
    %v5458 = vld [vmem:[%s8 + $0x18] sm:$0xff]
    %v5459 = vld [vmem:[%s8 + $0x20] sm:$0xff]
    %v5460 = vld [vmem:[%s8 + $0x28] sm:$0xff]
    %v5461 = vld [vmem:[%s8 + $0x30] sm:$0xff]
    %v5462 = vld [vmem:[%s8 + $0x38] sm:$0xff]
    %v5463 = vld [vmem:[%s8 + $0x40] sm:$0xff]
    %v5464 = vld [vmem:[%s8 + $0x48] sm:$0xff]
    %v5465 = vld [vmem:[%s8 + $0x50] sm:$0xff]
    %v5466 = vld [vmem:[%s8 + $0x58] sm:$0xff]
    %v5467 = vld [vmem:[%s8 + $0x60] sm:$0xff]
    %v5468 = vld [vmem:[%s8 + $0x68] sm:$0xff]
    %v5469 = vld [vmem:[%s8 + $0x70] sm:$0xff]
    %v5471 = vsel %vm4576, %v5451, 0
    %v5474 = vsel %vm4576, %v5452, 0
    %v5477 = vsel %vm4576, %v5453, 0
    %v5480 = vsel %vm4576, %v5454, 0
    %5482 = vmatpush.msra.mxu0 0.0
    %v5483 = vand.u32 %v5469, 4294901760
    %5484 = vmatpush.msra.mxu0 %v5483
    %v5485 = vand.u32 %v5468, 4294901760
    %5486 = vmatpush.msra.mxu0 %v5485
    %v5487 = vand.u32 %v5467, 4294901760
    %5488 = vmatpush.msra.mxu0 %v5487
    %v5489 = vand.u32 %v5466, 4294901760
    %5490 = vmatpush.msra.mxu0 %v5489
    %v5491 = vand.u32 %v5465, 4294901760
    %5492 = vmatpush.msra.mxu0 %v5491
    %v5493 = vand.u32 %v5464, 4294901760
    %5494 = vmatpush.msra.mxu0 %v5493
    %v5495 = vand.u32 %v5463, 4294901760
    %5496 = vmatpush.msra.mxu0 %v5495
    %v5497 = vand.u32 %v5462, 4294901760
    %5498 = vmatpush.msra.mxu0 %v5497
    %v5499 = vand.u32 %v5461, 4294901760
    %5500 = vmatpush.msra.mxu0 %v5499
    %v5501 = vand.u32 %v5460, 4294901760
    %5502 = vmatpush.msra.mxu0 %v5501
    %v5503 = vand.u32 %v5459, 4294901760
    %5504 = vmatpush.msra.mxu0 %v5503
    %v5505 = vand.u32 %v5458, 4294901760
    %5506 = vmatpush.msra.mxu0 %v5505
    %v5507 = vand.u32 %v5457, 4294901760
    %5508 = vmatpush.msra.mxu0 %v5507
    %v5509 = vand.u32 %v5456, 4294901760
    %5510 = vmatpush.msra.mxu0 %v5509
    %v5511 = vand.u32 %v5455, 4294901760
    %5512 = vmatpush.msra.mxu0 %v5511
    %v5513 = vand.u32 %v5471, 4294901760
    %v5514 = vsub.f32 %v5471, %v5513
    %v5515 = vand.u32 %v5514, 4294901760
    %v5516 = vsub.f32 %v5514, %v5515
    %v5517 = vand.u32 %v5516, 4294901760
    %5518 = vmatmul.f32.gmra.mxu0 %v5517
    %v5519 = vpop.f32.mrf.mxu0
    %v5520 = vadd.f32 0.0, %v5519
    %v5521 = vand.u32 %v5474, 4294901760
    %v5522 = vsub.f32 %v5474, %v5521
    %v5523 = vand.u32 %v5522, 4294901760
    %v5524 = vsub.f32 %v5522, %v5523
    %v5525 = vand.u32 %v5524, 4294901760
    %5526 = vmatmul.f32.gmra.mxu0 %v5525
    %v5527 = vpop.f32.mrf.mxu0
    %v5528 = vadd.f32 0.0, %v5527
    %v5529 = vand.u32 %v5477, 4294901760
    %v5530 = vsub.f32 %v5477, %v5529
    %v5531 = vand.u32 %v5530, 4294901760
    %v5532 = vsub.f32 %v5530, %v5531
    %v5533 = vand.u32 %v5532, 4294901760
    %5534 = vmatmul.f32.gmra.mxu0 %v5533
    %v5535 = vpop.f32.mrf.mxu0
    %v5536 = vadd.f32 0.0, %v5535
    %v5537 = vand.u32 %v5480, 4294901760
    %v5538 = vsub.f32 %v5480, %v5537
    %v5539 = vand.u32 %v5538, 4294901760
    %v5540 = vsub.f32 %v5538, %v5539
    %v5541 = vand.u32 %v5540, 4294901760
    %5542 = vmatmul.f32.gmra.mxu0 %v5541
    %v5543 = vpop.f32.mrf.mxu0
    %v5544 = vadd.f32 0.0, %v5543
    %5545 = vdwg.mxu0
    %5546 = vmatpush.msra.mxu0 0.0
    %v5547 = vand.u32 %v5469, 4294901760
    %v5548 = vsub.f32 %v5469, %v5547
    %v5549 = vand.u32 %v5548, 4294901760
    %v5550 = vsub.f32 %v5548, %v5549
    %v5551 = vand.u32 %v5550, 4294901760
    %5552 = vmatpush.msra.mxu0 %v5551
    %v5553 = vand.u32 %v5468, 4294901760
    %v5554 = vsub.f32 %v5468, %v5553
    %v5555 = vand.u32 %v5554, 4294901760
    %v5556 = vsub.f32 %v5554, %v5555
    %v5557 = vand.u32 %v5556, 4294901760
    %5558 = vmatpush.msra.mxu0 %v5557
    %v5559 = vand.u32 %v5467, 4294901760
    %v5560 = vsub.f32 %v5467, %v5559
    %v5561 = vand.u32 %v5560, 4294901760
    %v5562 = vsub.f32 %v5560, %v5561
    %v5563 = vand.u32 %v5562, 4294901760
    %5564 = vmatpush.msra.mxu0 %v5563
    %v5565 = vand.u32 %v5466, 4294901760
    %v5566 = vsub.f32 %v5466, %v5565
    %v5567 = vand.u32 %v5566, 4294901760
    %v5568 = vsub.f32 %v5566, %v5567
    %v5569 = vand.u32 %v5568, 4294901760
    %5570 = vmatpush.msra.mxu0 %v5569
    %v5571 = vand.u32 %v5465, 4294901760
    %v5572 = vsub.f32 %v5465, %v5571
    %v5573 = vand.u32 %v5572, 4294901760
    %v5574 = vsub.f32 %v5572, %v5573
    %v5575 = vand.u32 %v5574, 4294901760
    %5576 = vmatpush.msra.mxu0 %v5575
    %v5577 = vand.u32 %v5464, 4294901760
    %v5578 = vsub.f32 %v5464, %v5577
    %v5579 = vand.u32 %v5578, 4294901760
    %v5580 = vsub.f32 %v5578, %v5579
    %v5581 = vand.u32 %v5580, 4294901760
    %5582 = vmatpush.msra.mxu0 %v5581
    %v5583 = vand.u32 %v5463, 4294901760
    %v5584 = vsub.f32 %v5463, %v5583
    %v5585 = vand.u32 %v5584, 4294901760
    %v5586 = vsub.f32 %v5584, %v5585
    %v5587 = vand.u32 %v5586, 4294901760
    %5588 = vmatpush.msra.mxu0 %v5587
    %v5589 = vand.u32 %v5462, 4294901760
    %v5590 = vsub.f32 %v5462, %v5589
    %v5591 = vand.u32 %v5590, 4294901760
    %v5592 = vsub.f32 %v5590, %v5591
    %v5593 = vand.u32 %v5592, 4294901760
    %5594 = vmatpush.msra.mxu0 %v5593
    %v5595 = vand.u32 %v5461, 4294901760
    %v5596 = vsub.f32 %v5461, %v5595
    %v5597 = vand.u32 %v5596, 4294901760
    %v5598 = vsub.f32 %v5596, %v5597
    %v5599 = vand.u32 %v5598, 4294901760
    %5600 = vmatpush.msra.mxu0 %v5599
    %v5601 = vand.u32 %v5460, 4294901760
    %v5602 = vsub.f32 %v5460, %v5601
    %v5603 = vand.u32 %v5602, 4294901760
    %v5604 = vsub.f32 %v5602, %v5603
    %v5605 = vand.u32 %v5604, 4294901760
    %5606 = vmatpush.msra.mxu0 %v5605
    %v5607 = vand.u32 %v5459, 4294901760
    %v5608 = vsub.f32 %v5459, %v5607
    %v5609 = vand.u32 %v5608, 4294901760
    %v5610 = vsub.f32 %v5608, %v5609
    %v5611 = vand.u32 %v5610, 4294901760
    %5612 = vmatpush.msra.mxu0 %v5611
    %v5613 = vand.u32 %v5458, 4294901760
    %v5614 = vsub.f32 %v5458, %v5613
    %v5615 = vand.u32 %v5614, 4294901760
    %v5616 = vsub.f32 %v5614, %v5615
    %v5617 = vand.u32 %v5616, 4294901760
    %5618 = vmatpush.msra.mxu0 %v5617
    %v5619 = vand.u32 %v5457, 4294901760
    %v5620 = vsub.f32 %v5457, %v5619
    %v5621 = vand.u32 %v5620, 4294901760
    %v5622 = vsub.f32 %v5620, %v5621
    %v5623 = vand.u32 %v5622, 4294901760
    %5624 = vmatpush.msra.mxu0 %v5623
    %v5625 = vand.u32 %v5456, 4294901760
    %v5626 = vsub.f32 %v5456, %v5625
    %v5627 = vand.u32 %v5626, 4294901760
    %v5628 = vsub.f32 %v5626, %v5627
    %v5629 = vand.u32 %v5628, 4294901760
    %5630 = vmatpush.msra.mxu0 %v5629
    %v5631 = vand.u32 %v5455, 4294901760
    %v5632 = vsub.f32 %v5455, %v5631
    %v5633 = vand.u32 %v5632, 4294901760
    %v5634 = vsub.f32 %v5632, %v5633
    %v5635 = vand.u32 %v5634, 4294901760
    %5636 = vmatpush.msra.mxu0 %v5635
    %v5637 = vand.u32 %v5471, 4294901760
    %5638 = vmatmul.f32.gmra.mxu0 %v5637
    %v5639 = vpop.f32.mrf.mxu0
    %v5640 = vadd.f32 %v5520, %v5639
    %v5641 = vand.u32 %v5474, 4294901760
    %5642 = vmatmul.f32.gmra.mxu0 %v5641
    %v5643 = vpop.f32.mrf.mxu0
    %v5644 = vadd.f32 %v5528, %v5643
    %v5645 = vand.u32 %v5477, 4294901760
    %5646 = vmatmul.f32.gmra.mxu0 %v5645
    %v5647 = vpop.f32.mrf.mxu0
    %v5648 = vadd.f32 %v5536, %v5647
    %v5649 = vand.u32 %v5480, 4294901760
    %5650 = vmatmul.f32.gmra.mxu0 %v5649
    %v5651 = vpop.f32.mrf.mxu0
    %v5652 = vadd.f32 %v5544, %v5651
    %5653 = vdwg.mxu0
    %5654 = vmatpush.msra.mxu0 0.0
    %v5655 = vand.u32 %v5469, 4294901760
    %v5656 = vsub.f32 %v5469, %v5655
    %5657 = vmatpush.msra.mxu0 %v5656
    %v5658 = vand.u32 %v5468, 4294901760
    %v5659 = vsub.f32 %v5468, %v5658
    %5660 = vmatpush.msra.mxu0 %v5659
    %v5661 = vand.u32 %v5467, 4294901760
    %v5662 = vsub.f32 %v5467, %v5661
    %5663 = vmatpush.msra.mxu0 %v5662
    %v5664 = vand.u32 %v5466, 4294901760
    %v5665 = vsub.f32 %v5466, %v5664
    %5666 = vmatpush.msra.mxu0 %v5665
    %v5667 = vand.u32 %v5465, 4294901760
    %v5668 = vsub.f32 %v5465, %v5667
    %5669 = vmatpush.msra.mxu0 %v5668
    %v5670 = vand.u32 %v5464, 4294901760
    %v5671 = vsub.f32 %v5464, %v5670
    %5672 = vmatpush.msra.mxu0 %v5671
    %v5673 = vand.u32 %v5463, 4294901760
    %v5674 = vsub.f32 %v5463, %v5673
    %5675 = vmatpush.msra.mxu0 %v5674
    %v5676 = vand.u32 %v5462, 4294901760
    %v5677 = vsub.f32 %v5462, %v5676
    %5678 = vmatpush.msra.mxu0 %v5677
    %v5679 = vand.u32 %v5461, 4294901760
    %v5680 = vsub.f32 %v5461, %v5679
    %5681 = vmatpush.msra.mxu0 %v5680
    %v5682 = vand.u32 %v5460, 4294901760
    %v5683 = vsub.f32 %v5460, %v5682
    %5684 = vmatpush.msra.mxu0 %v5683
    %v5685 = vand.u32 %v5459, 4294901760
    %v5686 = vsub.f32 %v5459, %v5685
    %5687 = vmatpush.msra.mxu0 %v5686
    %v5688 = vand.u32 %v5458, 4294901760
    %v5689 = vsub.f32 %v5458, %v5688
    %5690 = vmatpush.msra.mxu0 %v5689
    %v5691 = vand.u32 %v5457, 4294901760
    %v5692 = vsub.f32 %v5457, %v5691
    %5693 = vmatpush.msra.mxu0 %v5692
    %v5694 = vand.u32 %v5456, 4294901760
    %v5695 = vsub.f32 %v5456, %v5694
    %5696 = vmatpush.msra.mxu0 %v5695
    %v5697 = vand.u32 %v5455, 4294901760
    %v5698 = vsub.f32 %v5455, %v5697
    %5699 = vmatpush.msra.mxu0 %v5698
    %v5700 = vand.u32 %v5471, 4294901760
    %v5701 = vsub.f32 %v5471, %v5700
    %5702 = vmatmul.f32.gmra.mxu0 %v5701
    %v5703 = vpop.f32.mrf.mxu0
    %v5704 = vadd.f32 %v5640, %v5703
    %v5705 = vand.u32 %v5474, 4294901760
    %v5706 = vsub.f32 %v5474, %v5705
    %5707 = vmatmul.f32.gmra.mxu0 %v5706
    %v5708 = vpop.f32.mrf.mxu0
    %v5709 = vadd.f32 %v5644, %v5708
    %v5710 = vand.u32 %v5477, 4294901760
    %v5711 = vsub.f32 %v5477, %v5710
    %5712 = vmatmul.f32.gmra.mxu0 %v5711
    %v5713 = vpop.f32.mrf.mxu0
    %v5714 = vadd.f32 %v5648, %v5713
    %v5715 = vand.u32 %v5480, 4294901760
    %v5716 = vsub.f32 %v5480, %v5715
    %5717 = vmatmul.f32.gmra.mxu0 %v5716
    %v5718 = vpop.f32.mrf.mxu0
    %v5719 = vadd.f32 %v5652, %v5718
    %5720 = vdwg.mxu0
    %5721 = vmatpush.msra.mxu0 0.0
    %v5722 = vand.u32 %v5469, 4294901760
    %5723 = vmatpush.msra.mxu0 %v5722
    %v5724 = vand.u32 %v5468, 4294901760
    %5725 = vmatpush.msra.mxu0 %v5724
    %v5726 = vand.u32 %v5467, 4294901760
    %5727 = vmatpush.msra.mxu0 %v5726
    %v5728 = vand.u32 %v5466, 4294901760
    %5729 = vmatpush.msra.mxu0 %v5728
    %v5730 = vand.u32 %v5465, 4294901760
    %5731 = vmatpush.msra.mxu0 %v5730
    %v5732 = vand.u32 %v5464, 4294901760
    %5733 = vmatpush.msra.mxu0 %v5732
    %v5734 = vand.u32 %v5463, 4294901760
    %5735 = vmatpush.msra.mxu0 %v5734
    %v5736 = vand.u32 %v5462, 4294901760
    %5737 = vmatpush.msra.mxu0 %v5736
    %v5738 = vand.u32 %v5461, 4294901760
    %5739 = vmatpush.msra.mxu0 %v5738
    %v5740 = vand.u32 %v5460, 4294901760
    %5741 = vmatpush.msra.mxu0 %v5740
    %v5742 = vand.u32 %v5459, 4294901760
    %5743 = vmatpush.msra.mxu0 %v5742
    %v5744 = vand.u32 %v5458, 4294901760
    %5745 = vmatpush.msra.mxu0 %v5744
    %v5746 = vand.u32 %v5457, 4294901760
    %5747 = vmatpush.msra.mxu0 %v5746
    %v5748 = vand.u32 %v5456, 4294901760
    %5749 = vmatpush.msra.mxu0 %v5748
    %v5750 = vand.u32 %v5455, 4294901760
    %5751 = vmatpush.msra.mxu0 %v5750
    %v5752 = vand.u32 %v5471, 4294901760
    %v5753 = vsub.f32 %v5471, %v5752
    %v5754 = vand.u32 %v5753, 4294901760
    %5755 = vmatmul.f32.gmra.mxu0 %v5754
    %v5756 = vpop.f32.mrf.mxu0
    %v5757 = vadd.f32 %v5704, %v5756
    %v5758 = vand.u32 %v5474, 4294901760
    %v5759 = vsub.f32 %v5474, %v5758
    %v5760 = vand.u32 %v5759, 4294901760
    %5761 = vmatmul.f32.gmra.mxu0 %v5760
    %v5762 = vpop.f32.mrf.mxu0
    %v5763 = vadd.f32 %v5709, %v5762
    %v5764 = vand.u32 %v5477, 4294901760
    %v5765 = vsub.f32 %v5477, %v5764
    %v5766 = vand.u32 %v5765, 4294901760
    %5767 = vmatmul.f32.gmra.mxu0 %v5766
    %v5768 = vpop.f32.mrf.mxu0
    %v5769 = vadd.f32 %v5714, %v5768
    %v5770 = vand.u32 %v5480, 4294901760
    %v5771 = vsub.f32 %v5480, %v5770
    %v5772 = vand.u32 %v5771, 4294901760
    %5773 = vmatmul.f32.gmra.mxu0 %v5772
    %v5774 = vpop.f32.mrf.mxu0
    %v5775 = vadd.f32 %v5719, %v5774
    %5776 = vdwg.mxu0
    %5777 = vmatpush.msra.mxu0 0.0
    %v5778 = vand.u32 %v5469, 4294901760
    %v5779 = vsub.f32 %v5469, %v5778
    %v5780 = vand.u32 %v5779, 4294901760
    %5781 = vmatpush.msra.mxu0 %v5780
    %v5782 = vand.u32 %v5468, 4294901760
    %v5783 = vsub.f32 %v5468, %v5782
    %v5784 = vand.u32 %v5783, 4294901760
    %5785 = vmatpush.msra.mxu0 %v5784
    %v5786 = vand.u32 %v5467, 4294901760
    %v5787 = vsub.f32 %v5467, %v5786
    %v5788 = vand.u32 %v5787, 4294901760
    %5789 = vmatpush.msra.mxu0 %v5788
    %v5790 = vand.u32 %v5466, 4294901760
    %v5791 = vsub.f32 %v5466, %v5790
    %v5792 = vand.u32 %v5791, 4294901760
    %5793 = vmatpush.msra.mxu0 %v5792
    %v5794 = vand.u32 %v5465, 4294901760
    %v5795 = vsub.f32 %v5465, %v5794
    %v5796 = vand.u32 %v5795, 4294901760
    %5797 = vmatpush.msra.mxu0 %v5796
    %v5798 = vand.u32 %v5464, 4294901760
    %v5799 = vsub.f32 %v5464, %v5798
    %v5800 = vand.u32 %v5799, 4294901760
    %5801 = vmatpush.msra.mxu0 %v5800
    %v5802 = vand.u32 %v5463, 4294901760
    %v5803 = vsub.f32 %v5463, %v5802
    %v5804 = vand.u32 %v5803, 4294901760
    %5805 = vmatpush.msra.mxu0 %v5804
    %v5806 = vand.u32 %v5462, 4294901760
    %v5807 = vsub.f32 %v5462, %v5806
    %v5808 = vand.u32 %v5807, 4294901760
    %5809 = vmatpush.msra.mxu0 %v5808
    %v5810 = vand.u32 %v5461, 4294901760
    %v5811 = vsub.f32 %v5461, %v5810
    %v5812 = vand.u32 %v5811, 4294901760
    %5813 = vmatpush.msra.mxu0 %v5812
    %v5814 = vand.u32 %v5460, 4294901760
    %v5815 = vsub.f32 %v5460, %v5814
    %v5816 = vand.u32 %v5815, 4294901760
    %5817 = vmatpush.msra.mxu0 %v5816
    %v5818 = vand.u32 %v5459, 4294901760
    %v5819 = vsub.f32 %v5459, %v5818
    %v5820 = vand.u32 %v5819, 4294901760
    %5821 = vmatpush.msra.mxu0 %v5820
    %v5822 = vand.u32 %v5458, 4294901760
    %v5823 = vsub.f32 %v5458, %v5822
    %v5824 = vand.u32 %v5823, 4294901760
    %5825 = vmatpush.msra.mxu0 %v5824
    %v5826 = vand.u32 %v5457, 4294901760
    %v5827 = vsub.f32 %v5457, %v5826
    %v5828 = vand.u32 %v5827, 4294901760
    %5829 = vmatpush.msra.mxu0 %v5828
    %v5830 = vand.u32 %v5456, 4294901760
    %v5831 = vsub.f32 %v5456, %v5830
    %v5832 = vand.u32 %v5831, 4294901760
    %5833 = vmatpush.msra.mxu0 %v5832
    %v5834 = vand.u32 %v5455, 4294901760
    %v5835 = vsub.f32 %v5455, %v5834
    %v5836 = vand.u32 %v5835, 4294901760
    %5837 = vmatpush.msra.mxu0 %v5836
    %v5838 = vand.u32 %v5471, 4294901760
    %5839 = vmatmul.f32.gmra.mxu0 %v5838
    %v5840 = vpop.f32.mrf.mxu0
    %v5841 = vadd.f32 %v5757, %v5840
    %v5842 = vand.u32 %v5474, 4294901760
    %5843 = vmatmul.f32.gmra.mxu0 %v5842
    %v5844 = vpop.f32.mrf.mxu0
    %v5845 = vadd.f32 %v5763, %v5844
    %v5846 = vand.u32 %v5477, 4294901760
    %5847 = vmatmul.f32.gmra.mxu0 %v5846
    %v5848 = vpop.f32.mrf.mxu0
    %v5849 = vadd.f32 %v5769, %v5848
    %v5850 = vand.u32 %v5480, 4294901760
    %5851 = vmatmul.f32.gmra.mxu0 %v5850
    %v5852 = vpop.f32.mrf.mxu0
    %v5853 = vadd.f32 %v5775, %v5852
    %5854 = vdwg.mxu0
    %5855 = vmatpush.msra.mxu0 0.0
    %v5856 = vand.u32 %v5469, 4294901760
    %5857 = vmatpush.msra.mxu0 %v5856
    %v5858 = vand.u32 %v5468, 4294901760
    %5859 = vmatpush.msra.mxu0 %v5858
    %v5860 = vand.u32 %v5467, 4294901760
    %5861 = vmatpush.msra.mxu0 %v5860
    %v5862 = vand.u32 %v5466, 4294901760
    %5863 = vmatpush.msra.mxu0 %v5862
    %v5864 = vand.u32 %v5465, 4294901760
    %5865 = vmatpush.msra.mxu0 %v5864
    %v5866 = vand.u32 %v5464, 4294901760
    %5867 = vmatpush.msra.mxu0 %v5866
    %v5868 = vand.u32 %v5463, 4294901760
    %5869 = vmatpush.msra.mxu0 %v5868
    %v5870 = vand.u32 %v5462, 4294901760
    %5871 = vmatpush.msra.mxu0 %v5870
    %v5872 = vand.u32 %v5461, 4294901760
    %5873 = vmatpush.msra.mxu0 %v5872
    %v5874 = vand.u32 %v5460, 4294901760
    %5875 = vmatpush.msra.mxu0 %v5874
    %v5876 = vand.u32 %v5459, 4294901760
    %5877 = vmatpush.msra.mxu0 %v5876
    %v5878 = vand.u32 %v5458, 4294901760
    %5879 = vmatpush.msra.mxu0 %v5878
    %v5880 = vand.u32 %v5457, 4294901760
    %5881 = vmatpush.msra.mxu0 %v5880
    %v5882 = vand.u32 %v5456, 4294901760
    %5883 = vmatpush.msra.mxu0 %v5882
    %v5884 = vand.u32 %v5455, 4294901760
    %5885 = vmatpush.msra.mxu0 %v5884
    %v5886 = vand.u32 %v5471, 4294901760
    %5887 = vmatmul.f32.gmra.mxu0 %v5886
    %v5888 = vpop.f32.mrf.mxu0
    %v5889 = vadd.f32 %v5841, %v5888
    %v5890 = vand.u32 %v5474, 4294901760
    %5891 = vmatmul.f32.gmra.mxu0 %v5890
    %v5892 = vpop.f32.mrf.mxu0
    %v5893 = vadd.f32 %v5845, %v5892
    %v5894 = vand.u32 %v5477, 4294901760
    %5895 = vmatmul.f32.gmra.mxu0 %v5894
    %v5896 = vpop.f32.mrf.mxu0
    %v5897 = vadd.f32 %v5849, %v5896
    %v5898 = vand.u32 %v5480, 4294901760
    %5899 = vmatmul.f32.gmra.mxu0 %v5898
    %v5900 = vpop.f32.mrf.mxu0
    %v5901 = vadd.f32 %v5853, %v5900
    %5902 = vdwg.mxu0
    %s5903 = scalar_lea.vmem %s8, 120
    %v5904 = vld [vmem:[%s5903] sm:$0xff]
    %v5905 = vld [vmem:[%s5903 + $0x8] sm:$0xff]
    %v5906 = vld [vmem:[%s5903 + $0x10] sm:$0xff]
    %v5907 = vld [vmem:[%s5903 + $0x18] sm:$0xff]
    %v5908 = vld [vmem:[%s5903 + $0x20] sm:$0xff]
    %v5909 = vld [vmem:[%s5903 + $0x28] sm:$0xff]
    %v5910 = vld [vmem:[%s5903 + $0x30] sm:$0xff]
    %v5911 = vld [vmem:[%s5903 + $0x38] sm:$0xff]
    %v5912 = vld [vmem:[%s5903 + $0x40] sm:$0xff]
    %v5913 = vld [vmem:[%s5903 + $0x48] sm:$0xff]
    %v5914 = vld [vmem:[%s5903 + $0x50] sm:$0xff]
    %v5915 = vld [vmem:[%s5903 + $0x58] sm:$0xff]
    %v5916 = vld [vmem:[%s5903 + $0x60] sm:$0xff]
    %v5917 = vld [vmem:[%s5903 + $0x68] sm:$0xff]
    %v5918 = vld [vmem:[%s5903 + $0x70] sm:$0xff]
    %5919 = vmatpush.msra.mxu0 0.0
    %v5920 = vand.u32 %v5918, 4294901760
    %5921 = vmatpush.msra.mxu0 %v5920
    %v5922 = vand.u32 %v5917, 4294901760
    %5923 = vmatpush.msra.mxu0 %v5922
    %v5924 = vand.u32 %v5916, 4294901760
    %5925 = vmatpush.msra.mxu0 %v5924
    %v5926 = vand.u32 %v5915, 4294901760
    %5927 = vmatpush.msra.mxu0 %v5926
    %v5928 = vand.u32 %v5914, 4294901760
    %5929 = vmatpush.msra.mxu0 %v5928
    %v5930 = vand.u32 %v5913, 4294901760
    %5931 = vmatpush.msra.mxu0 %v5930
    %v5932 = vand.u32 %v5912, 4294901760
    %5933 = vmatpush.msra.mxu0 %v5932
    %v5934 = vand.u32 %v5911, 4294901760
    %5935 = vmatpush.msra.mxu0 %v5934
    %v5936 = vand.u32 %v5910, 4294901760
    %5937 = vmatpush.msra.mxu0 %v5936
    %v5938 = vand.u32 %v5909, 4294901760
    %5939 = vmatpush.msra.mxu0 %v5938
    %v5940 = vand.u32 %v5908, 4294901760
    %5941 = vmatpush.msra.mxu0 %v5940
    %v5942 = vand.u32 %v5907, 4294901760
    %5943 = vmatpush.msra.mxu0 %v5942
    %v5944 = vand.u32 %v5906, 4294901760
    %5945 = vmatpush.msra.mxu0 %v5944
    %v5946 = vand.u32 %v5905, 4294901760
    %5947 = vmatpush.msra.mxu0 %v5946
    %v5948 = vand.u32 %v5904, 4294901760
    %5949 = vmatpush.msra.mxu0 %v5948
    %v5950 = vand.u32 %v5471, 4294901760
    %v5951 = vsub.f32 %v5471, %v5950
    %v5952 = vand.u32 %v5951, 4294901760
    %v5953 = vsub.f32 %v5951, %v5952
    %v5954 = vand.u32 %v5953, 4294901760
    %5955 = vmatmul.f32.gmra.mxu0 %v5954
    %v5956 = vpop.f32.mrf.mxu0
    %v5957 = vadd.f32 0.0, %v5956
    %v5958 = vand.u32 %v5474, 4294901760
    %v5959 = vsub.f32 %v5474, %v5958
    %v5960 = vand.u32 %v5959, 4294901760
    %v5961 = vsub.f32 %v5959, %v5960
    %v5962 = vand.u32 %v5961, 4294901760
    %5963 = vmatmul.f32.gmra.mxu0 %v5962
    %v5964 = vpop.f32.mrf.mxu0
    %v5965 = vadd.f32 0.0, %v5964
    %v5966 = vand.u32 %v5477, 4294901760
    %v5967 = vsub.f32 %v5477, %v5966
    %v5968 = vand.u32 %v5967, 4294901760
    %v5969 = vsub.f32 %v5967, %v5968
    %v5970 = vand.u32 %v5969, 4294901760
    %5971 = vmatmul.f32.gmra.mxu0 %v5970
    %v5972 = vpop.f32.mrf.mxu0
    %v5973 = vadd.f32 0.0, %v5972
    %v5974 = vand.u32 %v5480, 4294901760
    %v5975 = vsub.f32 %v5480, %v5974
    %v5976 = vand.u32 %v5975, 4294901760
    %v5977 = vsub.f32 %v5975, %v5976
    %v5978 = vand.u32 %v5977, 4294901760
    %5979 = vmatmul.f32.gmra.mxu0 %v5978
    %v5980 = vpop.f32.mrf.mxu0
    %v5981 = vadd.f32 0.0, %v5980
    %5982 = vdwg.mxu0
    %5983 = vmatpush.msra.mxu0 0.0
    %v5984 = vand.u32 %v5918, 4294901760
    %v5985 = vsub.f32 %v5918, %v5984
    %v5986 = vand.u32 %v5985, 4294901760
    %v5987 = vsub.f32 %v5985, %v5986
    %v5988 = vand.u32 %v5987, 4294901760
    %5989 = vmatpush.msra.mxu0 %v5988
    %v5990 = vand.u32 %v5917, 4294901760
    %v5991 = vsub.f32 %v5917, %v5990
    %v5992 = vand.u32 %v5991, 4294901760
    %v5993 = vsub.f32 %v5991, %v5992
    %v5994 = vand.u32 %v5993, 4294901760
    %5995 = vmatpush.msra.mxu0 %v5994
    %v5996 = vand.u32 %v5916, 4294901760
    %v5997 = vsub.f32 %v5916, %v5996
    %v5998 = vand.u32 %v5997, 4294901760
    %v5999 = vsub.f32 %v5997, %v5998
    %v6000 = vand.u32 %v5999, 4294901760
    %6001 = vmatpush.msra.mxu0 %v6000
    %v6002 = vand.u32 %v5915, 4294901760
    %v6003 = vsub.f32 %v5915, %v6002
    %v6004 = vand.u32 %v6003, 4294901760
    %v6005 = vsub.f32 %v6003, %v6004
    %v6006 = vand.u32 %v6005, 4294901760
    %6007 = vmatpush.msra.mxu0 %v6006
    %v6008 = vand.u32 %v5914, 4294901760
    %v6009 = vsub.f32 %v5914, %v6008
    %v6010 = vand.u32 %v6009, 4294901760
    %v6011 = vsub.f32 %v6009, %v6010
    %v6012 = vand.u32 %v6011, 4294901760
    %6013 = vmatpush.msra.mxu0 %v6012
    %v6014 = vand.u32 %v5913, 4294901760
    %v6015 = vsub.f32 %v5913, %v6014
    %v6016 = vand.u32 %v6015, 4294901760
    %v6017 = vsub.f32 %v6015, %v6016
    %v6018 = vand.u32 %v6017, 4294901760
    %6019 = vmatpush.msra.mxu0 %v6018
    %v6020 = vand.u32 %v5912, 4294901760
    %v6021 = vsub.f32 %v5912, %v6020
    %v6022 = vand.u32 %v6021, 4294901760
    %v6023 = vsub.f32 %v6021, %v6022
    %v6024 = vand.u32 %v6023, 4294901760
    %6025 = vmatpush.msra.mxu0 %v6024
    %v6026 = vand.u32 %v5911, 4294901760
    %v6027 = vsub.f32 %v5911, %v6026
    %v6028 = vand.u32 %v6027, 4294901760
    %v6029 = vsub.f32 %v6027, %v6028
    %v6030 = vand.u32 %v6029, 4294901760
    %6031 = vmatpush.msra.mxu0 %v6030
    %v6032 = vand.u32 %v5910, 4294901760
    %v6033 = vsub.f32 %v5910, %v6032
    %v6034 = vand.u32 %v6033, 4294901760
    %v6035 = vsub.f32 %v6033, %v6034
    %v6036 = vand.u32 %v6035, 4294901760
    %6037 = vmatpush.msra.mxu0 %v6036
    %v6038 = vand.u32 %v5909, 4294901760
    %v6039 = vsub.f32 %v5909, %v6038
    %v6040 = vand.u32 %v6039, 4294901760
    %v6041 = vsub.f32 %v6039, %v6040
    %v6042 = vand.u32 %v6041, 4294901760
    %6043 = vmatpush.msra.mxu0 %v6042
    %v6044 = vand.u32 %v5908, 4294901760
    %v6045 = vsub.f32 %v5908, %v6044
    %v6046 = vand.u32 %v6045, 4294901760
    %v6047 = vsub.f32 %v6045, %v6046
    %v6048 = vand.u32 %v6047, 4294901760
    %6049 = vmatpush.msra.mxu0 %v6048
    %v6050 = vand.u32 %v5907, 4294901760
    %v6051 = vsub.f32 %v5907, %v6050
    %v6052 = vand.u32 %v6051, 4294901760
    %v6053 = vsub.f32 %v6051, %v6052
    %v6054 = vand.u32 %v6053, 4294901760
    %6055 = vmatpush.msra.mxu0 %v6054
    %v6056 = vand.u32 %v5906, 4294901760
    %v6057 = vsub.f32 %v5906, %v6056
    %v6058 = vand.u32 %v6057, 4294901760
    %v6059 = vsub.f32 %v6057, %v6058
    %v6060 = vand.u32 %v6059, 4294901760
    %6061 = vmatpush.msra.mxu0 %v6060
    %v6062 = vand.u32 %v5905, 4294901760
    %v6063 = vsub.f32 %v5905, %v6062
    %v6064 = vand.u32 %v6063, 4294901760
    %v6065 = vsub.f32 %v6063, %v6064
    %v6066 = vand.u32 %v6065, 4294901760
    %6067 = vmatpush.msra.mxu0 %v6066
    %v6068 = vand.u32 %v5904, 4294901760
    %v6069 = vsub.f32 %v5904, %v6068
    %v6070 = vand.u32 %v6069, 4294901760
    %v6071 = vsub.f32 %v6069, %v6070
    %v6072 = vand.u32 %v6071, 4294901760
    %6073 = vmatpush.msra.mxu0 %v6072
    %v6074 = vand.u32 %v5471, 4294901760
    %6075 = vmatmul.f32.gmra.mxu0 %v6074
    %v6076 = vpop.f32.mrf.mxu0
    %v6077 = vadd.f32 %v5957, %v6076
    %v6078 = vand.u32 %v5474, 4294901760
    %6079 = vmatmul.f32.gmra.mxu0 %v6078
    %v6080 = vpop.f32.mrf.mxu0
    %v6081 = vadd.f32 %v5965, %v6080
    %v6082 = vand.u32 %v5477, 4294901760
    %6083 = vmatmul.f32.gmra.mxu0 %v6082
    %v6084 = vpop.f32.mrf.mxu0
    %v6085 = vadd.f32 %v5973, %v6084
    %v6086 = vand.u32 %v5480, 4294901760
    %6087 = vmatmul.f32.gmra.mxu0 %v6086
    %v6088 = vpop.f32.mrf.mxu0
    %v6089 = vadd.f32 %v5981, %v6088
    %6090 = vdwg.mxu0
    %6091 = vmatpush.msra.mxu0 0.0
    %v6092 = vand.u32 %v5918, 4294901760
    %v6093 = vsub.f32 %v5918, %v6092
    %6094 = vmatpush.msra.mxu0 %v6093
    %v6095 = vand.u32 %v5917, 4294901760
    %v6096 = vsub.f32 %v5917, %v6095
    %6097 = vmatpush.msra.mxu0 %v6096
    %v6098 = vand.u32 %v5916, 4294901760
    %v6099 = vsub.f32 %v5916, %v6098
    %6100 = vmatpush.msra.mxu0 %v6099
    %v6101 = vand.u32 %v5915, 4294901760
    %v6102 = vsub.f32 %v5915, %v6101
    %6103 = vmatpush.msra.mxu0 %v6102
    %v6104 = vand.u32 %v5914, 4294901760
    %v6105 = vsub.f32 %v5914, %v6104
    %6106 = vmatpush.msra.mxu0 %v6105
    %v6107 = vand.u32 %v5913, 4294901760
    %v6108 = vsub.f32 %v5913, %v6107
    %6109 = vmatpush.msra.mxu0 %v6108
    %v6110 = vand.u32 %v5912, 4294901760
    %v6111 = vsub.f32 %v5912, %v6110
    %6112 = vmatpush.msra.mxu0 %v6111
    %v6113 = vand.u32 %v5911, 4294901760
    %v6114 = vsub.f32 %v5911, %v6113
    %6115 = vmatpush.msra.mxu0 %v6114
    %v6116 = vand.u32 %v5910, 4294901760
    %v6117 = vsub.f32 %v5910, %v6116
    %6118 = vmatpush.msra.mxu0 %v6117
    %v6119 = vand.u32 %v5909, 4294901760
    %v6120 = vsub.f32 %v5909, %v6119
    %6121 = vmatpush.msra.mxu0 %v6120
    %v6122 = vand.u32 %v5908, 4294901760
    %v6123 = vsub.f32 %v5908, %v6122
    %6124 = vmatpush.msra.mxu0 %v6123
    %v6125 = vand.u32 %v5907, 4294901760
    %v6126 = vsub.f32 %v5907, %v6125
    %6127 = vmatpush.msra.mxu0 %v6126
    %v6128 = vand.u32 %v5906, 4294901760
    %v6129 = vsub.f32 %v5906, %v6128
    %6130 = vmatpush.msra.mxu0 %v6129
    %v6131 = vand.u32 %v5905, 4294901760
    %v6132 = vsub.f32 %v5905, %v6131
    %6133 = vmatpush.msra.mxu0 %v6132
    %v6134 = vand.u32 %v5904, 4294901760
    %v6135 = vsub.f32 %v5904, %v6134
    %6136 = vmatpush.msra.mxu0 %v6135
    %v6137 = vand.u32 %v5471, 4294901760
    %v6138 = vsub.f32 %v5471, %v6137
    %6139 = vmatmul.f32.gmra.mxu0 %v6138
    %v6140 = vpop.f32.mrf.mxu0
    %v6141 = vadd.f32 %v6077, %v6140
    %v6142 = vand.u32 %v5474, 4294901760
    %v6143 = vsub.f32 %v5474, %v6142
    %6144 = vmatmul.f32.gmra.mxu0 %v6143
    %v6145 = vpop.f32.mrf.mxu0
    %v6146 = vadd.f32 %v6081, %v6145
    %v6147 = vand.u32 %v5477, 4294901760
    %v6148 = vsub.f32 %v5477, %v6147
    %6149 = vmatmul.f32.gmra.mxu0 %v6148
    %v6150 = vpop.f32.mrf.mxu0
    %v6151 = vadd.f32 %v6085, %v6150
    %v6152 = vand.u32 %v5480, 4294901760
    %v6153 = vsub.f32 %v5480, %v6152
    %6154 = vmatmul.f32.gmra.mxu0 %v6153
    %v6155 = vpop.f32.mrf.mxu0
    %v6156 = vadd.f32 %v6089, %v6155
    %6157 = vdwg.mxu0
    %6158 = vmatpush.msra.mxu0 0.0
    %v6159 = vand.u32 %v5918, 4294901760
    %6160 = vmatpush.msra.mxu0 %v6159
    %v6161 = vand.u32 %v5917, 4294901760
    %6162 = vmatpush.msra.mxu0 %v6161
    %v6163 = vand.u32 %v5916, 4294901760
    %6164 = vmatpush.msra.mxu0 %v6163
    %v6165 = vand.u32 %v5915, 4294901760
    %6166 = vmatpush.msra.mxu0 %v6165
    %v6167 = vand.u32 %v5914, 4294901760
    %6168 = vmatpush.msra.mxu0 %v6167
    %v6169 = vand.u32 %v5913, 4294901760
    %6170 = vmatpush.msra.mxu0 %v6169
    %v6171 = vand.u32 %v5912, 4294901760
    %6172 = vmatpush.msra.mxu0 %v6171
    %v6173 = vand.u32 %v5911, 4294901760
    %6174 = vmatpush.msra.mxu0 %v6173
    %v6175 = vand.u32 %v5910, 4294901760
    %6176 = vmatpush.msra.mxu0 %v6175
    %v6177 = vand.u32 %v5909, 4294901760
    %6178 = vmatpush.msra.mxu0 %v6177
    %v6179 = vand.u32 %v5908, 4294901760
    %6180 = vmatpush.msra.mxu0 %v6179
    %v6181 = vand.u32 %v5907, 4294901760
    %6182 = vmatpush.msra.mxu0 %v6181
    %v6183 = vand.u32 %v5906, 4294901760
    %6184 = vmatpush.msra.mxu0 %v6183
    %v6185 = vand.u32 %v5905, 4294901760
    %6186 = vmatpush.msra.mxu0 %v6185
    %v6187 = vand.u32 %v5904, 4294901760
    %6188 = vmatpush.msra.mxu0 %v6187
    %v6189 = vand.u32 %v5471, 4294901760
    %v6190 = vsub.f32 %v5471, %v6189
    %v6191 = vand.u32 %v6190, 4294901760
    %6192 = vmatmul.f32.gmra.mxu0 %v6191
    %v6193 = vpop.f32.mrf.mxu0
    %v6194 = vadd.f32 %v6141, %v6193
    %v6195 = vand.u32 %v5474, 4294901760
    %v6196 = vsub.f32 %v5474, %v6195
    %v6197 = vand.u32 %v6196, 4294901760
    %6198 = vmatmul.f32.gmra.mxu0 %v6197
    %v6199 = vpop.f32.mrf.mxu0
    %v6200 = vadd.f32 %v6146, %v6199
    %v6201 = vand.u32 %v5477, 4294901760
    %v6202 = vsub.f32 %v5477, %v6201
    %v6203 = vand.u32 %v6202, 4294901760
    %6204 = vmatmul.f32.gmra.mxu0 %v6203
    %v6205 = vpop.f32.mrf.mxu0
    %v6206 = vadd.f32 %v6151, %v6205
    %v6207 = vand.u32 %v5480, 4294901760
    %v6208 = vsub.f32 %v5480, %v6207
    %v6209 = vand.u32 %v6208, 4294901760
    %6210 = vmatmul.f32.gmra.mxu0 %v6209
    %v6211 = vpop.f32.mrf.mxu0
    %v6212 = vadd.f32 %v6156, %v6211
    %6213 = vdwg.mxu0
    %6214 = vmatpush.msra.mxu0 0.0
    %v6215 = vand.u32 %v5918, 4294901760
    %v6216 = vsub.f32 %v5918, %v6215
    %v6217 = vand.u32 %v6216, 4294901760
    %6218 = vmatpush.msra.mxu0 %v6217
    %v6219 = vand.u32 %v5917, 4294901760
    %v6220 = vsub.f32 %v5917, %v6219
    %v6221 = vand.u32 %v6220, 4294901760
    %6222 = vmatpush.msra.mxu0 %v6221
    %v6223 = vand.u32 %v5916, 4294901760
    %v6224 = vsub.f32 %v5916, %v6223
    %v6225 = vand.u32 %v6224, 4294901760
    %6226 = vmatpush.msra.mxu0 %v6225
    %v6227 = vand.u32 %v5915, 4294901760
    %v6228 = vsub.f32 %v5915, %v6227
    %v6229 = vand.u32 %v6228, 4294901760
    %6230 = vmatpush.msra.mxu0 %v6229
    %v6231 = vand.u32 %v5914, 4294901760
    %v6232 = vsub.f32 %v5914, %v6231
    %v6233 = vand.u32 %v6232, 4294901760
    %6234 = vmatpush.msra.mxu0 %v6233
    %v6235 = vand.u32 %v5913, 4294901760
    %v6236 = vsub.f32 %v5913, %v6235
    %v6237 = vand.u32 %v6236, 4294901760
    %6238 = vmatpush.msra.mxu0 %v6237
    %v6239 = vand.u32 %v5912, 4294901760
    %v6240 = vsub.f32 %v5912, %v6239
    %v6241 = vand.u32 %v6240, 4294901760
    %6242 = vmatpush.msra.mxu0 %v6241
    %v6243 = vand.u32 %v5911, 4294901760
    %v6244 = vsub.f32 %v5911, %v6243
    %v6245 = vand.u32 %v6244, 4294901760
    %6246 = vmatpush.msra.mxu0 %v6245
    %v6247 = vand.u32 %v5910, 4294901760
    %v6248 = vsub.f32 %v5910, %v6247
    %v6249 = vand.u32 %v6248, 4294901760
    %6250 = vmatpush.msra.mxu0 %v6249
    %v6251 = vand.u32 %v5909, 4294901760
    %v6252 = vsub.f32 %v5909, %v6251
    %v6253 = vand.u32 %v6252, 4294901760
    %6254 = vmatpush.msra.mxu0 %v6253
    %v6255 = vand.u32 %v5908, 4294901760
    %v6256 = vsub.f32 %v5908, %v6255
    %v6257 = vand.u32 %v6256, 4294901760
    %6258 = vmatpush.msra.mxu0 %v6257
    %v6259 = vand.u32 %v5907, 4294901760
    %v6260 = vsub.f32 %v5907, %v6259
    %v6261 = vand.u32 %v6260, 4294901760
    %6262 = vmatpush.msra.mxu0 %v6261
    %v6263 = vand.u32 %v5906, 4294901760
    %v6264 = vsub.f32 %v5906, %v6263
    %v6265 = vand.u32 %v6264, 4294901760
    %6266 = vmatpush.msra.mxu0 %v6265
    %v6267 = vand.u32 %v5905, 4294901760
    %v6268 = vsub.f32 %v5905, %v6267
    %v6269 = vand.u32 %v6268, 4294901760
    %6270 = vmatpush.msra.mxu0 %v6269
    %v6271 = vand.u32 %v5904, 4294901760
    %v6272 = vsub.f32 %v5904, %v6271
    %v6273 = vand.u32 %v6272, 4294901760
    %6274 = vmatpush.msra.mxu0 %v6273
    %v6275 = vand.u32 %v5471, 4294901760
    %6276 = vmatmul.f32.gmra.mxu0 %v6275
    %v6277 = vpop.f32.mrf.mxu0
    %v6278 = vadd.f32 %v6194, %v6277
    %v6279 = vand.u32 %v5474, 4294901760
    %6280 = vmatmul.f32.gmra.mxu0 %v6279
    %v6281 = vpop.f32.mrf.mxu0
    %v6282 = vadd.f32 %v6200, %v6281
    %v6283 = vand.u32 %v5477, 4294901760
    %6284 = vmatmul.f32.gmra.mxu0 %v6283
    %v6285 = vpop.f32.mrf.mxu0
    %v6286 = vadd.f32 %v6206, %v6285
    %v6287 = vand.u32 %v5480, 4294901760
    %6288 = vmatmul.f32.gmra.mxu0 %v6287
    %v6289 = vpop.f32.mrf.mxu0
    %v6290 = vadd.f32 %v6212, %v6289
    %6291 = vdwg.mxu0
    %6292 = vmatpush.msra.mxu0 0.0
    %v6293 = vand.u32 %v5918, 4294901760
    %6294 = vmatpush.msra.mxu0 %v6293
    %v6295 = vand.u32 %v5917, 4294901760
    %6296 = vmatpush.msra.mxu0 %v6295
    %v6297 = vand.u32 %v5916, 4294901760
    %6298 = vmatpush.msra.mxu0 %v6297
    %v6299 = vand.u32 %v5915, 4294901760
    %6300 = vmatpush.msra.mxu0 %v6299
    %v6301 = vand.u32 %v5914, 4294901760
    %6302 = vmatpush.msra.mxu0 %v6301
    %v6303 = vand.u32 %v5913, 4294901760
    %6304 = vmatpush.msra.mxu0 %v6303
    %v6305 = vand.u32 %v5912, 4294901760
    %6306 = vmatpush.msra.mxu0 %v6305
    %v6307 = vand.u32 %v5911, 4294901760
    %6308 = vmatpush.msra.mxu0 %v6307
    %v6309 = vand.u32 %v5910, 4294901760
    %6310 = vmatpush.msra.mxu0 %v6309
    %v6311 = vand.u32 %v5909, 4294901760
    %6312 = vmatpush.msra.mxu0 %v6311
    %v6313 = vand.u32 %v5908, 4294901760
    %6314 = vmatpush.msra.mxu0 %v6313
    %v6315 = vand.u32 %v5907, 4294901760
    %6316 = vmatpush.msra.mxu0 %v6315
    %v6317 = vand.u32 %v5906, 4294901760
    %6318 = vmatpush.msra.mxu0 %v6317
    %v6319 = vand.u32 %v5905, 4294901760
    %6320 = vmatpush.msra.mxu0 %v6319
    %v6321 = vand.u32 %v5904, 4294901760
    %6322 = vmatpush.msra.mxu0 %v6321
    %v6323 = vand.u32 %v5471, 4294901760
    %6324 = vmatmul.f32.gmra.mxu0 %v6323
    %v6325 = vpop.f32.mrf.mxu0
    %v6326 = vadd.f32 %v6278, %v6325
    %v6327 = vand.u32 %v5474, 4294901760
    %6328 = vmatmul.f32.gmra.mxu0 %v6327
    %v6329 = vpop.f32.mrf.mxu0
    %v6330 = vadd.f32 %v6282, %v6329
    %v6331 = vand.u32 %v5477, 4294901760
    %6332 = vmatmul.f32.gmra.mxu0 %v6331
    %v6333 = vpop.f32.mrf.mxu0
    %v6334 = vadd.f32 %v6286, %v6333
    %v6335 = vand.u32 %v5480, 4294901760
    %6336 = vmatmul.f32.gmra.mxu0 %v6335
    %v6337 = vpop.f32.mrf.mxu0
    %v6338 = vadd.f32 %v6290, %v6337
    %6339 = vdwg.mxu0
    %v6340 = vmax.f32 %v5889, %v6326
    %v6341 = vmax.f32 %v5893, %v6330
    %v6342 = vmax.f32 %v5897, %v6334
    %v6343 = vmax.f32 %v5901, %v6338
    %s6344 = scalar_lea.vmem %s8, 240
    %v6345 = vld [vmem:[%s6344] sm:$0xff]
    %v6346 = vld [vmem:[%s6344 + $0x8] sm:$0xff]
    %v6347 = vld [vmem:[%s6344 + $0x10] sm:$0xff]
    %v6348 = vld [vmem:[%s6344 + $0x18] sm:$0xff]
    %v6349 = vld [vmem:[%s6344 + $0x20] sm:$0xff]
    %v6350 = vld [vmem:[%s6344 + $0x28] sm:$0xff]
    %v6351 = vld [vmem:[%s6344 + $0x30] sm:$0xff]
    %v6352 = vld [vmem:[%s6344 + $0x38] sm:$0xff]
    %v6353 = vld [vmem:[%s6344 + $0x40] sm:$0xff]
    %v6354 = vld [vmem:[%s6344 + $0x48] sm:$0xff]
    %v6355 = vld [vmem:[%s6344 + $0x50] sm:$0xff]
    %v6356 = vld [vmem:[%s6344 + $0x58] sm:$0xff]
    %v6357 = vld [vmem:[%s6344 + $0x60] sm:$0xff]
    %v6358 = vld [vmem:[%s6344 + $0x68] sm:$0xff]
    %v6359 = vld [vmem:[%s6344 + $0x70] sm:$0xff]
    %6360 = vmatpush.msra.mxu0 0.0
    %v6361 = vand.u32 %v6359, 4294901760
    %6362 = vmatpush.msra.mxu0 %v6361
    %v6363 = vand.u32 %v6358, 4294901760
    %6364 = vmatpush.msra.mxu0 %v6363
    %v6365 = vand.u32 %v6357, 4294901760
    %6366 = vmatpush.msra.mxu0 %v6365
    %v6367 = vand.u32 %v6356, 4294901760
    %6368 = vmatpush.msra.mxu0 %v6367
    %v6369 = vand.u32 %v6355, 4294901760
    %6370 = vmatpush.msra.mxu0 %v6369
    %v6371 = vand.u32 %v6354, 4294901760
    %6372 = vmatpush.msra.mxu0 %v6371
    %v6373 = vand.u32 %v6353, 4294901760
    %6374 = vmatpush.msra.mxu0 %v6373
    %v6375 = vand.u32 %v6352, 4294901760
    %6376 = vmatpush.msra.mxu0 %v6375
    %v6377 = vand.u32 %v6351, 4294901760
    %6378 = vmatpush.msra.mxu0 %v6377
    %v6379 = vand.u32 %v6350, 4294901760
    %6380 = vmatpush.msra.mxu0 %v6379
    %v6381 = vand.u32 %v6349, 4294901760
    %6382 = vmatpush.msra.mxu0 %v6381
    %v6383 = vand.u32 %v6348, 4294901760
    %6384 = vmatpush.msra.mxu0 %v6383
    %v6385 = vand.u32 %v6347, 4294901760
    %6386 = vmatpush.msra.mxu0 %v6385
    %v6387 = vand.u32 %v6346, 4294901760
    %6388 = vmatpush.msra.mxu0 %v6387
    %v6389 = vand.u32 %v6345, 4294901760
    %6390 = vmatpush.msra.mxu0 %v6389
    %v6391 = vand.u32 %v5471, 4294901760
    %v6392 = vsub.f32 %v5471, %v6391
    %v6393 = vand.u32 %v6392, 4294901760
    %v6394 = vsub.f32 %v6392, %v6393
    %v6395 = vand.u32 %v6394, 4294901760
    %6396 = vmatmul.f32.gmra.mxu0 %v6395
    %v6397 = vpop.f32.mrf.mxu0
    %v6398 = vadd.f32 0.0, %v6397
    %v6399 = vand.u32 %v5474, 4294901760
    %v6400 = vsub.f32 %v5474, %v6399
    %v6401 = vand.u32 %v6400, 4294901760
    %v6402 = vsub.f32 %v6400, %v6401
    %v6403 = vand.u32 %v6402, 4294901760
    %6404 = vmatmul.f32.gmra.mxu0 %v6403
    %v6405 = vpop.f32.mrf.mxu0
    %v6406 = vadd.f32 0.0, %v6405
    %v6407 = vand.u32 %v5477, 4294901760
    %v6408 = vsub.f32 %v5477, %v6407
    %v6409 = vand.u32 %v6408, 4294901760
    %v6410 = vsub.f32 %v6408, %v6409
    %v6411 = vand.u32 %v6410, 4294901760
    %6412 = vmatmul.f32.gmra.mxu0 %v6411
    %v6413 = vpop.f32.mrf.mxu0
    %v6414 = vadd.f32 0.0, %v6413
    %v6415 = vand.u32 %v5480, 4294901760
    %v6416 = vsub.f32 %v5480, %v6415
    %v6417 = vand.u32 %v6416, 4294901760
    %v6418 = vsub.f32 %v6416, %v6417
    %v6419 = vand.u32 %v6418, 4294901760
    %6420 = vmatmul.f32.gmra.mxu0 %v6419
    %v6421 = vpop.f32.mrf.mxu0
    %v6422 = vadd.f32 0.0, %v6421
    %6423 = vdwg.mxu0
    %6424 = vmatpush.msra.mxu0 0.0
    %v6425 = vand.u32 %v6359, 4294901760
    %v6426 = vsub.f32 %v6359, %v6425
    %v6427 = vand.u32 %v6426, 4294901760
    %v6428 = vsub.f32 %v6426, %v6427
    %v6429 = vand.u32 %v6428, 4294901760
    %6430 = vmatpush.msra.mxu0 %v6429
    %v6431 = vand.u32 %v6358, 4294901760
    %v6432 = vsub.f32 %v6358, %v6431
    %v6433 = vand.u32 %v6432, 4294901760
    %v6434 = vsub.f32 %v6432, %v6433
    %v6435 = vand.u32 %v6434, 4294901760
    %6436 = vmatpush.msra.mxu0 %v6435
    %v6437 = vand.u32 %v6357, 4294901760
    %v6438 = vsub.f32 %v6357, %v6437
    %v6439 = vand.u32 %v6438, 4294901760
    %v6440 = vsub.f32 %v6438, %v6439
    %v6441 = vand.u32 %v6440, 4294901760
    %6442 = vmatpush.msra.mxu0 %v6441
    %v6443 = vand.u32 %v6356, 4294901760
    %v6444 = vsub.f32 %v6356, %v6443
    %v6445 = vand.u32 %v6444, 4294901760
    %v6446 = vsub.f32 %v6444, %v6445
    %v6447 = vand.u32 %v6446, 4294901760
    %6448 = vmatpush.msra.mxu0 %v6447
    %v6449 = vand.u32 %v6355, 4294901760
    %v6450 = vsub.f32 %v6355, %v6449
    %v6451 = vand.u32 %v6450, 4294901760
    %v6452 = vsub.f32 %v6450, %v6451
    %v6453 = vand.u32 %v6452, 4294901760
    %6454 = vmatpush.msra.mxu0 %v6453
    %v6455 = vand.u32 %v6354, 4294901760
    %v6456 = vsub.f32 %v6354, %v6455
    %v6457 = vand.u32 %v6456, 4294901760
    %v6458 = vsub.f32 %v6456, %v6457
    %v6459 = vand.u32 %v6458, 4294901760
    %6460 = vmatpush.msra.mxu0 %v6459
    %v6461 = vand.u32 %v6353, 4294901760
    %v6462 = vsub.f32 %v6353, %v6461
    %v6463 = vand.u32 %v6462, 4294901760
    %v6464 = vsub.f32 %v6462, %v6463
    %v6465 = vand.u32 %v6464, 4294901760
    %6466 = vmatpush.msra.mxu0 %v6465
    %v6467 = vand.u32 %v6352, 4294901760
    %v6468 = vsub.f32 %v6352, %v6467
    %v6469 = vand.u32 %v6468, 4294901760
    %v6470 = vsub.f32 %v6468, %v6469
    %v6471 = vand.u32 %v6470, 4294901760
    %6472 = vmatpush.msra.mxu0 %v6471
    %v6473 = vand.u32 %v6351, 4294901760
    %v6474 = vsub.f32 %v6351, %v6473
    %v6475 = vand.u32 %v6474, 4294901760
    %v6476 = vsub.f32 %v6474, %v6475
    %v6477 = vand.u32 %v6476, 4294901760
    %6478 = vmatpush.msra.mxu0 %v6477
    %v6479 = vand.u32 %v6350, 4294901760
    %v6480 = vsub.f32 %v6350, %v6479
    %v6481 = vand.u32 %v6480, 4294901760
    %v6482 = vsub.f32 %v6480, %v6481
    %v6483 = vand.u32 %v6482, 4294901760
    %6484 = vmatpush.msra.mxu0 %v6483
    %v6485 = vand.u32 %v6349, 4294901760
    %v6486 = vsub.f32 %v6349, %v6485
    %v6487 = vand.u32 %v6486, 4294901760
    %v6488 = vsub.f32 %v6486, %v6487
    %v6489 = vand.u32 %v6488, 4294901760
    %6490 = vmatpush.msra.mxu0 %v6489
    %v6491 = vand.u32 %v6348, 4294901760
    %v6492 = vsub.f32 %v6348, %v6491
    %v6493 = vand.u32 %v6492, 4294901760
    %v6494 = vsub.f32 %v6492, %v6493
    %v6495 = vand.u32 %v6494, 4294901760
    %6496 = vmatpush.msra.mxu0 %v6495
    %v6497 = vand.u32 %v6347, 4294901760
    %v6498 = vsub.f32 %v6347, %v6497
    %v6499 = vand.u32 %v6498, 4294901760
    %v6500 = vsub.f32 %v6498, %v6499
    %v6501 = vand.u32 %v6500, 4294901760
    %6502 = vmatpush.msra.mxu0 %v6501
    %v6503 = vand.u32 %v6346, 4294901760
    %v6504 = vsub.f32 %v6346, %v6503
    %v6505 = vand.u32 %v6504, 4294901760
    %v6506 = vsub.f32 %v6504, %v6505
    %v6507 = vand.u32 %v6506, 4294901760
    %6508 = vmatpush.msra.mxu0 %v6507
    %v6509 = vand.u32 %v6345, 4294901760
    %v6510 = vsub.f32 %v6345, %v6509
    %v6511 = vand.u32 %v6510, 4294901760
    %v6512 = vsub.f32 %v6510, %v6511
    %v6513 = vand.u32 %v6512, 4294901760
    %6514 = vmatpush.msra.mxu0 %v6513
    %v6515 = vand.u32 %v5471, 4294901760
    %6516 = vmatmul.f32.gmra.mxu0 %v6515
    %v6517 = vpop.f32.mrf.mxu0
    %v6518 = vadd.f32 %v6398, %v6517
    %v6519 = vand.u32 %v5474, 4294901760
    %6520 = vmatmul.f32.gmra.mxu0 %v6519
    %v6521 = vpop.f32.mrf.mxu0
    %v6522 = vadd.f32 %v6406, %v6521
    %v6523 = vand.u32 %v5477, 4294901760
    %6524 = vmatmul.f32.gmra.mxu0 %v6523
    %v6525 = vpop.f32.mrf.mxu0
    %v6526 = vadd.f32 %v6414, %v6525
    %v6527 = vand.u32 %v5480, 4294901760
    %6528 = vmatmul.f32.gmra.mxu0 %v6527
    %v6529 = vpop.f32.mrf.mxu0
    %v6530 = vadd.f32 %v6422, %v6529
    %6531 = vdwg.mxu0
    %6532 = vmatpush.msra.mxu0 0.0
    %v6533 = vand.u32 %v6359, 4294901760
    %v6534 = vsub.f32 %v6359, %v6533
    %6535 = vmatpush.msra.mxu0 %v6534
    %v6536 = vand.u32 %v6358, 4294901760
    %v6537 = vsub.f32 %v6358, %v6536
    %6538 = vmatpush.msra.mxu0 %v6537
    %v6539 = vand.u32 %v6357, 4294901760
    %v6540 = vsub.f32 %v6357, %v6539
    %6541 = vmatpush.msra.mxu0 %v6540
    %v6542 = vand.u32 %v6356, 4294901760
    %v6543 = vsub.f32 %v6356, %v6542
    %6544 = vmatpush.msra.mxu0 %v6543
    %v6545 = vand.u32 %v6355, 4294901760
    %v6546 = vsub.f32 %v6355, %v6545
    %6547 = vmatpush.msra.mxu0 %v6546
    %v6548 = vand.u32 %v6354, 4294901760
    %v6549 = vsub.f32 %v6354, %v6548
    %6550 = vmatpush.msra.mxu0 %v6549
    %v6551 = vand.u32 %v6353, 4294901760
    %v6552 = vsub.f32 %v6353, %v6551
    %6553 = vmatpush.msra.mxu0 %v6552
    %v6554 = vand.u32 %v6352, 4294901760
    %v6555 = vsub.f32 %v6352, %v6554
    %6556 = vmatpush.msra.mxu0 %v6555
    %v6557 = vand.u32 %v6351, 4294901760
    %v6558 = vsub.f32 %v6351, %v6557
    %6559 = vmatpush.msra.mxu0 %v6558
    %v6560 = vand.u32 %v6350, 4294901760
    %v6561 = vsub.f32 %v6350, %v6560
    %6562 = vmatpush.msra.mxu0 %v6561
    %v6563 = vand.u32 %v6349, 4294901760
    %v6564 = vsub.f32 %v6349, %v6563
    %6565 = vmatpush.msra.mxu0 %v6564
    %v6566 = vand.u32 %v6348, 4294901760
    %v6567 = vsub.f32 %v6348, %v6566
    %6568 = vmatpush.msra.mxu0 %v6567
    %v6569 = vand.u32 %v6347, 4294901760
    %v6570 = vsub.f32 %v6347, %v6569
    %6571 = vmatpush.msra.mxu0 %v6570
    %v6572 = vand.u32 %v6346, 4294901760
    %v6573 = vsub.f32 %v6346, %v6572
    %6574 = vmatpush.msra.mxu0 %v6573
    %v6575 = vand.u32 %v6345, 4294901760
    %v6576 = vsub.f32 %v6345, %v6575
    %6577 = vmatpush.msra.mxu0 %v6576
    %v6578 = vand.u32 %v5471, 4294901760
    %v6579 = vsub.f32 %v5471, %v6578
    %6580 = vmatmul.f32.gmra.mxu0 %v6579
    %v6581 = vpop.f32.mrf.mxu0
    %v6582 = vadd.f32 %v6518, %v6581
    %v6583 = vand.u32 %v5474, 4294901760
    %v6584 = vsub.f32 %v5474, %v6583
    %6585 = vmatmul.f32.gmra.mxu0 %v6584
    %v6586 = vpop.f32.mrf.mxu0
    %v6587 = vadd.f32 %v6522, %v6586
    %v6588 = vand.u32 %v5477, 4294901760
    %v6589 = vsub.f32 %v5477, %v6588
    %6590 = vmatmul.f32.gmra.mxu0 %v6589
    %v6591 = vpop.f32.mrf.mxu0
    %v6592 = vadd.f32 %v6526, %v6591
    %v6593 = vand.u32 %v5480, 4294901760
    %v6594 = vsub.f32 %v5480, %v6593
    %6595 = vmatmul.f32.gmra.mxu0 %v6594
    %v6596 = vpop.f32.mrf.mxu0
    %v6597 = vadd.f32 %v6530, %v6596
    %6598 = vdwg.mxu0
    %6599 = vmatpush.msra.mxu0 0.0
    %v6600 = vand.u32 %v6359, 4294901760
    %6601 = vmatpush.msra.mxu0 %v6600
    %v6602 = vand.u32 %v6358, 4294901760
    %6603 = vmatpush.msra.mxu0 %v6602
    %v6604 = vand.u32 %v6357, 4294901760
    %6605 = vmatpush.msra.mxu0 %v6604
    %v6606 = vand.u32 %v6356, 4294901760
    %6607 = vmatpush.msra.mxu0 %v6606
    %v6608 = vand.u32 %v6355, 4294901760
    %6609 = vmatpush.msra.mxu0 %v6608
    %v6610 = vand.u32 %v6354, 4294901760
    %6611 = vmatpush.msra.mxu0 %v6610
    %v6612 = vand.u32 %v6353, 4294901760
    %6613 = vmatpush.msra.mxu0 %v6612
    %v6614 = vand.u32 %v6352, 4294901760
    %6615 = vmatpush.msra.mxu0 %v6614
    %v6616 = vand.u32 %v6351, 4294901760
    %6617 = vmatpush.msra.mxu0 %v6616
    %v6618 = vand.u32 %v6350, 4294901760
    %6619 = vmatpush.msra.mxu0 %v6618
    %v6620 = vand.u32 %v6349, 4294901760
    %6621 = vmatpush.msra.mxu0 %v6620
    %v6622 = vand.u32 %v6348, 4294901760
    %6623 = vmatpush.msra.mxu0 %v6622
    %v6624 = vand.u32 %v6347, 4294901760
    %6625 = vmatpush.msra.mxu0 %v6624
    %v6626 = vand.u32 %v6346, 4294901760
    %6627 = vmatpush.msra.mxu0 %v6626
    %v6628 = vand.u32 %v6345, 4294901760
    %6629 = vmatpush.msra.mxu0 %v6628
    %v6630 = vand.u32 %v5471, 4294901760
    %v6631 = vsub.f32 %v5471, %v6630
    %v6632 = vand.u32 %v6631, 4294901760
    %6633 = vmatmul.f32.gmra.mxu0 %v6632
    %v6634 = vpop.f32.mrf.mxu0
    %v6635 = vadd.f32 %v6582, %v6634
    %v6636 = vand.u32 %v5474, 4294901760
    %v6637 = vsub.f32 %v5474, %v6636
    %v6638 = vand.u32 %v6637, 4294901760
    %6639 = vmatmul.f32.gmra.mxu0 %v6638
    %v6640 = vpop.f32.mrf.mxu0
    %v6641 = vadd.f32 %v6587, %v6640
    %v6642 = vand.u32 %v5477, 4294901760
    %v6643 = vsub.f32 %v5477, %v6642
    %v6644 = vand.u32 %v6643, 4294901760
    %6645 = vmatmul.f32.gmra.mxu0 %v6644
    %v6646 = vpop.f32.mrf.mxu0
    %v6647 = vadd.f32 %v6592, %v6646
    %v6648 = vand.u32 %v5480, 4294901760
    %v6649 = vsub.f32 %v5480, %v6648
    %v6650 = vand.u32 %v6649, 4294901760
    %6651 = vmatmul.f32.gmra.mxu0 %v6650
    %v6652 = vpop.f32.mrf.mxu0
    %v6653 = vadd.f32 %v6597, %v6652
    %6654 = vdwg.mxu0
    %6655 = vmatpush.msra.mxu0 0.0
    %v6656 = vand.u32 %v6359, 4294901760
    %v6657 = vsub.f32 %v6359, %v6656
    %v6658 = vand.u32 %v6657, 4294901760
    %6659 = vmatpush.msra.mxu0 %v6658
    %v6660 = vand.u32 %v6358, 4294901760
    %v6661 = vsub.f32 %v6358, %v6660
    %v6662 = vand.u32 %v6661, 4294901760
    %6663 = vmatpush.msra.mxu0 %v6662
    %v6664 = vand.u32 %v6357, 4294901760
    %v6665 = vsub.f32 %v6357, %v6664
    %v6666 = vand.u32 %v6665, 4294901760
    %6667 = vmatpush.msra.mxu0 %v6666
    %v6668 = vand.u32 %v6356, 4294901760
    %v6669 = vsub.f32 %v6356, %v6668
    %v6670 = vand.u32 %v6669, 4294901760
    %6671 = vmatpush.msra.mxu0 %v6670
    %v6672 = vand.u32 %v6355, 4294901760
    %v6673 = vsub.f32 %v6355, %v6672
    %v6674 = vand.u32 %v6673, 4294901760
    %6675 = vmatpush.msra.mxu0 %v6674
    %v6676 = vand.u32 %v6354, 4294901760
    %v6677 = vsub.f32 %v6354, %v6676
    %v6678 = vand.u32 %v6677, 4294901760
    %6679 = vmatpush.msra.mxu0 %v6678
    %v6680 = vand.u32 %v6353, 4294901760
    %v6681 = vsub.f32 %v6353, %v6680
    %v6682 = vand.u32 %v6681, 4294901760
    %6683 = vmatpush.msra.mxu0 %v6682
    %v6684 = vand.u32 %v6352, 4294901760
    %v6685 = vsub.f32 %v6352, %v6684
    %v6686 = vand.u32 %v6685, 4294901760
    %6687 = vmatpush.msra.mxu0 %v6686
    %v6688 = vand.u32 %v6351, 4294901760
    %v6689 = vsub.f32 %v6351, %v6688
    %v6690 = vand.u32 %v6689, 4294901760
    %6691 = vmatpush.msra.mxu0 %v6690
    %v6692 = vand.u32 %v6350, 4294901760
    %v6693 = vsub.f32 %v6350, %v6692
    %v6694 = vand.u32 %v6693, 4294901760
    %6695 = vmatpush.msra.mxu0 %v6694
    %v6696 = vand.u32 %v6349, 4294901760
    %v6697 = vsub.f32 %v6349, %v6696
    %v6698 = vand.u32 %v6697, 4294901760
    %6699 = vmatpush.msra.mxu0 %v6698
    %v6700 = vand.u32 %v6348, 4294901760
    %v6701 = vsub.f32 %v6348, %v6700
    %v6702 = vand.u32 %v6701, 4294901760
    %6703 = vmatpush.msra.mxu0 %v6702
    %v6704 = vand.u32 %v6347, 4294901760
    %v6705 = vsub.f32 %v6347, %v6704
    %v6706 = vand.u32 %v6705, 4294901760
    %6707 = vmatpush.msra.mxu0 %v6706
    %v6708 = vand.u32 %v6346, 4294901760
    %v6709 = vsub.f32 %v6346, %v6708
    %v6710 = vand.u32 %v6709, 4294901760
    %6711 = vmatpush.msra.mxu0 %v6710
    %v6712 = vand.u32 %v6345, 4294901760
    %v6713 = vsub.f32 %v6345, %v6712
    %v6714 = vand.u32 %v6713, 4294901760
    %6715 = vmatpush.msra.mxu0 %v6714
    %v6716 = vand.u32 %v5471, 4294901760
    %6717 = vmatmul.f32.gmra.mxu0 %v6716
    %v6718 = vpop.f32.mrf.mxu0
    %v6719 = vadd.f32 %v6635, %v6718
    %v6720 = vand.u32 %v5474, 4294901760
    %6721 = vmatmul.f32.gmra.mxu0 %v6720
    %v6722 = vpop.f32.mrf.mxu0
    %v6723 = vadd.f32 %v6641, %v6722
    %v6724 = vand.u32 %v5477, 4294901760
    %6725 = vmatmul.f32.gmra.mxu0 %v6724
    %v6726 = vpop.f32.mrf.mxu0
    %v6727 = vadd.f32 %v6647, %v6726
    %v6728 = vand.u32 %v5480, 4294901760
    %6729 = vmatmul.f32.gmra.mxu0 %v6728
    %v6730 = vpop.f32.mrf.mxu0
    %v6731 = vadd.f32 %v6653, %v6730
    %6732 = vdwg.mxu0
    %6733 = vmatpush.msra.mxu0 0.0
    %v6734 = vand.u32 %v6359, 4294901760
    %6735 = vmatpush.msra.mxu0 %v6734
    %v6736 = vand.u32 %v6358, 4294901760
    %6737 = vmatpush.msra.mxu0 %v6736
    %v6738 = vand.u32 %v6357, 4294901760
    %6739 = vmatpush.msra.mxu0 %v6738
    %v6740 = vand.u32 %v6356, 4294901760
    %6741 = vmatpush.msra.mxu0 %v6740
    %v6742 = vand.u32 %v6355, 4294901760
    %6743 = vmatpush.msra.mxu0 %v6742
    %v6744 = vand.u32 %v6354, 4294901760
    %6745 = vmatpush.msra.mxu0 %v6744
    %v6746 = vand.u32 %v6353, 4294901760
    %6747 = vmatpush.msra.mxu0 %v6746
    %v6748 = vand.u32 %v6352, 4294901760
    %6749 = vmatpush.msra.mxu0 %v6748
    %v6750 = vand.u32 %v6351, 4294901760
    %6751 = vmatpush.msra.mxu0 %v6750
    %v6752 = vand.u32 %v6350, 4294901760
    %6753 = vmatpush.msra.mxu0 %v6752
    %v6754 = vand.u32 %v6349, 4294901760
    %6755 = vmatpush.msra.mxu0 %v6754
    %v6756 = vand.u32 %v6348, 4294901760
    %6757 = vmatpush.msra.mxu0 %v6756
    %v6758 = vand.u32 %v6347, 4294901760
    %6759 = vmatpush.msra.mxu0 %v6758
    %v6760 = vand.u32 %v6346, 4294901760
    %6761 = vmatpush.msra.mxu0 %v6760
    %v6762 = vand.u32 %v6345, 4294901760
    %6763 = vmatpush.msra.mxu0 %v6762
    %v6764 = vand.u32 %v5471, 4294901760
    %6765 = vmatmul.f32.gmra.mxu0 %v6764
    %v6766 = vpop.f32.mrf.mxu0
    %v6767 = vadd.f32 %v6719, %v6766
    %v6768 = vand.u32 %v5474, 4294901760
    %6769 = vmatmul.f32.gmra.mxu0 %v6768
    %v6770 = vpop.f32.mrf.mxu0
    %v6771 = vadd.f32 %v6723, %v6770
    %v6772 = vand.u32 %v5477, 4294901760
    %6773 = vmatmul.f32.gmra.mxu0 %v6772
    %v6774 = vpop.f32.mrf.mxu0
    %v6775 = vadd.f32 %v6727, %v6774
    %v6776 = vand.u32 %v5480, 4294901760
    %6777 = vmatmul.f32.gmra.mxu0 %v6776
    %v6778 = vpop.f32.mrf.mxu0
    %v6779 = vadd.f32 %v6731, %v6778
    %6780 = vdwg.mxu0
    %v6781 = vmax.f32 %v6340, %v6767
    %v6782 = vmax.f32 %v6341, %v6771
    %v6783 = vmax.f32 %v6342, %v6775
    %v6784 = vmax.f32 %v6343, %v6779
    %vm6785 = vcmask 326656
    %6786 = vst.msk [vmem:[#allocation2] sm:$0xff] %vm6785, %v6781
    %6787 = vst.msk [vmem:[#allocation2 + $0x8] sm:$0xff] %vm6785, %v6782
    %6788 = vst.msk [vmem:[#allocation2 + $0x10] sm:$0xff] %vm6785, %v6783
    %6789 = vst.msk [vmem:[#allocation2 + $0x18] sm:$0xff] %vm6785, %v6784
    // Predicated region
    $region46: #{tpu_custom_call.1} parent=1 // pred_check
      _
    $region47: #{tpu_custom_call.1} parent=1 // pred_check_branch
      %6791 = sbr.rel (0) target = $region49
    $region48: #{tpu_custom_call.1} parent=1 // pred_region
      %6793 = vsyncadd [#allocation3], 0
      %s6794 = sshll.u32 [#allocation2], 4
      %s6795 = int_to_ptr.vmem [resolvable:$true] %s6794
      %s6796 = sshll.u32 %s11, 4
      %s6797 = int_to_ptr.hbm [resolvable:$true] %s6796
      %6802 = dma.vmem_to_hbm [thread:$0]  %s6795, 512, %s6797, [#allocation3], 128, 128, 8
    $region49: #{tpu_custom_call.1} parent=1 // pred_fallthru
      _
    // Predicated region
    $region50: #{tpu_custom_call.1} parent=1 // pred_check
      _
    $region51: #{tpu_custom_call.1} parent=1 // pred_check_branch
      %6804 = sbr.rel (0) target = $region53
    $region52: #{tpu_custom_call.1} parent=1 // pred_region
      %6806 = dma.done [#allocation3], 512
    $region53: #{tpu_custom_call.1} parent=1 // pred_fallthru
      _
    %6807 = vsyncpa [#allocation3], 1

</llo_original>
